<compile_context>
chip_gen: v6e
topology: v6e:2x2x1
jax: 0.10.0
libtpu: 0.0.40
codegen_flags: <defaults>
</compile_context>

<pallas_src>
import math
from functools import partial

import jax
import jax.numpy as jnp
from jax.experimental import pallas as pl
from jax.experimental.pallas import tpu as pltpu

F32 = jnp.float32
REVIN_EPS = 1e-5
LN_EPS = 1e-5


# ----------------------------- in-kernel helpers -----------------------------

def _softplus(x):
    return jnp.maximum(x, 0.0) + jnp.log1p(jnp.exp(-jnp.abs(x)))


def _silu(x):
    return x * jax.nn.sigmoid(x)


def _layernorm(x, g, b):
    mu = jnp.mean(x, axis=-1, keepdims=True)
    var = jnp.mean((x - mu) ** 2, axis=-1, keepdims=True)
    return (x - mu) * jax.lax.rsqrt(var + LN_EPS) * g + b


# --------------------------------- fused kernel -------------------------------

def _sdmamba_fused_kernel(
        x_ref,
        revin_w_ref, revin_b_ref, w_emb_ref, b_emb_ref,
        ln_f_g_ref, ln_f_b_ref, w_proj_ref, b_proj_ref,
        m_win_ref, m_convw_ref, m_convb_ref, m_wbc_ref, m_wdelta_ref,
        m_bdt_ref, m_alog_ref, m_d_ref, m_wout_ref,
        f_g1_ref, f_b1_ref, f_w1_ref, f_bb1_ref,
        f_w2_ref, f_bb2_ref, f_g2_ref, f_b2_ref,
        out_ref,
        *, e_layers, n_dir, d_inner, d_conv, d_state, n_tokens, activation):
    """Full SDMamba forward for one batch element (tokens = variates on sublanes)."""
    x = x_ref[0]                                            # [N, L]

    # ---- RevIN normalization (per variate, over the time axis; unbiased=False) ----
    mu = jnp.mean(x, axis=1, keepdims=True)                 # [N, 1]
    var = jnp.mean((x - mu) ** 2, axis=1, keepdims=True)
    std = jnp.sqrt(var + REVIN_EPS)
    xn = (x - mu) / std * revin_w_ref[...] + revin_b_ref[...]

    # ---- inverted data embedding: Linear over the time axis ----
    xcur = jnp.dot(xn, w_emb_ref[...], preferred_element_type=F32) + b_emb_ref[...]

    # hoisted loop-invariant iota (row index over tokens, broadcast over lanes)
    row_id = jax.lax.broadcasted_iota(jnp.int32, (n_tokens, d_inner), 0)

    # ----------------------------- Mamba block --------------------------------
    def mamba_block(xin, blk, reverse):
        # weights for this (layer, direction) block; loaded once, stay in VMEM
        w_in = m_win_ref[blk]                               # [d_model, 2*d_inner]
        conv_w = m_convw_ref[blk]                           # [d_conv, d_inner]
        conv_b = m_convb_ref[blk]                           # [1, d_inner]
        w_bc = m_wbc_ref[blk]                               # [2*d_state, d_inner]
        w_dlt = m_wdelta_ref[blk]                           # [d_inner, d_inner] (pre-folded)
        b_dt = m_bdt_ref[blk]                               # [1, d_inner]
        a_t = -jnp.exp(m_alog_ref[blk])                     # [d_state, d_inner]
        d_row = m_d_ref[blk]                                # [1, d_inner]
        w_out = m_wout_ref[blk]                             # [d_inner, d_model]

        xz = jnp.dot(xin, w_in, preferred_element_type=F32)  # [N, 2*d_inner]
        xc = xz[:, :d_inner]
        z = xz[:, d_inner:]

        # depthwise conv along tokens: causal for the forward scan, anti-causal
        # for the reverse scan (flip -> conv -> flip expressed in original order).
        # tap j uses weight conv_w[d_conv-1-j] on xc shifted by j tokens.
        xconv = conv_w[d_conv - 1:d_conv, :] * xc            # j = 0 tap
        for j in range(1, d_conv):
            zpad = jnp.zeros((j, d_inner), F32)
            if reverse:
                shifted = jnp.concatenate([xc[j:, :], zpad], axis=0)              # row s -> xc[s+j]
            else:
                shifted = jnp.concatenate([zpad, xc[:n_tokens - j, :]], axis=0)   # row t -> xc[t-j]
            xconv = xconv + conv_w[d_conv - 1 - j:d_conv - j, :] * shifted
        u = _silu(xconv + conv_b)                            # [N, d_inner]

        # merged B/C projection emitted directly as [d_state, tokens] (A @ B^T form)
        bc_t = jax.lax.dot_general(w_bc, u, (((1,), (1,)), ((), ())),
                                   preferred_element_type=F32)   # [2*d_state, N]
        b_cols = bc_t[:d_state, :]                           # [d_state, N]
        c_cols = bc_t[d_state:, :]                           # [d_state, N]

        # delta path: x_proj_dt @ dt_proj pre-folded into one weight
        delta = _softplus(jnp.dot(u, w_dlt, preferred_element_type=F32) + b_dt)  # [N, d_inner]

        # selective scan, vectorized over d_state; per-token terms precomputed
        # off the serial dependence path (statically unrolled, tiny N).
        du = delta * u
        da_all = [jnp.exp(delta[t:t + 1, :] * a_t) for t in range(n_tokens)]      # [d_state, d_inner]
        dbu_all = [du[t:t + 1, :] * b_cols[:, t:t + 1] for t in range(n_tokens)]  # [d_state, d_inner]

        h = jnp.zeros((d_state, d_inner), F32)
        y = d_row * u                                        # skip term D * u, all tokens at once
        order = range(n_tokens - 1, -1, -1) if reverse else range(n_tokens)
        for t in order:
            h = da_all[t] * h + dbu_all[t]
            y_t = jnp.sum(h * c_cols[:, t:t + 1], axis=0, keepdims=True)   # [1, d_inner]
            y = y + jnp.where(row_id == t, y_t, 0.0)         # place row t (no concat of rows)

        y = y * _silu(z)
        return jnp.dot(y, w_out, preferred_element_type=F32)  # [N, d_model]

    # ------------------------------ FFN block ---------------------------------
    def ffn_block(xin, new_x, li):
        xres = xin + new_x                                   # residual (dropout = identity)
        xn1 = _layernorm(xres, f_g1_ref[li], f_b1_ref[li])
        hdn = jnp.dot(xn1, f_w1_ref[li], preferred_element_type=F32) + f_bb1_ref[li]
        if activation == "relu":
            hdn = jnp.maximum(hdn, 0.0)
        else:
            hdn = jax.nn.gelu(hdn, approximate=False)
        y2 = jnp.dot(hdn, f_w2_ref[li], preferred_element_type=F32) + f_bb2_ref[li]
        return _layernorm(xn1 + y2, f_g2_ref[li], f_b2_ref[li])

    # ------------------------------ encoder ------------------------------------
    for li in range(e_layers):
        blk = li * n_dir
        new_x = mamba_block(xcur, blk, reverse=False)
        if n_dir == 2:
            new_x = new_x + mamba_block(xcur, blk + 1, reverse=True)
        xcur = ffn_block(xcur, new_x, li)

    # ---- final LayerNorm + projector + RevIN denorm (mean/std never left VMEM) ----
    e = _layernorm(xcur, ln_f_g_ref[...], ln_f_b_ref[...])
    proj = jnp.dot(e, w_proj_ref[...], preferred_element_type=F32) + b_proj_ref[...]
    dn = (proj - revin_b_ref[...]) / (revin_w_ref[...] + REVIN_EPS * REVIN_EPS)
    out_ref[0] = dn * std + mu                               # [N, future]


# --------------------------- pallas_call wrapper ------------------------------

def _batched_spec(shape):
    nd = len(shape)
    return pl.BlockSpec((1,) + tuple(shape), lambda b, _nd=nd: (b,) + (0,) * _nd)


def _shared_spec(shape):
    nd = len(shape)
    return pl.BlockSpec(tuple(shape), lambda b, _nd=nd: (0,) * _nd)


def sdmamba_forward(history_data, packed, cfg):
    B = history_data.shape[0]
    L, fut, N = cfg["history_seq_len"], cfg["future_seq_len"], cfg["num_channels"]
    d_model = cfg["d_model"]
    d_inner = cfg["expand"] * d_model
    n_dir = 2 if cfg["mamba_mode"] == "bi-directional" else 1

    # glue: take feature channel 0 and put tokens (variates) on sublanes
    x_bnl = jnp.transpose(history_data[..., 0].astype(F32), (0, 2, 1))  # [B, N, L]

    weights = [
        packed["revin_w"], packed["revin_b"], packed["w_emb"], packed["b_emb"],
        packed["ln_f_g"], packed["ln_f_b"], packed["w_proj"], packed["b_proj"],
        packed["m_win"], packed["m_convw"], packed["m_convb"], packed["m_wbc"],
        packed["m_wdelta"], packed["m_bdt"], packed["m_alog"], packed["m_d"],
        packed["m_wout"],
        packed["f_ln1g"], packed["f_ln1b"], packed["f_w1"], packed["f_b1"],
        packed["f_w2"], packed["f_b2"], packed["f_ln2g"], packed["f_ln2b"],
    ]

    kernel = partial(_sdmamba_fused_kernel,
                     e_layers=cfg["e_layers"], n_dir=n_dir, d_inner=d_inner,
                     d_conv=cfg["d_conv"], d_state=cfg["d_state"],
                     n_tokens=N, activation=cfg["ffn_activation"])

    out = pl.pallas_call(
        kernel,
        grid=(B,),
        in_specs=[_batched_spec((N, L))] + [_shared_spec(w.shape) for w in weights],
        out_specs=_batched_spec((N, fut)),
        out_shape=jax.ShapeDtypeStruct((B, N, fut), F32),
        compiler_params=pltpu.CompilerParams(dimension_semantics=("parallel",)),
    )(x_bnl, *weights)

    return jnp.transpose(out, (0, 2, 1))[..., None]          # [B, future, N, 1]


# ------------------------------ parameter init --------------------------------

def _linear_t(key, fan_in, fan_out, scale=None):
    scale = (1.0 / math.sqrt(fan_in)) if scale is None else scale
    return scale * jax.random.normal(key, (fan_in, fan_out), F32)


def init_mamba_params(key, d_model, d_state, d_conv, expand):
    """One Mamba block; weights kept in [in, out] (transposed vs PyTorch) form."""
    d_inner = expand * d_model
    dt_rank = math.ceil(d_model / 16)
    ks = jax.random.split(key, 8)
    a_log = jnp.log(jnp.arange(1, d_state + 1, dtype=F32))
    return dict(
        w_in_t=_linear_t(ks[0], d_model, 2 * d_inner),                  # in_proj (no bias)
        conv_w=0.2 * jax.random.normal(ks[1], (d_conv, d_inner), F32),  # depthwise conv weight
        conv_b_row=jnp.zeros((1, d_inner), F32),
        w_xdt_t=_linear_t(ks[2], d_inner, dt_rank),                     # x_proj split (no bias)
        w_xb_t=_linear_t(ks[3], d_inner, d_state),
        w_xc_t=_linear_t(ks[4], d_inner, d_state),
        w_dt_t=_linear_t(ks[5], dt_rank, d_inner, scale=1.0),           # dt_proj
        b_dt_row=jnp.full((1, d_inner), -4.6, F32)
                 + 0.1 * jax.random.normal(ks[6], (1, d_inner), F32),
        a_log_t=jnp.broadcast_to(a_log[:, None], (d_state, d_inner)),   # A_log (transposed)
        d_row=jnp.ones((1, d_inner), F32),
        w_out_t=_linear_t(ks[7], d_inner, d_model),                     # out_proj (no bias)
    )


def init_params(key, cfg):
    L, fut, N = cfg["history_seq_len"], cfg["future_seq_len"], cfg["num_channels"]
    d_model, d_ff = cfg["d_model"], cfg["d_ff"]
    keys = jax.random.split(key, 4 + cfg["e_layers"])
    params = dict(
        revin_w_col=jnp.ones((N, 1), F32),
        revin_b_col=jnp.zeros((N, 1), F32),
        w_emb_t=_linear_t(keys[0], L, d_model),
        b_emb_row=0.01 * jax.random.normal(keys[1], (1, d_model), F32),
        ln_f_g=jnp.ones((1, d_model), F32),
        ln_f_b=jnp.zeros((1, d_model), F32),
        w_proj_t=_linear_t(keys[2], d_model, fut),
        b_proj_row=0.01 * jax.random.normal(keys[3], (1, fut), F32),
        layers=[],
    )
    for li in range(cfg["e_layers"]):
        lk = jax.random.split(keys[4 + li], 6)
        layer = dict(
            mamba_f=init_mamba_params(lk[0], d_model, cfg["d_state"],
                                      cfg["d_conv"], cfg["expand"]),
            ln1_g=jnp.ones((1, d_model), F32), ln1_b=jnp.zeros((1, d_model), F32),
            ln2_g=jnp.ones((1, d_model), F32), ln2_b=jnp.zeros((1, d_model), F32),
            w1_t=_linear_t(lk[2], d_model, d_ff),
            b1_row=0.01 * jax.random.normal(lk[3], (1, d_ff), F32),
            w2_t=_linear_t(lk[4], d_ff, d_model),
            b2_row=0.01 * jax.random.normal(lk[5], (1, d_model), F32),
        )
        if cfg["mamba_mode"] == "bi-directional":
            layer["mamba_r"] = init_mamba_params(lk[1], d_model, cfg["d_state"],
                                                 cfg["d_conv"], cfg["expand"])
        params["layers"].append(layer)
    return params


def pack_params(params, cfg):
    """Stack per-layer / per-direction weights so the fused kernel takes a fixed arg list."""
    n_dir = 2 if cfg["mamba_mode"] == "bi-directional" else 1
    blocks = []
    for lp in params["layers"]:
        blocks.append(lp["mamba_f"])
        if n_dir == 2:
            blocks.append(lp["mamba_r"])

    def mstack(fn):
        return jnp.stack([fn(m) for m in blocks], axis=0)

    def lstack(name):
        return jnp.stack([lp[name] for lp in params["layers"]], axis=0)

    return dict(
        revin_w=params["revin_w_col"], revin_b=params["revin_b_col"],
        w_emb=params["w_emb_t"], b_emb=params["b_emb_row"],
        ln_f_g=params["ln_f_g"], ln_f_b=params["ln_f_b"],
        w_proj=params["w_proj_t"], b_proj=params["b_proj_row"],
        m_win=mstack(lambda m: m["w_in_t"]),
        m_convw=mstack(lambda m: m["conv_w"]),
        m_convb=mstack(lambda m: m["conv_b_row"]),
        # B/C rows of x_proj merged and kept in [d_state, d_inner] orientation so the
        # kernel's dot_general produces the [d_state, tokens] layout directly.
        m_wbc=mstack(lambda m: jnp.concatenate([m["w_xb_t"].T, m["w_xc_t"].T], axis=0)),
        # delta path folded: x_proj_dt (d_inner->dt_rank) @ dt_proj (dt_rank->d_inner)
        m_wdelta=mstack(lambda m: m["w_xdt_t"] @ m["w_dt_t"]),
        m_bdt=mstack(lambda m: m["b_dt_row"]),
        m_alog=mstack(lambda m: m["a_log_t"]),
        m_d=mstack(lambda m: m["d_row"]),
        m_wout=mstack(lambda m: m["w_out_t"]),
        f_ln1g=lstack("ln1_g"), f_ln1b=lstack("ln1_b"),
        f_w1=lstack("w1_t"), f_b1=lstack("b1_row"),
        f_w2=lstack("w2_t"), f_b2=lstack("b2_row"),
        f_ln2g=lstack("ln2_g"), f_ln2b=lstack("ln2_b"),
    )


# ------------------------------------ main -------------------------------------

if __name__ == "__main__":
    cfg = dict(history_seq_len=16, future_seq_len=8, num_channels=8,
               d_model=32, use_revin=True, emb_dropout=0.1,
               mamba_mode="bi-directional", e_layers=2,
               d_state=8, d_conv=4, expand=2, d_ff=64,
               ffn_dropout=0.1, ffn_activation="relu")

    key = jax.random.PRNGKey(0)
    pkey, dkey = jax.random.split(key)
    params = init_params(pkey, cfg)
    packed = pack_params(params, cfg)

    B = 2
    history_data = jax.random.normal(
        dkey, (B, cfg["history_seq_len"], cfg["num_channels"], 1), F32)

    fwd = jax.jit(partial(sdmamba_forward, cfg=cfg))
    out = fwd(history_data, packed)
    out = jax.block_until_ready(out)

    assert out.shape == (B, cfg["future_seq_len"], cfg["num_channels"], 1), out.shape
    assert bool(jnp.all(jnp.isfinite(out)))
    print("KERNEL_OK")
</pallas_src>

<mosaic_0001>
module attributes {stable_mosaic.version = 11 : i64} {
  func.func @_sdmamba_fused_kernel(%arg0: i32, %arg1: memref<1x8x16xf32, #tpu.memory_space<vmem>>, %arg2: memref<8x1xf32, #tpu.memory_space<vmem>>, %arg3: memref<8x1xf32, #tpu.memory_space<vmem>>, %arg4: memref<16x32xf32, #tpu.memory_space<vmem>>, %arg5: memref<1x32xf32, #tpu.memory_space<vmem>>, %arg6: memref<1x32xf32, #tpu.memory_space<vmem>>, %arg7: memref<1x32xf32, #tpu.memory_space<vmem>>, %arg8: memref<32x8xf32, #tpu.memory_space<vmem>>, %arg9: memref<1x8xf32, #tpu.memory_space<vmem>>, %arg10: memref<4x32x128xf32, #tpu.memory_space<vmem>>, %arg11: memref<4x4x64xf32, #tpu.memory_space<vmem>>, %arg12: memref<4x1x64xf32, #tpu.memory_space<vmem>>, %arg13: memref<4x16x64xf32, #tpu.memory_space<vmem>>, %arg14: memref<4x64x64xf32, #tpu.memory_space<vmem>>, %arg15: memref<4x1x64xf32, #tpu.memory_space<vmem>>, %arg16: memref<4x8x64xf32, #tpu.memory_space<vmem>>, %arg17: memref<4x1x64xf32, #tpu.memory_space<vmem>>, %arg18: memref<4x64x32xf32, #tpu.memory_space<vmem>>, %arg19: memref<2x1x32xf32, #tpu.memory_space<vmem>>, %arg20: memref<2x1x32xf32, #tpu.memory_space<vmem>>, %arg21: memref<2x32x64xf32, #tpu.memory_space<vmem>>, %arg22: memref<2x1x64xf32, #tpu.memory_space<vmem>>, %arg23: memref<2x64x32xf32, #tpu.memory_space<vmem>>, %arg24: memref<2x1x32xf32, #tpu.memory_space<vmem>>, %arg25: memref<2x1x32xf32, #tpu.memory_space<vmem>>, %arg26: memref<2x1x32xf32, #tpu.memory_space<vmem>>, %arg27: memref<1x8x8xf32, #tpu.memory_space<vmem>>) attributes {dimension_semantics = [#tpu.dimension_semantics<parallel>], iteration_bounds = array<i64: 2>, scalar_prefetch = 0 : i64, scratch_operands = 0 : i64, tpu.core_type = #tpu.core_type<tc>, window_params = [{transform_indices = @transform_0, window_bounds = array<i64: 1, 8, 16>}, {pipeline_mode = #tpu.pipeline_mode<synchronous>, transform_indices = @transform_1, window_bounds = array<i64: 8, 1>}, {pipeline_mode = #tpu.pipeline_mode<synchronous>, transform_indices = @transform_2, window_bounds = array<i64: 8, 1>}, {pipeline_mode = #tpu.pipeline_mode<synchronous>, transform_indices = @transform_3, window_bounds = array<i64: 16, 32>}, {pipeline_mode = #tpu.pipeline_mode<synchronous>, transform_indices = @transform_4, window_bounds = array<i64: 1, 32>}, {pipeline_mode = #tpu.pipeline_mode<synchronous>, transform_indices = @transform_5, window_bounds = array<i64: 1, 32>}, {pipeline_mode = #tpu.pipeline_mode<synchronous>, transform_indices = @transform_6, window_bounds = array<i64: 1, 32>}, {pipeline_mode = #tpu.pipeline_mode<synchronous>, transform_indices = @transform_7, window_bounds = array<i64: 32, 8>}, {pipeline_mode = #tpu.pipeline_mode<synchronous>, transform_indices = @transform_8, window_bounds = array<i64: 1, 8>}, {pipeline_mode = #tpu.pipeline_mode<synchronous>, transform_indices = @transform_9, window_bounds = array<i64: 4, 32, 128>}, {pipeline_mode = #tpu.pipeline_mode<synchronous>, transform_indices = @transform_10, window_bounds = array<i64: 4, 4, 64>}, {pipeline_mode = #tpu.pipeline_mode<synchronous>, transform_indices = @transform_11, window_bounds = array<i64: 4, 1, 64>}, {pipeline_mode = #tpu.pipeline_mode<synchronous>, transform_indices = @transform_12, window_bounds = array<i64: 4, 16, 64>}, {pipeline_mode = #tpu.pipeline_mode<synchronous>, transform_indices = @transform_13, window_bounds = array<i64: 4, 64, 64>}, {pipeline_mode = #tpu.pipeline_mode<synchronous>, transform_indices = @transform_14, window_bounds = array<i64: 4, 1, 64>}, {pipeline_mode = #tpu.pipeline_mode<synchronous>, transform_indices = @transform_15, window_bounds = array<i64: 4, 8, 64>}, {pipeline_mode = #tpu.pipeline_mode<synchronous>, transform_indices = @transform_16, window_bounds = array<i64: 4, 1, 64>}, {pipeline_mode = #tpu.pipeline_mode<synchronous>, transform_indices = @transform_17, window_bounds = array<i64: 4, 64, 32>}, {pipeline_mode = #tpu.pipeline_mode<synchronous>, transform_indices = @transform_18, window_bounds = array<i64: 2, 1, 32>}, {pipeline_mode = #tpu.pipeline_mode<synchronous>, transform_indices = @transform_19, window_bounds = array<i64: 2, 1, 32>}, {pipeline_mode = #tpu.pipeline_mode<synchronous>, transform_indices = @transform_20, window_bounds = array<i64: 2, 32, 64>}, {pipeline_mode = #tpu.pipeline_mode<synchronous>, transform_indices = @transform_21, window_bounds = array<i64: 2, 1, 64>}, {pipeline_mode = #tpu.pipeline_mode<synchronous>, transform_indices = @transform_22, window_bounds = array<i64: 2, 64, 32>}, {pipeline_mode = #tpu.pipeline_mode<synchronous>, transform_indices = @transform_23, window_bounds = array<i64: 2, 1, 32>}, {pipeline_mode = #tpu.pipeline_mode<synchronous>, transform_indices = @transform_24, window_bounds = array<i64: 2, 1, 32>}, {pipeline_mode = #tpu.pipeline_mode<synchronous>, transform_indices = @transform_25, window_bounds = array<i64: 2, 1, 32>}, {transform_indices = @transform_26, window_bounds = array<i64: 1, 8, 8>}]} {
    %c0 = arith.constant 0 : index
    %c0_0 = arith.constant 0 : index
    %c0_1 = arith.constant 0 : index
    %0 = vector.load %arg1[%c0, %c0_0, %c0_1] : memref<1x8x16xf32, #tpu.memory_space<vmem>>, vector<1x8x16xf32>
    %1 = vector.shape_cast %0 : vector<1x8x16xf32> to vector<8x16xf32>
    %cst = arith.constant dense<0.000000e+00> : vector<8xf32>
    %2 = vector.multi_reduction <add>, %1, %cst [1] : vector<8x16xf32> to vector<8xf32>
    %3 = vector.shape_cast %2 : vector<8xf32> to vector<8x1xf32>
    %cst_2 = arith.constant 1.600000e+01 : f32
    %4 = vector.broadcast %cst_2 : f32 to vector<8x1xf32>
    %5 = arith.divf %3, %4 : vector<8x1xf32>
    %6 = vector.broadcast %5 : vector<8x1xf32> to vector<8x16xf32>
    %7 = arith.subf %1, %6 : vector<8x16xf32>
    %8 = arith.mulf %7, %7 : vector<8x16xf32>
    %cst_3 = arith.constant dense<0.000000e+00> : vector<8xf32>
    %9 = vector.multi_reduction <add>, %8, %cst_3 [1] : vector<8x16xf32> to vector<8xf32>
    %10 = vector.shape_cast %9 : vector<8xf32> to vector<8x1xf32>
    %cst_4 = arith.constant 1.600000e+01 : f32
    %11 = vector.broadcast %cst_4 : f32 to vector<8x1xf32>
    %12 = arith.divf %10, %11 : vector<8x1xf32>
    %cst_5 = arith.constant 9.99999974E-6 : f32
    %13 = vector.broadcast %cst_5 : f32 to vector<8x1xf32>
    %14 = arith.addf %12, %13 : vector<8x1xf32>
    %15 = math.sqrt %14 : vector<8x1xf32>
    %16 = vector.broadcast %5 : vector<8x1xf32> to vector<8x16xf32>
    %17 = arith.subf %1, %16 : vector<8x16xf32>
    %18 = vector.broadcast %15 : vector<8x1xf32> to vector<8x16xf32>
    %19 = arith.divf %17, %18 : vector<8x16xf32>
    %c0_6 = arith.constant 0 : index
    %c0_7 = arith.constant 0 : index
    %20 = vector.load %arg2[%c0_6, %c0_7] : memref<8x1xf32, #tpu.memory_space<vmem>>, vector<8x1xf32>
    %21 = vector.broadcast %20 : vector<8x1xf32> to vector<8x16xf32>
    %22 = arith.mulf %19, %21 : vector<8x16xf32>
    %c0_8 = arith.constant 0 : index
    %c0_9 = arith.constant 0 : index
    %23 = vector.load %arg3[%c0_8, %c0_9] : memref<8x1xf32, #tpu.memory_space<vmem>>, vector<8x1xf32>
    %24 = vector.broadcast %23 : vector<8x1xf32> to vector<8x16xf32>
    %25 = arith.addf %22, %24 : vector<8x16xf32>
    %c0_10 = arith.constant 0 : index
    %c0_11 = arith.constant 0 : index
    %26 = vector.load %arg4[%c0_10, %c0_11] : memref<16x32xf32, #tpu.memory_space<vmem>>, vector<16x32xf32>
    %cst_12 = arith.constant dense<0.000000e+00> : vector<8x32xf32>
    %27 = tpu.matmul %25, %26, %cst_12 {dimension_numbers = #tpu.dot_dimension_numbers<[1], [0], [0], [1], [0, 0, 1, 1], [], []>} : vector<8x16xf32>, vector<16x32xf32>, vector<8x32xf32> -> vector<8x32xf32>
    %c0_13 = arith.constant 0 : index
    %c0_14 = arith.constant 0 : index
    %28 = vector.load %arg5[%c0_13, %c0_14] : memref<1x32xf32, #tpu.memory_space<vmem>>, vector<1x32xf32>
    %29 = vector.broadcast %28 : vector<1x32xf32> to vector<8x32xf32>
    %30 = arith.addf %27, %29 : vector<8x32xf32>
    %31 = tpu.iota {dimensions = array<i32: 0>} : vector<8x64xi32>
    %c0_15 = arith.constant 0 : index
    %c0_16 = arith.constant 0 : index
    %c0_17 = arith.constant 0 : index
    %32 = vector.load %arg10[%c0_15, %c0_16, %c0_17] : memref<4x32x128xf32, #tpu.memory_space<vmem>>, vector<1x32x128xf32>
    %33 = vector.shape_cast %32 : vector<1x32x128xf32> to vector<32x128xf32>
    %c0_18 = arith.constant 0 : index
    %c0_19 = arith.constant 0 : index
    %c0_20 = arith.constant 0 : index
    %34 = vector.load %arg11[%c0_18, %c0_19, %c0_20] : memref<4x4x64xf32, #tpu.memory_space<vmem>>, vector<1x4x64xf32>
    %35 = vector.shape_cast %34 : vector<1x4x64xf32> to vector<4x64xf32>
    %c0_21 = arith.constant 0 : index
    %c0_22 = arith.constant 0 : index
    %c0_23 = arith.constant 0 : index
    %36 = vector.load %arg12[%c0_21, %c0_22, %c0_23] : memref<4x1x64xf32, #tpu.memory_space<vmem>>, vector<1x1x64xf32>
    %37 = vector.shape_cast %36 : vector<1x1x64xf32> to vector<1x64xf32>
    %c0_24 = arith.constant 0 : index
    %c0_25 = arith.constant 0 : index
    %c0_26 = arith.constant 0 : index
    %38 = vector.load %arg13[%c0_24, %c0_25, %c0_26] : memref<4x16x64xf32, #tpu.memory_space<vmem>>, vector<1x16x64xf32>
    %39 = vector.shape_cast %38 : vector<1x16x64xf32> to vector<16x64xf32>
    %c0_27 = arith.constant 0 : index
    %c0_28 = arith.constant 0 : index
    %c0_29 = arith.constant 0 : index
    %40 = vector.load %arg14[%c0_27, %c0_28, %c0_29] : memref<4x64x64xf32, #tpu.memory_space<vmem>>, vector<1x64x64xf32>
    %41 = vector.shape_cast %40 : vector<1x64x64xf32> to vector<64x64xf32>
    %c0_30 = arith.constant 0 : index
    %c0_31 = arith.constant 0 : index
    %c0_32 = arith.constant 0 : index
    %42 = vector.load %arg15[%c0_30, %c0_31, %c0_32] : memref<4x1x64xf32, #tpu.memory_space<vmem>>, vector<1x1x64xf32>
    %43 = vector.shape_cast %42 : vector<1x1x64xf32> to vector<1x64xf32>
    %c0_33 = arith.constant 0 : index
    %c0_34 = arith.constant 0 : index
    %c0_35 = arith.constant 0 : index
    %44 = vector.load %arg16[%c0_33, %c0_34, %c0_35] : memref<4x8x64xf32, #tpu.memory_space<vmem>>, vector<1x8x64xf32>
    %45 = vector.shape_cast %44 : vector<1x8x64xf32> to vector<8x64xf32>
    %46 = math.exp %45 : vector<8x64xf32>
    %cst_36 = arith.constant 0.000000e+00 : f32
    %47 = vector.broadcast %cst_36 : f32 to vector<8x64xf32>
    %48 = arith.subf %47, %46 : vector<8x64xf32>
    %c0_37 = arith.constant 0 : index
    %c0_38 = arith.constant 0 : index
    %c0_39 = arith.constant 0 : index
    %49 = vector.load %arg17[%c0_37, %c0_38, %c0_39] : memref<4x1x64xf32, #tpu.memory_space<vmem>>, vector<1x1x64xf32>
    %50 = vector.shape_cast %49 : vector<1x1x64xf32> to vector<1x64xf32>
    %c0_40 = arith.constant 0 : index
    %c0_41 = arith.constant 0 : index
    %c0_42 = arith.constant 0 : index
    %51 = vector.load %arg18[%c0_40, %c0_41, %c0_42] : memref<4x64x32xf32, #tpu.memory_space<vmem>>, vector<1x64x32xf32>
    %52 = vector.shape_cast %51 : vector<1x64x32xf32> to vector<64x32xf32>
    %cst_43 = arith.constant dense<0.000000e+00> : vector<8x128xf32>
    %53 = tpu.matmul %30, %33, %cst_43 {dimension_numbers = #tpu.dot_dimension_numbers<[1], [0], [0], [1], [0, 0, 1, 1], [], []>} : vector<8x32xf32>, vector<32x128xf32>, vector<8x128xf32> -> vector<8x128xf32>
    %54 = vector.extract_strided_slice %53 {offsets = [0, 0], sizes = [8, 64], strides = [1, 1]} : vector<8x128xf32> to vector<8x64xf32>
    %55 = vector.extract_strided_slice %53 {offsets = [0, 64], sizes = [8, 64], strides = [1, 1]} : vector<8x128xf32> to vector<8x64xf32>
    %56 = vector.extract_strided_slice %35 {offsets = [3, 0], sizes = [1, 64], strides = [1, 1]} : vector<4x64xf32> to vector<1x64xf32>
    %57 = vector.broadcast %56 : vector<1x64xf32> to vector<8x64xf32>
    %58 = arith.mulf %57, %54 : vector<8x64xf32>
    %cst_44 = arith.constant 0.000000e+00 : f32
    %59 = vector.broadcast %cst_44 : f32 to vector<1x64xf32>
    %60 = vector.extract_strided_slice %54 {offsets = [0, 0], sizes = [7, 64], strides = [1, 1]} : vector<8x64xf32> to vector<7x64xf32>
    %61 = tpu.concatenate %59, %60 in 0 : vector<1x64xf32>, vector<7x64xf32> -> vector<8x64xf32>
    %62 = vector.extract_strided_slice %35 {offsets = [2, 0], sizes = [1, 64], strides = [1, 1]} : vector<4x64xf32> to vector<1x64xf32>
    %63 = vector.broadcast %62 : vector<1x64xf32> to vector<8x64xf32>
    %64 = arith.mulf %63, %61 : vector<8x64xf32>
    %65 = arith.addf %58, %64 : vector<8x64xf32>
    %cst_45 = arith.constant 0.000000e+00 : f32
    %66 = vector.broadcast %cst_45 : f32 to vector<2x64xf32>
    %67 = vector.extract_strided_slice %54 {offsets = [0, 0], sizes = [6, 64], strides = [1, 1]} : vector<8x64xf32> to vector<6x64xf32>
    %68 = tpu.concatenate %66, %67 in 0 : vector<2x64xf32>, vector<6x64xf32> -> vector<8x64xf32>
    %69 = vector.extract_strided_slice %35 {offsets = [1, 0], sizes = [1, 64], strides = [1, 1]} : vector<4x64xf32> to vector<1x64xf32>
    %70 = vector.broadcast %69 : vector<1x64xf32> to vector<8x64xf32>
    %71 = arith.mulf %70, %68 : vector<8x64xf32>
    %72 = arith.addf %65, %71 : vector<8x64xf32>
    %cst_46 = arith.constant 0.000000e+00 : f32
    %73 = vector.broadcast %cst_46 : f32 to vector<3x64xf32>
    %74 = vector.extract_strided_slice %54 {offsets = [0, 0], sizes = [5, 64], strides = [1, 1]} : vector<8x64xf32> to vector<5x64xf32>
    %75 = tpu.concatenate %73, %74 in 0 : vector<3x64xf32>, vector<5x64xf32> -> vector<8x64xf32>
    %76 = vector.extract_strided_slice %35 {offsets = [0, 0], sizes = [1, 64], strides = [1, 1]} : vector<4x64xf32> to vector<1x64xf32>
    %77 = vector.broadcast %76 : vector<1x64xf32> to vector<8x64xf32>
    %78 = arith.mulf %77, %75 : vector<8x64xf32>
    %79 = arith.addf %72, %78 : vector<8x64xf32>
    %80 = vector.broadcast %37 : vector<1x64xf32> to vector<8x64xf32>
    %81 = arith.addf %79, %80 : vector<8x64xf32>
    %82 = arith.negf %81 : vector<8x64xf32>
    %83 = math.exp %82 : vector<8x64xf32>
    %cst_47 = arith.constant 1.000000e+00 : f32
    %84 = vector.broadcast %cst_47 : f32 to vector<8x64xf32>
    %85 = arith.addf %84, %83 : vector<8x64xf32>
    %86 = arith.divf %84, %85 : vector<8x64xf32>
    %87 = arith.mulf %81, %86 : vector<8x64xf32>
    %cst_48 = arith.constant dense<0.000000e+00> : vector<16x8xf32>
    %88 = tpu.matmul %39, %87, %cst_48 {dimension_numbers = #tpu.dot_dimension_numbers<[1], [1], [0], [0], [0, 0, 1, 0], [], []>} : vector<16x64xf32>, vector<8x64xf32>, vector<16x8xf32> -> vector<16x8xf32>
    %89 = vector.extract_strided_slice %88 {offsets = [0, 0], sizes = [8, 8], strides = [1, 1]} : vector<16x8xf32> to vector<8x8xf32>
    %90 = vector.extract_strided_slice %88 {offsets = [8, 0], sizes = [8, 8], strides = [1, 1]} : vector<16x8xf32> to vector<8x8xf32>
    %cst_49 = arith.constant dense<0.000000e+00> : vector<8x64xf32>
    %91 = tpu.matmul %87, %41, %cst_49 {dimension_numbers = #tpu.dot_dimension_numbers<[1], [0], [0], [1], [0, 0, 1, 1], [], []>} : vector<8x64xf32>, vector<64x64xf32>, vector<8x64xf32> -> vector<8x64xf32>
    %92 = vector.broadcast %43 : vector<1x64xf32> to vector<8x64xf32>
    %93 = arith.addf %91, %92 : vector<8x64xf32>
    %cst_50 = arith.constant 0.000000e+00 : f32
    %94 = vector.broadcast %cst_50 : f32 to vector<8x64xf32>
    %95 = arith.maximumf %93, %94 : vector<8x64xf32>
    %96 = math.absf %93 : vector<8x64xf32>
    %cst_51 = arith.constant 0.000000e+00 : f32
    %97 = vector.broadcast %cst_51 : f32 to vector<8x64xf32>
    %98 = arith.subf %97, %96 : vector<8x64xf32>
    %99 = math.exp %98 : vector<8x64xf32>
    %100 = math.log1p %99 : vector<8x64xf32>
    %101 = arith.addf %95, %100 : vector<8x64xf32>
    %102 = arith.mulf %101, %87 : vector<8x64xf32>
    %103 = vector.extract_strided_slice %101 {offsets = [0, 0], sizes = [1, 64], strides = [1, 1]} : vector<8x64xf32> to vector<1x64xf32>
    %104 = vector.broadcast %103 : vector<1x64xf32> to vector<8x64xf32>
    %105 = arith.mulf %104, %48 : vector<8x64xf32>
    %106 = math.exp %105 : vector<8x64xf32>
    %107 = vector.extract_strided_slice %101 {offsets = [1, 0], sizes = [1, 64], strides = [1, 1]} : vector<8x64xf32> to vector<1x64xf32>
    %108 = vector.broadcast %107 : vector<1x64xf32> to vector<8x64xf32>
    %109 = arith.mulf %108, %48 : vector<8x64xf32>
    %110 = math.exp %109 : vector<8x64xf32>
    %111 = vector.extract_strided_slice %101 {offsets = [2, 0], sizes = [1, 64], strides = [1, 1]} : vector<8x64xf32> to vector<1x64xf32>
    %112 = vector.broadcast %111 : vector<1x64xf32> to vector<8x64xf32>
    %113 = arith.mulf %112, %48 : vector<8x64xf32>
    %114 = math.exp %113 : vector<8x64xf32>
    %115 = vector.extract_strided_slice %101 {offsets = [3, 0], sizes = [1, 64], strides = [1, 1]} : vector<8x64xf32> to vector<1x64xf32>
    %116 = vector.broadcast %115 : vector<1x64xf32> to vector<8x64xf32>
    %117 = arith.mulf %116, %48 : vector<8x64xf32>
    %118 = math.exp %117 : vector<8x64xf32>
    %119 = vector.extract_strided_slice %101 {offsets = [4, 0], sizes = [1, 64], strides = [1, 1]} : vector<8x64xf32> to vector<1x64xf32>
    %120 = vector.broadcast %119 : vector<1x64xf32> to vector<8x64xf32>
    %121 = arith.mulf %120, %48 : vector<8x64xf32>
    %122 = math.exp %121 : vector<8x64xf32>
    %123 = vector.extract_strided_slice %101 {offsets = [5, 0], sizes = [1, 64], strides = [1, 1]} : vector<8x64xf32> to vector<1x64xf32>
    %124 = vector.broadcast %123 : vector<1x64xf32> to vector<8x64xf32>
    %125 = arith.mulf %124, %48 : vector<8x64xf32>
    %126 = math.exp %125 : vector<8x64xf32>
    %127 = vector.extract_strided_slice %101 {offsets = [6, 0], sizes = [1, 64], strides = [1, 1]} : vector<8x64xf32> to vector<1x64xf32>
    %128 = vector.broadcast %127 : vector<1x64xf32> to vector<8x64xf32>
    %129 = arith.mulf %128, %48 : vector<8x64xf32>
    %130 = math.exp %129 : vector<8x64xf32>
    %131 = vector.extract_strided_slice %101 {offsets = [7, 0], sizes = [1, 64], strides = [1, 1]} : vector<8x64xf32> to vector<1x64xf32>
    %132 = vector.broadcast %131 : vector<1x64xf32> to vector<8x64xf32>
    %133 = arith.mulf %132, %48 : vector<8x64xf32>
    %134 = math.exp %133 : vector<8x64xf32>
    %135 = vector.extract_strided_slice %102 {offsets = [0, 0], sizes = [1, 64], strides = [1, 1]} : vector<8x64xf32> to vector<1x64xf32>
    %136 = vector.extract_strided_slice %89 {offsets = [0, 0], sizes = [8, 1], strides = [1, 1]} : vector<8x8xf32> to vector<8x1xf32>
    %137 = vector.broadcast %135 : vector<1x64xf32> to vector<8x64xf32>
    %138 = vector.broadcast %136 : vector<8x1xf32> to vector<8x64xf32>
    %139 = arith.mulf %137, %138 : vector<8x64xf32>
    %140 = vector.extract_strided_slice %102 {offsets = [1, 0], sizes = [1, 64], strides = [1, 1]} : vector<8x64xf32> to vector<1x64xf32>
    %141 = vector.extract_strided_slice %89 {offsets = [0, 1], sizes = [8, 1], strides = [1, 1]} : vector<8x8xf32> to vector<8x1xf32>
    %142 = vector.broadcast %140 : vector<1x64xf32> to vector<8x64xf32>
    %143 = vector.broadcast %141 : vector<8x1xf32> to vector<8x64xf32>
    %144 = arith.mulf %142, %143 : vector<8x64xf32>
    %145 = vector.extract_strided_slice %102 {offsets = [2, 0], sizes = [1, 64], strides = [1, 1]} : vector<8x64xf32> to vector<1x64xf32>
    %146 = vector.extract_strided_slice %89 {offsets = [0, 2], sizes = [8, 1], strides = [1, 1]} : vector<8x8xf32> to vector<8x1xf32>
    %147 = vector.broadcast %145 : vector<1x64xf32> to vector<8x64xf32>
    %148 = vector.broadcast %146 : vector<8x1xf32> to vector<8x64xf32>
    %149 = arith.mulf %147, %148 : vector<8x64xf32>
    %150 = vector.extract_strided_slice %102 {offsets = [3, 0], sizes = [1, 64], strides = [1, 1]} : vector<8x64xf32> to vector<1x64xf32>
    %151 = vector.extract_strided_slice %89 {offsets = [0, 3], sizes = [8, 1], strides = [1, 1]} : vector<8x8xf32> to vector<8x1xf32>
    %152 = vector.broadcast %150 : vector<1x64xf32> to vector<8x64xf32>
    %153 = vector.broadcast %151 : vector<8x1xf32> to vector<8x64xf32>
    %154 = arith.mulf %152, %153 : vector<8x64xf32>
    %155 = vector.extract_strided_slice %102 {offsets = [4, 0], sizes = [1, 64], strides = [1, 1]} : vector<8x64xf32> to vector<1x64xf32>
    %156 = vector.extract_strided_slice %89 {offsets = [0, 4], sizes = [8, 1], strides = [1, 1]} : vector<8x8xf32> to vector<8x1xf32>
    %157 = vector.broadcast %155 : vector<1x64xf32> to vector<8x64xf32>
    %158 = vector.broadcast %156 : vector<8x1xf32> to vector<8x64xf32>
    %159 = arith.mulf %157, %158 : vector<8x64xf32>
    %160 = vector.extract_strided_slice %102 {offsets = [5, 0], sizes = [1, 64], strides = [1, 1]} : vector<8x64xf32> to vector<1x64xf32>
    %161 = vector.extract_strided_slice %89 {offsets = [0, 5], sizes = [8, 1], strides = [1, 1]} : vector<8x8xf32> to vector<8x1xf32>
    %162 = vector.broadcast %160 : vector<1x64xf32> to vector<8x64xf32>
    %163 = vector.broadcast %161 : vector<8x1xf32> to vector<8x64xf32>
    %164 = arith.mulf %162, %163 : vector<8x64xf32>
    %165 = vector.extract_strided_slice %102 {offsets = [6, 0], sizes = [1, 64], strides = [1, 1]} : vector<8x64xf32> to vector<1x64xf32>
    %166 = vector.extract_strided_slice %89 {offsets = [0, 6], sizes = [8, 1], strides = [1, 1]} : vector<8x8xf32> to vector<8x1xf32>
    %167 = vector.broadcast %165 : vector<1x64xf32> to vector<8x64xf32>
    %168 = vector.broadcast %166 : vector<8x1xf32> to vector<8x64xf32>
    %169 = arith.mulf %167, %168 : vector<8x64xf32>
    %170 = vector.extract_strided_slice %102 {offsets = [7, 0], sizes = [1, 64], strides = [1, 1]} : vector<8x64xf32> to vector<1x64xf32>
    %171 = vector.extract_strided_slice %89 {offsets = [0, 7], sizes = [8, 1], strides = [1, 1]} : vector<8x8xf32> to vector<8x1xf32>
    %172 = vector.broadcast %170 : vector<1x64xf32> to vector<8x64xf32>
    %173 = vector.broadcast %171 : vector<8x1xf32> to vector<8x64xf32>
    %174 = arith.mulf %172, %173 : vector<8x64xf32>
    %cst_52 = arith.constant 0.000000e+00 : f32
    %175 = vector.broadcast %cst_52 : f32 to vector<8x64xf32>
    %176 = vector.broadcast %50 : vector<1x64xf32> to vector<8x64xf32>
    %177 = arith.mulf %176, %87 : vector<8x64xf32>
    %178 = arith.mulf %106, %175 : vector<8x64xf32>
    %179 = arith.addf %178, %139 : vector<8x64xf32>
    %180 = vector.extract_strided_slice %90 {offsets = [0, 0], sizes = [8, 1], strides = [1, 1]} : vector<8x8xf32> to vector<8x1xf32>
    %181 = vector.broadcast %180 : vector<8x1xf32> to vector<8x64xf32>
    %182 = arith.mulf %179, %181 : vector<8x64xf32>
    %cst_53 = arith.constant dense<0.000000e+00> : vector<64xf32>
    %183 = vector.multi_reduction <add>, %182, %cst_53 [0] : vector<8x64xf32> to vector<64xf32>
    %184 = vector.shape_cast %183 : vector<64xf32> to vector<1x64xf32>
    %c0_i32 = arith.constant 0 : i32
    %185 = vector.broadcast %c0_i32 : i32 to vector<8x64xi32>
    %186 = arith.cmpi eq, %31, %185 : vector<8x64xi32>
    %cst_54 = arith.constant 0.000000e+00 : f32
    %187 = vector.shape_cast %184 : vector<1x64xf32> to vector<1x64xf32>
    %188 = vector.broadcast %187 : vector<1x64xf32> to vector<8x64xf32>
    %189 = vector.broadcast %cst_54 : f32 to vector<8x64xf32>
    %190 = arith.select %186, %188, %189 : vector<8x64xi1>, vector<8x64xf32>
    %191 = arith.addf %177, %190 : vector<8x64xf32>
    %192 = arith.mulf %110, %179 : vector<8x64xf32>
    %193 = arith.addf %192, %144 : vector<8x64xf32>
    %194 = vector.extract_strided_slice %90 {offsets = [0, 1], sizes = [8, 1], strides = [1, 1]} : vector<8x8xf32> to vector<8x1xf32>
    %195 = vector.broadcast %194 : vector<8x1xf32> to vector<8x64xf32>
    %196 = arith.mulf %193, %195 : vector<8x64xf32>
    %cst_55 = arith.constant dense<0.000000e+00> : vector<64xf32>
    %197 = vector.multi_reduction <add>, %196, %cst_55 [0] : vector<8x64xf32> to vector<64xf32>
    %198 = vector.shape_cast %197 : vector<64xf32> to vector<1x64xf32>
    %c1_i32 = arith.constant 1 : i32
    %199 = vector.broadcast %c1_i32 : i32 to vector<8x64xi32>
    %200 = arith.cmpi eq, %31, %199 : vector<8x64xi32>
    %cst_56 = arith.constant 0.000000e+00 : f32
    %201 = vector.shape_cast %198 : vector<1x64xf32> to vector<1x64xf32>
    %202 = vector.broadcast %201 : vector<1x64xf32> to vector<8x64xf32>
    %203 = vector.broadcast %cst_56 : f32 to vector<8x64xf32>
    %204 = arith.select %200, %202, %203 : vector<8x64xi1>, vector<8x64xf32>
    %205 = arith.addf %191, %204 : vector<8x64xf32>
    %206 = arith.mulf %114, %193 : vector<8x64xf32>
    %207 = arith.addf %206, %149 : vector<8x64xf32>
    %208 = vector.extract_strided_slice %90 {offsets = [0, 2], sizes = [8, 1], strides = [1, 1]} : vector<8x8xf32> to vector<8x1xf32>
    %209 = vector.broadcast %208 : vector<8x1xf32> to vector<8x64xf32>
    %210 = arith.mulf %207, %209 : vector<8x64xf32>
    %cst_57 = arith.constant dense<0.000000e+00> : vector<64xf32>
    %211 = vector.multi_reduction <add>, %210, %cst_57 [0] : vector<8x64xf32> to vector<64xf32>
    %212 = vector.shape_cast %211 : vector<64xf32> to vector<1x64xf32>
    %c2_i32 = arith.constant 2 : i32
    %213 = vector.broadcast %c2_i32 : i32 to vector<8x64xi32>
    %214 = arith.cmpi eq, %31, %213 : vector<8x64xi32>
    %cst_58 = arith.constant 0.000000e+00 : f32
    %215 = vector.shape_cast %212 : vector<1x64xf32> to vector<1x64xf32>
    %216 = vector.broadcast %215 : vector<1x64xf32> to vector<8x64xf32>
    %217 = vector.broadcast %cst_58 : f32 to vector<8x64xf32>
    %218 = arith.select %214, %216, %217 : vector<8x64xi1>, vector<8x64xf32>
    %219 = arith.addf %205, %218 : vector<8x64xf32>
    %220 = arith.mulf %118, %207 : vector<8x64xf32>
    %221 = arith.addf %220, %154 : vector<8x64xf32>
    %222 = vector.extract_strided_slice %90 {offsets = [0, 3], sizes = [8, 1], strides = [1, 1]} : vector<8x8xf32> to vector<8x1xf32>
    %223 = vector.broadcast %222 : vector<8x1xf32> to vector<8x64xf32>
    %224 = arith.mulf %221, %223 : vector<8x64xf32>
    %cst_59 = arith.constant dense<0.000000e+00> : vector<64xf32>
    %225 = vector.multi_reduction <add>, %224, %cst_59 [0] : vector<8x64xf32> to vector<64xf32>
    %226 = vector.shape_cast %225 : vector<64xf32> to vector<1x64xf32>
    %c3_i32 = arith.constant 3 : i32
    %227 = vector.broadcast %c3_i32 : i32 to vector<8x64xi32>
    %228 = arith.cmpi eq, %31, %227 : vector<8x64xi32>
    %cst_60 = arith.constant 0.000000e+00 : f32
    %229 = vector.shape_cast %226 : vector<1x64xf32> to vector<1x64xf32>
    %230 = vector.broadcast %229 : vector<1x64xf32> to vector<8x64xf32>
    %231 = vector.broadcast %cst_60 : f32 to vector<8x64xf32>
    %232 = arith.select %228, %230, %231 : vector<8x64xi1>, vector<8x64xf32>
    %233 = arith.addf %219, %232 : vector<8x64xf32>
    %234 = arith.mulf %122, %221 : vector<8x64xf32>
    %235 = arith.addf %234, %159 : vector<8x64xf32>
    %236 = vector.extract_strided_slice %90 {offsets = [0, 4], sizes = [8, 1], strides = [1, 1]} : vector<8x8xf32> to vector<8x1xf32>
    %237 = vector.broadcast %236 : vector<8x1xf32> to vector<8x64xf32>
    %238 = arith.mulf %235, %237 : vector<8x64xf32>
    %cst_61 = arith.constant dense<0.000000e+00> : vector<64xf32>
    %239 = vector.multi_reduction <add>, %238, %cst_61 [0] : vector<8x64xf32> to vector<64xf32>
    %240 = vector.shape_cast %239 : vector<64xf32> to vector<1x64xf32>
    %c4_i32 = arith.constant 4 : i32
    %241 = vector.broadcast %c4_i32 : i32 to vector<8x64xi32>
    %242 = arith.cmpi eq, %31, %241 : vector<8x64xi32>
    %cst_62 = arith.constant 0.000000e+00 : f32
    %243 = vector.shape_cast %240 : vector<1x64xf32> to vector<1x64xf32>
    %244 = vector.broadcast %243 : vector<1x64xf32> to vector<8x64xf32>
    %245 = vector.broadcast %cst_62 : f32 to vector<8x64xf32>
    %246 = arith.select %242, %244, %245 : vector<8x64xi1>, vector<8x64xf32>
    %247 = arith.addf %233, %246 : vector<8x64xf32>
    %248 = arith.mulf %126, %235 : vector<8x64xf32>
    %249 = arith.addf %248, %164 : vector<8x64xf32>
    %250 = vector.extract_strided_slice %90 {offsets = [0, 5], sizes = [8, 1], strides = [1, 1]} : vector<8x8xf32> to vector<8x1xf32>
    %251 = vector.broadcast %250 : vector<8x1xf32> to vector<8x64xf32>
    %252 = arith.mulf %249, %251 : vector<8x64xf32>
    %cst_63 = arith.constant dense<0.000000e+00> : vector<64xf32>
    %253 = vector.multi_reduction <add>, %252, %cst_63 [0] : vector<8x64xf32> to vector<64xf32>
    %254 = vector.shape_cast %253 : vector<64xf32> to vector<1x64xf32>
    %c5_i32 = arith.constant 5 : i32
    %255 = vector.broadcast %c5_i32 : i32 to vector<8x64xi32>
    %256 = arith.cmpi eq, %31, %255 : vector<8x64xi32>
    %cst_64 = arith.constant 0.000000e+00 : f32
    %257 = vector.shape_cast %254 : vector<1x64xf32> to vector<1x64xf32>
    %258 = vector.broadcast %257 : vector<1x64xf32> to vector<8x64xf32>
    %259 = vector.broadcast %cst_64 : f32 to vector<8x64xf32>
    %260 = arith.select %256, %258, %259 : vector<8x64xi1>, vector<8x64xf32>
    %261 = arith.addf %247, %260 : vector<8x64xf32>
    %262 = arith.mulf %130, %249 : vector<8x64xf32>
    %263 = arith.addf %262, %169 : vector<8x64xf32>
    %264 = vector.extract_strided_slice %90 {offsets = [0, 6], sizes = [8, 1], strides = [1, 1]} : vector<8x8xf32> to vector<8x1xf32>
    %265 = vector.broadcast %264 : vector<8x1xf32> to vector<8x64xf32>
    %266 = arith.mulf %263, %265 : vector<8x64xf32>
    %cst_65 = arith.constant dense<0.000000e+00> : vector<64xf32>
    %267 = vector.multi_reduction <add>, %266, %cst_65 [0] : vector<8x64xf32> to vector<64xf32>
    %268 = vector.shape_cast %267 : vector<64xf32> to vector<1x64xf32>
    %c6_i32 = arith.constant 6 : i32
    %269 = vector.broadcast %c6_i32 : i32 to vector<8x64xi32>
    %270 = arith.cmpi eq, %31, %269 : vector<8x64xi32>
    %cst_66 = arith.constant 0.000000e+00 : f32
    %271 = vector.shape_cast %268 : vector<1x64xf32> to vector<1x64xf32>
    %272 = vector.broadcast %271 : vector<1x64xf32> to vector<8x64xf32>
    %273 = vector.broadcast %cst_66 : f32 to vector<8x64xf32>
    %274 = arith.select %270, %272, %273 : vector<8x64xi1>, vector<8x64xf32>
    %275 = arith.addf %261, %274 : vector<8x64xf32>
    %276 = arith.mulf %134, %263 : vector<8x64xf32>
    %277 = arith.addf %276, %174 : vector<8x64xf32>
    %278 = vector.extract_strided_slice %90 {offsets = [0, 7], sizes = [8, 1], strides = [1, 1]} : vector<8x8xf32> to vector<8x1xf32>
    %279 = vector.broadcast %278 : vector<8x1xf32> to vector<8x64xf32>
    %280 = arith.mulf %277, %279 : vector<8x64xf32>
    %cst_67 = arith.constant dense<0.000000e+00> : vector<64xf32>
    %281 = vector.multi_reduction <add>, %280, %cst_67 [0] : vector<8x64xf32> to vector<64xf32>
    %282 = vector.shape_cast %281 : vector<64xf32> to vector<1x64xf32>
    %c7_i32 = arith.constant 7 : i32
    %283 = vector.broadcast %c7_i32 : i32 to vector<8x64xi32>
    %284 = arith.cmpi eq, %31, %283 : vector<8x64xi32>
    %cst_68 = arith.constant 0.000000e+00 : f32
    %285 = vector.shape_cast %282 : vector<1x64xf32> to vector<1x64xf32>
    %286 = vector.broadcast %285 : vector<1x64xf32> to vector<8x64xf32>
    %287 = vector.broadcast %cst_68 : f32 to vector<8x64xf32>
    %288 = arith.select %284, %286, %287 : vector<8x64xi1>, vector<8x64xf32>
    %289 = arith.addf %275, %288 : vector<8x64xf32>
    %290 = arith.negf %55 : vector<8x64xf32>
    %291 = math.exp %290 : vector<8x64xf32>
    %cst_69 = arith.constant 1.000000e+00 : f32
    %292 = vector.broadcast %cst_69 : f32 to vector<8x64xf32>
    %293 = arith.addf %292, %291 : vector<8x64xf32>
    %294 = arith.divf %292, %293 : vector<8x64xf32>
    %295 = arith.mulf %55, %294 : vector<8x64xf32>
    %296 = arith.mulf %289, %295 : vector<8x64xf32>
    %cst_70 = arith.constant dense<0.000000e+00> : vector<8x32xf32>
    %297 = tpu.matmul %296, %52, %cst_70 {dimension_numbers = #tpu.dot_dimension_numbers<[1], [0], [0], [1], [0, 0, 1, 1], [], []>} : vector<8x64xf32>, vector<64x32xf32>, vector<8x32xf32> -> vector<8x32xf32>
    %c1 = arith.constant 1 : index
    %c0_71 = arith.constant 0 : index
    %c0_72 = arith.constant 0 : index
    %298 = vector.load %arg10[%c1, %c0_71, %c0_72] : memref<4x32x128xf32, #tpu.memory_space<vmem>>, vector<1x32x128xf32>
    %299 = vector.shape_cast %298 : vector<1x32x128xf32> to vector<32x128xf32>
    %c1_73 = arith.constant 1 : index
    %c0_74 = arith.constant 0 : index
    %c0_75 = arith.constant 0 : index
    %300 = vector.load %arg11[%c1_73, %c0_74, %c0_75] : memref<4x4x64xf32, #tpu.memory_space<vmem>>, vector<1x4x64xf32>
    %301 = vector.shape_cast %300 : vector<1x4x64xf32> to vector<4x64xf32>
    %c1_76 = arith.constant 1 : index
    %c0_77 = arith.constant 0 : index
    %c0_78 = arith.constant 0 : index
    %302 = vector.load %arg12[%c1_76, %c0_77, %c0_78] : memref<4x1x64xf32, #tpu.memory_space<vmem>>, vector<1x1x64xf32>
    %303 = vector.shape_cast %302 : vector<1x1x64xf32> to vector<1x64xf32>
    %c1_79 = arith.constant 1 : index
    %c0_80 = arith.constant 0 : index
    %c0_81 = arith.constant 0 : index
    %304 = vector.load %arg13[%c1_79, %c0_80, %c0_81] : memref<4x16x64xf32, #tpu.memory_space<vmem>>, vector<1x16x64xf32>
    %305 = vector.shape_cast %304 : vector<1x16x64xf32> to vector<16x64xf32>
    %c1_82 = arith.constant 1 : index
    %c0_83 = arith.constant 0 : index
    %c0_84 = arith.constant 0 : index
    %306 = vector.load %arg14[%c1_82, %c0_83, %c0_84] : memref<4x64x64xf32, #tpu.memory_space<vmem>>, vector<1x64x64xf32>
    %307 = vector.shape_cast %306 : vector<1x64x64xf32> to vector<64x64xf32>
    %c1_85 = arith.constant 1 : index
    %c0_86 = arith.constant 0 : index
    %c0_87 = arith.constant 0 : index
    %308 = vector.load %arg15[%c1_85, %c0_86, %c0_87] : memref<4x1x64xf32, #tpu.memory_space<vmem>>, vector<1x1x64xf32>
    %309 = vector.shape_cast %308 : vector<1x1x64xf32> to vector<1x64xf32>
    %c1_88 = arith.constant 1 : index
    %c0_89 = arith.constant 0 : index
    %c0_90 = arith.constant 0 : index
    %310 = vector.load %arg16[%c1_88, %c0_89, %c0_90] : memref<4x8x64xf32, #tpu.memory_space<vmem>>, vector<1x8x64xf32>
    %311 = vector.shape_cast %310 : vector<1x8x64xf32> to vector<8x64xf32>
    %312 = math.exp %311 : vector<8x64xf32>
    %cst_91 = arith.constant 0.000000e+00 : f32
    %313 = vector.broadcast %cst_91 : f32 to vector<8x64xf32>
    %314 = arith.subf %313, %312 : vector<8x64xf32>
    %c1_92 = arith.constant 1 : index
    %c0_93 = arith.constant 0 : index
    %c0_94 = arith.constant 0 : index
    %315 = vector.load %arg17[%c1_92, %c0_93, %c0_94] : memref<4x1x64xf32, #tpu.memory_space<vmem>>, vector<1x1x64xf32>
    %316 = vector.shape_cast %315 : vector<1x1x64xf32> to vector<1x64xf32>
    %c1_95 = arith.constant 1 : index
    %c0_96 = arith.constant 0 : index
    %c0_97 = arith.constant 0 : index
    %317 = vector.load %arg18[%c1_95, %c0_96, %c0_97] : memref<4x64x32xf32, #tpu.memory_space<vmem>>, vector<1x64x32xf32>
    %318 = vector.shape_cast %317 : vector<1x64x32xf32> to vector<64x32xf32>
    %cst_98 = arith.constant dense<0.000000e+00> : vector<8x128xf32>
    %319 = tpu.matmul %30, %299, %cst_98 {dimension_numbers = #tpu.dot_dimension_numbers<[1], [0], [0], [1], [0, 0, 1, 1], [], []>} : vector<8x32xf32>, vector<32x128xf32>, vector<8x128xf32> -> vector<8x128xf32>
    %320 = vector.extract_strided_slice %319 {offsets = [0, 0], sizes = [8, 64], strides = [1, 1]} : vector<8x128xf32> to vector<8x64xf32>
    %321 = vector.extract_strided_slice %319 {offsets = [0, 64], sizes = [8, 64], strides = [1, 1]} : vector<8x128xf32> to vector<8x64xf32>
    %322 = vector.extract_strided_slice %301 {offsets = [3, 0], sizes = [1, 64], strides = [1, 1]} : vector<4x64xf32> to vector<1x64xf32>
    %323 = vector.broadcast %322 : vector<1x64xf32> to vector<8x64xf32>
    %324 = arith.mulf %323, %320 : vector<8x64xf32>
    %cst_99 = arith.constant 0.000000e+00 : f32
    %325 = vector.broadcast %cst_99 : f32 to vector<1x64xf32>
    %326 = vector.extract_strided_slice %320 {offsets = [1, 0], sizes = [7, 64], strides = [1, 1]} : vector<8x64xf32> to vector<7x64xf32>
    %327 = tpu.concatenate %326, %325 in 0 : vector<7x64xf32>, vector<1x64xf32> -> vector<8x64xf32>
    %328 = vector.extract_strided_slice %301 {offsets = [2, 0], sizes = [1, 64], strides = [1, 1]} : vector<4x64xf32> to vector<1x64xf32>
    %329 = vector.broadcast %328 : vector<1x64xf32> to vector<8x64xf32>
    %330 = arith.mulf %329, %327 : vector<8x64xf32>
    %331 = arith.addf %324, %330 : vector<8x64xf32>
    %cst_100 = arith.constant 0.000000e+00 : f32
    %332 = vector.broadcast %cst_100 : f32 to vector<2x64xf32>
    %333 = vector.extract_strided_slice %320 {offsets = [2, 0], sizes = [6, 64], strides = [1, 1]} : vector<8x64xf32> to vector<6x64xf32>
    %334 = tpu.concatenate %333, %332 in 0 : vector<6x64xf32>, vector<2x64xf32> -> vector<8x64xf32>
    %335 = vector.extract_strided_slice %301 {offsets = [1, 0], sizes = [1, 64], strides = [1, 1]} : vector<4x64xf32> to vector<1x64xf32>
    %336 = vector.broadcast %335 : vector<1x64xf32> to vector<8x64xf32>
    %337 = arith.mulf %336, %334 : vector<8x64xf32>
    %338 = arith.addf %331, %337 : vector<8x64xf32>
    %cst_101 = arith.constant 0.000000e+00 : f32
    %339 = vector.broadcast %cst_101 : f32 to vector<3x64xf32>
    %340 = vector.extract_strided_slice %320 {offsets = [3, 0], sizes = [5, 64], strides = [1, 1]} : vector<8x64xf32> to vector<5x64xf32>
    %341 = tpu.concatenate %340, %339 in 0 : vector<5x64xf32>, vector<3x64xf32> -> vector<8x64xf32>
    %342 = vector.extract_strided_slice %301 {offsets = [0, 0], sizes = [1, 64], strides = [1, 1]} : vector<4x64xf32> to vector<1x64xf32>
    %343 = vector.broadcast %342 : vector<1x64xf32> to vector<8x64xf32>
    %344 = arith.mulf %343, %341 : vector<8x64xf32>
    %345 = arith.addf %338, %344 : vector<8x64xf32>
    %346 = vector.broadcast %303 : vector<1x64xf32> to vector<8x64xf32>
    %347 = arith.addf %345, %346 : vector<8x64xf32>
    %348 = arith.negf %347 : vector<8x64xf32>
    %349 = math.exp %348 : vector<8x64xf32>
    %cst_102 = arith.constant 1.000000e+00 : f32
    %350 = vector.broadcast %cst_102 : f32 to vector<8x64xf32>
    %351 = arith.addf %350, %349 : vector<8x64xf32>
    %352 = arith.divf %350, %351 : vector<8x64xf32>
    %353 = arith.mulf %347, %352 : vector<8x64xf32>
    %cst_103 = arith.constant dense<0.000000e+00> : vector<16x8xf32>
    %354 = tpu.matmul %305, %353, %cst_103 {dimension_numbers = #tpu.dot_dimension_numbers<[1], [1], [0], [0], [0, 0, 1, 0], [], []>} : vector<16x64xf32>, vector<8x64xf32>, vector<16x8xf32> -> vector<16x8xf32>
    %355 = vector.extract_strided_slice %354 {offsets = [0, 0], sizes = [8, 8], strides = [1, 1]} : vector<16x8xf32> to vector<8x8xf32>
    %356 = vector.extract_strided_slice %354 {offsets = [8, 0], sizes = [8, 8], strides = [1, 1]} : vector<16x8xf32> to vector<8x8xf32>
    %cst_104 = arith.constant dense<0.000000e+00> : vector<8x64xf32>
    %357 = tpu.matmul %353, %307, %cst_104 {dimension_numbers = #tpu.dot_dimension_numbers<[1], [0], [0], [1], [0, 0, 1, 1], [], []>} : vector<8x64xf32>, vector<64x64xf32>, vector<8x64xf32> -> vector<8x64xf32>
    %358 = vector.broadcast %309 : vector<1x64xf32> to vector<8x64xf32>
    %359 = arith.addf %357, %358 : vector<8x64xf32>
    %cst_105 = arith.constant 0.000000e+00 : f32
    %360 = vector.broadcast %cst_105 : f32 to vector<8x64xf32>
    %361 = arith.maximumf %359, %360 : vector<8x64xf32>
    %362 = math.absf %359 : vector<8x64xf32>
    %cst_106 = arith.constant 0.000000e+00 : f32
    %363 = vector.broadcast %cst_106 : f32 to vector<8x64xf32>
    %364 = arith.subf %363, %362 : vector<8x64xf32>
    %365 = math.exp %364 : vector<8x64xf32>
    %366 = math.log1p %365 : vector<8x64xf32>
    %367 = arith.addf %361, %366 : vector<8x64xf32>
    %368 = arith.mulf %367, %353 : vector<8x64xf32>
    %369 = vector.extract_strided_slice %367 {offsets = [0, 0], sizes = [1, 64], strides = [1, 1]} : vector<8x64xf32> to vector<1x64xf32>
    %370 = vector.broadcast %369 : vector<1x64xf32> to vector<8x64xf32>
    %371 = arith.mulf %370, %314 : vector<8x64xf32>
    %372 = math.exp %371 : vector<8x64xf32>
    %373 = vector.extract_strided_slice %367 {offsets = [1, 0], sizes = [1, 64], strides = [1, 1]} : vector<8x64xf32> to vector<1x64xf32>
    %374 = vector.broadcast %373 : vector<1x64xf32> to vector<8x64xf32>
    %375 = arith.mulf %374, %314 : vector<8x64xf32>
    %376 = math.exp %375 : vector<8x64xf32>
    %377 = vector.extract_strided_slice %367 {offsets = [2, 0], sizes = [1, 64], strides = [1, 1]} : vector<8x64xf32> to vector<1x64xf32>
    %378 = vector.broadcast %377 : vector<1x64xf32> to vector<8x64xf32>
    %379 = arith.mulf %378, %314 : vector<8x64xf32>
    %380 = math.exp %379 : vector<8x64xf32>
    %381 = vector.extract_strided_slice %367 {offsets = [3, 0], sizes = [1, 64], strides = [1, 1]} : vector<8x64xf32> to vector<1x64xf32>
    %382 = vector.broadcast %381 : vector<1x64xf32> to vector<8x64xf32>
    %383 = arith.mulf %382, %314 : vector<8x64xf32>
    %384 = math.exp %383 : vector<8x64xf32>
    %385 = vector.extract_strided_slice %367 {offsets = [4, 0], sizes = [1, 64], strides = [1, 1]} : vector<8x64xf32> to vector<1x64xf32>
    %386 = vector.broadcast %385 : vector<1x64xf32> to vector<8x64xf32>
    %387 = arith.mulf %386, %314 : vector<8x64xf32>
    %388 = math.exp %387 : vector<8x64xf32>
    %389 = vector.extract_strided_slice %367 {offsets = [5, 0], sizes = [1, 64], strides = [1, 1]} : vector<8x64xf32> to vector<1x64xf32>
    %390 = vector.broadcast %389 : vector<1x64xf32> to vector<8x64xf32>
    %391 = arith.mulf %390, %314 : vector<8x64xf32>
    %392 = math.exp %391 : vector<8x64xf32>
    %393 = vector.extract_strided_slice %367 {offsets = [6, 0], sizes = [1, 64], strides = [1, 1]} : vector<8x64xf32> to vector<1x64xf32>
    %394 = vector.broadcast %393 : vector<1x64xf32> to vector<8x64xf32>
    %395 = arith.mulf %394, %314 : vector<8x64xf32>
    %396 = math.exp %395 : vector<8x64xf32>
    %397 = vector.extract_strided_slice %367 {offsets = [7, 0], sizes = [1, 64], strides = [1, 1]} : vector<8x64xf32> to vector<1x64xf32>
    %398 = vector.broadcast %397 : vector<1x64xf32> to vector<8x64xf32>
    %399 = arith.mulf %398, %314 : vector<8x64xf32>
    %400 = math.exp %399 : vector<8x64xf32>
    %401 = vector.extract_strided_slice %368 {offsets = [0, 0], sizes = [1, 64], strides = [1, 1]} : vector<8x64xf32> to vector<1x64xf32>
    %402 = vector.extract_strided_slice %355 {offsets = [0, 0], sizes = [8, 1], strides = [1, 1]} : vector<8x8xf32> to vector<8x1xf32>
    %403 = vector.broadcast %401 : vector<1x64xf32> to vector<8x64xf32>
    %404 = vector.broadcast %402 : vector<8x1xf32> to vector<8x64xf32>
    %405 = arith.mulf %403, %404 : vector<8x64xf32>
    %406 = vector.extract_strided_slice %368 {offsets = [1, 0], sizes = [1, 64], strides = [1, 1]} : vector<8x64xf32> to vector<1x64xf32>
    %407 = vector.extract_strided_slice %355 {offsets = [0, 1], sizes = [8, 1], strides = [1, 1]} : vector<8x8xf32> to vector<8x1xf32>
    %408 = vector.broadcast %406 : vector<1x64xf32> to vector<8x64xf32>
    %409 = vector.broadcast %407 : vector<8x1xf32> to vector<8x64xf32>
    %410 = arith.mulf %408, %409 : vector<8x64xf32>
    %411 = vector.extract_strided_slice %368 {offsets = [2, 0], sizes = [1, 64], strides = [1, 1]} : vector<8x64xf32> to vector<1x64xf32>
    %412 = vector.extract_strided_slice %355 {offsets = [0, 2], sizes = [8, 1], strides = [1, 1]} : vector<8x8xf32> to vector<8x1xf32>
    %413 = vector.broadcast %411 : vector<1x64xf32> to vector<8x64xf32>
    %414 = vector.broadcast %412 : vector<8x1xf32> to vector<8x64xf32>
    %415 = arith.mulf %413, %414 : vector<8x64xf32>
    %416 = vector.extract_strided_slice %368 {offsets = [3, 0], sizes = [1, 64], strides = [1, 1]} : vector<8x64xf32> to vector<1x64xf32>
    %417 = vector.extract_strided_slice %355 {offsets = [0, 3], sizes = [8, 1], strides = [1, 1]} : vector<8x8xf32> to vector<8x1xf32>
    %418 = vector.broadcast %416 : vector<1x64xf32> to vector<8x64xf32>
    %419 = vector.broadcast %417 : vector<8x1xf32> to vector<8x64xf32>
    %420 = arith.mulf %418, %419 : vector<8x64xf32>
    %421 = vector.extract_strided_slice %368 {offsets = [4, 0], sizes = [1, 64], strides = [1, 1]} : vector<8x64xf32> to vector<1x64xf32>
    %422 = vector.extract_strided_slice %355 {offsets = [0, 4], sizes = [8, 1], strides = [1, 1]} : vector<8x8xf32> to vector<8x1xf32>
    %423 = vector.broadcast %421 : vector<1x64xf32> to vector<8x64xf32>
    %424 = vector.broadcast %422 : vector<8x1xf32> to vector<8x64xf32>
    %425 = arith.mulf %423, %424 : vector<8x64xf32>
    %426 = vector.extract_strided_slice %368 {offsets = [5, 0], sizes = [1, 64], strides = [1, 1]} : vector<8x64xf32> to vector<1x64xf32>
    %427 = vector.extract_strided_slice %355 {offsets = [0, 5], sizes = [8, 1], strides = [1, 1]} : vector<8x8xf32> to vector<8x1xf32>
    %428 = vector.broadcast %426 : vector<1x64xf32> to vector<8x64xf32>
    %429 = vector.broadcast %427 : vector<8x1xf32> to vector<8x64xf32>
    %430 = arith.mulf %428, %429 : vector<8x64xf32>
    %431 = vector.extract_strided_slice %368 {offsets = [6, 0], sizes = [1, 64], strides = [1, 1]} : vector<8x64xf32> to vector<1x64xf32>
    %432 = vector.extract_strided_slice %355 {offsets = [0, 6], sizes = [8, 1], strides = [1, 1]} : vector<8x8xf32> to vector<8x1xf32>
    %433 = vector.broadcast %431 : vector<1x64xf32> to vector<8x64xf32>
    %434 = vector.broadcast %432 : vector<8x1xf32> to vector<8x64xf32>
    %435 = arith.mulf %433, %434 : vector<8x64xf32>
    %436 = vector.extract_strided_slice %368 {offsets = [7, 0], sizes = [1, 64], strides = [1, 1]} : vector<8x64xf32> to vector<1x64xf32>
    %437 = vector.extract_strided_slice %355 {offsets = [0, 7], sizes = [8, 1], strides = [1, 1]} : vector<8x8xf32> to vector<8x1xf32>
    %438 = vector.broadcast %436 : vector<1x64xf32> to vector<8x64xf32>
    %439 = vector.broadcast %437 : vector<8x1xf32> to vector<8x64xf32>
    %440 = arith.mulf %438, %439 : vector<8x64xf32>
    %cst_107 = arith.constant 0.000000e+00 : f32
    %441 = vector.broadcast %cst_107 : f32 to vector<8x64xf32>
    %442 = vector.broadcast %316 : vector<1x64xf32> to vector<8x64xf32>
    %443 = arith.mulf %442, %353 : vector<8x64xf32>
    %444 = arith.mulf %400, %441 : vector<8x64xf32>
    %445 = arith.addf %444, %440 : vector<8x64xf32>
    %446 = vector.extract_strided_slice %356 {offsets = [0, 7], sizes = [8, 1], strides = [1, 1]} : vector<8x8xf32> to vector<8x1xf32>
    %447 = vector.broadcast %446 : vector<8x1xf32> to vector<8x64xf32>
    %448 = arith.mulf %445, %447 : vector<8x64xf32>
    %cst_108 = arith.constant dense<0.000000e+00> : vector<64xf32>
    %449 = vector.multi_reduction <add>, %448, %cst_108 [0] : vector<8x64xf32> to vector<64xf32>
    %450 = vector.shape_cast %449 : vector<64xf32> to vector<1x64xf32>
    %c7_i32_109 = arith.constant 7 : i32
    %451 = vector.broadcast %c7_i32_109 : i32 to vector<8x64xi32>
    %452 = arith.cmpi eq, %31, %451 : vector<8x64xi32>
    %cst_110 = arith.constant 0.000000e+00 : f32
    %453 = vector.shape_cast %450 : vector<1x64xf32> to vector<1x64xf32>
    %454 = vector.broadcast %453 : vector<1x64xf32> to vector<8x64xf32>
    %455 = vector.broadcast %cst_110 : f32 to vector<8x64xf32>
    %456 = arith.select %452, %454, %455 : vector<8x64xi1>, vector<8x64xf32>
    %457 = arith.addf %443, %456 : vector<8x64xf32>
    %458 = arith.mulf %396, %445 : vector<8x64xf32>
    %459 = arith.addf %458, %435 : vector<8x64xf32>
    %460 = vector.extract_strided_slice %356 {offsets = [0, 6], sizes = [8, 1], strides = [1, 1]} : vector<8x8xf32> to vector<8x1xf32>
    %461 = vector.broadcast %460 : vector<8x1xf32> to vector<8x64xf32>
    %462 = arith.mulf %459, %461 : vector<8x64xf32>
    %cst_111 = arith.constant dense<0.000000e+00> : vector<64xf32>
    %463 = vector.multi_reduction <add>, %462, %cst_111 [0] : vector<8x64xf32> to vector<64xf32>
    %464 = vector.shape_cast %463 : vector<64xf32> to vector<1x64xf32>
    %c6_i32_112 = arith.constant 6 : i32
    %465 = vector.broadcast %c6_i32_112 : i32 to vector<8x64xi32>
    %466 = arith.cmpi eq, %31, %465 : vector<8x64xi32>
    %cst_113 = arith.constant 0.000000e+00 : f32
    %467 = vector.shape_cast %464 : vector<1x64xf32> to vector<1x64xf32>
    %468 = vector.broadcast %467 : vector<1x64xf32> to vector<8x64xf32>
    %469 = vector.broadcast %cst_113 : f32 to vector<8x64xf32>
    %470 = arith.select %466, %468, %469 : vector<8x64xi1>, vector<8x64xf32>
    %471 = arith.addf %457, %470 : vector<8x64xf32>
    %472 = arith.mulf %392, %459 : vector<8x64xf32>
    %473 = arith.addf %472, %430 : vector<8x64xf32>
    %474 = vector.extract_strided_slice %356 {offsets = [0, 5], sizes = [8, 1], strides = [1, 1]} : vector<8x8xf32> to vector<8x1xf32>
    %475 = vector.broadcast %474 : vector<8x1xf32> to vector<8x64xf32>
    %476 = arith.mulf %473, %475 : vector<8x64xf32>
    %cst_114 = arith.constant dense<0.000000e+00> : vector<64xf32>
    %477 = vector.multi_reduction <add>, %476, %cst_114 [0] : vector<8x64xf32> to vector<64xf32>
    %478 = vector.shape_cast %477 : vector<64xf32> to vector<1x64xf32>
    %c5_i32_115 = arith.constant 5 : i32
    %479 = vector.broadcast %c5_i32_115 : i32 to vector<8x64xi32>
    %480 = arith.cmpi eq, %31, %479 : vector<8x64xi32>
    %cst_116 = arith.constant 0.000000e+00 : f32
    %481 = vector.shape_cast %478 : vector<1x64xf32> to vector<1x64xf32>
    %482 = vector.broadcast %481 : vector<1x64xf32> to vector<8x64xf32>
    %483 = vector.broadcast %cst_116 : f32 to vector<8x64xf32>
    %484 = arith.select %480, %482, %483 : vector<8x64xi1>, vector<8x64xf32>
    %485 = arith.addf %471, %484 : vector<8x64xf32>
    %486 = arith.mulf %388, %473 : vector<8x64xf32>
    %487 = arith.addf %486, %425 : vector<8x64xf32>
    %488 = vector.extract_strided_slice %356 {offsets = [0, 4], sizes = [8, 1], strides = [1, 1]} : vector<8x8xf32> to vector<8x1xf32>
    %489 = vector.broadcast %488 : vector<8x1xf32> to vector<8x64xf32>
    %490 = arith.mulf %487, %489 : vector<8x64xf32>
    %cst_117 = arith.constant dense<0.000000e+00> : vector<64xf32>
    %491 = vector.multi_reduction <add>, %490, %cst_117 [0] : vector<8x64xf32> to vector<64xf32>
    %492 = vector.shape_cast %491 : vector<64xf32> to vector<1x64xf32>
    %c4_i32_118 = arith.constant 4 : i32
    %493 = vector.broadcast %c4_i32_118 : i32 to vector<8x64xi32>
    %494 = arith.cmpi eq, %31, %493 : vector<8x64xi32>
    %cst_119 = arith.constant 0.000000e+00 : f32
    %495 = vector.shape_cast %492 : vector<1x64xf32> to vector<1x64xf32>
    %496 = vector.broadcast %495 : vector<1x64xf32> to vector<8x64xf32>
    %497 = vector.broadcast %cst_119 : f32 to vector<8x64xf32>
    %498 = arith.select %494, %496, %497 : vector<8x64xi1>, vector<8x64xf32>
    %499 = arith.addf %485, %498 : vector<8x64xf32>
    %500 = arith.mulf %384, %487 : vector<8x64xf32>
    %501 = arith.addf %500, %420 : vector<8x64xf32>
    %502 = vector.extract_strided_slice %356 {offsets = [0, 3], sizes = [8, 1], strides = [1, 1]} : vector<8x8xf32> to vector<8x1xf32>
    %503 = vector.broadcast %502 : vector<8x1xf32> to vector<8x64xf32>
    %504 = arith.mulf %501, %503 : vector<8x64xf32>
    %cst_120 = arith.constant dense<0.000000e+00> : vector<64xf32>
    %505 = vector.multi_reduction <add>, %504, %cst_120 [0] : vector<8x64xf32> to vector<64xf32>
    %506 = vector.shape_cast %505 : vector<64xf32> to vector<1x64xf32>
    %c3_i32_121 = arith.constant 3 : i32
    %507 = vector.broadcast %c3_i32_121 : i32 to vector<8x64xi32>
    %508 = arith.cmpi eq, %31, %507 : vector<8x64xi32>
    %cst_122 = arith.constant 0.000000e+00 : f32
    %509 = vector.shape_cast %506 : vector<1x64xf32> to vector<1x64xf32>
    %510 = vector.broadcast %509 : vector<1x64xf32> to vector<8x64xf32>
    %511 = vector.broadcast %cst_122 : f32 to vector<8x64xf32>
    %512 = arith.select %508, %510, %511 : vector<8x64xi1>, vector<8x64xf32>
    %513 = arith.addf %499, %512 : vector<8x64xf32>
    %514 = arith.mulf %380, %501 : vector<8x64xf32>
    %515 = arith.addf %514, %415 : vector<8x64xf32>
    %516 = vector.extract_strided_slice %356 {offsets = [0, 2], sizes = [8, 1], strides = [1, 1]} : vector<8x8xf32> to vector<8x1xf32>
    %517 = vector.broadcast %516 : vector<8x1xf32> to vector<8x64xf32>
    %518 = arith.mulf %515, %517 : vector<8x64xf32>
    %cst_123 = arith.constant dense<0.000000e+00> : vector<64xf32>
    %519 = vector.multi_reduction <add>, %518, %cst_123 [0] : vector<8x64xf32> to vector<64xf32>
    %520 = vector.shape_cast %519 : vector<64xf32> to vector<1x64xf32>
    %c2_i32_124 = arith.constant 2 : i32
    %521 = vector.broadcast %c2_i32_124 : i32 to vector<8x64xi32>
    %522 = arith.cmpi eq, %31, %521 : vector<8x64xi32>
    %cst_125 = arith.constant 0.000000e+00 : f32
    %523 = vector.shape_cast %520 : vector<1x64xf32> to vector<1x64xf32>
    %524 = vector.broadcast %523 : vector<1x64xf32> to vector<8x64xf32>
    %525 = vector.broadcast %cst_125 : f32 to vector<8x64xf32>
    %526 = arith.select %522, %524, %525 : vector<8x64xi1>, vector<8x64xf32>
    %527 = arith.addf %513, %526 : vector<8x64xf32>
    %528 = arith.mulf %376, %515 : vector<8x64xf32>
    %529 = arith.addf %528, %410 : vector<8x64xf32>
    %530 = vector.extract_strided_slice %356 {offsets = [0, 1], sizes = [8, 1], strides = [1, 1]} : vector<8x8xf32> to vector<8x1xf32>
    %531 = vector.broadcast %530 : vector<8x1xf32> to vector<8x64xf32>
    %532 = arith.mulf %529, %531 : vector<8x64xf32>
    %cst_126 = arith.constant dense<0.000000e+00> : vector<64xf32>
    %533 = vector.multi_reduction <add>, %532, %cst_126 [0] : vector<8x64xf32> to vector<64xf32>
    %534 = vector.shape_cast %533 : vector<64xf32> to vector<1x64xf32>
    %c1_i32_127 = arith.constant 1 : i32
    %535 = vector.broadcast %c1_i32_127 : i32 to vector<8x64xi32>
    %536 = arith.cmpi eq, %31, %535 : vector<8x64xi32>
    %cst_128 = arith.constant 0.000000e+00 : f32
    %537 = vector.shape_cast %534 : vector<1x64xf32> to vector<1x64xf32>
    %538 = vector.broadcast %537 : vector<1x64xf32> to vector<8x64xf32>
    %539 = vector.broadcast %cst_128 : f32 to vector<8x64xf32>
    %540 = arith.select %536, %538, %539 : vector<8x64xi1>, vector<8x64xf32>
    %541 = arith.addf %527, %540 : vector<8x64xf32>
    %542 = arith.mulf %372, %529 : vector<8x64xf32>
    %543 = arith.addf %542, %405 : vector<8x64xf32>
    %544 = vector.extract_strided_slice %356 {offsets = [0, 0], sizes = [8, 1], strides = [1, 1]} : vector<8x8xf32> to vector<8x1xf32>
    %545 = vector.broadcast %544 : vector<8x1xf32> to vector<8x64xf32>
    %546 = arith.mulf %543, %545 : vector<8x64xf32>
    %cst_129 = arith.constant dense<0.000000e+00> : vector<64xf32>
    %547 = vector.multi_reduction <add>, %546, %cst_129 [0] : vector<8x64xf32> to vector<64xf32>
    %548 = vector.shape_cast %547 : vector<64xf32> to vector<1x64xf32>
    %c0_i32_130 = arith.constant 0 : i32
    %549 = vector.broadcast %c0_i32_130 : i32 to vector<8x64xi32>
    %550 = arith.cmpi eq, %31, %549 : vector<8x64xi32>
    %cst_131 = arith.constant 0.000000e+00 : f32
    %551 = vector.shape_cast %548 : vector<1x64xf32> to vector<1x64xf32>
    %552 = vector.broadcast %551 : vector<1x64xf32> to vector<8x64xf32>
    %553 = vector.broadcast %cst_131 : f32 to vector<8x64xf32>
    %554 = arith.select %550, %552, %553 : vector<8x64xi1>, vector<8x64xf32>
    %555 = arith.addf %541, %554 : vector<8x64xf32>
    %556 = arith.negf %321 : vector<8x64xf32>
    %557 = math.exp %556 : vector<8x64xf32>
    %cst_132 = arith.constant 1.000000e+00 : f32
    %558 = vector.broadcast %cst_132 : f32 to vector<8x64xf32>
    %559 = arith.addf %558, %557 : vector<8x64xf32>
    %560 = arith.divf %558, %559 : vector<8x64xf32>
    %561 = arith.mulf %321, %560 : vector<8x64xf32>
    %562 = arith.mulf %555, %561 : vector<8x64xf32>
    %cst_133 = arith.constant dense<0.000000e+00> : vector<8x32xf32>
    %563 = tpu.matmul %562, %318, %cst_133 {dimension_numbers = #tpu.dot_dimension_numbers<[1], [0], [0], [1], [0, 0, 1, 1], [], []>} : vector<8x64xf32>, vector<64x32xf32>, vector<8x32xf32> -> vector<8x32xf32>
    %564 = arith.addf %297, %563 : vector<8x32xf32>
    %565 = arith.addf %30, %564 : vector<8x32xf32>
    %c0_134 = arith.constant 0 : index
    %c0_135 = arith.constant 0 : index
    %c0_136 = arith.constant 0 : index
    %566 = vector.load %arg19[%c0_134, %c0_135, %c0_136] : memref<2x1x32xf32, #tpu.memory_space<vmem>>, vector<1x1x32xf32>
    %567 = vector.shape_cast %566 : vector<1x1x32xf32> to vector<1x32xf32>
    %c0_137 = arith.constant 0 : index
    %c0_138 = arith.constant 0 : index
    %c0_139 = arith.constant 0 : index
    %568 = vector.load %arg20[%c0_137, %c0_138, %c0_139] : memref<2x1x32xf32, #tpu.memory_space<vmem>>, vector<1x1x32xf32>
    %569 = vector.shape_cast %568 : vector<1x1x32xf32> to vector<1x32xf32>
    %cst_140 = arith.constant dense<0.000000e+00> : vector<8xf32>
    %570 = vector.multi_reduction <add>, %565, %cst_140 [1] : vector<8x32xf32> to vector<8xf32>
    %571 = vector.shape_cast %570 : vector<8xf32> to vector<8x1xf32>
    %cst_141 = arith.constant 3.200000e+01 : f32
    %572 = vector.broadcast %cst_141 : f32 to vector<8x1xf32>
    %573 = arith.divf %571, %572 : vector<8x1xf32>
    %574 = vector.broadcast %573 : vector<8x1xf32> to vector<8x32xf32>
    %575 = arith.subf %565, %574 : vector<8x32xf32>
    %576 = arith.mulf %575, %575 : vector<8x32xf32>
    %cst_142 = arith.constant dense<0.000000e+00> : vector<8xf32>
    %577 = vector.multi_reduction <add>, %576, %cst_142 [1] : vector<8x32xf32> to vector<8xf32>
    %578 = vector.shape_cast %577 : vector<8xf32> to vector<8x1xf32>
    %cst_143 = arith.constant 3.200000e+01 : f32
    %579 = vector.broadcast %cst_143 : f32 to vector<8x1xf32>
    %580 = arith.divf %578, %579 : vector<8x1xf32>
    %581 = vector.broadcast %573 : vector<8x1xf32> to vector<8x32xf32>
    %582 = arith.subf %565, %581 : vector<8x32xf32>
    %cst_144 = arith.constant 9.99999974E-6 : f32
    %583 = vector.broadcast %cst_144 : f32 to vector<8x1xf32>
    %584 = arith.addf %580, %583 : vector<8x1xf32>
    %585 = math.rsqrt %584 : vector<8x1xf32>
    %586 = vector.broadcast %585 : vector<8x1xf32> to vector<8x32xf32>
    %587 = arith.mulf %582, %586 : vector<8x32xf32>
    %588 = vector.broadcast %567 : vector<1x32xf32> to vector<8x32xf32>
    %589 = arith.mulf %587, %588 : vector<8x32xf32>
    %590 = vector.broadcast %569 : vector<1x32xf32> to vector<8x32xf32>
    %591 = arith.addf %589, %590 : vector<8x32xf32>
    %c0_145 = arith.constant 0 : index
    %c0_146 = arith.constant 0 : index
    %c0_147 = arith.constant 0 : index
    %592 = vector.load %arg21[%c0_145, %c0_146, %c0_147] : memref<2x32x64xf32, #tpu.memory_space<vmem>>, vector<1x32x64xf32>
    %593 = vector.shape_cast %592 : vector<1x32x64xf32> to vector<32x64xf32>
    %cst_148 = arith.constant dense<0.000000e+00> : vector<8x64xf32>
    %594 = tpu.matmul %591, %593, %cst_148 {dimension_numbers = #tpu.dot_dimension_numbers<[1], [0], [0], [1], [0, 0, 1, 1], [], []>} : vector<8x32xf32>, vector<32x64xf32>, vector<8x64xf32> -> vector<8x64xf32>
    %c0_149 = arith.constant 0 : index
    %c0_150 = arith.constant 0 : index
    %c0_151 = arith.constant 0 : index
    %595 = vector.load %arg22[%c0_149, %c0_150, %c0_151] : memref<2x1x64xf32, #tpu.memory_space<vmem>>, vector<1x1x64xf32>
    %596 = vector.shape_cast %595 : vector<1x1x64xf32> to vector<1x64xf32>
    %597 = vector.broadcast %596 : vector<1x64xf32> to vector<8x64xf32>
    %598 = arith.addf %594, %597 : vector<8x64xf32>
    %cst_152 = arith.constant 0.000000e+00 : f32
    %599 = vector.broadcast %cst_152 : f32 to vector<8x64xf32>
    %600 = arith.maximumf %598, %599 : vector<8x64xf32>
    %c0_153 = arith.constant 0 : index
    %c0_154 = arith.constant 0 : index
    %c0_155 = arith.constant 0 : index
    %601 = vector.load %arg23[%c0_153, %c0_154, %c0_155] : memref<2x64x32xf32, #tpu.memory_space<vmem>>, vector<1x64x32xf32>
    %602 = vector.shape_cast %601 : vector<1x64x32xf32> to vector<64x32xf32>
    %cst_156 = arith.constant dense<0.000000e+00> : vector<8x32xf32>
    %603 = tpu.matmul %600, %602, %cst_156 {dimension_numbers = #tpu.dot_dimension_numbers<[1], [0], [0], [1], [0, 0, 1, 1], [], []>} : vector<8x64xf32>, vector<64x32xf32>, vector<8x32xf32> -> vector<8x32xf32>
    %c0_157 = arith.constant 0 : index
    %c0_158 = arith.constant 0 : index
    %c0_159 = arith.constant 0 : index
    %604 = vector.load %arg24[%c0_157, %c0_158, %c0_159] : memref<2x1x32xf32, #tpu.memory_space<vmem>>, vector<1x1x32xf32>
    %605 = vector.shape_cast %604 : vector<1x1x32xf32> to vector<1x32xf32>
    %606 = vector.broadcast %605 : vector<1x32xf32> to vector<8x32xf32>
    %607 = arith.addf %603, %606 : vector<8x32xf32>
    %608 = arith.addf %591, %607 : vector<8x32xf32>
    %c0_160 = arith.constant 0 : index
    %c0_161 = arith.constant 0 : index
    %c0_162 = arith.constant 0 : index
    %609 = vector.load %arg25[%c0_160, %c0_161, %c0_162] : memref<2x1x32xf32, #tpu.memory_space<vmem>>, vector<1x1x32xf32>
    %610 = vector.shape_cast %609 : vector<1x1x32xf32> to vector<1x32xf32>
    %c0_163 = arith.constant 0 : index
    %c0_164 = arith.constant 0 : index
    %c0_165 = arith.constant 0 : index
    %611 = vector.load %arg26[%c0_163, %c0_164, %c0_165] : memref<2x1x32xf32, #tpu.memory_space<vmem>>, vector<1x1x32xf32>
    %612 = vector.shape_cast %611 : vector<1x1x32xf32> to vector<1x32xf32>
    %cst_166 = arith.constant dense<0.000000e+00> : vector<8xf32>
    %613 = vector.multi_reduction <add>, %608, %cst_166 [1] : vector<8x32xf32> to vector<8xf32>
    %614 = vector.shape_cast %613 : vector<8xf32> to vector<8x1xf32>
    %cst_167 = arith.constant 3.200000e+01 : f32
    %615 = vector.broadcast %cst_167 : f32 to vector<8x1xf32>
    %616 = arith.divf %614, %615 : vector<8x1xf32>
    %617 = vector.broadcast %616 : vector<8x1xf32> to vector<8x32xf32>
    %618 = arith.subf %608, %617 : vector<8x32xf32>
    %619 = arith.mulf %618, %618 : vector<8x32xf32>
    %cst_168 = arith.constant dense<0.000000e+00> : vector<8xf32>
    %620 = vector.multi_reduction <add>, %619, %cst_168 [1] : vector<8x32xf32> to vector<8xf32>
    %621 = vector.shape_cast %620 : vector<8xf32> to vector<8x1xf32>
    %cst_169 = arith.constant 3.200000e+01 : f32
    %622 = vector.broadcast %cst_169 : f32 to vector<8x1xf32>
    %623 = arith.divf %621, %622 : vector<8x1xf32>
    %624 = vector.broadcast %616 : vector<8x1xf32> to vector<8x32xf32>
    %625 = arith.subf %608, %624 : vector<8x32xf32>
    %cst_170 = arith.constant 9.99999974E-6 : f32
    %626 = vector.broadcast %cst_170 : f32 to vector<8x1xf32>
    %627 = arith.addf %623, %626 : vector<8x1xf32>
    %628 = math.rsqrt %627 : vector<8x1xf32>
    %629 = vector.broadcast %628 : vector<8x1xf32> to vector<8x32xf32>
    %630 = arith.mulf %625, %629 : vector<8x32xf32>
    %631 = vector.broadcast %610 : vector<1x32xf32> to vector<8x32xf32>
    %632 = arith.mulf %630, %631 : vector<8x32xf32>
    %633 = vector.broadcast %612 : vector<1x32xf32> to vector<8x32xf32>
    %634 = arith.addf %632, %633 : vector<8x32xf32>
    %c2 = arith.constant 2 : index
    %c0_171 = arith.constant 0 : index
    %c0_172 = arith.constant 0 : index
    %635 = vector.load %arg10[%c2, %c0_171, %c0_172] : memref<4x32x128xf32, #tpu.memory_space<vmem>>, vector<1x32x128xf32>
    %636 = vector.shape_cast %635 : vector<1x32x128xf32> to vector<32x128xf32>
    %c2_173 = arith.constant 2 : index
    %c0_174 = arith.constant 0 : index
    %c0_175 = arith.constant 0 : index
    %637 = vector.load %arg11[%c2_173, %c0_174, %c0_175] : memref<4x4x64xf32, #tpu.memory_space<vmem>>, vector<1x4x64xf32>
    %638 = vector.shape_cast %637 : vector<1x4x64xf32> to vector<4x64xf32>
    %c2_176 = arith.constant 2 : index
    %c0_177 = arith.constant 0 : index
    %c0_178 = arith.constant 0 : index
    %639 = vector.load %arg12[%c2_176, %c0_177, %c0_178] : memref<4x1x64xf32, #tpu.memory_space<vmem>>, vector<1x1x64xf32>
    %640 = vector.shape_cast %639 : vector<1x1x64xf32> to vector<1x64xf32>
    %c2_179 = arith.constant 2 : index
    %c0_180 = arith.constant 0 : index
    %c0_181 = arith.constant 0 : index
    %641 = vector.load %arg13[%c2_179, %c0_180, %c0_181] : memref<4x16x64xf32, #tpu.memory_space<vmem>>, vector<1x16x64xf32>
    %642 = vector.shape_cast %641 : vector<1x16x64xf32> to vector<16x64xf32>
    %c2_182 = arith.constant 2 : index
    %c0_183 = arith.constant 0 : index
    %c0_184 = arith.constant 0 : index
    %643 = vector.load %arg14[%c2_182, %c0_183, %c0_184] : memref<4x64x64xf32, #tpu.memory_space<vmem>>, vector<1x64x64xf32>
    %644 = vector.shape_cast %643 : vector<1x64x64xf32> to vector<64x64xf32>
    %c2_185 = arith.constant 2 : index
    %c0_186 = arith.constant 0 : index
    %c0_187 = arith.constant 0 : index
    %645 = vector.load %arg15[%c2_185, %c0_186, %c0_187] : memref<4x1x64xf32, #tpu.memory_space<vmem>>, vector<1x1x64xf32>
    %646 = vector.shape_cast %645 : vector<1x1x64xf32> to vector<1x64xf32>
    %c2_188 = arith.constant 2 : index
    %c0_189 = arith.constant 0 : index
    %c0_190 = arith.constant 0 : index
    %647 = vector.load %arg16[%c2_188, %c0_189, %c0_190] : memref<4x8x64xf32, #tpu.memory_space<vmem>>, vector<1x8x64xf32>
    %648 = vector.shape_cast %647 : vector<1x8x64xf32> to vector<8x64xf32>
    %649 = math.exp %648 : vector<8x64xf32>
    %cst_191 = arith.constant 0.000000e+00 : f32
    %650 = vector.broadcast %cst_191 : f32 to vector<8x64xf32>
    %651 = arith.subf %650, %649 : vector<8x64xf32>
    %c2_192 = arith.constant 2 : index
    %c0_193 = arith.constant 0 : index
    %c0_194 = arith.constant 0 : index
    %652 = vector.load %arg17[%c2_192, %c0_193, %c0_194] : memref<4x1x64xf32, #tpu.memory_space<vmem>>, vector<1x1x64xf32>
    %653 = vector.shape_cast %652 : vector<1x1x64xf32> to vector<1x64xf32>
    %c2_195 = arith.constant 2 : index
    %c0_196 = arith.constant 0 : index
    %c0_197 = arith.constant 0 : index
    %654 = vector.load %arg18[%c2_195, %c0_196, %c0_197] : memref<4x64x32xf32, #tpu.memory_space<vmem>>, vector<1x64x32xf32>
    %655 = vector.shape_cast %654 : vector<1x64x32xf32> to vector<64x32xf32>
    %cst_198 = arith.constant dense<0.000000e+00> : vector<8x128xf32>
    %656 = tpu.matmul %634, %636, %cst_198 {dimension_numbers = #tpu.dot_dimension_numbers<[1], [0], [0], [1], [0, 0, 1, 1], [], []>} : vector<8x32xf32>, vector<32x128xf32>, vector<8x128xf32> -> vector<8x128xf32>
    %657 = vector.extract_strided_slice %656 {offsets = [0, 0], sizes = [8, 64], strides = [1, 1]} : vector<8x128xf32> to vector<8x64xf32>
    %658 = vector.extract_strided_slice %656 {offsets = [0, 64], sizes = [8, 64], strides = [1, 1]} : vector<8x128xf32> to vector<8x64xf32>
    %659 = vector.extract_strided_slice %638 {offsets = [3, 0], sizes = [1, 64], strides = [1, 1]} : vector<4x64xf32> to vector<1x64xf32>
    %660 = vector.broadcast %659 : vector<1x64xf32> to vector<8x64xf32>
    %661 = arith.mulf %660, %657 : vector<8x64xf32>
    %cst_199 = arith.constant 0.000000e+00 : f32
    %662 = vector.broadcast %cst_199 : f32 to vector<1x64xf32>
    %663 = vector.extract_strided_slice %657 {offsets = [0, 0], sizes = [7, 64], strides = [1, 1]} : vector<8x64xf32> to vector<7x64xf32>
    %664 = tpu.concatenate %662, %663 in 0 : vector<1x64xf32>, vector<7x64xf32> -> vector<8x64xf32>
    %665 = vector.extract_strided_slice %638 {offsets = [2, 0], sizes = [1, 64], strides = [1, 1]} : vector<4x64xf32> to vector<1x64xf32>
    %666 = vector.broadcast %665 : vector<1x64xf32> to vector<8x64xf32>
    %667 = arith.mulf %666, %664 : vector<8x64xf32>
    %668 = arith.addf %661, %667 : vector<8x64xf32>
    %cst_200 = arith.constant 0.000000e+00 : f32
    %669 = vector.broadcast %cst_200 : f32 to vector<2x64xf32>
    %670 = vector.extract_strided_slice %657 {offsets = [0, 0], sizes = [6, 64], strides = [1, 1]} : vector<8x64xf32> to vector<6x64xf32>
    %671 = tpu.concatenate %669, %670 in 0 : vector<2x64xf32>, vector<6x64xf32> -> vector<8x64xf32>
    %672 = vector.extract_strided_slice %638 {offsets = [1, 0], sizes = [1, 64], strides = [1, 1]} : vector<4x64xf32> to vector<1x64xf32>
    %673 = vector.broadcast %672 : vector<1x64xf32> to vector<8x64xf32>
    %674 = arith.mulf %673, %671 : vector<8x64xf32>
    %675 = arith.addf %668, %674 : vector<8x64xf32>
    %cst_201 = arith.constant 0.000000e+00 : f32
    %676 = vector.broadcast %cst_201 : f32 to vector<3x64xf32>
    %677 = vector.extract_strided_slice %657 {offsets = [0, 0], sizes = [5, 64], strides = [1, 1]} : vector<8x64xf32> to vector<5x64xf32>
    %678 = tpu.concatenate %676, %677 in 0 : vector<3x64xf32>, vector<5x64xf32> -> vector<8x64xf32>
    %679 = vector.extract_strided_slice %638 {offsets = [0, 0], sizes = [1, 64], strides = [1, 1]} : vector<4x64xf32> to vector<1x64xf32>
    %680 = vector.broadcast %679 : vector<1x64xf32> to vector<8x64xf32>
    %681 = arith.mulf %680, %678 : vector<8x64xf32>
    %682 = arith.addf %675, %681 : vector<8x64xf32>
    %683 = vector.broadcast %640 : vector<1x64xf32> to vector<8x64xf32>
    %684 = arith.addf %682, %683 : vector<8x64xf32>
    %685 = arith.negf %684 : vector<8x64xf32>
    %686 = math.exp %685 : vector<8x64xf32>
    %cst_202 = arith.constant 1.000000e+00 : f32
    %687 = vector.broadcast %cst_202 : f32 to vector<8x64xf32>
    %688 = arith.addf %687, %686 : vector<8x64xf32>
    %689 = arith.divf %687, %688 : vector<8x64xf32>
    %690 = arith.mulf %684, %689 : vector<8x64xf32>
    %cst_203 = arith.constant dense<0.000000e+00> : vector<16x8xf32>
    %691 = tpu.matmul %642, %690, %cst_203 {dimension_numbers = #tpu.dot_dimension_numbers<[1], [1], [0], [0], [0, 0, 1, 0], [], []>} : vector<16x64xf32>, vector<8x64xf32>, vector<16x8xf32> -> vector<16x8xf32>
    %692 = vector.extract_strided_slice %691 {offsets = [0, 0], sizes = [8, 8], strides = [1, 1]} : vector<16x8xf32> to vector<8x8xf32>
    %693 = vector.extract_strided_slice %691 {offsets = [8, 0], sizes = [8, 8], strides = [1, 1]} : vector<16x8xf32> to vector<8x8xf32>
    %cst_204 = arith.constant dense<0.000000e+00> : vector<8x64xf32>
    %694 = tpu.matmul %690, %644, %cst_204 {dimension_numbers = #tpu.dot_dimension_numbers<[1], [0], [0], [1], [0, 0, 1, 1], [], []>} : vector<8x64xf32>, vector<64x64xf32>, vector<8x64xf32> -> vector<8x64xf32>
    %695 = vector.broadcast %646 : vector<1x64xf32> to vector<8x64xf32>
    %696 = arith.addf %694, %695 : vector<8x64xf32>
    %cst_205 = arith.constant 0.000000e+00 : f32
    %697 = vector.broadcast %cst_205 : f32 to vector<8x64xf32>
    %698 = arith.maximumf %696, %697 : vector<8x64xf32>
    %699 = math.absf %696 : vector<8x64xf32>
    %cst_206 = arith.constant 0.000000e+00 : f32
    %700 = vector.broadcast %cst_206 : f32 to vector<8x64xf32>
    %701 = arith.subf %700, %699 : vector<8x64xf32>
    %702 = math.exp %701 : vector<8x64xf32>
    %703 = math.log1p %702 : vector<8x64xf32>
    %704 = arith.addf %698, %703 : vector<8x64xf32>
    %705 = arith.mulf %704, %690 : vector<8x64xf32>
    %706 = vector.extract_strided_slice %704 {offsets = [0, 0], sizes = [1, 64], strides = [1, 1]} : vector<8x64xf32> to vector<1x64xf32>
    %707 = vector.broadcast %706 : vector<1x64xf32> to vector<8x64xf32>
    %708 = arith.mulf %707, %651 : vector<8x64xf32>
    %709 = math.exp %708 : vector<8x64xf32>
    %710 = vector.extract_strided_slice %704 {offsets = [1, 0], sizes = [1, 64], strides = [1, 1]} : vector<8x64xf32> to vector<1x64xf32>
    %711 = vector.broadcast %710 : vector<1x64xf32> to vector<8x64xf32>
    %712 = arith.mulf %711, %651 : vector<8x64xf32>
    %713 = math.exp %712 : vector<8x64xf32>
    %714 = vector.extract_strided_slice %704 {offsets = [2, 0], sizes = [1, 64], strides = [1, 1]} : vector<8x64xf32> to vector<1x64xf32>
    %715 = vector.broadcast %714 : vector<1x64xf32> to vector<8x64xf32>
    %716 = arith.mulf %715, %651 : vector<8x64xf32>
    %717 = math.exp %716 : vector<8x64xf32>
    %718 = vector.extract_strided_slice %704 {offsets = [3, 0], sizes = [1, 64], strides = [1, 1]} : vector<8x64xf32> to vector<1x64xf32>
    %719 = vector.broadcast %718 : vector<1x64xf32> to vector<8x64xf32>
    %720 = arith.mulf %719, %651 : vector<8x64xf32>
    %721 = math.exp %720 : vector<8x64xf32>
    %722 = vector.extract_strided_slice %704 {offsets = [4, 0], sizes = [1, 64], strides = [1, 1]} : vector<8x64xf32> to vector<1x64xf32>
    %723 = vector.broadcast %722 : vector<1x64xf32> to vector<8x64xf32>
    %724 = arith.mulf %723, %651 : vector<8x64xf32>
    %725 = math.exp %724 : vector<8x64xf32>
    %726 = vector.extract_strided_slice %704 {offsets = [5, 0], sizes = [1, 64], strides = [1, 1]} : vector<8x64xf32> to vector<1x64xf32>
    %727 = vector.broadcast %726 : vector<1x64xf32> to vector<8x64xf32>
    %728 = arith.mulf %727, %651 : vector<8x64xf32>
    %729 = math.exp %728 : vector<8x64xf32>
    %730 = vector.extract_strided_slice %704 {offsets = [6, 0], sizes = [1, 64], strides = [1, 1]} : vector<8x64xf32> to vector<1x64xf32>
    %731 = vector.broadcast %730 : vector<1x64xf32> to vector<8x64xf32>
    %732 = arith.mulf %731, %651 : vector<8x64xf32>
    %733 = math.exp %732 : vector<8x64xf32>
    %734 = vector.extract_strided_slice %704 {offsets = [7, 0], sizes = [1, 64], strides = [1, 1]} : vector<8x64xf32> to vector<1x64xf32>
    %735 = vector.broadcast %734 : vector<1x64xf32> to vector<8x64xf32>
    %736 = arith.mulf %735, %651 : vector<8x64xf32>
    %737 = math.exp %736 : vector<8x64xf32>
    %738 = vector.extract_strided_slice %705 {offsets = [0, 0], sizes = [1, 64], strides = [1, 1]} : vector<8x64xf32> to vector<1x64xf32>
    %739 = vector.extract_strided_slice %692 {offsets = [0, 0], sizes = [8, 1], strides = [1, 1]} : vector<8x8xf32> to vector<8x1xf32>
    %740 = vector.broadcast %738 : vector<1x64xf32> to vector<8x64xf32>
    %741 = vector.broadcast %739 : vector<8x1xf32> to vector<8x64xf32>
    %742 = arith.mulf %740, %741 : vector<8x64xf32>
    %743 = vector.extract_strided_slice %705 {offsets = [1, 0], sizes = [1, 64], strides = [1, 1]} : vector<8x64xf32> to vector<1x64xf32>
    %744 = vector.extract_strided_slice %692 {offsets = [0, 1], sizes = [8, 1], strides = [1, 1]} : vector<8x8xf32> to vector<8x1xf32>
    %745 = vector.broadcast %743 : vector<1x64xf32> to vector<8x64xf32>
    %746 = vector.broadcast %744 : vector<8x1xf32> to vector<8x64xf32>
    %747 = arith.mulf %745, %746 : vector<8x64xf32>
    %748 = vector.extract_strided_slice %705 {offsets = [2, 0], sizes = [1, 64], strides = [1, 1]} : vector<8x64xf32> to vector<1x64xf32>
    %749 = vector.extract_strided_slice %692 {offsets = [0, 2], sizes = [8, 1], strides = [1, 1]} : vector<8x8xf32> to vector<8x1xf32>
    %750 = vector.broadcast %748 : vector<1x64xf32> to vector<8x64xf32>
    %751 = vector.broadcast %749 : vector<8x1xf32> to vector<8x64xf32>
    %752 = arith.mulf %750, %751 : vector<8x64xf32>
    %753 = vector.extract_strided_slice %705 {offsets = [3, 0], sizes = [1, 64], strides = [1, 1]} : vector<8x64xf32> to vector<1x64xf32>
    %754 = vector.extract_strided_slice %692 {offsets = [0, 3], sizes = [8, 1], strides = [1, 1]} : vector<8x8xf32> to vector<8x1xf32>
    %755 = vector.broadcast %753 : vector<1x64xf32> to vector<8x64xf32>
    %756 = vector.broadcast %754 : vector<8x1xf32> to vector<8x64xf32>
    %757 = arith.mulf %755, %756 : vector<8x64xf32>
    %758 = vector.extract_strided_slice %705 {offsets = [4, 0], sizes = [1, 64], strides = [1, 1]} : vector<8x64xf32> to vector<1x64xf32>
    %759 = vector.extract_strided_slice %692 {offsets = [0, 4], sizes = [8, 1], strides = [1, 1]} : vector<8x8xf32> to vector<8x1xf32>
    %760 = vector.broadcast %758 : vector<1x64xf32> to vector<8x64xf32>
    %761 = vector.broadcast %759 : vector<8x1xf32> to vector<8x64xf32>
    %762 = arith.mulf %760, %761 : vector<8x64xf32>
    %763 = vector.extract_strided_slice %705 {offsets = [5, 0], sizes = [1, 64], strides = [1, 1]} : vector<8x64xf32> to vector<1x64xf32>
    %764 = vector.extract_strided_slice %692 {offsets = [0, 5], sizes = [8, 1], strides = [1, 1]} : vector<8x8xf32> to vector<8x1xf32>
    %765 = vector.broadcast %763 : vector<1x64xf32> to vector<8x64xf32>
    %766 = vector.broadcast %764 : vector<8x1xf32> to vector<8x64xf32>
    %767 = arith.mulf %765, %766 : vector<8x64xf32>
    %768 = vector.extract_strided_slice %705 {offsets = [6, 0], sizes = [1, 64], strides = [1, 1]} : vector<8x64xf32> to vector<1x64xf32>
    %769 = vector.extract_strided_slice %692 {offsets = [0, 6], sizes = [8, 1], strides = [1, 1]} : vector<8x8xf32> to vector<8x1xf32>
    %770 = vector.broadcast %768 : vector<1x64xf32> to vector<8x64xf32>
    %771 = vector.broadcast %769 : vector<8x1xf32> to vector<8x64xf32>
    %772 = arith.mulf %770, %771 : vector<8x64xf32>
    %773 = vector.extract_strided_slice %705 {offsets = [7, 0], sizes = [1, 64], strides = [1, 1]} : vector<8x64xf32> to vector<1x64xf32>
    %774 = vector.extract_strided_slice %692 {offsets = [0, 7], sizes = [8, 1], strides = [1, 1]} : vector<8x8xf32> to vector<8x1xf32>
    %775 = vector.broadcast %773 : vector<1x64xf32> to vector<8x64xf32>
    %776 = vector.broadcast %774 : vector<8x1xf32> to vector<8x64xf32>
    %777 = arith.mulf %775, %776 : vector<8x64xf32>
    %cst_207 = arith.constant 0.000000e+00 : f32
    %778 = vector.broadcast %cst_207 : f32 to vector<8x64xf32>
    %779 = vector.broadcast %653 : vector<1x64xf32> to vector<8x64xf32>
    %780 = arith.mulf %779, %690 : vector<8x64xf32>
    %781 = arith.mulf %709, %778 : vector<8x64xf32>
    %782 = arith.addf %781, %742 : vector<8x64xf32>
    %783 = vector.extract_strided_slice %693 {offsets = [0, 0], sizes = [8, 1], strides = [1, 1]} : vector<8x8xf32> to vector<8x1xf32>
    %784 = vector.broadcast %783 : vector<8x1xf32> to vector<8x64xf32>
    %785 = arith.mulf %782, %784 : vector<8x64xf32>
    %cst_208 = arith.constant dense<0.000000e+00> : vector<64xf32>
    %786 = vector.multi_reduction <add>, %785, %cst_208 [0] : vector<8x64xf32> to vector<64xf32>
    %787 = vector.shape_cast %786 : vector<64xf32> to vector<1x64xf32>
    %c0_i32_209 = arith.constant 0 : i32
    %788 = vector.broadcast %c0_i32_209 : i32 to vector<8x64xi32>
    %789 = arith.cmpi eq, %31, %788 : vector<8x64xi32>
    %cst_210 = arith.constant 0.000000e+00 : f32
    %790 = vector.shape_cast %787 : vector<1x64xf32> to vector<1x64xf32>
    %791 = vector.broadcast %790 : vector<1x64xf32> to vector<8x64xf32>
    %792 = vector.broadcast %cst_210 : f32 to vector<8x64xf32>
    %793 = arith.select %789, %791, %792 : vector<8x64xi1>, vector<8x64xf32>
    %794 = arith.addf %780, %793 : vector<8x64xf32>
    %795 = arith.mulf %713, %782 : vector<8x64xf32>
    %796 = arith.addf %795, %747 : vector<8x64xf32>
    %797 = vector.extract_strided_slice %693 {offsets = [0, 1], sizes = [8, 1], strides = [1, 1]} : vector<8x8xf32> to vector<8x1xf32>
    %798 = vector.broadcast %797 : vector<8x1xf32> to vector<8x64xf32>
    %799 = arith.mulf %796, %798 : vector<8x64xf32>
    %cst_211 = arith.constant dense<0.000000e+00> : vector<64xf32>
    %800 = vector.multi_reduction <add>, %799, %cst_211 [0] : vector<8x64xf32> to vector<64xf32>
    %801 = vector.shape_cast %800 : vector<64xf32> to vector<1x64xf32>
    %c1_i32_212 = arith.constant 1 : i32
    %802 = vector.broadcast %c1_i32_212 : i32 to vector<8x64xi32>
    %803 = arith.cmpi eq, %31, %802 : vector<8x64xi32>
    %cst_213 = arith.constant 0.000000e+00 : f32
    %804 = vector.shape_cast %801 : vector<1x64xf32> to vector<1x64xf32>
    %805 = vector.broadcast %804 : vector<1x64xf32> to vector<8x64xf32>
    %806 = vector.broadcast %cst_213 : f32 to vector<8x64xf32>
    %807 = arith.select %803, %805, %806 : vector<8x64xi1>, vector<8x64xf32>
    %808 = arith.addf %794, %807 : vector<8x64xf32>
    %809 = arith.mulf %717, %796 : vector<8x64xf32>
    %810 = arith.addf %809, %752 : vector<8x64xf32>
    %811 = vector.extract_strided_slice %693 {offsets = [0, 2], sizes = [8, 1], strides = [1, 1]} : vector<8x8xf32> to vector<8x1xf32>
    %812 = vector.broadcast %811 : vector<8x1xf32> to vector<8x64xf32>
    %813 = arith.mulf %810, %812 : vector<8x64xf32>
    %cst_214 = arith.constant dense<0.000000e+00> : vector<64xf32>
    %814 = vector.multi_reduction <add>, %813, %cst_214 [0] : vector<8x64xf32> to vector<64xf32>
    %815 = vector.shape_cast %814 : vector<64xf32> to vector<1x64xf32>
    %c2_i32_215 = arith.constant 2 : i32
    %816 = vector.broadcast %c2_i32_215 : i32 to vector<8x64xi32>
    %817 = arith.cmpi eq, %31, %816 : vector<8x64xi32>
    %cst_216 = arith.constant 0.000000e+00 : f32
    %818 = vector.shape_cast %815 : vector<1x64xf32> to vector<1x64xf32>
    %819 = vector.broadcast %818 : vector<1x64xf32> to vector<8x64xf32>
    %820 = vector.broadcast %cst_216 : f32 to vector<8x64xf32>
    %821 = arith.select %817, %819, %820 : vector<8x64xi1>, vector<8x64xf32>
    %822 = arith.addf %808, %821 : vector<8x64xf32>
    %823 = arith.mulf %721, %810 : vector<8x64xf32>
    %824 = arith.addf %823, %757 : vector<8x64xf32>
    %825 = vector.extract_strided_slice %693 {offsets = [0, 3], sizes = [8, 1], strides = [1, 1]} : vector<8x8xf32> to vector<8x1xf32>
    %826 = vector.broadcast %825 : vector<8x1xf32> to vector<8x64xf32>
    %827 = arith.mulf %824, %826 : vector<8x64xf32>
    %cst_217 = arith.constant dense<0.000000e+00> : vector<64xf32>
    %828 = vector.multi_reduction <add>, %827, %cst_217 [0] : vector<8x64xf32> to vector<64xf32>
    %829 = vector.shape_cast %828 : vector<64xf32> to vector<1x64xf32>
    %c3_i32_218 = arith.constant 3 : i32
    %830 = vector.broadcast %c3_i32_218 : i32 to vector<8x64xi32>
    %831 = arith.cmpi eq, %31, %830 : vector<8x64xi32>
    %cst_219 = arith.constant 0.000000e+00 : f32
    %832 = vector.shape_cast %829 : vector<1x64xf32> to vector<1x64xf32>
    %833 = vector.broadcast %832 : vector<1x64xf32> to vector<8x64xf32>
    %834 = vector.broadcast %cst_219 : f32 to vector<8x64xf32>
    %835 = arith.select %831, %833, %834 : vector<8x64xi1>, vector<8x64xf32>
    %836 = arith.addf %822, %835 : vector<8x64xf32>
    %837 = arith.mulf %725, %824 : vector<8x64xf32>
    %838 = arith.addf %837, %762 : vector<8x64xf32>
    %839 = vector.extract_strided_slice %693 {offsets = [0, 4], sizes = [8, 1], strides = [1, 1]} : vector<8x8xf32> to vector<8x1xf32>
    %840 = vector.broadcast %839 : vector<8x1xf32> to vector<8x64xf32>
    %841 = arith.mulf %838, %840 : vector<8x64xf32>
    %cst_220 = arith.constant dense<0.000000e+00> : vector<64xf32>
    %842 = vector.multi_reduction <add>, %841, %cst_220 [0] : vector<8x64xf32> to vector<64xf32>
    %843 = vector.shape_cast %842 : vector<64xf32> to vector<1x64xf32>
    %c4_i32_221 = arith.constant 4 : i32
    %844 = vector.broadcast %c4_i32_221 : i32 to vector<8x64xi32>
    %845 = arith.cmpi eq, %31, %844 : vector<8x64xi32>
    %cst_222 = arith.constant 0.000000e+00 : f32
    %846 = vector.shape_cast %843 : vector<1x64xf32> to vector<1x64xf32>
    %847 = vector.broadcast %846 : vector<1x64xf32> to vector<8x64xf32>
    %848 = vector.broadcast %cst_222 : f32 to vector<8x64xf32>
    %849 = arith.select %845, %847, %848 : vector<8x64xi1>, vector<8x64xf32>
    %850 = arith.addf %836, %849 : vector<8x64xf32>
    %851 = arith.mulf %729, %838 : vector<8x64xf32>
    %852 = arith.addf %851, %767 : vector<8x64xf32>
    %853 = vector.extract_strided_slice %693 {offsets = [0, 5], sizes = [8, 1], strides = [1, 1]} : vector<8x8xf32> to vector<8x1xf32>
    %854 = vector.broadcast %853 : vector<8x1xf32> to vector<8x64xf32>
    %855 = arith.mulf %852, %854 : vector<8x64xf32>
    %cst_223 = arith.constant dense<0.000000e+00> : vector<64xf32>
    %856 = vector.multi_reduction <add>, %855, %cst_223 [0] : vector<8x64xf32> to vector<64xf32>
    %857 = vector.shape_cast %856 : vector<64xf32> to vector<1x64xf32>
    %c5_i32_224 = arith.constant 5 : i32
    %858 = vector.broadcast %c5_i32_224 : i32 to vector<8x64xi32>
    %859 = arith.cmpi eq, %31, %858 : vector<8x64xi32>
    %cst_225 = arith.constant 0.000000e+00 : f32
    %860 = vector.shape_cast %857 : vector<1x64xf32> to vector<1x64xf32>
    %861 = vector.broadcast %860 : vector<1x64xf32> to vector<8x64xf32>
    %862 = vector.broadcast %cst_225 : f32 to vector<8x64xf32>
    %863 = arith.select %859, %861, %862 : vector<8x64xi1>, vector<8x64xf32>
    %864 = arith.addf %850, %863 : vector<8x64xf32>
    %865 = arith.mulf %733, %852 : vector<8x64xf32>
    %866 = arith.addf %865, %772 : vector<8x64xf32>
    %867 = vector.extract_strided_slice %693 {offsets = [0, 6], sizes = [8, 1], strides = [1, 1]} : vector<8x8xf32> to vector<8x1xf32>
    %868 = vector.broadcast %867 : vector<8x1xf32> to vector<8x64xf32>
    %869 = arith.mulf %866, %868 : vector<8x64xf32>
    %cst_226 = arith.constant dense<0.000000e+00> : vector<64xf32>
    %870 = vector.multi_reduction <add>, %869, %cst_226 [0] : vector<8x64xf32> to vector<64xf32>
    %871 = vector.shape_cast %870 : vector<64xf32> to vector<1x64xf32>
    %c6_i32_227 = arith.constant 6 : i32
    %872 = vector.broadcast %c6_i32_227 : i32 to vector<8x64xi32>
    %873 = arith.cmpi eq, %31, %872 : vector<8x64xi32>
    %cst_228 = arith.constant 0.000000e+00 : f32
    %874 = vector.shape_cast %871 : vector<1x64xf32> to vector<1x64xf32>
    %875 = vector.broadcast %874 : vector<1x64xf32> to vector<8x64xf32>
    %876 = vector.broadcast %cst_228 : f32 to vector<8x64xf32>
    %877 = arith.select %873, %875, %876 : vector<8x64xi1>, vector<8x64xf32>
    %878 = arith.addf %864, %877 : vector<8x64xf32>
    %879 = arith.mulf %737, %866 : vector<8x64xf32>
    %880 = arith.addf %879, %777 : vector<8x64xf32>
    %881 = vector.extract_strided_slice %693 {offsets = [0, 7], sizes = [8, 1], strides = [1, 1]} : vector<8x8xf32> to vector<8x1xf32>
    %882 = vector.broadcast %881 : vector<8x1xf32> to vector<8x64xf32>
    %883 = arith.mulf %880, %882 : vector<8x64xf32>
    %cst_229 = arith.constant dense<0.000000e+00> : vector<64xf32>
    %884 = vector.multi_reduction <add>, %883, %cst_229 [0] : vector<8x64xf32> to vector<64xf32>
    %885 = vector.shape_cast %884 : vector<64xf32> to vector<1x64xf32>
    %c7_i32_230 = arith.constant 7 : i32
    %886 = vector.broadcast %c7_i32_230 : i32 to vector<8x64xi32>
    %887 = arith.cmpi eq, %31, %886 : vector<8x64xi32>
    %cst_231 = arith.constant 0.000000e+00 : f32
    %888 = vector.shape_cast %885 : vector<1x64xf32> to vector<1x64xf32>
    %889 = vector.broadcast %888 : vector<1x64xf32> to vector<8x64xf32>
    %890 = vector.broadcast %cst_231 : f32 to vector<8x64xf32>
    %891 = arith.select %887, %889, %890 : vector<8x64xi1>, vector<8x64xf32>
    %892 = arith.addf %878, %891 : vector<8x64xf32>
    %893 = arith.negf %658 : vector<8x64xf32>
    %894 = math.exp %893 : vector<8x64xf32>
    %cst_232 = arith.constant 1.000000e+00 : f32
    %895 = vector.broadcast %cst_232 : f32 to vector<8x64xf32>
    %896 = arith.addf %895, %894 : vector<8x64xf32>
    %897 = arith.divf %895, %896 : vector<8x64xf32>
    %898 = arith.mulf %658, %897 : vector<8x64xf32>
    %899 = arith.mulf %892, %898 : vector<8x64xf32>
    %cst_233 = arith.constant dense<0.000000e+00> : vector<8x32xf32>
    %900 = tpu.matmul %899, %655, %cst_233 {dimension_numbers = #tpu.dot_dimension_numbers<[1], [0], [0], [1], [0, 0, 1, 1], [], []>} : vector<8x64xf32>, vector<64x32xf32>, vector<8x32xf32> -> vector<8x32xf32>
    %c3 = arith.constant 3 : index
    %c0_234 = arith.constant 0 : index
    %c0_235 = arith.constant 0 : index
    %901 = vector.load %arg10[%c3, %c0_234, %c0_235] : memref<4x32x128xf32, #tpu.memory_space<vmem>>, vector<1x32x128xf32>
    %902 = vector.shape_cast %901 : vector<1x32x128xf32> to vector<32x128xf32>
    %c3_236 = arith.constant 3 : index
    %c0_237 = arith.constant 0 : index
    %c0_238 = arith.constant 0 : index
    %903 = vector.load %arg11[%c3_236, %c0_237, %c0_238] : memref<4x4x64xf32, #tpu.memory_space<vmem>>, vector<1x4x64xf32>
    %904 = vector.shape_cast %903 : vector<1x4x64xf32> to vector<4x64xf32>
    %c3_239 = arith.constant 3 : index
    %c0_240 = arith.constant 0 : index
    %c0_241 = arith.constant 0 : index
    %905 = vector.load %arg12[%c3_239, %c0_240, %c0_241] : memref<4x1x64xf32, #tpu.memory_space<vmem>>, vector<1x1x64xf32>
    %906 = vector.shape_cast %905 : vector<1x1x64xf32> to vector<1x64xf32>
    %c3_242 = arith.constant 3 : index
    %c0_243 = arith.constant 0 : index
    %c0_244 = arith.constant 0 : index
    %907 = vector.load %arg13[%c3_242, %c0_243, %c0_244] : memref<4x16x64xf32, #tpu.memory_space<vmem>>, vector<1x16x64xf32>
    %908 = vector.shape_cast %907 : vector<1x16x64xf32> to vector<16x64xf32>
    %c3_245 = arith.constant 3 : index
    %c0_246 = arith.constant 0 : index
    %c0_247 = arith.constant 0 : index
    %909 = vector.load %arg14[%c3_245, %c0_246, %c0_247] : memref<4x64x64xf32, #tpu.memory_space<vmem>>, vector<1x64x64xf32>
    %910 = vector.shape_cast %909 : vector<1x64x64xf32> to vector<64x64xf32>
    %c3_248 = arith.constant 3 : index
    %c0_249 = arith.constant 0 : index
    %c0_250 = arith.constant 0 : index
    %911 = vector.load %arg15[%c3_248, %c0_249, %c0_250] : memref<4x1x64xf32, #tpu.memory_space<vmem>>, vector<1x1x64xf32>
    %912 = vector.shape_cast %911 : vector<1x1x64xf32> to vector<1x64xf32>
    %c3_251 = arith.constant 3 : index
    %c0_252 = arith.constant 0 : index
    %c0_253 = arith.constant 0 : index
    %913 = vector.load %arg16[%c3_251, %c0_252, %c0_253] : memref<4x8x64xf32, #tpu.memory_space<vmem>>, vector<1x8x64xf32>
    %914 = vector.shape_cast %913 : vector<1x8x64xf32> to vector<8x64xf32>
    %915 = math.exp %914 : vector<8x64xf32>
    %cst_254 = arith.constant 0.000000e+00 : f32
    %916 = vector.broadcast %cst_254 : f32 to vector<8x64xf32>
    %917 = arith.subf %916, %915 : vector<8x64xf32>
    %c3_255 = arith.constant 3 : index
    %c0_256 = arith.constant 0 : index
    %c0_257 = arith.constant 0 : index
    %918 = vector.load %arg17[%c3_255, %c0_256, %c0_257] : memref<4x1x64xf32, #tpu.memory_space<vmem>>, vector<1x1x64xf32>
    %919 = vector.shape_cast %918 : vector<1x1x64xf32> to vector<1x64xf32>
    %c3_258 = arith.constant 3 : index
    %c0_259 = arith.constant 0 : index
    %c0_260 = arith.constant 0 : index
    %920 = vector.load %arg18[%c3_258, %c0_259, %c0_260] : memref<4x64x32xf32, #tpu.memory_space<vmem>>, vector<1x64x32xf32>
    %921 = vector.shape_cast %920 : vector<1x64x32xf32> to vector<64x32xf32>
    %cst_261 = arith.constant dense<0.000000e+00> : vector<8x128xf32>
    %922 = tpu.matmul %634, %902, %cst_261 {dimension_numbers = #tpu.dot_dimension_numbers<[1], [0], [0], [1], [0, 0, 1, 1], [], []>} : vector<8x32xf32>, vector<32x128xf32>, vector<8x128xf32> -> vector<8x128xf32>
    %923 = vector.extract_strided_slice %922 {offsets = [0, 0], sizes = [8, 64], strides = [1, 1]} : vector<8x128xf32> to vector<8x64xf32>
    %924 = vector.extract_strided_slice %922 {offsets = [0, 64], sizes = [8, 64], strides = [1, 1]} : vector<8x128xf32> to vector<8x64xf32>
    %925 = vector.extract_strided_slice %904 {offsets = [3, 0], sizes = [1, 64], strides = [1, 1]} : vector<4x64xf32> to vector<1x64xf32>
    %926 = vector.broadcast %925 : vector<1x64xf32> to vector<8x64xf32>
    %927 = arith.mulf %926, %923 : vector<8x64xf32>
    %cst_262 = arith.constant 0.000000e+00 : f32
    %928 = vector.broadcast %cst_262 : f32 to vector<1x64xf32>
    %929 = vector.extract_strided_slice %923 {offsets = [1, 0], sizes = [7, 64], strides = [1, 1]} : vector<8x64xf32> to vector<7x64xf32>
    %930 = tpu.concatenate %929, %928 in 0 : vector<7x64xf32>, vector<1x64xf32> -> vector<8x64xf32>
    %931 = vector.extract_strided_slice %904 {offsets = [2, 0], sizes = [1, 64], strides = [1, 1]} : vector<4x64xf32> to vector<1x64xf32>
    %932 = vector.broadcast %931 : vector<1x64xf32> to vector<8x64xf32>
    %933 = arith.mulf %932, %930 : vector<8x64xf32>
    %934 = arith.addf %927, %933 : vector<8x64xf32>
    %cst_263 = arith.constant 0.000000e+00 : f32
    %935 = vector.broadcast %cst_263 : f32 to vector<2x64xf32>
    %936 = vector.extract_strided_slice %923 {offsets = [2, 0], sizes = [6, 64], strides = [1, 1]} : vector<8x64xf32> to vector<6x64xf32>
    %937 = tpu.concatenate %936, %935 in 0 : vector<6x64xf32>, vector<2x64xf32> -> vector<8x64xf32>
    %938 = vector.extract_strided_slice %904 {offsets = [1, 0], sizes = [1, 64], strides = [1, 1]} : vector<4x64xf32> to vector<1x64xf32>
    %939 = vector.broadcast %938 : vector<1x64xf32> to vector<8x64xf32>
    %940 = arith.mulf %939, %937 : vector<8x64xf32>
    %941 = arith.addf %934, %940 : vector<8x64xf32>
    %cst_264 = arith.constant 0.000000e+00 : f32
    %942 = vector.broadcast %cst_264 : f32 to vector<3x64xf32>
    %943 = vector.extract_strided_slice %923 {offsets = [3, 0], sizes = [5, 64], strides = [1, 1]} : vector<8x64xf32> to vector<5x64xf32>
    %944 = tpu.concatenate %943, %942 in 0 : vector<5x64xf32>, vector<3x64xf32> -> vector<8x64xf32>
    %945 = vector.extract_strided_slice %904 {offsets = [0, 0], sizes = [1, 64], strides = [1, 1]} : vector<4x64xf32> to vector<1x64xf32>
    %946 = vector.broadcast %945 : vector<1x64xf32> to vector<8x64xf32>
    %947 = arith.mulf %946, %944 : vector<8x64xf32>
    %948 = arith.addf %941, %947 : vector<8x64xf32>
    %949 = vector.broadcast %906 : vector<1x64xf32> to vector<8x64xf32>
    %950 = arith.addf %948, %949 : vector<8x64xf32>
    %951 = arith.negf %950 : vector<8x64xf32>
    %952 = math.exp %951 : vector<8x64xf32>
    %cst_265 = arith.constant 1.000000e+00 : f32
    %953 = vector.broadcast %cst_265 : f32 to vector<8x64xf32>
    %954 = arith.addf %953, %952 : vector<8x64xf32>
    %955 = arith.divf %953, %954 : vector<8x64xf32>
    %956 = arith.mulf %950, %955 : vector<8x64xf32>
    %cst_266 = arith.constant dense<0.000000e+00> : vector<16x8xf32>
    %957 = tpu.matmul %908, %956, %cst_266 {dimension_numbers = #tpu.dot_dimension_numbers<[1], [1], [0], [0], [0, 0, 1, 0], [], []>} : vector<16x64xf32>, vector<8x64xf32>, vector<16x8xf32> -> vector<16x8xf32>
    %958 = vector.extract_strided_slice %957 {offsets = [0, 0], sizes = [8, 8], strides = [1, 1]} : vector<16x8xf32> to vector<8x8xf32>
    %959 = vector.extract_strided_slice %957 {offsets = [8, 0], sizes = [8, 8], strides = [1, 1]} : vector<16x8xf32> to vector<8x8xf32>
    %cst_267 = arith.constant dense<0.000000e+00> : vector<8x64xf32>
    %960 = tpu.matmul %956, %910, %cst_267 {dimension_numbers = #tpu.dot_dimension_numbers<[1], [0], [0], [1], [0, 0, 1, 1], [], []>} : vector<8x64xf32>, vector<64x64xf32>, vector<8x64xf32> -> vector<8x64xf32>
    %961 = vector.broadcast %912 : vector<1x64xf32> to vector<8x64xf32>
    %962 = arith.addf %960, %961 : vector<8x64xf32>
    %cst_268 = arith.constant 0.000000e+00 : f32
    %963 = vector.broadcast %cst_268 : f32 to vector<8x64xf32>
    %964 = arith.maximumf %962, %963 : vector<8x64xf32>
    %965 = math.absf %962 : vector<8x64xf32>
    %cst_269 = arith.constant 0.000000e+00 : f32
    %966 = vector.broadcast %cst_269 : f32 to vector<8x64xf32>
    %967 = arith.subf %966, %965 : vector<8x64xf32>
    %968 = math.exp %967 : vector<8x64xf32>
    %969 = math.log1p %968 : vector<8x64xf32>
    %970 = arith.addf %964, %969 : vector<8x64xf32>
    %971 = arith.mulf %970, %956 : vector<8x64xf32>
    %972 = vector.extract_strided_slice %970 {offsets = [0, 0], sizes = [1, 64], strides = [1, 1]} : vector<8x64xf32> to vector<1x64xf32>
    %973 = vector.broadcast %972 : vector<1x64xf32> to vector<8x64xf32>
    %974 = arith.mulf %973, %917 : vector<8x64xf32>
    %975 = math.exp %974 : vector<8x64xf32>
    %976 = vector.extract_strided_slice %970 {offsets = [1, 0], sizes = [1, 64], strides = [1, 1]} : vector<8x64xf32> to vector<1x64xf32>
    %977 = vector.broadcast %976 : vector<1x64xf32> to vector<8x64xf32>
    %978 = arith.mulf %977, %917 : vector<8x64xf32>
    %979 = math.exp %978 : vector<8x64xf32>
    %980 = vector.extract_strided_slice %970 {offsets = [2, 0], sizes = [1, 64], strides = [1, 1]} : vector<8x64xf32> to vector<1x64xf32>
    %981 = vector.broadcast %980 : vector<1x64xf32> to vector<8x64xf32>
    %982 = arith.mulf %981, %917 : vector<8x64xf32>
    %983 = math.exp %982 : vector<8x64xf32>
    %984 = vector.extract_strided_slice %970 {offsets = [3, 0], sizes = [1, 64], strides = [1, 1]} : vector<8x64xf32> to vector<1x64xf32>
    %985 = vector.broadcast %984 : vector<1x64xf32> to vector<8x64xf32>
    %986 = arith.mulf %985, %917 : vector<8x64xf32>
    %987 = math.exp %986 : vector<8x64xf32>
    %988 = vector.extract_strided_slice %970 {offsets = [4, 0], sizes = [1, 64], strides = [1, 1]} : vector<8x64xf32> to vector<1x64xf32>
    %989 = vector.broadcast %988 : vector<1x64xf32> to vector<8x64xf32>
    %990 = arith.mulf %989, %917 : vector<8x64xf32>
    %991 = math.exp %990 : vector<8x64xf32>
    %992 = vector.extract_strided_slice %970 {offsets = [5, 0], sizes = [1, 64], strides = [1, 1]} : vector<8x64xf32> to vector<1x64xf32>
    %993 = vector.broadcast %992 : vector<1x64xf32> to vector<8x64xf32>
    %994 = arith.mulf %993, %917 : vector<8x64xf32>
    %995 = math.exp %994 : vector<8x64xf32>
    %996 = vector.extract_strided_slice %970 {offsets = [6, 0], sizes = [1, 64], strides = [1, 1]} : vector<8x64xf32> to vector<1x64xf32>
    %997 = vector.broadcast %996 : vector<1x64xf32> to vector<8x64xf32>
    %998 = arith.mulf %997, %917 : vector<8x64xf32>
    %999 = math.exp %998 : vector<8x64xf32>
    %1000 = vector.extract_strided_slice %970 {offsets = [7, 0], sizes = [1, 64], strides = [1, 1]} : vector<8x64xf32> to vector<1x64xf32>
    %1001 = vector.broadcast %1000 : vector<1x64xf32> to vector<8x64xf32>
    %1002 = arith.mulf %1001, %917 : vector<8x64xf32>
    %1003 = math.exp %1002 : vector<8x64xf32>
    %1004 = vector.extract_strided_slice %971 {offsets = [0, 0], sizes = [1, 64], strides = [1, 1]} : vector<8x64xf32> to vector<1x64xf32>
    %1005 = vector.extract_strided_slice %958 {offsets = [0, 0], sizes = [8, 1], strides = [1, 1]} : vector<8x8xf32> to vector<8x1xf32>
    %1006 = vector.broadcast %1004 : vector<1x64xf32> to vector<8x64xf32>
    %1007 = vector.broadcast %1005 : vector<8x1xf32> to vector<8x64xf32>
    %1008 = arith.mulf %1006, %1007 : vector<8x64xf32>
    %1009 = vector.extract_strided_slice %971 {offsets = [1, 0], sizes = [1, 64], strides = [1, 1]} : vector<8x64xf32> to vector<1x64xf32>
    %1010 = vector.extract_strided_slice %958 {offsets = [0, 1], sizes = [8, 1], strides = [1, 1]} : vector<8x8xf32> to vector<8x1xf32>
    %1011 = vector.broadcast %1009 : vector<1x64xf32> to vector<8x64xf32>
    %1012 = vector.broadcast %1010 : vector<8x1xf32> to vector<8x64xf32>
    %1013 = arith.mulf %1011, %1012 : vector<8x64xf32>
    %1014 = vector.extract_strided_slice %971 {offsets = [2, 0], sizes = [1, 64], strides = [1, 1]} : vector<8x64xf32> to vector<1x64xf32>
    %1015 = vector.extract_strided_slice %958 {offsets = [0, 2], sizes = [8, 1], strides = [1, 1]} : vector<8x8xf32> to vector<8x1xf32>
    %1016 = vector.broadcast %1014 : vector<1x64xf32> to vector<8x64xf32>
    %1017 = vector.broadcast %1015 : vector<8x1xf32> to vector<8x64xf32>
    %1018 = arith.mulf %1016, %1017 : vector<8x64xf32>
    %1019 = vector.extract_strided_slice %971 {offsets = [3, 0], sizes = [1, 64], strides = [1, 1]} : vector<8x64xf32> to vector<1x64xf32>
    %1020 = vector.extract_strided_slice %958 {offsets = [0, 3], sizes = [8, 1], strides = [1, 1]} : vector<8x8xf32> to vector<8x1xf32>
    %1021 = vector.broadcast %1019 : vector<1x64xf32> to vector<8x64xf32>
    %1022 = vector.broadcast %1020 : vector<8x1xf32> to vector<8x64xf32>
    %1023 = arith.mulf %1021, %1022 : vector<8x64xf32>
    %1024 = vector.extract_strided_slice %971 {offsets = [4, 0], sizes = [1, 64], strides = [1, 1]} : vector<8x64xf32> to vector<1x64xf32>
    %1025 = vector.extract_strided_slice %958 {offsets = [0, 4], sizes = [8, 1], strides = [1, 1]} : vector<8x8xf32> to vector<8x1xf32>
    %1026 = vector.broadcast %1024 : vector<1x64xf32> to vector<8x64xf32>
    %1027 = vector.broadcast %1025 : vector<8x1xf32> to vector<8x64xf32>
    %1028 = arith.mulf %1026, %1027 : vector<8x64xf32>
    %1029 = vector.extract_strided_slice %971 {offsets = [5, 0], sizes = [1, 64], strides = [1, 1]} : vector<8x64xf32> to vector<1x64xf32>
    %1030 = vector.extract_strided_slice %958 {offsets = [0, 5], sizes = [8, 1], strides = [1, 1]} : vector<8x8xf32> to vector<8x1xf32>
    %1031 = vector.broadcast %1029 : vector<1x64xf32> to vector<8x64xf32>
    %1032 = vector.broadcast %1030 : vector<8x1xf32> to vector<8x64xf32>
    %1033 = arith.mulf %1031, %1032 : vector<8x64xf32>
    %1034 = vector.extract_strided_slice %971 {offsets = [6, 0], sizes = [1, 64], strides = [1, 1]} : vector<8x64xf32> to vector<1x64xf32>
    %1035 = vector.extract_strided_slice %958 {offsets = [0, 6], sizes = [8, 1], strides = [1, 1]} : vector<8x8xf32> to vector<8x1xf32>
    %1036 = vector.broadcast %1034 : vector<1x64xf32> to vector<8x64xf32>
    %1037 = vector.broadcast %1035 : vector<8x1xf32> to vector<8x64xf32>
    %1038 = arith.mulf %1036, %1037 : vector<8x64xf32>
    %1039 = vector.extract_strided_slice %971 {offsets = [7, 0], sizes = [1, 64], strides = [1, 1]} : vector<8x64xf32> to vector<1x64xf32>
    %1040 = vector.extract_strided_slice %958 {offsets = [0, 7], sizes = [8, 1], strides = [1, 1]} : vector<8x8xf32> to vector<8x1xf32>
    %1041 = vector.broadcast %1039 : vector<1x64xf32> to vector<8x64xf32>
    %1042 = vector.broadcast %1040 : vector<8x1xf32> to vector<8x64xf32>
    %1043 = arith.mulf %1041, %1042 : vector<8x64xf32>
    %cst_270 = arith.constant 0.000000e+00 : f32
    %1044 = vector.broadcast %cst_270 : f32 to vector<8x64xf32>
    %1045 = vector.broadcast %919 : vector<1x64xf32> to vector<8x64xf32>
    %1046 = arith.mulf %1045, %956 : vector<8x64xf32>
    %1047 = arith.mulf %1003, %1044 : vector<8x64xf32>
    %1048 = arith.addf %1047, %1043 : vector<8x64xf32>
    %1049 = vector.extract_strided_slice %959 {offsets = [0, 7], sizes = [8, 1], strides = [1, 1]} : vector<8x8xf32> to vector<8x1xf32>
    %1050 = vector.broadcast %1049 : vector<8x1xf32> to vector<8x64xf32>
    %1051 = arith.mulf %1048, %1050 : vector<8x64xf32>
    %cst_271 = arith.constant dense<0.000000e+00> : vector<64xf32>
    %1052 = vector.multi_reduction <add>, %1051, %cst_271 [0] : vector<8x64xf32> to vector<64xf32>
    %1053 = vector.shape_cast %1052 : vector<64xf32> to vector<1x64xf32>
    %c7_i32_272 = arith.constant 7 : i32
    %1054 = vector.broadcast %c7_i32_272 : i32 to vector<8x64xi32>
    %1055 = arith.cmpi eq, %31, %1054 : vector<8x64xi32>
    %cst_273 = arith.constant 0.000000e+00 : f32
    %1056 = vector.shape_cast %1053 : vector<1x64xf32> to vector<1x64xf32>
    %1057 = vector.broadcast %1056 : vector<1x64xf32> to vector<8x64xf32>
    %1058 = vector.broadcast %cst_273 : f32 to vector<8x64xf32>
    %1059 = arith.select %1055, %1057, %1058 : vector<8x64xi1>, vector<8x64xf32>
    %1060 = arith.addf %1046, %1059 : vector<8x64xf32>
    %1061 = arith.mulf %999, %1048 : vector<8x64xf32>
    %1062 = arith.addf %1061, %1038 : vector<8x64xf32>
    %1063 = vector.extract_strided_slice %959 {offsets = [0, 6], sizes = [8, 1], strides = [1, 1]} : vector<8x8xf32> to vector<8x1xf32>
    %1064 = vector.broadcast %1063 : vector<8x1xf32> to vector<8x64xf32>
    %1065 = arith.mulf %1062, %1064 : vector<8x64xf32>
    %cst_274 = arith.constant dense<0.000000e+00> : vector<64xf32>
    %1066 = vector.multi_reduction <add>, %1065, %cst_274 [0] : vector<8x64xf32> to vector<64xf32>
    %1067 = vector.shape_cast %1066 : vector<64xf32> to vector<1x64xf32>
    %c6_i32_275 = arith.constant 6 : i32
    %1068 = vector.broadcast %c6_i32_275 : i32 to vector<8x64xi32>
    %1069 = arith.cmpi eq, %31, %1068 : vector<8x64xi32>
    %cst_276 = arith.constant 0.000000e+00 : f32
    %1070 = vector.shape_cast %1067 : vector<1x64xf32> to vector<1x64xf32>
    %1071 = vector.broadcast %1070 : vector<1x64xf32> to vector<8x64xf32>
    %1072 = vector.broadcast %cst_276 : f32 to vector<8x64xf32>
    %1073 = arith.select %1069, %1071, %1072 : vector<8x64xi1>, vector<8x64xf32>
    %1074 = arith.addf %1060, %1073 : vector<8x64xf32>
    %1075 = arith.mulf %995, %1062 : vector<8x64xf32>
    %1076 = arith.addf %1075, %1033 : vector<8x64xf32>
    %1077 = vector.extract_strided_slice %959 {offsets = [0, 5], sizes = [8, 1], strides = [1, 1]} : vector<8x8xf32> to vector<8x1xf32>
    %1078 = vector.broadcast %1077 : vector<8x1xf32> to vector<8x64xf32>
    %1079 = arith.mulf %1076, %1078 : vector<8x64xf32>
    %cst_277 = arith.constant dense<0.000000e+00> : vector<64xf32>
    %1080 = vector.multi_reduction <add>, %1079, %cst_277 [0] : vector<8x64xf32> to vector<64xf32>
    %1081 = vector.shape_cast %1080 : vector<64xf32> to vector<1x64xf32>
    %c5_i32_278 = arith.constant 5 : i32
    %1082 = vector.broadcast %c5_i32_278 : i32 to vector<8x64xi32>
    %1083 = arith.cmpi eq, %31, %1082 : vector<8x64xi32>
    %cst_279 = arith.constant 0.000000e+00 : f32
    %1084 = vector.shape_cast %1081 : vector<1x64xf32> to vector<1x64xf32>
    %1085 = vector.broadcast %1084 : vector<1x64xf32> to vector<8x64xf32>
    %1086 = vector.broadcast %cst_279 : f32 to vector<8x64xf32>
    %1087 = arith.select %1083, %1085, %1086 : vector<8x64xi1>, vector<8x64xf32>
    %1088 = arith.addf %1074, %1087 : vector<8x64xf32>
    %1089 = arith.mulf %991, %1076 : vector<8x64xf32>
    %1090 = arith.addf %1089, %1028 : vector<8x64xf32>
    %1091 = vector.extract_strided_slice %959 {offsets = [0, 4], sizes = [8, 1], strides = [1, 1]} : vector<8x8xf32> to vector<8x1xf32>
    %1092 = vector.broadcast %1091 : vector<8x1xf32> to vector<8x64xf32>
    %1093 = arith.mulf %1090, %1092 : vector<8x64xf32>
    %cst_280 = arith.constant dense<0.000000e+00> : vector<64xf32>
    %1094 = vector.multi_reduction <add>, %1093, %cst_280 [0] : vector<8x64xf32> to vector<64xf32>
    %1095 = vector.shape_cast %1094 : vector<64xf32> to vector<1x64xf32>
    %c4_i32_281 = arith.constant 4 : i32
    %1096 = vector.broadcast %c4_i32_281 : i32 to vector<8x64xi32>
    %1097 = arith.cmpi eq, %31, %1096 : vector<8x64xi32>
    %cst_282 = arith.constant 0.000000e+00 : f32
    %1098 = vector.shape_cast %1095 : vector<1x64xf32> to vector<1x64xf32>
    %1099 = vector.broadcast %1098 : vector<1x64xf32> to vector<8x64xf32>
    %1100 = vector.broadcast %cst_282 : f32 to vector<8x64xf32>
    %1101 = arith.select %1097, %1099, %1100 : vector<8x64xi1>, vector<8x64xf32>
    %1102 = arith.addf %1088, %1101 : vector<8x64xf32>
    %1103 = arith.mulf %987, %1090 : vector<8x64xf32>
    %1104 = arith.addf %1103, %1023 : vector<8x64xf32>
    %1105 = vector.extract_strided_slice %959 {offsets = [0, 3], sizes = [8, 1], strides = [1, 1]} : vector<8x8xf32> to vector<8x1xf32>
    %1106 = vector.broadcast %1105 : vector<8x1xf32> to vector<8x64xf32>
    %1107 = arith.mulf %1104, %1106 : vector<8x64xf32>
    %cst_283 = arith.constant dense<0.000000e+00> : vector<64xf32>
    %1108 = vector.multi_reduction <add>, %1107, %cst_283 [0] : vector<8x64xf32> to vector<64xf32>
    %1109 = vector.shape_cast %1108 : vector<64xf32> to vector<1x64xf32>
    %c3_i32_284 = arith.constant 3 : i32
    %1110 = vector.broadcast %c3_i32_284 : i32 to vector<8x64xi32>
    %1111 = arith.cmpi eq, %31, %1110 : vector<8x64xi32>
    %cst_285 = arith.constant 0.000000e+00 : f32
    %1112 = vector.shape_cast %1109 : vector<1x64xf32> to vector<1x64xf32>
    %1113 = vector.broadcast %1112 : vector<1x64xf32> to vector<8x64xf32>
    %1114 = vector.broadcast %cst_285 : f32 to vector<8x64xf32>
    %1115 = arith.select %1111, %1113, %1114 : vector<8x64xi1>, vector<8x64xf32>
    %1116 = arith.addf %1102, %1115 : vector<8x64xf32>
    %1117 = arith.mulf %983, %1104 : vector<8x64xf32>
    %1118 = arith.addf %1117, %1018 : vector<8x64xf32>
    %1119 = vector.extract_strided_slice %959 {offsets = [0, 2], sizes = [8, 1], strides = [1, 1]} : vector<8x8xf32> to vector<8x1xf32>
    %1120 = vector.broadcast %1119 : vector<8x1xf32> to vector<8x64xf32>
    %1121 = arith.mulf %1118, %1120 : vector<8x64xf32>
    %cst_286 = arith.constant dense<0.000000e+00> : vector<64xf32>
    %1122 = vector.multi_reduction <add>, %1121, %cst_286 [0] : vector<8x64xf32> to vector<64xf32>
    %1123 = vector.shape_cast %1122 : vector<64xf32> to vector<1x64xf32>
    %c2_i32_287 = arith.constant 2 : i32
    %1124 = vector.broadcast %c2_i32_287 : i32 to vector<8x64xi32>
    %1125 = arith.cmpi eq, %31, %1124 : vector<8x64xi32>
    %cst_288 = arith.constant 0.000000e+00 : f32
    %1126 = vector.shape_cast %1123 : vector<1x64xf32> to vector<1x64xf32>
    %1127 = vector.broadcast %1126 : vector<1x64xf32> to vector<8x64xf32>
    %1128 = vector.broadcast %cst_288 : f32 to vector<8x64xf32>
    %1129 = arith.select %1125, %1127, %1128 : vector<8x64xi1>, vector<8x64xf32>
    %1130 = arith.addf %1116, %1129 : vector<8x64xf32>
    %1131 = arith.mulf %979, %1118 : vector<8x64xf32>
    %1132 = arith.addf %1131, %1013 : vector<8x64xf32>
    %1133 = vector.extract_strided_slice %959 {offsets = [0, 1], sizes = [8, 1], strides = [1, 1]} : vector<8x8xf32> to vector<8x1xf32>
    %1134 = vector.broadcast %1133 : vector<8x1xf32> to vector<8x64xf32>
    %1135 = arith.mulf %1132, %1134 : vector<8x64xf32>
    %cst_289 = arith.constant dense<0.000000e+00> : vector<64xf32>
    %1136 = vector.multi_reduction <add>, %1135, %cst_289 [0] : vector<8x64xf32> to vector<64xf32>
    %1137 = vector.shape_cast %1136 : vector<64xf32> to vector<1x64xf32>
    %c1_i32_290 = arith.constant 1 : i32
    %1138 = vector.broadcast %c1_i32_290 : i32 to vector<8x64xi32>
    %1139 = arith.cmpi eq, %31, %1138 : vector<8x64xi32>
    %cst_291 = arith.constant 0.000000e+00 : f32
    %1140 = vector.shape_cast %1137 : vector<1x64xf32> to vector<1x64xf32>
    %1141 = vector.broadcast %1140 : vector<1x64xf32> to vector<8x64xf32>
    %1142 = vector.broadcast %cst_291 : f32 to vector<8x64xf32>
    %1143 = arith.select %1139, %1141, %1142 : vector<8x64xi1>, vector<8x64xf32>
    %1144 = arith.addf %1130, %1143 : vector<8x64xf32>
    %1145 = arith.mulf %975, %1132 : vector<8x64xf32>
    %1146 = arith.addf %1145, %1008 : vector<8x64xf32>
    %1147 = vector.extract_strided_slice %959 {offsets = [0, 0], sizes = [8, 1], strides = [1, 1]} : vector<8x8xf32> to vector<8x1xf32>
    %1148 = vector.broadcast %1147 : vector<8x1xf32> to vector<8x64xf32>
    %1149 = arith.mulf %1146, %1148 : vector<8x64xf32>
    %cst_292 = arith.constant dense<0.000000e+00> : vector<64xf32>
    %1150 = vector.multi_reduction <add>, %1149, %cst_292 [0] : vector<8x64xf32> to vector<64xf32>
    %1151 = vector.shape_cast %1150 : vector<64xf32> to vector<1x64xf32>
    %c0_i32_293 = arith.constant 0 : i32
    %1152 = vector.broadcast %c0_i32_293 : i32 to vector<8x64xi32>
    %1153 = arith.cmpi eq, %31, %1152 : vector<8x64xi32>
    %cst_294 = arith.constant 0.000000e+00 : f32
    %1154 = vector.shape_cast %1151 : vector<1x64xf32> to vector<1x64xf32>
    %1155 = vector.broadcast %1154 : vector<1x64xf32> to vector<8x64xf32>
    %1156 = vector.broadcast %cst_294 : f32 to vector<8x64xf32>
    %1157 = arith.select %1153, %1155, %1156 : vector<8x64xi1>, vector<8x64xf32>
    %1158 = arith.addf %1144, %1157 : vector<8x64xf32>
    %1159 = arith.negf %924 : vector<8x64xf32>
    %1160 = math.exp %1159 : vector<8x64xf32>
    %cst_295 = arith.constant 1.000000e+00 : f32
    %1161 = vector.broadcast %cst_295 : f32 to vector<8x64xf32>
    %1162 = arith.addf %1161, %1160 : vector<8x64xf32>
    %1163 = arith.divf %1161, %1162 : vector<8x64xf32>
    %1164 = arith.mulf %924, %1163 : vector<8x64xf32>
    %1165 = arith.mulf %1158, %1164 : vector<8x64xf32>
    %cst_296 = arith.constant dense<0.000000e+00> : vector<8x32xf32>
    %1166 = tpu.matmul %1165, %921, %cst_296 {dimension_numbers = #tpu.dot_dimension_numbers<[1], [0], [0], [1], [0, 0, 1, 1], [], []>} : vector<8x64xf32>, vector<64x32xf32>, vector<8x32xf32> -> vector<8x32xf32>
    %1167 = arith.addf %900, %1166 : vector<8x32xf32>
    %1168 = arith.addf %634, %1167 : vector<8x32xf32>
    %c1_297 = arith.constant 1 : index
    %c0_298 = arith.constant 0 : index
    %c0_299 = arith.constant 0 : index
    %1169 = vector.load %arg19[%c1_297, %c0_298, %c0_299] : memref<2x1x32xf32, #tpu.memory_space<vmem>>, vector<1x1x32xf32>
    %1170 = vector.shape_cast %1169 : vector<1x1x32xf32> to vector<1x32xf32>
    %c1_300 = arith.constant 1 : index
    %c0_301 = arith.constant 0 : index
    %c0_302 = arith.constant 0 : index
    %1171 = vector.load %arg20[%c1_300, %c0_301, %c0_302] : memref<2x1x32xf32, #tpu.memory_space<vmem>>, vector<1x1x32xf32>
    %1172 = vector.shape_cast %1171 : vector<1x1x32xf32> to vector<1x32xf32>
    %cst_303 = arith.constant dense<0.000000e+00> : vector<8xf32>
    %1173 = vector.multi_reduction <add>, %1168, %cst_303 [1] : vector<8x32xf32> to vector<8xf32>
    %1174 = vector.shape_cast %1173 : vector<8xf32> to vector<8x1xf32>
    %cst_304 = arith.constant 3.200000e+01 : f32
    %1175 = vector.broadcast %cst_304 : f32 to vector<8x1xf32>
    %1176 = arith.divf %1174, %1175 : vector<8x1xf32>
    %1177 = vector.broadcast %1176 : vector<8x1xf32> to vector<8x32xf32>
    %1178 = arith.subf %1168, %1177 : vector<8x32xf32>
    %1179 = arith.mulf %1178, %1178 : vector<8x32xf32>
    %cst_305 = arith.constant dense<0.000000e+00> : vector<8xf32>
    %1180 = vector.multi_reduction <add>, %1179, %cst_305 [1] : vector<8x32xf32> to vector<8xf32>
    %1181 = vector.shape_cast %1180 : vector<8xf32> to vector<8x1xf32>
    %cst_306 = arith.constant 3.200000e+01 : f32
    %1182 = vector.broadcast %cst_306 : f32 to vector<8x1xf32>
    %1183 = arith.divf %1181, %1182 : vector<8x1xf32>
    %1184 = vector.broadcast %1176 : vector<8x1xf32> to vector<8x32xf32>
    %1185 = arith.subf %1168, %1184 : vector<8x32xf32>
    %cst_307 = arith.constant 9.99999974E-6 : f32
    %1186 = vector.broadcast %cst_307 : f32 to vector<8x1xf32>
    %1187 = arith.addf %1183, %1186 : vector<8x1xf32>
    %1188 = math.rsqrt %1187 : vector<8x1xf32>
    %1189 = vector.broadcast %1188 : vector<8x1xf32> to vector<8x32xf32>
    %1190 = arith.mulf %1185, %1189 : vector<8x32xf32>
    %1191 = vector.broadcast %1170 : vector<1x32xf32> to vector<8x32xf32>
    %1192 = arith.mulf %1190, %1191 : vector<8x32xf32>
    %1193 = vector.broadcast %1172 : vector<1x32xf32> to vector<8x32xf32>
    %1194 = arith.addf %1192, %1193 : vector<8x32xf32>
    %c1_308 = arith.constant 1 : index
    %c0_309 = arith.constant 0 : index
    %c0_310 = arith.constant 0 : index
    %1195 = vector.load %arg21[%c1_308, %c0_309, %c0_310] : memref<2x32x64xf32, #tpu.memory_space<vmem>>, vector<1x32x64xf32>
    %1196 = vector.shape_cast %1195 : vector<1x32x64xf32> to vector<32x64xf32>
    %cst_311 = arith.constant dense<0.000000e+00> : vector<8x64xf32>
    %1197 = tpu.matmul %1194, %1196, %cst_311 {dimension_numbers = #tpu.dot_dimension_numbers<[1], [0], [0], [1], [0, 0, 1, 1], [], []>} : vector<8x32xf32>, vector<32x64xf32>, vector<8x64xf32> -> vector<8x64xf32>
    %c1_312 = arith.constant 1 : index
    %c0_313 = arith.constant 0 : index
    %c0_314 = arith.constant 0 : index
    %1198 = vector.load %arg22[%c1_312, %c0_313, %c0_314] : memref<2x1x64xf32, #tpu.memory_space<vmem>>, vector<1x1x64xf32>
    %1199 = vector.shape_cast %1198 : vector<1x1x64xf32> to vector<1x64xf32>
    %1200 = vector.broadcast %1199 : vector<1x64xf32> to vector<8x64xf32>
    %1201 = arith.addf %1197, %1200 : vector<8x64xf32>
    %cst_315 = arith.constant 0.000000e+00 : f32
    %1202 = vector.broadcast %cst_315 : f32 to vector<8x64xf32>
    %1203 = arith.maximumf %1201, %1202 : vector<8x64xf32>
    %c1_316 = arith.constant 1 : index
    %c0_317 = arith.constant 0 : index
    %c0_318 = arith.constant 0 : index
    %1204 = vector.load %arg23[%c1_316, %c0_317, %c0_318] : memref<2x64x32xf32, #tpu.memory_space<vmem>>, vector<1x64x32xf32>
    %1205 = vector.shape_cast %1204 : vector<1x64x32xf32> to vector<64x32xf32>
    %cst_319 = arith.constant dense<0.000000e+00> : vector<8x32xf32>
    %1206 = tpu.matmul %1203, %1205, %cst_319 {dimension_numbers = #tpu.dot_dimension_numbers<[1], [0], [0], [1], [0, 0, 1, 1], [], []>} : vector<8x64xf32>, vector<64x32xf32>, vector<8x32xf32> -> vector<8x32xf32>
    %c1_320 = arith.constant 1 : index
    %c0_321 = arith.constant 0 : index
    %c0_322 = arith.constant 0 : index
    %1207 = vector.load %arg24[%c1_320, %c0_321, %c0_322] : memref<2x1x32xf32, #tpu.memory_space<vmem>>, vector<1x1x32xf32>
    %1208 = vector.shape_cast %1207 : vector<1x1x32xf32> to vector<1x32xf32>
    %1209 = vector.broadcast %1208 : vector<1x32xf32> to vector<8x32xf32>
    %1210 = arith.addf %1206, %1209 : vector<8x32xf32>
    %1211 = arith.addf %1194, %1210 : vector<8x32xf32>
    %c1_323 = arith.constant 1 : index
    %c0_324 = arith.constant 0 : index
    %c0_325 = arith.constant 0 : index
    %1212 = vector.load %arg25[%c1_323, %c0_324, %c0_325] : memref<2x1x32xf32, #tpu.memory_space<vmem>>, vector<1x1x32xf32>
    %1213 = vector.shape_cast %1212 : vector<1x1x32xf32> to vector<1x32xf32>
    %c1_326 = arith.constant 1 : index
    %c0_327 = arith.constant 0 : index
    %c0_328 = arith.constant 0 : index
    %1214 = vector.load %arg26[%c1_326, %c0_327, %c0_328] : memref<2x1x32xf32, #tpu.memory_space<vmem>>, vector<1x1x32xf32>
    %1215 = vector.shape_cast %1214 : vector<1x1x32xf32> to vector<1x32xf32>
    %cst_329 = arith.constant dense<0.000000e+00> : vector<8xf32>
    %1216 = vector.multi_reduction <add>, %1211, %cst_329 [1] : vector<8x32xf32> to vector<8xf32>
    %1217 = vector.shape_cast %1216 : vector<8xf32> to vector<8x1xf32>
    %cst_330 = arith.constant 3.200000e+01 : f32
    %1218 = vector.broadcast %cst_330 : f32 to vector<8x1xf32>
    %1219 = arith.divf %1217, %1218 : vector<8x1xf32>
    %1220 = vector.broadcast %1219 : vector<8x1xf32> to vector<8x32xf32>
    %1221 = arith.subf %1211, %1220 : vector<8x32xf32>
    %1222 = arith.mulf %1221, %1221 : vector<8x32xf32>
    %cst_331 = arith.constant dense<0.000000e+00> : vector<8xf32>
    %1223 = vector.multi_reduction <add>, %1222, %cst_331 [1] : vector<8x32xf32> to vector<8xf32>
    %1224 = vector.shape_cast %1223 : vector<8xf32> to vector<8x1xf32>
    %cst_332 = arith.constant 3.200000e+01 : f32
    %1225 = vector.broadcast %cst_332 : f32 to vector<8x1xf32>
    %1226 = arith.divf %1224, %1225 : vector<8x1xf32>
    %1227 = vector.broadcast %1219 : vector<8x1xf32> to vector<8x32xf32>
    %1228 = arith.subf %1211, %1227 : vector<8x32xf32>
    %cst_333 = arith.constant 9.99999974E-6 : f32
    %1229 = vector.broadcast %cst_333 : f32 to vector<8x1xf32>
    %1230 = arith.addf %1226, %1229 : vector<8x1xf32>
    %1231 = math.rsqrt %1230 : vector<8x1xf32>
    %1232 = vector.broadcast %1231 : vector<8x1xf32> to vector<8x32xf32>
    %1233 = arith.mulf %1228, %1232 : vector<8x32xf32>
    %1234 = vector.broadcast %1213 : vector<1x32xf32> to vector<8x32xf32>
    %1235 = arith.mulf %1233, %1234 : vector<8x32xf32>
    %1236 = vector.broadcast %1215 : vector<1x32xf32> to vector<8x32xf32>
    %1237 = arith.addf %1235, %1236 : vector<8x32xf32>
    %c0_334 = arith.constant 0 : index
    %c0_335 = arith.constant 0 : index
    %1238 = vector.load %arg6[%c0_334, %c0_335] : memref<1x32xf32, #tpu.memory_space<vmem>>, vector<1x32xf32>
    %c0_336 = arith.constant 0 : index
    %c0_337 = arith.constant 0 : index
    %1239 = vector.load %arg7[%c0_336, %c0_337] : memref<1x32xf32, #tpu.memory_space<vmem>>, vector<1x32xf32>
    %cst_338 = arith.constant dense<0.000000e+00> : vector<8xf32>
    %1240 = vector.multi_reduction <add>, %1237, %cst_338 [1] : vector<8x32xf32> to vector<8xf32>
    %1241 = vector.shape_cast %1240 : vector<8xf32> to vector<8x1xf32>
    %cst_339 = arith.constant 3.200000e+01 : f32
    %1242 = vector.broadcast %cst_339 : f32 to vector<8x1xf32>
    %1243 = arith.divf %1241, %1242 : vector<8x1xf32>
    %1244 = vector.broadcast %1243 : vector<8x1xf32> to vector<8x32xf32>
    %1245 = arith.subf %1237, %1244 : vector<8x32xf32>
    %1246 = arith.mulf %1245, %1245 : vector<8x32xf32>
    %cst_340 = arith.constant dense<0.000000e+00> : vector<8xf32>
    %1247 = vector.multi_reduction <add>, %1246, %cst_340 [1] : vector<8x32xf32> to vector<8xf32>
    %1248 = vector.shape_cast %1247 : vector<8xf32> to vector<8x1xf32>
    %cst_341 = arith.constant 3.200000e+01 : f32
    %1249 = vector.broadcast %cst_341 : f32 to vector<8x1xf32>
    %1250 = arith.divf %1248, %1249 : vector<8x1xf32>
    %1251 = vector.broadcast %1243 : vector<8x1xf32> to vector<8x32xf32>
    %1252 = arith.subf %1237, %1251 : vector<8x32xf32>
    %cst_342 = arith.constant 9.99999974E-6 : f32
    %1253 = vector.broadcast %cst_342 : f32 to vector<8x1xf32>
    %1254 = arith.addf %1250, %1253 : vector<8x1xf32>
    %1255 = math.rsqrt %1254 : vector<8x1xf32>
    %1256 = vector.broadcast %1255 : vector<8x1xf32> to vector<8x32xf32>
    %1257 = arith.mulf %1252, %1256 : vector<8x32xf32>
    %1258 = vector.broadcast %1238 : vector<1x32xf32> to vector<8x32xf32>
    %1259 = arith.mulf %1257, %1258 : vector<8x32xf32>
    %1260 = vector.broadcast %1239 : vector<1x32xf32> to vector<8x32xf32>
    %1261 = arith.addf %1259, %1260 : vector<8x32xf32>
    %c0_343 = arith.constant 0 : index
    %c0_344 = arith.constant 0 : index
    %1262 = vector.load %arg8[%c0_343, %c0_344] : memref<32x8xf32, #tpu.memory_space<vmem>>, vector<32x8xf32>
    %cst_345 = arith.constant dense<0.000000e+00> : vector<8x8xf32>
    %1263 = tpu.matmul %1261, %1262, %cst_345 {dimension_numbers = #tpu.dot_dimension_numbers<[1], [0], [0], [1], [0, 0, 1, 1], [], []>} : vector<8x32xf32>, vector<32x8xf32>, vector<8x8xf32> -> vector<8x8xf32>
    %c0_346 = arith.constant 0 : index
    %c0_347 = arith.constant 0 : index
    %1264 = vector.load %arg9[%c0_346, %c0_347] : memref<1x8xf32, #tpu.memory_space<vmem>>, vector<1x8xf32>
    %1265 = vector.broadcast %1264 : vector<1x8xf32> to vector<8x8xf32>
    %1266 = arith.addf %1263, %1265 : vector<8x8xf32>
    %c0_348 = arith.constant 0 : index
    %c0_349 = arith.constant 0 : index
    %1267 = vector.load %arg3[%c0_348, %c0_349] : memref<8x1xf32, #tpu.memory_space<vmem>>, vector<8x1xf32>
    %1268 = vector.broadcast %1267 : vector<8x1xf32> to vector<8x8xf32>
    %1269 = arith.subf %1266, %1268 : vector<8x8xf32>
    %c0_350 = arith.constant 0 : index
    %c0_351 = arith.constant 0 : index
    %1270 = vector.load %arg2[%c0_350, %c0_351] : memref<8x1xf32, #tpu.memory_space<vmem>>, vector<8x1xf32>
    %cst_352 = arith.constant 1.000000e-10 : f32
    %1271 = vector.broadcast %cst_352 : f32 to vector<8x1xf32>
    %1272 = arith.addf %1270, %1271 : vector<8x1xf32>
    %1273 = vector.broadcast %1272 : vector<8x1xf32> to vector<8x8xf32>
    %1274 = arith.divf %1269, %1273 : vector<8x8xf32>
    %1275 = vector.broadcast %15 : vector<8x1xf32> to vector<8x8xf32>
    %1276 = arith.mulf %1274, %1275 : vector<8x8xf32>
    %1277 = vector.broadcast %5 : vector<8x1xf32> to vector<8x8xf32>
    %1278 = arith.addf %1276, %1277 : vector<8x8xf32>
    %c0_353 = arith.constant 0 : index
    %c0_354 = arith.constant 0 : index
    %c0_355 = arith.constant 0 : index
    %1279 = vector.load %arg27[%c0_353, %c0_354, %c0_355] : memref<1x8x8xf32, #tpu.memory_space<vmem>>, vector<1x8x8xf32>
    %1280 = vector.shape_cast %1279 : vector<1x8x8xf32> to vector<8x8xf32>
    %1281 = vector.shape_cast %1278 : vector<8x8xf32> to vector<1x8x8xf32>
    tpu.vector_store %arg27[%c0_353, %c0_354, %c0_355], %1281 {strides = array<i32>} : memref<1x8x8xf32, #tpu.memory_space<vmem>>, vector<1x8x8xf32>,
    return
  }
  func.func @transform_0(%arg0: i32) -> (i32, i32, i32) {
    %c0_i32 = arith.constant 0 : i32
    %c0_i32_0 = arith.constant 0 : i32
    %c0_i32_1 = arith.constant 0 : i32
    return %arg0, %c0_i32, %c0_i32_0 : i32, i32, i32
  }
  func.func @transform_1(%arg0: i32) -> (i32, i32) {
    %c0_i32 = arith.constant 0 : i32
    %c0_i32_0 = arith.constant 0 : i32
    %c0_i32_1 = arith.constant 0 : i32
    return %c0_i32, %c0_i32_0 : i32, i32
  }
  func.func @transform_2(%arg0: i32) -> (i32, i32) {
    %c0_i32 = arith.constant 0 : i32
    %c0_i32_0 = arith.constant 0 : i32
    %c0_i32_1 = arith.constant 0 : i32
    return %c0_i32, %c0_i32_0 : i32, i32
  }
  func.func @transform_3(%arg0: i32) -> (i32, i32) {
    %c0_i32 = arith.constant 0 : i32
    %c0_i32_0 = arith.constant 0 : i32
    %c0_i32_1 = arith.constant 0 : i32
    return %c0_i32, %c0_i32_0 : i32, i32
  }
  func.func @transform_4(%arg0: i32) -> (i32, i32) {
    %c0_i32 = arith.constant 0 : i32
    %c0_i32_0 = arith.constant 0 : i32
    %c0_i32_1 = arith.constant 0 : i32
    return %c0_i32, %c0_i32_0 : i32, i32
  }
  func.func @transform_5(%arg0: i32) -> (i32, i32) {
    %c0_i32 = arith.constant 0 : i32
    %c0_i32_0 = arith.constant 0 : i32
    %c0_i32_1 = arith.constant 0 : i32
    return %c0_i32, %c0_i32_0 : i32, i32
  }
  func.func @transform_6(%arg0: i32) -> (i32, i32) {
    %c0_i32 = arith.constant 0 : i32
    %c0_i32_0 = arith.constant 0 : i32
    %c0_i32_1 = arith.constant 0 : i32
    return %c0_i32, %c0_i32_0 : i32, i32
  }
  func.func @transform_7(%arg0: i32) -> (i32, i32) {
    %c0_i32 = arith.constant 0 : i32
    %c0_i32_0 = arith.constant 0 : i32
    %c0_i32_1 = arith.constant 0 : i32
    return %c0_i32, %c0_i32_0 : i32, i32
  }
  func.func @transform_8(%arg0: i32) -> (i32, i32) {
    %c0_i32 = arith.constant 0 : i32
    %c0_i32_0 = arith.constant 0 : i32
    %c0_i32_1 = arith.constant 0 : i32
    return %c0_i32, %c0_i32_0 : i32, i32
  }
  func.func @transform_9(%arg0: i32) -> (i32, i32, i32) {
    %c0_i32 = arith.constant 0 : i32
    %c0_i32_0 = arith.constant 0 : i32
    %c0_i32_1 = arith.constant 0 : i32
    %c0_i32_2 = arith.constant 0 : i32
    return %c0_i32, %c0_i32_0, %c0_i32_1 : i32, i32, i32
  }
  func.func @transform_10(%arg0: i32) -> (i32, i32, i32) {
    %c0_i32 = arith.constant 0 : i32
    %c0_i32_0 = arith.constant 0 : i32
    %c0_i32_1 = arith.constant 0 : i32
    %c0_i32_2 = arith.constant 0 : i32
    return %c0_i32, %c0_i32_0, %c0_i32_1 : i32, i32, i32
  }
  func.func @transform_11(%arg0: i32) -> (i32, i32, i32) {
    %c0_i32 = arith.constant 0 : i32
    %c0_i32_0 = arith.constant 0 : i32
    %c0_i32_1 = arith.constant 0 : i32
    %c0_i32_2 = arith.constant 0 : i32
    return %c0_i32, %c0_i32_0, %c0_i32_1 : i32, i32, i32
  }
  func.func @transform_12(%arg0: i32) -> (i32, i32, i32) {
    %c0_i32 = arith.constant 0 : i32
    %c0_i32_0 = arith.constant 0 : i32
    %c0_i32_1 = arith.constant 0 : i32
    %c0_i32_2 = arith.constant 0 : i32
    return %c0_i32, %c0_i32_0, %c0_i32_1 : i32, i32, i32
  }
  func.func @transform_13(%arg0: i32) -> (i32, i32, i32) {
    %c0_i32 = arith.constant 0 : i32
    %c0_i32_0 = arith.constant 0 : i32
    %c0_i32_1 = arith.constant 0 : i32
    %c0_i32_2 = arith.constant 0 : i32
    return %c0_i32, %c0_i32_0, %c0_i32_1 : i32, i32, i32
  }
  func.func @transform_14(%arg0: i32) -> (i32, i32, i32) {
    %c0_i32 = arith.constant 0 : i32
    %c0_i32_0 = arith.constant 0 : i32
    %c0_i32_1 = arith.constant 0 : i32
    %c0_i32_2 = arith.constant 0 : i32
    return %c0_i32, %c0_i32_0, %c0_i32_1 : i32, i32, i32
  }
  func.func @transform_15(%arg0: i32) -> (i32, i32, i32) {
    %c0_i32 = arith.constant 0 : i32
    %c0_i32_0 = arith.constant 0 : i32
    %c0_i32_1 = arith.constant 0 : i32
    %c0_i32_2 = arith.constant 0 : i32
    return %c0_i32, %c0_i32_0, %c0_i32_1 : i32, i32, i32
  }
  func.func @transform_16(%arg0: i32) -> (i32, i32, i32) {
    %c0_i32 = arith.constant 0 : i32
    %c0_i32_0 = arith.constant 0 : i32
    %c0_i32_1 = arith.constant 0 : i32
    %c0_i32_2 = arith.constant 0 : i32
    return %c0_i32, %c0_i32_0, %c0_i32_1 : i32, i32, i32
  }
  func.func @transform_17(%arg0: i32) -> (i32, i32, i32) {
    %c0_i32 = arith.constant 0 : i32
    %c0_i32_0 = arith.constant 0 : i32
    %c0_i32_1 = arith.constant 0 : i32
    %c0_i32_2 = arith.constant 0 : i32
    return %c0_i32, %c0_i32_0, %c0_i32_1 : i32, i32, i32
  }
  func.func @transform_18(%arg0: i32) -> (i32, i32, i32) {
    %c0_i32 = arith.constant 0 : i32
    %c0_i32_0 = arith.constant 0 : i32
    %c0_i32_1 = arith.constant 0 : i32
    %c0_i32_2 = arith.constant 0 : i32
    return %c0_i32, %c0_i32_0, %c0_i32_1 : i32, i32, i32
  }
  func.func @transform_19(%arg0: i32) -> (i32, i32, i32) {
    %c0_i32 = arith.constant 0 : i32
    %c0_i32_0 = arith.constant 0 : i32
    %c0_i32_1 = arith.constant 0 : i32
    %c0_i32_2 = arith.constant 0 : i32
    return %c0_i32, %c0_i32_0, %c0_i32_1 : i32, i32, i32
  }
  func.func @transform_20(%arg0: i32) -> (i32, i32, i32) {
    %c0_i32 = arith.constant 0 : i32
    %c0_i32_0 = arith.constant 0 : i32
    %c0_i32_1 = arith.constant 0 : i32
    %c0_i32_2 = arith.constant 0 : i32
    return %c0_i32, %c0_i32_0, %c0_i32_1 : i32, i32, i32
  }
  func.func @transform_21(%arg0: i32) -> (i32, i32, i32) {
    %c0_i32 = arith.constant 0 : i32
    %c0_i32_0 = arith.constant 0 : i32
    %c0_i32_1 = arith.constant 0 : i32
    %c0_i32_2 = arith.constant 0 : i32
    return %c0_i32, %c0_i32_0, %c0_i32_1 : i32, i32, i32
  }
  func.func @transform_22(%arg0: i32) -> (i32, i32, i32) {
    %c0_i32 = arith.constant 0 : i32
    %c0_i32_0 = arith.constant 0 : i32
    %c0_i32_1 = arith.constant 0 : i32
    %c0_i32_2 = arith.constant 0 : i32
    return %c0_i32, %c0_i32_0, %c0_i32_1 : i32, i32, i32
  }
  func.func @transform_23(%arg0: i32) -> (i32, i32, i32) {
    %c0_i32 = arith.constant 0 : i32
    %c0_i32_0 = arith.constant 0 : i32
    %c0_i32_1 = arith.constant 0 : i32
    %c0_i32_2 = arith.constant 0 : i32
    return %c0_i32, %c0_i32_0, %c0_i32_1 : i32, i32, i32
  }
  func.func @transform_24(%arg0: i32) -> (i32, i32, i32) {
    %c0_i32 = arith.constant 0 : i32
    %c0_i32_0 = arith.constant 0 : i32
    %c0_i32_1 = arith.constant 0 : i32
    %c0_i32_2 = arith.constant 0 : i32
    return %c0_i32, %c0_i32_0, %c0_i32_1 : i32, i32, i32
  }
  func.func @transform_25(%arg0: i32) -> (i32, i32, i32) {
    %c0_i32 = arith.constant 0 : i32
    %c0_i32_0 = arith.constant 0 : i32
    %c0_i32_1 = arith.constant 0 : i32
    %c0_i32_2 = arith.constant 0 : i32
    return %c0_i32, %c0_i32_0, %c0_i32_1 : i32, i32, i32
  }
  func.func @transform_26(%arg0: i32) -> (i32, i32, i32) {
    %c0_i32 = arith.constant 0 : i32
    %c0_i32_0 = arith.constant 0 : i32
    %c0_i32_1 = arith.constant 0 : i32
    return %arg0, %c0_i32, %c0_i32_0 : i32, i32, i32
  }
}

</mosaic_0001>

<llo_original>
// kernel: sdmamba_forward.1
$region0: #{sdmamba_forward.1}
  #allocation0 [shape = 'u32[]', space=smem, size = 0x4, offset = 0x4, fixed_abs, tag = 'smem constant byte address 0x4 - core index']
  #allocation1 [shape = 'u32[144,128]{1,0:T(1,128)}', space=vmem, size = 0x12000, scoped, tag = 'internal scratch']
  %s0 = inlined_call_operand.hbm [shape: f32[2,8,16], index: 0, kind: input, shape index: {}]
  %s1 = inlined_call_operand.vmem [shape: f32[8,1], index: 1, kind: input, shape index: {}]
  %s2 = inlined_call_operand.vmem [shape: f32[8,1], index: 2, kind: input, shape index: {}]
  %s3 = inlined_call_operand.vmem [shape: f32[16,32], index: 3, kind: input, shape index: {}]
  %s4 = inlined_call_operand.vmem [shape: f32[1,32], index: 4, kind: input, shape index: {}]
  %s5 = inlined_call_operand.hbm [shape: f32[1,32], index: 5, kind: input, shape index: {}]
  %s6 = inlined_call_operand.hbm [shape: f32[1,32], index: 6, kind: input, shape index: {}]
  %s7 = inlined_call_operand.vmem [shape: f32[32,8], index: 7, kind: input, shape index: {}]
  %s8 = inlined_call_operand.hbm [shape: f32[1,8], index: 8, kind: input, shape index: {}]
  %s9 = inlined_call_operand.vmem [shape: f32[4,32,128], index: 9, kind: input, shape index: {}]
  %s10 = inlined_call_operand.hbm [shape: f32[4,4,64], index: 10, kind: input, shape index: {}]
  %s11 = inlined_call_operand.hbm [shape: f32[4,1,64], index: 11, kind: input, shape index: {}]
  %s12 = inlined_call_operand.vmem [shape: f32[4,16,64], index: 12, kind: input, shape index: {}]
  %s13 = inlined_call_operand.vmem [shape: f32[4,64,64], index: 13, kind: input, shape index: {}]
  %s14 = inlined_call_operand.hbm [shape: f32[4,1,64], index: 14, kind: input, shape index: {}]
  %s15 = inlined_call_operand.hbm [shape: f32[4,8,64], index: 15, kind: input, shape index: {}]
  %s16 = inlined_call_operand.hbm [shape: f32[4,1,64], index: 16, kind: input, shape index: {}]
  %s17 = inlined_call_operand.vmem [shape: f32[4,64,32], index: 17, kind: input, shape index: {}]
  %s18 = inlined_call_operand.hbm [shape: f32[2,1,32], index: 18, kind: input, shape index: {}]
  %s19 = inlined_call_operand.hbm [shape: f32[2,1,32], index: 19, kind: input, shape index: {}]
  %s20 = inlined_call_operand.vmem [shape: f32[2,32,64], index: 20, kind: input, shape index: {}]
  %s21 = inlined_call_operand.hbm [shape: f32[2,1,64], index: 21, kind: input, shape index: {}]
  %s22 = inlined_call_operand.vmem [shape: f32[2,64,32], index: 22, kind: input, shape index: {}]
  %s23 = inlined_call_operand.hbm [shape: f32[2,1,32], index: 23, kind: input, shape index: {}]
  %s24 = inlined_call_operand.hbm [shape: f32[2,1,32], index: 24, kind: input, shape index: {}]
  %s25 = inlined_call_operand.hbm [shape: f32[2,1,32], index: 25, kind: input, shape index: {}]
  %s26 = inlined_call_operand.vmem [shape: f32[2,8,8], index: 26, kind: output, shape index: {}]
  %s27 = sld [smem:[#allocation0]]
  $region197: #{sdmamba_forward.1} parent=0
    _
  %s29 = ssub.s32 1, %s27
  %s30 = scalar_select 0, %s29, %s27
  $region1: #{sdmamba_forward.1} parent=0
    #allocation2 [shape = 'u8[8192]{0}', space=vmem, size = 0x2000, scoped, tag = 'input window, operand 0']
    #allocation3 [shape = 's32[2]{0}', space=sflag, size = 0x8, scoped, tag = 'scoped memory for sdmamba_forward.1']
    #allocation4 [shape = 'u8[512]{0}', space=vmem, size = 0x400, scoped, tag = 'input window, operand 5, single buffered']
    #allocation5 [shape = 's32[1]{0}', space=sflag, size = 0x4, scoped, tag = 'scoped memory for sdmamba_forward.1']
    #allocation6 [shape = 'u8[512]{0}', space=vmem, size = 0x400, scoped, tag = 'input window, operand 6, single buffered']
    #allocation7 [shape = 'u8[512]{0}', space=vmem, size = 0x400, scoped, tag = 'input window, operand 8, single buffered']
    #allocation8 [shape = 's32[1]{0}', space=sflag, size = 0x4, scoped, tag = 'scoped memory for sdmamba_forward.1']
    #allocation9 [shape = 'u8[8192]{0}', space=vmem, size = 0x2000, scoped, tag = 'input window, operand 10, single buffered']
    #allocation10 [shape = 'u8[2048]{0}', space=vmem, size = 0x800, scoped, tag = 'input window, operand 11, single buffered']
    #allocation11 [shape = 's32[1]{0}', space=sflag, size = 0x4, scoped, tag = 'scoped memory for sdmamba_forward.1']
    #allocation12 [shape = 'u8[2048]{0}', space=vmem, size = 0x800, scoped, tag = 'input window, operand 14, single buffered']
    #allocation13 [shape = 'u8[16384]{0}', space=vmem, size = 0x4000, scoped, tag = 'input window, operand 15, single buffered']
    #allocation14 [shape = 's32[1]{0}', space=sflag, size = 0x4, scoped, tag = 'scoped memory for sdmamba_forward.1']
    #allocation15 [shape = 'u8[2048]{0}', space=vmem, size = 0x800, scoped, tag = 'input window, operand 16, single buffered']
    #allocation16 [shape = 'u8[1024]{0}', space=vmem, size = 0x400, scoped, tag = 'input window, operand 18, single buffered']
    #allocation17 [shape = 's32[1]{0}', space=sflag, size = 0x4, scoped, tag = 'scoped memory for sdmamba_forward.1']
    #allocation18 [shape = 'u8[1024]{0}', space=vmem, size = 0x400, scoped, tag = 'input window, operand 19, single buffered']
    #allocation19 [shape = 'u8[1024]{0}', space=vmem, size = 0x400, scoped, tag = 'input window, operand 21, single buffered']
    #allocation20 [shape = 's32[1]{0}', space=sflag, size = 0x4, scoped, tag = 'scoped memory for sdmamba_forward.1']
    #allocation21 [shape = 'u8[1024]{0}', space=vmem, size = 0x400, scoped, tag = 'input window, operand 23, single buffered']
    #allocation22 [shape = 'u8[1024]{0}', space=vmem, size = 0x400, scoped, tag = 'input window, operand 24, single buffered']
    #allocation23 [shape = 's32[1]{0}', space=sflag, size = 0x4, scoped, tag = 'scoped memory for sdmamba_forward.1']
    #allocation24 [shape = 'u8[1024]{0}', space=vmem, size = 0x400, scoped, tag = 'input window, operand 25, single buffered']
    %31 = vsyncpa [#allocation3], 0
    %s32 = scalar_lea.sflag [#allocation3], 1
    %33 = vsyncpa %s32, 0
    %34 = vsyncpa [#allocation5], 0
    %35 = vsyncpa [#allocation8], 0
    %36 = vsyncpa [#allocation11], 0
    %37 = vsyncpa [#allocation14], 0
    %38 = vsyncpa [#allocation17], 0
    %39 = vsyncpa [#allocation20], 0
    %40 = vsyncpa [#allocation23], 0
    loop: start=0, step=1, limit=4
    $region2: #{sdmamba_forward.1} parent=1 // loop_pre_header
      _
    $region3: #{sdmamba_forward.1} parent=1 // loop_header
      %s42 = sphi 0, %s46
      %p43 = scmp.ge.s32.totalorder %s42, 4
      %s52 = sphi 0, %s54
      %s55 = sphi 0, %s52
      %s56 = sphi 0, %s55
      %s72 = sphi 0, %s56
      %s76 = sphi 0, %s76
      %s78 = sphi 0, %s76
      %s79 = sphi 0, %s78
      %s93 = sphi 0, %s79
      %s97 = sphi 0, %s97
      %s99 = sphi 0, %s97
      %s100 = sphi 0, %s99
      %s114 = sphi 0, %s100
      %s118 = sphi 0, %s118
      %s120 = sphi 0, %s118
      %s121 = sphi 0, %s120
      %s135 = sphi 0, %s121
      %s139 = sphi 0, %s139
      %s141 = sphi 0, %s139
      %s142 = sphi 0, %s141
      %s156 = sphi 0, %s142
      %s160 = sphi 0, %s160
      %s162 = sphi 0, %s160
      %s163 = sphi 0, %s162
      %s177 = sphi 0, %s163
      %s181 = sphi 0, %s181
      %s183 = sphi 0, %s181
      %s184 = sphi 0, %s183
      %s198 = sphi 0, %s184
      %s202 = sphi 0, %s202
      %s204 = sphi 0, %s202
      %s205 = sphi 0, %s204
      %s219 = sphi 0, %s205
      %s223 = sphi 0, %s223
      %s225 = sphi 0, %s223
      %s226 = sphi 0, %s225
      %s240 = sphi 0, %s226
      %s244 = sphi 0, %s244
      %s246 = sphi 0, %s244
      %s247 = sphi 0, %s246
      %s261 = sphi 0, %s247
      %s265 = sphi 0, %s265
      %s267 = sphi 0, %s265
      %s268 = sphi 0, %s267
      %s282 = sphi 0, %s268
      %s286 = sphi 0, %s286
      %s288 = sphi 0, %s286
      %s289 = sphi 0, %s288
      %s303 = sphi 0, %s289
      %s307 = sphi 0, %s307
      %s309 = sphi 0, %s307
      %s310 = sphi 0, %s309
      %s324 = sphi 0, %s310
      %s328 = sphi 0, %s328
      %s330 = sphi 0, %s328
      %s331 = sphi 0, %s330
      %s345 = sphi 0, %s331
      %s349 = sphi 0, %s349
      %s351 = sphi 0, %s349
      %s352 = sphi 0, %s351
      %s366 = sphi 0, %s352
      %s370 = sphi 0, %s370
      %s372 = sphi 0, %s370
      %s373 = sphi 0, %s372
      %s387 = sphi 0, %s373
      %s391 = sphi 0, %s391
      %s393 = sphi 0, %s391
      %s394 = sphi 0, %s393
      %s408 = sphi 0, %s394
      %s412 = sphi 0, %s412
      %s414 = sphi 0, %s412
      %s415 = sphi 0, %s414
      %s429 = sphi 0, %s415
      %s433 = sphi 0, %s433
      %s435 = sphi 0, %s433
      %s436 = sphi 0, %s435
      %s450 = sphi 0, %s436
      %s454 = sphi 0, %s454
      %s456 = sphi 0, %s454
      %s457 = sphi 0, %s456
      %s471 = sphi 0, %s457
      %s475 = sphi 0, %s475
      %s477 = sphi 0, %s475
      %s478 = sphi 0, %s477
      %s492 = sphi 0, %s478
      %s496 = sphi 0, %s496
      %s498 = sphi 0, %s496
      %s499 = sphi 0, %s498
      %s513 = sphi 0, %s499
      %s517 = sphi 0, %s517
      %s519 = sphi 0, %s517
      %s520 = sphi 0, %s519
      %s534 = sphi 0, %s520
      %s538 = sphi 0, %s538
      %s540 = sphi 0, %s538
      %s541 = sphi 0, %s540
      %s555 = sphi 0, %s541
      %s559 = sphi 0, %s559
      %s561 = sphi 0, %s559
      %s562 = sphi 0, %s561
      %s576 = sphi 0, %s562
      %s580 = sphi 0, %s580
      %s582 = sphi 0, %s580
      %s583 = sphi 0, %s582
      %s597 = sphi 0, %s583
      %s603 = sphi 0, %s605
      %s606 = sphi 0, %s603
      %s607 = sphi 0, %s606
      %s623 = sphi 0, %s607
    $region4: #{sdmamba_forward.1} parent=1 // loop_header_branch
      %45 = sbr.rel (%p43) target = $region8
    $region5: #{sdmamba_forward.1} parent=1 // loop_body
      %s47 = ssub.s32 %s42, 1
      %s48 = ssub.s32 %s42, 2
      %s49 = sadd.s32 %s42, 1
      %s50 = ssub.s32 %s42, %s49
      %p51 = scmp.eq.s32.totalorder %s50, 0
      %s53 = sadd.s32 %s52, 1
      %s54 = scalar_select %p51, %s52, %s53
      %p57 = pneg %p51
      %p58 = scmp.eq.s32.totalorder %s42, 1
      %p59 = por %p57, %p58
      %p60 = scmp.ne.s32.totalorder %s52, %s55
      %p61 = scmp.eq.s32.totalorder %s42, 0
      %p62 = por %p60, %p61
      %p63 = scmp.ne.s32.totalorder %s52, %s55
      %p64 = scmp.eq.s32.totalorder %s47, 1
      %p65 = por %p63, %p64
      %p66 = scmp.ne.s32.totalorder %s55, %s56
      %p67 = scmp.eq.s32.totalorder %s47, 0
      %p68 = por %p66, %p67
      %p69 = scmp.ne.s32.totalorder %s55, %s56
      %p70 = scmp.eq.s32.totalorder %s48, 1
      %p71 = por %p69, %p70
      %p73 = scmp.ne.s32.totalorder %s56, %s72
      %p74 = scmp.eq.s32.totalorder %s48, 0
      %p75 = por %p73, %p74
      %s77 = sadd.s32 %s76, 1
      %p80 = scmp.eq.s32.totalorder %s42, 1
      %p81 = scmp.ne.s32.totalorder %s76, %s78
      %p82 = scmp.eq.s32.totalorder %s42, 0
      %p83 = por %p81, %p82
      %p84 = scmp.ne.s32.totalorder %s76, %s78
      %p85 = scmp.eq.s32.totalorder %s47, 1
      %p86 = por %p84, %p85
      %p87 = scmp.ne.s32.totalorder %s78, %s79
      %p88 = scmp.eq.s32.totalorder %s47, 0
      %p89 = por %p87, %p88
      %p90 = scmp.ne.s32.totalorder %s78, %s79
      %p91 = scmp.eq.s32.totalorder %s48, 1
      %p92 = por %p90, %p91
      %p94 = scmp.ne.s32.totalorder %s79, %s93
      %p95 = scmp.eq.s32.totalorder %s48, 0
      %p96 = por %p94, %p95
      %s98 = sadd.s32 %s97, 1
      %p101 = scmp.eq.s32.totalorder %s42, 1
      %p102 = scmp.ne.s32.totalorder %s97, %s99
      %p103 = scmp.eq.s32.totalorder %s42, 0
      %p104 = por %p102, %p103
      %p105 = scmp.ne.s32.totalorder %s97, %s99
      %p106 = scmp.eq.s32.totalorder %s47, 1
      %p107 = por %p105, %p106
      %p108 = scmp.ne.s32.totalorder %s99, %s100
      %p109 = scmp.eq.s32.totalorder %s47, 0
      %p110 = por %p108, %p109
      %p111 = scmp.ne.s32.totalorder %s99, %s100
      %p112 = scmp.eq.s32.totalorder %s48, 1
      %p113 = por %p111, %p112
      %p115 = scmp.ne.s32.totalorder %s100, %s114
      %p116 = scmp.eq.s32.totalorder %s48, 0
      %p117 = por %p115, %p116
      %s119 = sadd.s32 %s118, 1
      %p122 = scmp.eq.s32.totalorder %s42, 1
      %p123 = scmp.ne.s32.totalorder %s118, %s120
      %p124 = scmp.eq.s32.totalorder %s42, 0
      %p125 = por %p123, %p124
      %p126 = scmp.ne.s32.totalorder %s118, %s120
      %p127 = scmp.eq.s32.totalorder %s47, 1
      %p128 = por %p126, %p127
      %p129 = scmp.ne.s32.totalorder %s120, %s121
      %p130 = scmp.eq.s32.totalorder %s47, 0
      %p131 = por %p129, %p130
      %p132 = scmp.ne.s32.totalorder %s120, %s121
      %p133 = scmp.eq.s32.totalorder %s48, 1
      %p134 = por %p132, %p133
      %p136 = scmp.ne.s32.totalorder %s121, %s135
      %p137 = scmp.eq.s32.totalorder %s48, 0
      %p138 = por %p136, %p137
      %s140 = sadd.s32 %s139, 1
      %p143 = scmp.eq.s32.totalorder %s42, 1
      %p144 = scmp.ne.s32.totalorder %s139, %s141
      %p145 = scmp.eq.s32.totalorder %s42, 0
      %p146 = por %p144, %p145
      %p147 = scmp.ne.s32.totalorder %s139, %s141
      %p148 = scmp.eq.s32.totalorder %s47, 1
      %p149 = por %p147, %p148
      %p150 = scmp.ne.s32.totalorder %s141, %s142
      %p151 = scmp.eq.s32.totalorder %s47, 0
      %p152 = por %p150, %p151
      %p153 = scmp.ne.s32.totalorder %s141, %s142
      %p154 = scmp.eq.s32.totalorder %s48, 1
      %p155 = por %p153, %p154
      %p157 = scmp.ne.s32.totalorder %s142, %s156
      %p158 = scmp.eq.s32.totalorder %s48, 0
      %p159 = por %p157, %p158
      %s161 = sadd.s32 %s160, 1
      %p164 = scmp.eq.s32.totalorder %s42, 1
      %p165 = scmp.ne.s32.totalorder %s160, %s162
      %p166 = scmp.eq.s32.totalorder %s42, 0
      %p167 = por %p165, %p166
      %p168 = scmp.ne.s32.totalorder %s160, %s162
      %p169 = scmp.eq.s32.totalorder %s47, 1
      %p170 = por %p168, %p169
      %p171 = scmp.ne.s32.totalorder %s162, %s163
      %p172 = scmp.eq.s32.totalorder %s47, 0
      %p173 = por %p171, %p172
      %p174 = scmp.ne.s32.totalorder %s162, %s163
      %p175 = scmp.eq.s32.totalorder %s48, 1
      %p176 = por %p174, %p175
      %p178 = scmp.ne.s32.totalorder %s163, %s177
      %p179 = scmp.eq.s32.totalorder %s48, 0
      %p180 = por %p178, %p179
      %s182 = sadd.s32 %s181, 1
      %p185 = scmp.eq.s32.totalorder %s42, 1
      %p186 = scmp.ne.s32.totalorder %s181, %s183
      %p187 = scmp.eq.s32.totalorder %s42, 0
      %p188 = por %p186, %p187
      %p189 = scmp.ne.s32.totalorder %s181, %s183
      %p190 = scmp.eq.s32.totalorder %s47, 1
      %p191 = por %p189, %p190
      %p192 = scmp.ne.s32.totalorder %s183, %s184
      %p193 = scmp.eq.s32.totalorder %s47, 0
      %p194 = por %p192, %p193
      %p195 = scmp.ne.s32.totalorder %s183, %s184
      %p196 = scmp.eq.s32.totalorder %s48, 1
      %p197 = por %p195, %p196
      %p199 = scmp.ne.s32.totalorder %s184, %s198
      %p200 = scmp.eq.s32.totalorder %s48, 0
      %p201 = por %p199, %p200
      %s203 = sadd.s32 %s202, 1
      %p206 = scmp.eq.s32.totalorder %s42, 1
      %p207 = scmp.ne.s32.totalorder %s202, %s204
      %p208 = scmp.eq.s32.totalorder %s42, 0
      %p209 = por %p207, %p208
      %p210 = scmp.ne.s32.totalorder %s202, %s204
      %p211 = scmp.eq.s32.totalorder %s47, 1
      %p212 = por %p210, %p211
      %p213 = scmp.ne.s32.totalorder %s204, %s205
      %p214 = scmp.eq.s32.totalorder %s47, 0
      %p215 = por %p213, %p214
      %p216 = scmp.ne.s32.totalorder %s204, %s205
      %p217 = scmp.eq.s32.totalorder %s48, 1
      %p218 = por %p216, %p217
      %p220 = scmp.ne.s32.totalorder %s205, %s219
      %p221 = scmp.eq.s32.totalorder %s48, 0
      %p222 = por %p220, %p221
      %s224 = sadd.s32 %s223, 1
      %p227 = scmp.eq.s32.totalorder %s42, 1
      %p228 = scmp.ne.s32.totalorder %s223, %s225
      %p229 = scmp.eq.s32.totalorder %s42, 0
      %p230 = por %p228, %p229
      %p231 = scmp.ne.s32.totalorder %s223, %s225
      %p232 = scmp.eq.s32.totalorder %s47, 1
      %p233 = por %p231, %p232
      %p234 = scmp.ne.s32.totalorder %s225, %s226
      %p235 = scmp.eq.s32.totalorder %s47, 0
      %p236 = por %p234, %p235
      %p237 = scmp.ne.s32.totalorder %s225, %s226
      %p238 = scmp.eq.s32.totalorder %s48, 1
      %p239 = por %p237, %p238
      %p241 = scmp.ne.s32.totalorder %s226, %s240
      %p242 = scmp.eq.s32.totalorder %s48, 0
      %p243 = por %p241, %p242
      %s245 = sadd.s32 %s244, 1
      %p248 = scmp.eq.s32.totalorder %s42, 1
      %p249 = scmp.ne.s32.totalorder %s244, %s246
      %p250 = scmp.eq.s32.totalorder %s42, 0
      %p251 = por %p249, %p250
      %p252 = scmp.ne.s32.totalorder %s244, %s246
      %p253 = scmp.eq.s32.totalorder %s47, 1
      %p254 = por %p252, %p253
      %p255 = scmp.ne.s32.totalorder %s246, %s247
      %p256 = scmp.eq.s32.totalorder %s47, 0
      %p257 = por %p255, %p256
      %p258 = scmp.ne.s32.totalorder %s246, %s247
      %p259 = scmp.eq.s32.totalorder %s48, 1
      %p260 = por %p258, %p259
      %p262 = scmp.ne.s32.totalorder %s247, %s261
      %p263 = scmp.eq.s32.totalorder %s48, 0
      %p264 = por %p262, %p263
      %s266 = sadd.s32 %s265, 1
      %p269 = scmp.eq.s32.totalorder %s42, 1
      %p270 = scmp.ne.s32.totalorder %s265, %s267
      %p271 = scmp.eq.s32.totalorder %s42, 0
      %p272 = por %p270, %p271
      %p273 = scmp.ne.s32.totalorder %s265, %s267
      %p274 = scmp.eq.s32.totalorder %s47, 1
      %p275 = por %p273, %p274
      %p276 = scmp.ne.s32.totalorder %s267, %s268
      %p277 = scmp.eq.s32.totalorder %s47, 0
      %p278 = por %p276, %p277
      %p279 = scmp.ne.s32.totalorder %s267, %s268
      %p280 = scmp.eq.s32.totalorder %s48, 1
      %p281 = por %p279, %p280
      %p283 = scmp.ne.s32.totalorder %s268, %s282
      %p284 = scmp.eq.s32.totalorder %s48, 0
      %p285 = por %p283, %p284
      %s287 = sadd.s32 %s286, 1
      %p290 = scmp.eq.s32.totalorder %s42, 1
      %p291 = scmp.ne.s32.totalorder %s286, %s288
      %p292 = scmp.eq.s32.totalorder %s42, 0
      %p293 = por %p291, %p292
      %p294 = scmp.ne.s32.totalorder %s286, %s288
      %p295 = scmp.eq.s32.totalorder %s47, 1
      %p296 = por %p294, %p295
      %p297 = scmp.ne.s32.totalorder %s288, %s289
      %p298 = scmp.eq.s32.totalorder %s47, 0
      %p299 = por %p297, %p298
      %p300 = scmp.ne.s32.totalorder %s288, %s289
      %p301 = scmp.eq.s32.totalorder %s48, 1
      %p302 = por %p300, %p301
      %p304 = scmp.ne.s32.totalorder %s289, %s303
      %p305 = scmp.eq.s32.totalorder %s48, 0
      %p306 = por %p304, %p305
      %s308 = sadd.s32 %s307, 1
      %p311 = scmp.eq.s32.totalorder %s42, 1
      %p312 = scmp.ne.s32.totalorder %s307, %s309
      %p313 = scmp.eq.s32.totalorder %s42, 0
      %p314 = por %p312, %p313
      %p315 = scmp.ne.s32.totalorder %s307, %s309
      %p316 = scmp.eq.s32.totalorder %s47, 1
      %p317 = por %p315, %p316
      %p318 = scmp.ne.s32.totalorder %s309, %s310
      %p319 = scmp.eq.s32.totalorder %s47, 0
      %p320 = por %p318, %p319
      %p321 = scmp.ne.s32.totalorder %s309, %s310
      %p322 = scmp.eq.s32.totalorder %s48, 1
      %p323 = por %p321, %p322
      %p325 = scmp.ne.s32.totalorder %s310, %s324
      %p326 = scmp.eq.s32.totalorder %s48, 0
      %p327 = por %p325, %p326
      %s329 = sadd.s32 %s328, 1
      %p332 = scmp.eq.s32.totalorder %s42, 1
      %p333 = scmp.ne.s32.totalorder %s328, %s330
      %p334 = scmp.eq.s32.totalorder %s42, 0
      %p335 = por %p333, %p334
      %p336 = scmp.ne.s32.totalorder %s328, %s330
      %p337 = scmp.eq.s32.totalorder %s47, 1
      %p338 = por %p336, %p337
      %p339 = scmp.ne.s32.totalorder %s330, %s331
      %p340 = scmp.eq.s32.totalorder %s47, 0
      %p341 = por %p339, %p340
      %p342 = scmp.ne.s32.totalorder %s330, %s331
      %p343 = scmp.eq.s32.totalorder %s48, 1
      %p344 = por %p342, %p343
      %p346 = scmp.ne.s32.totalorder %s331, %s345
      %p347 = scmp.eq.s32.totalorder %s48, 0
      %p348 = por %p346, %p347
      %s350 = sadd.s32 %s349, 1
      %p353 = scmp.eq.s32.totalorder %s42, 1
      %p354 = scmp.ne.s32.totalorder %s349, %s351
      %p355 = scmp.eq.s32.totalorder %s42, 0
      %p356 = por %p354, %p355
      %p357 = scmp.ne.s32.totalorder %s349, %s351
      %p358 = scmp.eq.s32.totalorder %s47, 1
      %p359 = por %p357, %p358
      %p360 = scmp.ne.s32.totalorder %s351, %s352
      %p361 = scmp.eq.s32.totalorder %s47, 0
      %p362 = por %p360, %p361
      %p363 = scmp.ne.s32.totalorder %s351, %s352
      %p364 = scmp.eq.s32.totalorder %s48, 1
      %p365 = por %p363, %p364
      %p367 = scmp.ne.s32.totalorder %s352, %s366
      %p368 = scmp.eq.s32.totalorder %s48, 0
      %p369 = por %p367, %p368
      %s371 = sadd.s32 %s370, 1
      %p374 = scmp.eq.s32.totalorder %s42, 1
      %p375 = scmp.ne.s32.totalorder %s370, %s372
      %p376 = scmp.eq.s32.totalorder %s42, 0
      %p377 = por %p375, %p376
      %p378 = scmp.ne.s32.totalorder %s370, %s372
      %p379 = scmp.eq.s32.totalorder %s47, 1
      %p380 = por %p378, %p379
      %p381 = scmp.ne.s32.totalorder %s372, %s373
      %p382 = scmp.eq.s32.totalorder %s47, 0
      %p383 = por %p381, %p382
      %p384 = scmp.ne.s32.totalorder %s372, %s373
      %p385 = scmp.eq.s32.totalorder %s48, 1
      %p386 = por %p384, %p385
      %p388 = scmp.ne.s32.totalorder %s373, %s387
      %p389 = scmp.eq.s32.totalorder %s48, 0
      %p390 = por %p388, %p389
      %s392 = sadd.s32 %s391, 1
      %p395 = scmp.eq.s32.totalorder %s42, 1
      %p396 = scmp.ne.s32.totalorder %s391, %s393
      %p397 = scmp.eq.s32.totalorder %s42, 0
      %p398 = por %p396, %p397
      %p399 = scmp.ne.s32.totalorder %s391, %s393
      %p400 = scmp.eq.s32.totalorder %s47, 1
      %p401 = por %p399, %p400
      %p402 = scmp.ne.s32.totalorder %s393, %s394
      %p403 = scmp.eq.s32.totalorder %s47, 0
      %p404 = por %p402, %p403
      %p405 = scmp.ne.s32.totalorder %s393, %s394
      %p406 = scmp.eq.s32.totalorder %s48, 1
      %p407 = por %p405, %p406
      %p409 = scmp.ne.s32.totalorder %s394, %s408
      %p410 = scmp.eq.s32.totalorder %s48, 0
      %p411 = por %p409, %p410
      %s413 = sadd.s32 %s412, 1
      %p416 = scmp.eq.s32.totalorder %s42, 1
      %p417 = scmp.ne.s32.totalorder %s412, %s414
      %p418 = scmp.eq.s32.totalorder %s42, 0
      %p419 = por %p417, %p418
      %p420 = scmp.ne.s32.totalorder %s412, %s414
      %p421 = scmp.eq.s32.totalorder %s47, 1
      %p422 = por %p420, %p421
      %p423 = scmp.ne.s32.totalorder %s414, %s415
      %p424 = scmp.eq.s32.totalorder %s47, 0
      %p425 = por %p423, %p424
      %p426 = scmp.ne.s32.totalorder %s414, %s415
      %p427 = scmp.eq.s32.totalorder %s48, 1
      %p428 = por %p426, %p427
      %p430 = scmp.ne.s32.totalorder %s415, %s429
      %p431 = scmp.eq.s32.totalorder %s48, 0
      %p432 = por %p430, %p431
      %s434 = sadd.s32 %s433, 1
      %p437 = scmp.eq.s32.totalorder %s42, 1
      %p438 = scmp.ne.s32.totalorder %s433, %s435
      %p439 = scmp.eq.s32.totalorder %s42, 0
      %p440 = por %p438, %p439
      %p441 = scmp.ne.s32.totalorder %s433, %s435
      %p442 = scmp.eq.s32.totalorder %s47, 1
      %p443 = por %p441, %p442
      %p444 = scmp.ne.s32.totalorder %s435, %s436
      %p445 = scmp.eq.s32.totalorder %s47, 0
      %p446 = por %p444, %p445
      %p447 = scmp.ne.s32.totalorder %s435, %s436
      %p448 = scmp.eq.s32.totalorder %s48, 1
      %p449 = por %p447, %p448
      %p451 = scmp.ne.s32.totalorder %s436, %s450
      %p452 = scmp.eq.s32.totalorder %s48, 0
      %p453 = por %p451, %p452
      %s455 = sadd.s32 %s454, 1
      %p458 = scmp.eq.s32.totalorder %s42, 1
      %p459 = scmp.ne.s32.totalorder %s454, %s456
      %p460 = scmp.eq.s32.totalorder %s42, 0
      %p461 = por %p459, %p460
      %p462 = scmp.ne.s32.totalorder %s454, %s456
      %p463 = scmp.eq.s32.totalorder %s47, 1
      %p464 = por %p462, %p463
      %p465 = scmp.ne.s32.totalorder %s456, %s457
      %p466 = scmp.eq.s32.totalorder %s47, 0
      %p467 = por %p465, %p466
      %p468 = scmp.ne.s32.totalorder %s456, %s457
      %p469 = scmp.eq.s32.totalorder %s48, 1
      %p470 = por %p468, %p469
      %p472 = scmp.ne.s32.totalorder %s457, %s471
      %p473 = scmp.eq.s32.totalorder %s48, 0
      %p474 = por %p472, %p473
      %s476 = sadd.s32 %s475, 1
      %p479 = scmp.eq.s32.totalorder %s42, 1
      %p480 = scmp.ne.s32.totalorder %s475, %s477
      %p481 = scmp.eq.s32.totalorder %s42, 0
      %p482 = por %p480, %p481
      %p483 = scmp.ne.s32.totalorder %s475, %s477
      %p484 = scmp.eq.s32.totalorder %s47, 1
      %p485 = por %p483, %p484
      %p486 = scmp.ne.s32.totalorder %s477, %s478
      %p487 = scmp.eq.s32.totalorder %s47, 0
      %p488 = por %p486, %p487
      %p489 = scmp.ne.s32.totalorder %s477, %s478
      %p490 = scmp.eq.s32.totalorder %s48, 1
      %p491 = por %p489, %p490
      %p493 = scmp.ne.s32.totalorder %s478, %s492
      %p494 = scmp.eq.s32.totalorder %s48, 0
      %p495 = por %p493, %p494
      %s497 = sadd.s32 %s496, 1
      %p500 = scmp.eq.s32.totalorder %s42, 1
      %p501 = scmp.ne.s32.totalorder %s496, %s498
      %p502 = scmp.eq.s32.totalorder %s42, 0
      %p503 = por %p501, %p502
      %p504 = scmp.ne.s32.totalorder %s496, %s498
      %p505 = scmp.eq.s32.totalorder %s47, 1
      %p506 = por %p504, %p505
      %p507 = scmp.ne.s32.totalorder %s498, %s499
      %p508 = scmp.eq.s32.totalorder %s47, 0
      %p509 = por %p507, %p508
      %p510 = scmp.ne.s32.totalorder %s498, %s499
      %p511 = scmp.eq.s32.totalorder %s48, 1
      %p512 = por %p510, %p511
      %p514 = scmp.ne.s32.totalorder %s499, %s513
      %p515 = scmp.eq.s32.totalorder %s48, 0
      %p516 = por %p514, %p515
      %s518 = sadd.s32 %s517, 1
      %p521 = scmp.eq.s32.totalorder %s42, 1
      %p522 = scmp.ne.s32.totalorder %s517, %s519
      %p523 = scmp.eq.s32.totalorder %s42, 0
      %p524 = por %p522, %p523
      %p525 = scmp.ne.s32.totalorder %s517, %s519
      %p526 = scmp.eq.s32.totalorder %s47, 1
      %p527 = por %p525, %p526
      %p528 = scmp.ne.s32.totalorder %s519, %s520
      %p529 = scmp.eq.s32.totalorder %s47, 0
      %p530 = por %p528, %p529
      %p531 = scmp.ne.s32.totalorder %s519, %s520
      %p532 = scmp.eq.s32.totalorder %s48, 1
      %p533 = por %p531, %p532
      %p535 = scmp.ne.s32.totalorder %s520, %s534
      %p536 = scmp.eq.s32.totalorder %s48, 0
      %p537 = por %p535, %p536
      %s539 = sadd.s32 %s538, 1
      %p542 = scmp.eq.s32.totalorder %s42, 1
      %p543 = scmp.ne.s32.totalorder %s538, %s540
      %p544 = scmp.eq.s32.totalorder %s42, 0
      %p545 = por %p543, %p544
      %p546 = scmp.ne.s32.totalorder %s538, %s540
      %p547 = scmp.eq.s32.totalorder %s47, 1
      %p548 = por %p546, %p547
      %p549 = scmp.ne.s32.totalorder %s540, %s541
      %p550 = scmp.eq.s32.totalorder %s47, 0
      %p551 = por %p549, %p550
      %p552 = scmp.ne.s32.totalorder %s540, %s541
      %p553 = scmp.eq.s32.totalorder %s48, 1
      %p554 = por %p552, %p553
      %p556 = scmp.ne.s32.totalorder %s541, %s555
      %p557 = scmp.eq.s32.totalorder %s48, 0
      %p558 = por %p556, %p557
      %s560 = sadd.s32 %s559, 1
      %p563 = scmp.eq.s32.totalorder %s42, 1
      %p564 = scmp.ne.s32.totalorder %s559, %s561
      %p565 = scmp.eq.s32.totalorder %s42, 0
      %p566 = por %p564, %p565
      %p567 = scmp.ne.s32.totalorder %s559, %s561
      %p568 = scmp.eq.s32.totalorder %s47, 1
      %p569 = por %p567, %p568
      %p570 = scmp.ne.s32.totalorder %s561, %s562
      %p571 = scmp.eq.s32.totalorder %s47, 0
      %p572 = por %p570, %p571
      %p573 = scmp.ne.s32.totalorder %s561, %s562
      %p574 = scmp.eq.s32.totalorder %s48, 1
      %p575 = por %p573, %p574
      %p577 = scmp.ne.s32.totalorder %s562, %s576
      %p578 = scmp.eq.s32.totalorder %s48, 0
      %p579 = por %p577, %p578
      %s581 = sadd.s32 %s580, 1
      %p584 = scmp.eq.s32.totalorder %s42, 1
      %p585 = scmp.ne.s32.totalorder %s580, %s582
      %p586 = scmp.eq.s32.totalorder %s42, 0
      %p587 = por %p585, %p586
      %p588 = scmp.ne.s32.totalorder %s580, %s582
      %p589 = scmp.eq.s32.totalorder %s47, 1
      %p590 = por %p588, %p589
      %p591 = scmp.ne.s32.totalorder %s582, %s583
      %p592 = scmp.eq.s32.totalorder %s47, 0
      %p593 = por %p591, %p592
      %p594 = scmp.ne.s32.totalorder %s582, %s583
      %p595 = scmp.eq.s32.totalorder %s48, 1
      %p596 = por %p594, %p595
      %p598 = scmp.ne.s32.totalorder %s583, %s597
      %p599 = scmp.eq.s32.totalorder %s48, 0
      %p600 = por %p598, %p599
      %s601 = ssub.s32 %s42, %s49
      %p602 = scmp.eq.s32.totalorder %s601, 0
      %s604 = sadd.s32 %s603, 1
      %s605 = scalar_select %p602, %s603, %s604
      %p608 = pneg %p602
      %p609 = scmp.eq.s32.totalorder %s42, 1
      %p610 = por %p608, %p609
      %p611 = scmp.ne.s32.totalorder %s603, %s606
      %p612 = scmp.eq.s32.totalorder %s42, 0
      %p613 = por %p611, %p612
      %p614 = scmp.ne.s32.totalorder %s603, %s606
      %p615 = scmp.eq.s32.totalorder %s47, 1
      %p616 = por %p614, %p615
      %p617 = scmp.ne.s32.totalorder %s606, %s607
      %p618 = scmp.eq.s32.totalorder %s47, 0
      %p619 = por %p617, %p618
      %p620 = scmp.ne.s32.totalorder %s606, %s607
      %p621 = scmp.eq.s32.totalorder %s48, 1
      %p622 = por %p620, %p621
      %p624 = scmp.ne.s32.totalorder %s607, %s623
      %p625 = scmp.eq.s32.totalorder %s48, 0
      %p626 = por %p624, %p625
      %p627 = scmp.le.s32.totalorder 1, %s42
      %p628 = scmp.lt.s32.totalorder %s42, 3
      %p629 = pnand %p627, %p628
      %p630 = pneg %p629
      // Predicated region
      $region9: #{sdmamba_forward.1} parent=5 // pred_check
        _
      $region10: #{sdmamba_forward.1} parent=5 // pred_check_branch
        %632 = sbr.rel (%p629) target = $region12
      $region11: #{sdmamba_forward.1} parent=5 // pred_region
        %s633 = ssub.s32 %s42, 1
        // Predicated region
        $region13: #{sdmamba_forward.1} parent=11 // pred_check
          %p634 = pneg %p89
        $region14: #{sdmamba_forward.1} parent=11 // pred_check_branch
          %636 = sbr.rel (%p634) target = $region16
        $region15: #{sdmamba_forward.1} parent=11 // pred_region
          _
        $region16: #{sdmamba_forward.1} parent=11 // pred_fallthru
          _
        // Predicated region
        $region17: #{sdmamba_forward.1} parent=11 // pred_check
          %p637 = pneg %p110
        $region18: #{sdmamba_forward.1} parent=11 // pred_check_branch
          %639 = sbr.rel (%p637) target = $region20
        $region19: #{sdmamba_forward.1} parent=11 // pred_region
          _
        $region20: #{sdmamba_forward.1} parent=11 // pred_fallthru
          _
        // Predicated region
        $region21: #{sdmamba_forward.1} parent=11 // pred_check
          %p640 = pneg %p131
        $region22: #{sdmamba_forward.1} parent=11 // pred_check_branch
          %642 = sbr.rel (%p640) target = $region24
        $region23: #{sdmamba_forward.1} parent=11 // pred_region
          _
        $region24: #{sdmamba_forward.1} parent=11 // pred_fallthru
          _
        // Predicated region
        $region25: #{sdmamba_forward.1} parent=11 // pred_check
          %p643 = pneg %p152
        $region26: #{sdmamba_forward.1} parent=11 // pred_check_branch
          %645 = sbr.rel (%p643) target = $region28
        $region27: #{sdmamba_forward.1} parent=11 // pred_region
          _
        $region28: #{sdmamba_forward.1} parent=11 // pred_fallthru
          _
        // Predicated region
        $region29: #{sdmamba_forward.1} parent=11 // pred_check
          %p646 = pneg %p173
        $region30: #{sdmamba_forward.1} parent=11 // pred_check_branch
          %648 = sbr.rel (%p646) target = $region32
        $region31: #{sdmamba_forward.1} parent=11 // pred_region
          %s650 = ssub.s32 16, 16
          %651 = vsyncadd [#allocation5], %s650
          %s653 = sshll.u32 [#allocation4], 4
          %s654 = int_to_ptr.vmem [resolvable:$true] %s653
          %656 = dma.hbm_to_vmem [thread:$0]  %s5, 16, %s654, [#allocation5]
        $region32: #{sdmamba_forward.1} parent=11 // pred_fallthru
          _
        // Predicated region
        $region33: #{sdmamba_forward.1} parent=11 // pred_check
          %p657 = pneg %p194
        $region34: #{sdmamba_forward.1} parent=11 // pred_check_branch
          %659 = sbr.rel (%p657) target = $region36
        $region35: #{sdmamba_forward.1} parent=11 // pred_region
          %s661 = ssub.s32 16, 16
          %662 = vsyncadd [#allocation5], %s661
          %s664 = sshll.u32 [#allocation6], 4
          %s665 = int_to_ptr.vmem [resolvable:$true] %s664
          %667 = dma.hbm_to_vmem [thread:$0]  %s6, 16, %s665, [#allocation5]
        $region36: #{sdmamba_forward.1} parent=11 // pred_fallthru
          _
        // Predicated region
        $region37: #{sdmamba_forward.1} parent=11 // pred_check
          %p668 = pneg %p215
        $region38: #{sdmamba_forward.1} parent=11 // pred_check_branch
          %670 = sbr.rel (%p668) target = $region40
        $region39: #{sdmamba_forward.1} parent=11 // pred_region
          _
        $region40: #{sdmamba_forward.1} parent=11 // pred_fallthru
          _
        // Predicated region
        $region41: #{sdmamba_forward.1} parent=11 // pred_check
          %p671 = pneg %p236
        $region42: #{sdmamba_forward.1} parent=11 // pred_check_branch
          %673 = sbr.rel (%p671) target = $region44
        $region43: #{sdmamba_forward.1} parent=11 // pred_region
          %s675 = ssub.s32 16, 16
          %676 = vsyncadd [#allocation8], %s675
          %s678 = sshll.u32 [#allocation7], 4
          %s679 = int_to_ptr.vmem [resolvable:$true] %s678
          %681 = dma.hbm_to_vmem [thread:$0]  %s8, 16, %s679, [#allocation8]
        $region44: #{sdmamba_forward.1} parent=11 // pred_fallthru
          _
        // Predicated region
        $region45: #{sdmamba_forward.1} parent=11 // pred_check
          %p682 = pneg %p257
        $region46: #{sdmamba_forward.1} parent=11 // pred_check_branch
          %684 = sbr.rel (%p682) target = $region48
        $region47: #{sdmamba_forward.1} parent=11 // pred_region
          _
        $region48: #{sdmamba_forward.1} parent=11 // pred_fallthru
          _
        // Predicated region
        $region49: #{sdmamba_forward.1} parent=11 // pred_check
          %p685 = pneg %p278
        $region50: #{sdmamba_forward.1} parent=11 // pred_check_branch
          %687 = sbr.rel (%p685) target = $region52
        $region51: #{sdmamba_forward.1} parent=11 // pred_region
          %s689 = ssub.s32 256, 256
          %690 = vsyncadd [#allocation8], %s689
          %s691 = sshll.u32 [#allocation9], 4
          %s692 = int_to_ptr.vmem [resolvable:$true] %s691
          %697 = dma.hbm_to_vmem [thread:$0]  %s10, 256, %s692, [#allocation8], 64, 64, 4
        $region52: #{sdmamba_forward.1} parent=11 // pred_fallthru
          _
        // Predicated region
        $region53: #{sdmamba_forward.1} parent=11 // pred_check
          %p698 = pneg %p299
        $region54: #{sdmamba_forward.1} parent=11 // pred_check_branch
          %700 = sbr.rel (%p698) target = $region56
        $region55: #{sdmamba_forward.1} parent=11 // pred_region
          %s702 = ssub.s32 64, 64
          %703 = vsyncadd [#allocation11], %s702
          %s704 = sshll.u32 [#allocation10], 4
          %s705 = int_to_ptr.vmem [resolvable:$true] %s704
          %710 = dma.hbm_to_vmem [thread:$0]  %s11, 64, %s705, [#allocation11], 16, 16, 1
        $region56: #{sdmamba_forward.1} parent=11 // pred_fallthru
          _
        // Predicated region
        $region57: #{sdmamba_forward.1} parent=11 // pred_check
          %p711 = pneg %p320
        $region58: #{sdmamba_forward.1} parent=11 // pred_check_branch
          %713 = sbr.rel (%p711) target = $region60
        $region59: #{sdmamba_forward.1} parent=11 // pred_region
          _
        $region60: #{sdmamba_forward.1} parent=11 // pred_fallthru
          _
        // Predicated region
        $region61: #{sdmamba_forward.1} parent=11 // pred_check
          %p714 = pneg %p341
        $region62: #{sdmamba_forward.1} parent=11 // pred_check_branch
          %716 = sbr.rel (%p714) target = $region64
        $region63: #{sdmamba_forward.1} parent=11 // pred_region
          _
        $region64: #{sdmamba_forward.1} parent=11 // pred_fallthru
          _
        // Predicated region
        $region65: #{sdmamba_forward.1} parent=11 // pred_check
          %p717 = pneg %p362
        $region66: #{sdmamba_forward.1} parent=11 // pred_check_branch
          %719 = sbr.rel (%p717) target = $region68
        $region67: #{sdmamba_forward.1} parent=11 // pred_region
          %s721 = ssub.s32 64, 64
          %722 = vsyncadd [#allocation11], %s721
          %s723 = sshll.u32 [#allocation12], 4
          %s724 = int_to_ptr.vmem [resolvable:$true] %s723
          %729 = dma.hbm_to_vmem [thread:$0]  %s14, 64, %s724, [#allocation11], 16, 16, 1
        $region68: #{sdmamba_forward.1} parent=11 // pred_fallthru
          _
        // Predicated region
        $region69: #{sdmamba_forward.1} parent=11 // pred_check
          %p730 = pneg %p383
        $region70: #{sdmamba_forward.1} parent=11 // pred_check_branch
          %732 = sbr.rel (%p730) target = $region72
        $region71: #{sdmamba_forward.1} parent=11 // pred_region
          %s734 = ssub.s32 512, 512
          %735 = vsyncadd [#allocation14], %s734
          %s736 = sshll.u32 [#allocation13], 4
          %s737 = int_to_ptr.vmem [resolvable:$true] %s736
          %742 = dma.hbm_to_vmem [thread:$0]  %s15, 512, %s737, [#allocation14], 128, 128, 8
        $region72: #{sdmamba_forward.1} parent=11 // pred_fallthru
          _
        // Predicated region
        $region73: #{sdmamba_forward.1} parent=11 // pred_check
          %p743 = pneg %p404
        $region74: #{sdmamba_forward.1} parent=11 // pred_check_branch
          %745 = sbr.rel (%p743) target = $region76
        $region75: #{sdmamba_forward.1} parent=11 // pred_region
          %s747 = ssub.s32 64, 64
          %748 = vsyncadd [#allocation14], %s747
          %s749 = sshll.u32 [#allocation15], 4
          %s750 = int_to_ptr.vmem [resolvable:$true] %s749
          %755 = dma.hbm_to_vmem [thread:$0]  %s16, 64, %s750, [#allocation14], 16, 16, 1
        $region76: #{sdmamba_forward.1} parent=11 // pred_fallthru
          _
        // Predicated region
        $region77: #{sdmamba_forward.1} parent=11 // pred_check
          %p756 = pneg %p425
        $region78: #{sdmamba_forward.1} parent=11 // pred_check_branch
          %758 = sbr.rel (%p756) target = $region80
        $region79: #{sdmamba_forward.1} parent=11 // pred_region
          _
        $region80: #{sdmamba_forward.1} parent=11 // pred_fallthru
          _
        // Predicated region
        $region81: #{sdmamba_forward.1} parent=11 // pred_check
          %p759 = pneg %p446
        $region82: #{sdmamba_forward.1} parent=11 // pred_check_branch
          %761 = sbr.rel (%p759) target = $region84
        $region83: #{sdmamba_forward.1} parent=11 // pred_region
          %s763 = ssub.s32 32, 32
          %764 = vsyncadd [#allocation17], %s763
          %s765 = sshll.u32 [#allocation16], 4
          %s766 = int_to_ptr.vmem [resolvable:$true] %s765
          %771 = dma.hbm_to_vmem [thread:$0]  %s18, 32, %s766, [#allocation17], 16, 16, 1
        $region84: #{sdmamba_forward.1} parent=11 // pred_fallthru
          _
        // Predicated region
        $region85: #{sdmamba_forward.1} parent=11 // pred_check
          %p772 = pneg %p467
        $region86: #{sdmamba_forward.1} parent=11 // pred_check_branch
          %774 = sbr.rel (%p772) target = $region88
        $region87: #{sdmamba_forward.1} parent=11 // pred_region
          %s776 = ssub.s32 32, 32
          %777 = vsyncadd [#allocation17], %s776
          %s778 = sshll.u32 [#allocation18], 4
          %s779 = int_to_ptr.vmem [resolvable:$true] %s778
          %784 = dma.hbm_to_vmem [thread:$0]  %s19, 32, %s779, [#allocation17], 16, 16, 1
        $region88: #{sdmamba_forward.1} parent=11 // pred_fallthru
          _
        // Predicated region
        $region89: #{sdmamba_forward.1} parent=11 // pred_check
          %p785 = pneg %p488
        $region90: #{sdmamba_forward.1} parent=11 // pred_check_branch
          %787 = sbr.rel (%p785) target = $region92
        $region91: #{sdmamba_forward.1} parent=11 // pred_region
          _
        $region92: #{sdmamba_forward.1} parent=11 // pred_fallthru
          _
        // Predicated region
        $region93: #{sdmamba_forward.1} parent=11 // pred_check
          %p788 = pneg %p509
        $region94: #{sdmamba_forward.1} parent=11 // pred_check_branch
          %790 = sbr.rel (%p788) target = $region96
        $region95: #{sdmamba_forward.1} parent=11 // pred_region
          %s792 = ssub.s32 32, 32
          %793 = vsyncadd [#allocation20], %s792
          %s794 = sshll.u32 [#allocation19], 4
          %s795 = int_to_ptr.vmem [resolvable:$true] %s794
          %800 = dma.hbm_to_vmem [thread:$0]  %s21, 32, %s795, [#allocation20], 16, 16, 1
        $region96: #{sdmamba_forward.1} parent=11 // pred_fallthru
          _
        // Predicated region
        $region97: #{sdmamba_forward.1} parent=11 // pred_check
          %p801 = pneg %p530
        $region98: #{sdmamba_forward.1} parent=11 // pred_check_branch
          %803 = sbr.rel (%p801) target = $region100
        $region99: #{sdmamba_forward.1} parent=11 // pred_region
          _
        $region100: #{sdmamba_forward.1} parent=11 // pred_fallthru
          _
        // Predicated region
        $region101: #{sdmamba_forward.1} parent=11 // pred_check
          %p804 = pneg %p551
        $region102: #{sdmamba_forward.1} parent=11 // pred_check_branch
          %806 = sbr.rel (%p804) target = $region104
        $region103: #{sdmamba_forward.1} parent=11 // pred_region
          %s808 = ssub.s32 32, 32
          %809 = vsyncadd [#allocation20], %s808
          %s810 = sshll.u32 [#allocation21], 4
          %s811 = int_to_ptr.vmem [resolvable:$true] %s810
          %816 = dma.hbm_to_vmem [thread:$0]  %s23, 32, %s811, [#allocation20], 16, 16, 1
        $region104: #{sdmamba_forward.1} parent=11 // pred_fallthru
          _
        // Predicated region
        $region105: #{sdmamba_forward.1} parent=11 // pred_check
          %p817 = pneg %p572
        $region106: #{sdmamba_forward.1} parent=11 // pred_check_branch
          %819 = sbr.rel (%p817) target = $region108
        $region107: #{sdmamba_forward.1} parent=11 // pred_region
          %s821 = ssub.s32 32, 32
          %822 = vsyncadd [#allocation23], %s821
          %s823 = sshll.u32 [#allocation22], 4
          %s824 = int_to_ptr.vmem [resolvable:$true] %s823
          %829 = dma.hbm_to_vmem [thread:$0]  %s24, 32, %s824, [#allocation23], 16, 16, 1
        $region108: #{sdmamba_forward.1} parent=11 // pred_fallthru
          _
        // Predicated region
        $region109: #{sdmamba_forward.1} parent=11 // pred_check
          %p830 = pneg %p593
        $region110: #{sdmamba_forward.1} parent=11 // pred_check_branch
          %832 = sbr.rel (%p830) target = $region112
        $region111: #{sdmamba_forward.1} parent=11 // pred_region
          %s834 = ssub.s32 32, 32
          %835 = vsyncadd [#allocation23], %s834
          %s836 = sshll.u32 [#allocation24], 4
          %s837 = int_to_ptr.vmem [resolvable:$true] %s836
          %842 = dma.hbm_to_vmem [thread:$0]  %s25, 32, %s837, [#allocation23], 16, 16, 1
        $region112: #{sdmamba_forward.1} parent=11 // pred_fallthru
          _
      $region12: #{sdmamba_forward.1} parent=5 // pred_fallthru
        _
      %p843 = scmp.lt.s32.totalorder %s42, 2
      // Predicated region
      $region113: #{sdmamba_forward.1} parent=5 // pred_check
        %p844 = pneg %p843
      $region114: #{sdmamba_forward.1} parent=5 // pred_check_branch
        %846 = sbr.rel (%p844) target = $region116
      $region115: #{sdmamba_forward.1} parent=5 // pred_region
        // Predicated region
        $region117: #{sdmamba_forward.1} parent=115 // pred_check
          %p847 = pneg %p62
        $region118: #{sdmamba_forward.1} parent=115 // pred_check_branch
          %849 = sbr.rel (%p847) target = $region120
        $region119: #{sdmamba_forward.1} parent=115 // pred_region
          %s850 = sand.u32 %s52, 1
          %s851 = scalar_lea.sflag [#allocation3], %s850
          %s852 = sand.u32 %s52, 1
          %s853 = smul.addr %s852, 8
          %s854 = scalar_lea.vmem [#allocation2], %s853
          %s856 = ssub.s32 128, 128
          %857 = vsyncadd %s851, %s856
          %s858 = smul.addr %s42, 128
          %s859 = scalar_lea.hbm %s0, %s858
          %s861 = sshll.u32 %s854, 4
          %s862 = int_to_ptr.vmem [resolvable:$true] %s861
          %864 = dma.hbm_to_vmem [thread:$0]  %s859, 128, %s862, %s851
        $region120: #{sdmamba_forward.1} parent=115 // pred_fallthru
          _
      $region116: #{sdmamba_forward.1} parent=5 // pred_fallthru
        _
      %p865 = scmp.le.s32.totalorder 1, %s42
      %p866 = scmp.lt.s32.totalorder %s42, 3
      %p867 = pnand %p865, %p866
      %p868 = pneg %p867
      // Predicated region
      $region121: #{sdmamba_forward.1} parent=5 // pred_check
        _
      $region122: #{sdmamba_forward.1} parent=5 // pred_check_branch
        %870 = sbr.rel (%p867) target = $region124
      $region123: #{sdmamba_forward.1} parent=5 // pred_region
        %s871 = ssub.s32 %s42, 1
        %s872 = sand.u32 %s55, 1
        %s873 = scalar_lea.sflag [#allocation3], %s872
        %s874 = sand.u32 %s55, 1
        %s875 = smul.addr %s874, 8
        %s876 = scalar_lea.vmem [#allocation2], %s875
        // Predicated region
        $region125: #{sdmamba_forward.1} parent=123 // pred_check
          %p877 = pneg %p68
        $region126: #{sdmamba_forward.1} parent=123 // pred_check_branch
          %879 = sbr.rel (%p877) target = $region128
        $region127: #{sdmamba_forward.1} parent=123 // pred_region
          %880 = dma.done %s873, 128
        $region128: #{sdmamba_forward.1} parent=123 // pred_fallthru
          _
        // Predicated region
        $region129: #{sdmamba_forward.1} parent=123 // pred_check
          %p881 = pneg %p173
        $region130: #{sdmamba_forward.1} parent=123 // pred_check_branch
          %883 = sbr.rel (%p881) target = $region132
        $region131: #{sdmamba_forward.1} parent=123 // pred_region
          %884 = dma.done [#allocation5], 16
        $region132: #{sdmamba_forward.1} parent=123 // pred_fallthru
          _
        // Predicated region
        $region133: #{sdmamba_forward.1} parent=123 // pred_check
          %p885 = pneg %p194
        $region134: #{sdmamba_forward.1} parent=123 // pred_check_branch
          %887 = sbr.rel (%p885) target = $region136
        $region135: #{sdmamba_forward.1} parent=123 // pred_region
          %888 = dma.done [#allocation5], 16
        $region136: #{sdmamba_forward.1} parent=123 // pred_fallthru
          _
        // Predicated region
        $region137: #{sdmamba_forward.1} parent=123 // pred_check
          %p889 = pneg %p236
        $region138: #{sdmamba_forward.1} parent=123 // pred_check_branch
          %891 = sbr.rel (%p889) target = $region140
        $region139: #{sdmamba_forward.1} parent=123 // pred_region
          %892 = dma.done [#allocation8], 16
        $region140: #{sdmamba_forward.1} parent=123 // pred_fallthru
          _
        // Predicated region
        $region141: #{sdmamba_forward.1} parent=123 // pred_check
          %p893 = pneg %p278
        $region142: #{sdmamba_forward.1} parent=123 // pred_check_branch
          %895 = sbr.rel (%p893) target = $region144
        $region143: #{sdmamba_forward.1} parent=123 // pred_region
          %896 = dma.done [#allocation8], 256
        $region144: #{sdmamba_forward.1} parent=123 // pred_fallthru
          _
        // Predicated region
        $region145: #{sdmamba_forward.1} parent=123 // pred_check
          %p897 = pneg %p299
        $region146: #{sdmamba_forward.1} parent=123 // pred_check_branch
          %899 = sbr.rel (%p897) target = $region148
        $region147: #{sdmamba_forward.1} parent=123 // pred_region
          %900 = dma.done [#allocation11], 64
        $region148: #{sdmamba_forward.1} parent=123 // pred_fallthru
          _
        // Predicated region
        $region149: #{sdmamba_forward.1} parent=123 // pred_check
          %p901 = pneg %p362
        $region150: #{sdmamba_forward.1} parent=123 // pred_check_branch
          %903 = sbr.rel (%p901) target = $region152
        $region151: #{sdmamba_forward.1} parent=123 // pred_region
          %904 = dma.done [#allocation11], 64
        $region152: #{sdmamba_forward.1} parent=123 // pred_fallthru
          _
        // Predicated region
        $region153: #{sdmamba_forward.1} parent=123 // pred_check
          %p905 = pneg %p383
        $region154: #{sdmamba_forward.1} parent=123 // pred_check_branch
          %907 = sbr.rel (%p905) target = $region156
        $region155: #{sdmamba_forward.1} parent=123 // pred_region
          %908 = dma.done [#allocation14], 512
        $region156: #{sdmamba_forward.1} parent=123 // pred_fallthru
          _
        // Predicated region
        $region157: #{sdmamba_forward.1} parent=123 // pred_check
          %p909 = pneg %p404
        $region158: #{sdmamba_forward.1} parent=123 // pred_check_branch
          %911 = sbr.rel (%p909) target = $region160
        $region159: #{sdmamba_forward.1} parent=123 // pred_region
          %912 = dma.done [#allocation14], 64
        $region160: #{sdmamba_forward.1} parent=123 // pred_fallthru
          _
        // Predicated region
        $region161: #{sdmamba_forward.1} parent=123 // pred_check
          %p913 = pneg %p446
        $region162: #{sdmamba_forward.1} parent=123 // pred_check_branch
          %915 = sbr.rel (%p913) target = $region164
        $region163: #{sdmamba_forward.1} parent=123 // pred_region
          %916 = dma.done [#allocation17], 32
        $region164: #{sdmamba_forward.1} parent=123 // pred_fallthru
          _
        // Predicated region
        $region165: #{sdmamba_forward.1} parent=123 // pred_check
          %p917 = pneg %p467
        $region166: #{sdmamba_forward.1} parent=123 // pred_check_branch
          %919 = sbr.rel (%p917) target = $region168
        $region167: #{sdmamba_forward.1} parent=123 // pred_region
          %920 = dma.done [#allocation17], 32
        $region168: #{sdmamba_forward.1} parent=123 // pred_fallthru
          _
        // Predicated region
        $region169: #{sdmamba_forward.1} parent=123 // pred_check
          %p921 = pneg %p509
        $region170: #{sdmamba_forward.1} parent=123 // pred_check_branch
          %923 = sbr.rel (%p921) target = $region172
        $region171: #{sdmamba_forward.1} parent=123 // pred_region
          %924 = dma.done [#allocation20], 32
        $region172: #{sdmamba_forward.1} parent=123 // pred_fallthru
          _
        // Predicated region
        $region173: #{sdmamba_forward.1} parent=123 // pred_check
          %p925 = pneg %p551
        $region174: #{sdmamba_forward.1} parent=123 // pred_check_branch
          %927 = sbr.rel (%p925) target = $region176
        $region175: #{sdmamba_forward.1} parent=123 // pred_region
          %928 = dma.done [#allocation20], 32
        $region176: #{sdmamba_forward.1} parent=123 // pred_fallthru
          _
        // Predicated region
        $region177: #{sdmamba_forward.1} parent=123 // pred_check
          %p929 = pneg %p572
        $region178: #{sdmamba_forward.1} parent=123 // pred_check_branch
          %931 = sbr.rel (%p929) target = $region180
        $region179: #{sdmamba_forward.1} parent=123 // pred_region
          %932 = dma.done [#allocation23], 32
        $region180: #{sdmamba_forward.1} parent=123 // pred_fallthru
          _
        // Predicated region
        $region181: #{sdmamba_forward.1} parent=123 // pred_check
          %p933 = pneg %p593
        $region182: #{sdmamba_forward.1} parent=123 // pred_check_branch
          %935 = sbr.rel (%p933) target = $region184
        $region183: #{sdmamba_forward.1} parent=123 // pred_region
          %936 = dma.done [#allocation23], 32
        $region184: #{sdmamba_forward.1} parent=123 // pred_fallthru
          _
        %s937 = sand.u32 %s55, 1
        %s938 = scalar_lea.sflag [#allocation3], %s937
        %s939 = sand.u32 %s55, 1
        %s940 = smul.addr %s939, 8
        %s941 = scalar_lea.vmem [#allocation2], %s940
        %p942 = pneg %p68
        %p943 = pneg %p65
        %p944 = pneg %p89
        %p945 = pneg %p86
        %p946 = pneg %p110
        %p947 = pneg %p107
        %p948 = pneg %p131
        %p949 = pneg %p128
        %p950 = pneg %p152
        %p951 = pneg %p149
        %p952 = pneg %p173
        %p953 = pneg %p170
        %p954 = pneg %p194
        %p955 = pneg %p191
        %p956 = pneg %p215
        %p957 = pneg %p212
        %p958 = pneg %p236
        %p959 = pneg %p233
        %p960 = pneg %p257
        %p961 = pneg %p254
        %p962 = pneg %p278
        %p963 = pneg %p275
        %p964 = pneg %p299
        %p965 = pneg %p296
        %p966 = pneg %p320
        %p967 = pneg %p317
        %p968 = pneg %p341
        %p969 = pneg %p338
        %p970 = pneg %p362
        %p971 = pneg %p359
        %p972 = pneg %p383
        %p973 = pneg %p380
        %p974 = pneg %p404
        %p975 = pneg %p401
        %p976 = pneg %p425
        %p977 = pneg %p422
        %p978 = pneg %p446
        %p979 = pneg %p443
        %p980 = pneg %p467
        %p981 = pneg %p464
        %p982 = pneg %p488
        %p983 = pneg %p485
        %p984 = pneg %p509
        %p985 = pneg %p506
        %p986 = pneg %p530
        %p987 = pneg %p527
        %p988 = pneg %p551
        %p989 = pneg %p548
        %p990 = pneg %p572
        %p991 = pneg %p569
        %p992 = pneg %p593
        %p993 = pneg %p590
        %p994 = pneg %p619
        %p995 = pneg %p616
        %p996 = scmp.lt.s32.totalorder %s47, 1
        %s997 = scalar_select %p996, %s47, 1
        %s998 = smul.addr %s997, 8
        %s999 = scalar_lea.vmem %s26, %s998
        %p1000 = scmp.lt.s32.totalorder %s47, 1
        %s1001 = scalar_select %p1000, %s47, 1
        %s1002 = smul.addr %s1001, 8
        %s1003 = scalar_lea.vmem %s26, %s1002
        %v1004 = vld [vmem:[%s876] sm:$0xff]
        %vm1005 = vcmask 130048
        %v1006 = vsel %vm1005, %v1004, 0.0
        %1007 = vadd.xlane.f32.xlu0 %v1006
        %v1008 = vpop.xlane.xlu0 %1007
        %v1009 = vrcp.pop 16.0
        %v1010 = vmul.f32 %v1008, %v1009
        %v1011 = vsub.f32 %v1004, %v1010
        %v1012 = vmul.f32 %v1011, %v1011
        %v1013 = vsel %vm1005, %v1012, 0.0
        %1014 = vadd.xlane.f32.xlu0 %v1013
        %v1015 = vpop.xlane.xlu0 %1014
        %v1016 = vmul.f32 %v1015, %v1009
        %v1017 = vadd.f32 %v1016, 1e-05
        %v1018 = vrsqrt.pop %v1017
        %v1019 = vmul.f32 %v1017, %v1018
        %vm1020 = vcmp.eq.f32.partialorder %v1017, inf
        %v1021 = vsel %vm1020, %v1017, %v1019
        %vm1022 = vcmp.eq.f32.partialorder %v1017, 0.0
        %v1023 = vand.u32 %v1017, 2147483648
        %v1024 = vsel %vm1022, %v1023, %v1021
        %v1025 = vrcp.pop %v1024
        %v1026 = vmul.f32 %v1011, %v1025
        %v1027 = vld [vmem:[%s1] sm:$0xff]
        %1029 = vset.pattern.permute.xlu0 0
        %1030 = vperm.xlu0 %1029, %v1027
        %v1031 = vpop.permute.xlu0 %1030
        %v1033 = vmul.f32 %v1026, %v1031
        %v1034 = vld [vmem:[%s2] sm:$0xff]
        %1036 = vset.pattern.permute.xlu0 0
        %1037 = vperm.xlu0 %1036, %v1034
        %v1038 = vpop.permute.xlu0 %1037
        %v1040 = vadd.f32 %v1033, %v1038
        %v1041 = vld [vmem:[%s3] sm:$0xff]
        %v1042 = vld [vmem:[%s3 + $0x8] sm:$0xff]
        %v1043 = vld [vmem:[%s4] sm:$0x1]
        %v1045 = vlaneseq
        %v1046 = vshrl.u32 %v1045, 7
        %v1047 = vsub.s32 0, %v1046
        %v1048 = vrot.slane %v1043, %v1047
        %v1051 = vsel %vm1005, %v1040, 0
        %1053 = vmatprep.subr.mxu0 0.0
        %1054 = vmatpush1.msra.mxu0 0.0
        %1055 = vmatprep.subr.mxu0 0.0
        %1056 = vmatpush1.msra.mxu0 0.0
        %1057 = vmatprep.subr.mxu0 0.0
        %1058 = vmatpush1.msra.mxu0 0.0
        %1059 = vmatprep.subr.mxu0 0.0
        %1060 = vmatpush1.msra.mxu0 0.0
        %1061 = vmatprep.subr.mxu0 0.0
        %1062 = vmatpush1.msra.mxu0 0.0
        %1063 = vmatprep.subr.mxu0 0.0
        %1064 = vmatpush1.msra.mxu0 0.0
        %1065 = vmatprep.subr.mxu0 0.0
        %1066 = vmatpush1.msra.mxu0 0.0
        %1067 = vmatprep.subr.mxu0 0.0
        %1068 = vmatpush1.msra.mxu0 0.0
        %1069 = vmatprep.subr.mxu0 0.0
        %1070 = vmatpush1.msra.mxu0 0.0
        %1071 = vmatprep.subr.mxu0 0.0
        %1072 = vmatpush1.msra.mxu0 0.0
        %1073 = vmatprep.subr.mxu0 0.0
        %1074 = vmatpush1.msra.mxu0 0.0
        %1075 = vmatprep.subr.mxu0 0.0
        %1076 = vmatpush1.msra.mxu0 0.0
        %1077 = vmatprep.subr.mxu0 0.0
        %1078 = vmatpush1.msra.mxu0 0.0
        %1079 = vmatprep.subr.mxu0 0.0
        %1080 = vmatpush1.msra.mxu0 0.0
        %1081 = vmatprep.subr.mxu0 0.0
        %1082 = vmatpush1.msra.mxu0 %v1042
        %1083 = vmatprep.subr.mxu0 0.0
        %1084 = vmatpush1.msra.mxu0 %v1041
        %1085 = vmatprep.subr.mxu0 0.0
        %1086 = vmatpush2.msra.mxu0 0.0
        %1087 = vmatprep.subr.mxu0 0.0
        %1088 = vmatpush2.msra.mxu0 0.0
        %1089 = vmatprep.subr.mxu0 0.0
        %1090 = vmatpush2.msra.mxu0 0.0
        %1091 = vmatprep.subr.mxu0 0.0
        %1092 = vmatpush2.msra.mxu0 0.0
        %1093 = vmatprep.subr.mxu0 0.0
        %1094 = vmatpush2.msra.mxu0 0.0
        %1095 = vmatprep.subr.mxu0 0.0
        %1096 = vmatpush2.msra.mxu0 0.0
        %1097 = vmatprep.subr.mxu0 0.0
        %1098 = vmatpush2.msra.mxu0 0.0
        %1099 = vmatprep.subr.mxu0 0.0
        %1100 = vmatpush2.msra.mxu0 0.0
        %1101 = vmatprep.subr.mxu0 0.0
        %1102 = vmatpush2.msra.mxu0 0.0
        %1103 = vmatprep.subr.mxu0 0.0
        %1104 = vmatpush2.msra.mxu0 0.0
        %1105 = vmatprep.subr.mxu0 0.0
        %1106 = vmatpush2.msra.mxu0 0.0
        %1107 = vmatprep.subr.mxu0 0.0
        %1108 = vmatpush2.msra.mxu0 0.0
        %1109 = vmatprep.subr.mxu0 0.0
        %1110 = vmatpush2.msra.mxu0 0.0
        %1111 = vmatprep.subr.mxu0 0.0
        %1112 = vmatpush2.msra.mxu0 0.0
        %1113 = vmatprep.subr.mxu0 0.0
        %1114 = vmatpush2.msra.mxu0 0.0
        %1115 = vmatprep.subr.mxu0 0.0
        %1116 = vmatpush2.msra.mxu0 0.0
        %1117 = vmatprep.mubr.f32.mxu0 0.0
        %1118 = vmatmul.mubr.f32.gmra.mxu0 %v1051
        %v1119 = vpop.f32.mrf.mxu0
        %v1120 = vadd.f32 %v1048, %v1119
        %v1121 = vpop.f32.mrf.mxu0
        %1122 = vdwg.mxu0
        %v1123 = vlaneseq
        %v1124 = vshrl.u32 %v1123, 7
        %v1125 = vld [vmem:[%s9] sm:$0xff]
        %v1126 = vld [vmem:[%s9 + $0x8] sm:$0xff]
        %v1127 = vld [vmem:[%s9 + $0x10] sm:$0xff]
        %v1128 = vld [vmem:[%s9 + $0x18] sm:$0xff]
        %v1129 = vld [vmem:[#allocation9] sm:$0xf]
        %v1130 = vld [vmem:[#allocation10] sm:$0x1]
        %v1131 = vld [vmem:[%s12] sm:$0xff]
        %v1132 = vld [vmem:[%s12 + $0x8] sm:$0xff]
        %v1133 = vld [vmem:[%s13] sm:$0xff]
        %v1134 = vld [vmem:[%s13 + $0x8] sm:$0xff]
        %v1135 = vld [vmem:[%s13 + $0x10] sm:$0xff]
        %v1136 = vld [vmem:[%s13 + $0x18] sm:$0xff]
        %v1137 = vld [vmem:[%s13 + $0x20] sm:$0xff]
        %v1138 = vld [vmem:[%s13 + $0x28] sm:$0xff]
        %v1139 = vld [vmem:[%s13 + $0x30] sm:$0xff]
        %v1140 = vld [vmem:[%s13 + $0x38] sm:$0xff]
        %v1141 = vld [vmem:[#allocation12] sm:$0x1]
        %v1142 = vld [vmem:[#allocation13] sm:$0xff]
        %v1143 = vmul.f32 %v1142, 1.442695
        %v1144 = vpow.pop %v1143
        %v1145 = vsub.f32 0.0, %v1144
        %v1146 = vld [vmem:[#allocation15] sm:$0x1]
        %v1147 = vld [vmem:[%s17] sm:$0xff]
        %v1148 = vld [vmem:[%s17 + $0x8] sm:$0xff]
        %v1149 = vld [vmem:[%s17 + $0x10] sm:$0xff]
        %v1150 = vld [vmem:[%s17 + $0x18] sm:$0xff]
        %v1151 = vld [vmem:[%s17 + $0x20] sm:$0xff]
        %v1152 = vld [vmem:[%s17 + $0x28] sm:$0xff]
        %v1153 = vld [vmem:[%s17 + $0x30] sm:$0xff]
        %v1154 = vld [vmem:[%s17 + $0x38] sm:$0xff]
        %vm1155 = vcmask 261120
        %v1157 = vsel %vm1155, %v1120, 0
        %1159 = vmatprep.subr.mxu0 0.0
        %1160 = vmatpush1.msra.mxu0 0.0
        %1161 = vmatprep.subr.mxu0 0.0
        %1162 = vmatpush1.msra.mxu0 0.0
        %1163 = vmatprep.subr.mxu0 0.0
        %1164 = vmatpush1.msra.mxu0 0.0
        %1165 = vmatprep.subr.mxu0 0.0
        %1166 = vmatpush1.msra.mxu0 0.0
        %1167 = vmatprep.subr.mxu0 0.0
        %1168 = vmatpush1.msra.mxu0 0.0
        %1169 = vmatprep.subr.mxu0 0.0
        %1170 = vmatpush1.msra.mxu0 0.0
        %1171 = vmatprep.subr.mxu0 0.0
        %1172 = vmatpush1.msra.mxu0 0.0
        %1173 = vmatprep.subr.mxu0 0.0
        %1174 = vmatpush1.msra.mxu0 0.0
        %1175 = vmatprep.subr.mxu0 0.0
        %1176 = vmatpush1.msra.mxu0 0.0
        %1177 = vmatprep.subr.mxu0 0.0
        %1178 = vmatpush1.msra.mxu0 0.0
        %1179 = vmatprep.subr.mxu0 0.0
        %1180 = vmatpush1.msra.mxu0 0.0
        %1181 = vmatprep.subr.mxu0 0.0
        %1182 = vmatpush1.msra.mxu0 0.0
        %1183 = vmatprep.subr.mxu0 0.0
        %1184 = vmatpush1.msra.mxu0 %v1128
        %1185 = vmatprep.subr.mxu0 0.0
        %1186 = vmatpush1.msra.mxu0 %v1127
        %1187 = vmatprep.subr.mxu0 0.0
        %1188 = vmatpush1.msra.mxu0 %v1126
        %1189 = vmatprep.subr.mxu0 0.0
        %1190 = vmatpush1.msra.mxu0 %v1125
        %1191 = vmatprep.subr.mxu0 0.0
        %1192 = vmatpush2.msra.mxu0 0.0
        %1193 = vmatprep.subr.mxu0 0.0
        %1194 = vmatpush2.msra.mxu0 0.0
        %1195 = vmatprep.subr.mxu0 0.0
        %1196 = vmatpush2.msra.mxu0 0.0
        %1197 = vmatprep.subr.mxu0 0.0
        %1198 = vmatpush2.msra.mxu0 0.0
        %1199 = vmatprep.subr.mxu0 0.0
        %1200 = vmatpush2.msra.mxu0 0.0
        %1201 = vmatprep.subr.mxu0 0.0
        %1202 = vmatpush2.msra.mxu0 0.0
        %1203 = vmatprep.subr.mxu0 0.0
        %1204 = vmatpush2.msra.mxu0 0.0
        %1205 = vmatprep.subr.mxu0 0.0
        %1206 = vmatpush2.msra.mxu0 0.0
        %1207 = vmatprep.subr.mxu0 0.0
        %1208 = vmatpush2.msra.mxu0 0.0
        %1209 = vmatprep.subr.mxu0 0.0
        %1210 = vmatpush2.msra.mxu0 0.0
        %1211 = vmatprep.subr.mxu0 0.0
        %1212 = vmatpush2.msra.mxu0 0.0
        %1213 = vmatprep.subr.mxu0 0.0
        %1214 = vmatpush2.msra.mxu0 0.0
        %1215 = vmatprep.subr.mxu0 0.0
        %1216 = vmatpush2.msra.mxu0 0.0
        %1217 = vmatprep.subr.mxu0 0.0
        %1218 = vmatpush2.msra.mxu0 0.0
        %1219 = vmatprep.subr.mxu0 0.0
        %1220 = vmatpush2.msra.mxu0 0.0
        %1221 = vmatprep.subr.mxu0 0.0
        %1222 = vmatpush2.msra.mxu0 0.0
        %1223 = vmatprep.mubr.f32.mxu0 0.0
        %1224 = vmatmul.mubr.f32.gmra.mxu0 %v1157
        %v1225 = vpop.f32.mrf.mxu0
        %v1226 = vadd.f32 0.0, %v1225
        %v1227 = vpop.f32.mrf.mxu0
        %1228 = vdwg.mxu0
        %v1229 = vlaneseq
        %v1230 = vshrl.u32 %v1229, 7
        %v1231 = vsub.s32 3, %v1230
        %v1232 = vrot.slane %v1129, %v1231
        %v1233 = vmul.f32 %v1232, %v1226
        %v1235 = vrot.slane %v1226, 7
        %vm1237 = vcmask 1040384
        %v1238 = vsel %vm1237, 0.0, %v1235
        %v1239 = vlaneseq
        %v1240 = vshrl.u32 %v1239, 7
        %v1241 = vsub.s32 2, %v1240
        %v1242 = vrot.slane %v1129, %v1241
        %v1243 = vmul.f32 %v1242, %v1238
        %v1244 = vadd.f32 %v1233, %v1243
        %v1245 = vrot.slane %v1226, 6
        %vm1247 = vcmask 1041408
        %v1248 = vsel %vm1247, 0.0, %v1245
        %v1249 = vlaneseq
        %v1250 = vshrl.u32 %v1249, 7
        %v1251 = vsub.s32 1, %v1250
        %v1252 = vrot.slane %v1129, %v1251
        %v1253 = vmul.f32 %v1252, %v1248
        %v1254 = vadd.f32 %v1244, %v1253
        %v1255 = vrot.slane %v1226, 5
        %vm1257 = vcmask 1042432
        %v1258 = vsel %vm1257, 0.0, %v1255
        %v1259 = vlaneseq
        %v1260 = vshrl.u32 %v1259, 7
        %v1261 = vsub.s32 0, %v1260
        %v1262 = vrot.slane %v1129, %v1261
        %v1263 = vmul.f32 %v1262, %v1258
        %v1264 = vadd.f32 %v1254, %v1263
        %v1266 = vlaneseq
        %v1267 = vshrl.u32 %v1266, 7
        %v1268 = vsub.s32 0, %v1267
        %v1269 = vrot.slane %v1130, %v1268
        %v1271 = vadd.f32 %v1264, %v1269
        %v1272 = vxor.u32 %v1271, 2147483648
        %v1273 = vmul.f32 %v1272, 1.442695
        %v1274 = vpow.pop %v1273
        %v1275 = vadd.f32 %v1274, 1.0
        %v1276 = vrcp.pop %v1275
        %v1277 = vmul.f32 1.0, %v1276
        %v1278 = vmul.f32 %v1271, %v1277
        %vm1279 = vcmask 523264
        %v1281 = vsel %vm1279, %v1131, 0
        %v1284 = vsel %vm1279, %v1132, 0
        %v1287 = vsel %vm1279, %v1278, 0
        %1289 = vmatprep.subr.mxu0 0.0
        %1290 = vmatpush1.xpose.msra.mxu0 0.0
        %1291 = vmatprep.subr.mxu0 0.0
        %1292 = vmatpush1.xpose.msra.mxu0 0.0
        %1293 = vmatprep.subr.mxu0 0.0
        %1294 = vmatpush1.xpose.msra.mxu0 0.0
        %1295 = vmatprep.subr.mxu0 0.0
        %1296 = vmatpush1.xpose.msra.mxu0 0.0
        %1297 = vmatprep.subr.mxu0 0.0
        %1298 = vmatpush1.xpose.msra.mxu0 0.0
        %1299 = vmatprep.subr.mxu0 0.0
        %1300 = vmatpush1.xpose.msra.mxu0 0.0
        %1301 = vmatprep.subr.mxu0 0.0
        %1302 = vmatpush1.xpose.msra.mxu0 0.0
        %1303 = vmatprep.subr.mxu0 0.0
        %1304 = vmatpush1.xpose.msra.mxu0 0.0
        %1305 = vmatprep.subr.mxu0 0.0
        %1306 = vmatpush1.xpose.msra.mxu0 0.0
        %1307 = vmatprep.subr.mxu0 0.0
        %1308 = vmatpush1.xpose.msra.mxu0 0.0
        %1309 = vmatprep.subr.mxu0 0.0
        %1310 = vmatpush1.xpose.msra.mxu0 0.0
        %1311 = vmatprep.subr.mxu0 0.0
        %1312 = vmatpush1.xpose.msra.mxu0 0.0
        %1313 = vmatprep.subr.mxu0 0.0
        %1314 = vmatpush1.xpose.msra.mxu0 0.0
        %1315 = vmatprep.subr.mxu0 0.0
        %1316 = vmatpush1.xpose.msra.mxu0 0.0
        %1317 = vmatprep.subr.mxu0 0.0
        %1318 = vmatpush1.xpose.msra.mxu0 0.0
        %1319 = vmatprep.subr.mxu0 0.0
        %1320 = vmatpush1.xpose.msra.mxu0 %v1287
        %1321 = vmatprep.subr.mxu0 0.0
        %1322 = vmatpush2.xpose.msra.mxu0 0.0
        %1323 = vmatprep.subr.mxu0 0.0
        %1324 = vmatpush2.xpose.msra.mxu0 0.0
        %1325 = vmatprep.subr.mxu0 0.0
        %1326 = vmatpush2.xpose.msra.mxu0 0.0
        %1327 = vmatprep.subr.mxu0 0.0
        %1328 = vmatpush2.xpose.msra.mxu0 0.0
        %1329 = vmatprep.subr.mxu0 0.0
        %1330 = vmatpush2.xpose.msra.mxu0 0.0
        %1331 = vmatprep.subr.mxu0 0.0
        %1332 = vmatpush2.xpose.msra.mxu0 0.0
        %1333 = vmatprep.subr.mxu0 0.0
        %1334 = vmatpush2.xpose.msra.mxu0 0.0
        %1335 = vmatprep.subr.mxu0 0.0
        %1336 = vmatpush2.xpose.msra.mxu0 0.0
        %1337 = vmatprep.subr.mxu0 0.0
        %1338 = vmatpush2.xpose.msra.mxu0 0.0
        %1339 = vmatprep.subr.mxu0 0.0
        %1340 = vmatpush2.xpose.msra.mxu0 0.0
        %1341 = vmatprep.subr.mxu0 0.0
        %1342 = vmatpush2.xpose.msra.mxu0 0.0
        %1343 = vmatprep.subr.mxu0 0.0
        %1344 = vmatpush2.xpose.msra.mxu0 0.0
        %1345 = vmatprep.subr.mxu0 0.0
        %1346 = vmatpush2.xpose.msra.mxu0 0.0
        %1347 = vmatprep.subr.mxu0 0.0
        %1348 = vmatpush2.xpose.msra.mxu0 0.0
        %1349 = vmatprep.subr.mxu0 0.0
        %1350 = vmatpush2.xpose.msra.mxu0 0.0
        %1351 = vmatprep.subr.mxu0 0.0
        %1352 = vmatpush2.xpose.msra.mxu0 0.0
        %1353 = vmatprep.mubr.f32.mxu0 0.0
        %1354 = vmatmul.mubr.f32.gmra.mxu0 %v1281
        %v1355 = vpop.f32.mrf.mxu0
        %v1356 = vadd.f32 0.0, %v1355
        %v1357 = vpop.f32.mrf.mxu0
        %1358 = vmatprep.mubr.f32.mxu0 0.0
        %1359 = vmatmul.mubr.f32.gmra.mxu0 %v1284
        %v1360 = vpop.f32.mrf.mxu0
        %v1361 = vadd.f32 0.0, %v1360
        %v1362 = vpop.f32.mrf.mxu0
        %1363 = vdwg.mxu0
        %v1365 = vlaneseq
        %v1366 = vshrl.u32 %v1365, 7
        %v1367 = vsub.s32 0, %v1366
        %v1368 = vrot.slane %v1141, %v1367
        %1370 = vmatprep.subr.mxu0 0.0
        %1371 = vmatpush1.msra.mxu0 0.0
        %1372 = vmatprep.subr.mxu0 0.0
        %1373 = vmatpush1.msra.mxu0 0.0
        %1374 = vmatprep.subr.mxu0 0.0
        %1375 = vmatpush1.msra.mxu0 0.0
        %1376 = vmatprep.subr.mxu0 0.0
        %1377 = vmatpush1.msra.mxu0 0.0
        %1378 = vmatprep.subr.mxu0 0.0
        %1379 = vmatpush1.msra.mxu0 0.0
        %1380 = vmatprep.subr.mxu0 0.0
        %1381 = vmatpush1.msra.mxu0 0.0
        %1382 = vmatprep.subr.mxu0 0.0
        %1383 = vmatpush1.msra.mxu0 0.0
        %1384 = vmatprep.subr.mxu0 0.0
        %1385 = vmatpush1.msra.mxu0 0.0
        %1386 = vmatprep.subr.mxu0 0.0
        %1387 = vmatpush1.msra.mxu0 %v1140
        %1388 = vmatprep.subr.mxu0 0.0
        %1389 = vmatpush1.msra.mxu0 %v1139
        %1390 = vmatprep.subr.mxu0 0.0
        %1391 = vmatpush1.msra.mxu0 %v1138
        %1392 = vmatprep.subr.mxu0 0.0
        %1393 = vmatpush1.msra.mxu0 %v1137
        %1394 = vmatprep.subr.mxu0 0.0
        %1395 = vmatpush1.msra.mxu0 %v1136
        %1396 = vmatprep.subr.mxu0 0.0
        %1397 = vmatpush1.msra.mxu0 %v1135
        %1398 = vmatprep.subr.mxu0 0.0
        %1399 = vmatpush1.msra.mxu0 %v1134
        %1400 = vmatprep.subr.mxu0 0.0
        %1401 = vmatpush1.msra.mxu0 %v1133
        %1402 = vmatprep.subr.mxu0 0.0
        %1403 = vmatpush2.msra.mxu0 0.0
        %1404 = vmatprep.subr.mxu0 0.0
        %1405 = vmatpush2.msra.mxu0 0.0
        %1406 = vmatprep.subr.mxu0 0.0
        %1407 = vmatpush2.msra.mxu0 0.0
        %1408 = vmatprep.subr.mxu0 0.0
        %1409 = vmatpush2.msra.mxu0 0.0
        %1410 = vmatprep.subr.mxu0 0.0
        %1411 = vmatpush2.msra.mxu0 0.0
        %1412 = vmatprep.subr.mxu0 0.0
        %1413 = vmatpush2.msra.mxu0 0.0
        %1414 = vmatprep.subr.mxu0 0.0
        %1415 = vmatpush2.msra.mxu0 0.0
        %1416 = vmatprep.subr.mxu0 0.0
        %1417 = vmatpush2.msra.mxu0 0.0
        %1418 = vmatprep.subr.mxu0 0.0
        %1419 = vmatpush2.msra.mxu0 0.0
        %1420 = vmatprep.subr.mxu0 0.0
        %1421 = vmatpush2.msra.mxu0 0.0
        %1422 = vmatprep.subr.mxu0 0.0
        %1423 = vmatpush2.msra.mxu0 0.0
        %1424 = vmatprep.subr.mxu0 0.0
        %1425 = vmatpush2.msra.mxu0 0.0
        %1426 = vmatprep.subr.mxu0 0.0
        %1427 = vmatpush2.msra.mxu0 0.0
        %1428 = vmatprep.subr.mxu0 0.0
        %1429 = vmatpush2.msra.mxu0 0.0
        %1430 = vmatprep.subr.mxu0 0.0
        %1431 = vmatpush2.msra.mxu0 0.0
        %1432 = vmatprep.subr.mxu0 0.0
        %1433 = vmatpush2.msra.mxu0 0.0
        %1434 = vmatprep.mubr.f32.mxu0 0.0
        %1435 = vmatmul.mubr.f32.gmra.mxu0 %v1287
        %v1436 = vpop.f32.mrf.mxu0
        %v1437 = vadd.f32 %v1368, %v1436
        %v1438 = vpop.f32.mrf.mxu0
        %1439 = vdwg.mxu0
        %v1440 = vmax.f32 %v1437, 0.0
        %v1441 = vand.u32 2147483647, %v1437
        %v1442 = vsub.f32 0.0, %v1441
        %v1443 = vmul.f32 %v1442, 1.442695
        %v1444 = vpow.pop %v1443
        %v1445 = vadd.f32 %v1444, 1.0
        %v1446 = vlog2.pop %v1445
        %v1447 = vmul.f32 %v1446, 0.6931472
        %v1448 = vmul.f32 -0.5, %v1444
        %v1449 = vadd.f32 %v1448, 1.0
        %v1450 = vmul.f32 %v1449, %v1444
        %v1451 = vand.u32 2147483647, %v1444
        %vm1452 = vcmp.lt.f32.partialorder %v1451, 0.0004427343
        %v1453 = vsel %vm1452, %v1450, %v1447
        %v1454 = vadd.f32 %v1440, %v1453
        %v1455 = vmul.f32 %v1454, %v1278
        %v1456 = vlaneseq
        %v1457 = vshrl.u32 %v1456, 7
        %v1458 = vsub.s32 0, %v1457
        %v1459 = vrot.slane %v1454, %v1458
        %v1460 = vmul.f32 %v1459, %v1145
        %v1461 = vmul.f32 %v1460, 1.442695
        %v1462 = vpow.pop %v1461
        %v1463 = vlaneseq
        %v1464 = vshrl.u32 %v1463, 7
        %v1465 = vsub.s32 1, %v1464
        %v1466 = vrot.slane %v1454, %v1465
        %v1467 = vmul.f32 %v1466, %v1145
        %v1468 = vmul.f32 %v1467, 1.442695
        %v1469 = vpow.pop %v1468
        %v1470 = vlaneseq
        %v1471 = vshrl.u32 %v1470, 7
        %v1472 = vsub.s32 2, %v1471
        %v1473 = vrot.slane %v1454, %v1472
        %v1474 = vmul.f32 %v1473, %v1145
        %v1475 = vmul.f32 %v1474, 1.442695
        %v1476 = vpow.pop %v1475
        %v1477 = vlaneseq
        %v1478 = vshrl.u32 %v1477, 7
        %v1479 = vsub.s32 3, %v1478
        %v1480 = vrot.slane %v1454, %v1479
        %v1481 = vmul.f32 %v1480, %v1145
        %v1482 = vmul.f32 %v1481, 1.442695
        %v1483 = vpow.pop %v1482
        %v1484 = vlaneseq
        %v1485 = vshrl.u32 %v1484, 7
        %v1486 = vsub.s32 4, %v1485
        %v1487 = vrot.slane %v1454, %v1486
        %v1488 = vmul.f32 %v1487, %v1145
        %v1489 = vmul.f32 %v1488, 1.442695
        %v1490 = vpow.pop %v1489
        %v1491 = vlaneseq
        %v1492 = vshrl.u32 %v1491, 7
        %v1493 = vsub.s32 5, %v1492
        %v1494 = vrot.slane %v1454, %v1493
        %v1495 = vmul.f32 %v1494, %v1145
        %v1496 = vmul.f32 %v1495, 1.442695
        %v1497 = vpow.pop %v1496
        %v1498 = vlaneseq
        %v1499 = vshrl.u32 %v1498, 7
        %v1500 = vsub.s32 6, %v1499
        %v1501 = vrot.slane %v1454, %v1500
        %v1502 = vmul.f32 %v1501, %v1145
        %v1503 = vmul.f32 %v1502, 1.442695
        %v1504 = vpow.pop %v1503
        %v1505 = vlaneseq
        %v1506 = vshrl.u32 %v1505, 7
        %v1507 = vsub.s32 7, %v1506
        %v1508 = vrot.slane %v1454, %v1507
        %v1509 = vmul.f32 %v1508, %v1145
        %v1510 = vmul.f32 %v1509, 1.442695
        %v1511 = vpow.pop %v1510
        %v1512 = vlaneseq
        %v1513 = vshrl.u32 %v1512, 7
        %v1514 = vsub.s32 0, %v1513
        %v1515 = vrot.slane %v1455, %v1514
        %1517 = vset.pattern.permute.xlu0 0
        %1518 = vperm.xlu0 %1517, %v1356
        %v1519 = vpop.permute.xlu0 %1518
        %v1521 = vmul.f32 %v1515, %v1519
        %v1522 = vlaneseq
        %v1523 = vshrl.u32 %v1522, 7
        %v1524 = vsub.s32 1, %v1523
        %v1525 = vrot.slane %v1455, %v1524
        %1526 = vset.pattern.permute.xlu0 1
        %1527 = vperm.xlu0 %1526, %v1356
        %v1528 = vpop.permute.xlu0 %1527
        %v1530 = vmul.f32 %v1525, %v1528
        %v1531 = vlaneseq
        %v1532 = vshrl.u32 %v1531, 7
        %v1533 = vsub.s32 2, %v1532
        %v1534 = vrot.slane %v1455, %v1533
        %1535 = vset.pattern.permute.xlu0 2
        %1536 = vperm.xlu0 %1535, %v1356
        %v1537 = vpop.permute.xlu0 %1536
        %v1539 = vmul.f32 %v1534, %v1537
        %v1540 = vlaneseq
        %v1541 = vshrl.u32 %v1540, 7
        %v1542 = vsub.s32 3, %v1541
        %v1543 = vrot.slane %v1455, %v1542
        %1544 = vset.pattern.permute.xlu0 3
        %1545 = vperm.xlu0 %1544, %v1356
        %v1546 = vpop.permute.xlu0 %1545
        %v1548 = vmul.f32 %v1543, %v1546
        %v1549 = vlaneseq
        %v1550 = vshrl.u32 %v1549, 7
        %v1551 = vsub.s32 4, %v1550
        %v1552 = vrot.slane %v1455, %v1551
        %1553 = vset.pattern.permute.xlu0 4
        %1554 = vperm.xlu0 %1553, %v1356
        %v1555 = vpop.permute.xlu0 %1554
        %v1557 = vmul.f32 %v1552, %v1555
        %v1558 = vlaneseq
        %v1559 = vshrl.u32 %v1558, 7
        %v1560 = vsub.s32 5, %v1559
        %v1561 = vrot.slane %v1455, %v1560
        %1562 = vset.pattern.permute.xlu0 5
        %1563 = vperm.xlu0 %1562, %v1356
        %v1564 = vpop.permute.xlu0 %1563
        %v1566 = vmul.f32 %v1561, %v1564
        %v1567 = vlaneseq
        %v1568 = vshrl.u32 %v1567, 7
        %v1569 = vsub.s32 6, %v1568
        %v1570 = vrot.slane %v1455, %v1569
        %1571 = vset.pattern.permute.xlu0 6
        %1572 = vperm.xlu0 %1571, %v1356
        %v1573 = vpop.permute.xlu0 %1572
        %v1575 = vmul.f32 %v1570, %v1573
        %v1576 = vlaneseq
        %v1577 = vshrl.u32 %v1576, 7
        %v1578 = vsub.s32 7, %v1577
        %v1579 = vrot.slane %v1455, %v1578
        %1580 = vset.pattern.permute.xlu0 7
        %1581 = vperm.xlu0 %1580, %v1356
        %v1582 = vpop.permute.xlu0 %1581
        %v1584 = vmul.f32 %v1579, %v1582
        %v1586 = vlaneseq
        %v1587 = vshrl.u32 %v1586, 7
        %v1588 = vsub.s32 0, %v1587
        %v1589 = vrot.slane %v1146, %v1588
        %v1591 = vmul.f32 %v1589, %v1278
        %v1592 = vmul.f32 %v1462, 0.0
        %v1593 = vadd.f32 %v1592, %v1521
        %1595 = vset.pattern.permute.xlu0 0
        %1596 = vperm.xlu0 %1595, %v1361
        %v1597 = vpop.permute.xlu0 %1596
        %v1599 = vmul.f32 %v1593, %v1597
        %v1600 = vsel %vm1279, %v1599, 0.0
        %v1601 = vrot.slane %v1600, 4
        %v1602 = vadd.f32 %v1600, %v1601
        %v1603 = vrot.slane %v1602, 2
        %v1604 = vadd.f32 %v1602, %v1603
        %v1605 = vrot.slane %v1604, 1
        %v1606 = vadd.f32 %v1604, %v1605
        %vm1607 = vcmp.eq.s32.totalorder %v1124, 0
        %v1608 = vsel %vm1607, %v1606, 0.0
        %v1609 = vadd.f32 %v1591, %v1608
        %v1610 = vmul.f32 %v1469, %v1593
        %v1611 = vadd.f32 %v1610, %v1530
        %1612 = vset.pattern.permute.xlu0 1
        %1613 = vperm.xlu0 %1612, %v1361
        %v1614 = vpop.permute.xlu0 %1613
        %v1616 = vmul.f32 %v1611, %v1614
        %v1617 = vsel %vm1279, %v1616, 0.0
        %v1618 = vrot.slane %v1617, 4
        %v1619 = vadd.f32 %v1617, %v1618
        %v1620 = vrot.slane %v1619, 2
        %v1621 = vadd.f32 %v1619, %v1620
        %v1622 = vrot.slane %v1621, 1
        %v1623 = vadd.f32 %v1621, %v1622
        %vm1624 = vcmp.eq.s32.totalorder %v1124, 1
        %v1625 = vsel %vm1624, %v1623, 0.0
        %v1626 = vadd.f32 %v1609, %v1625
        %v1627 = vmul.f32 %v1476, %v1611
        %v1628 = vadd.f32 %v1627, %v1539
        %1629 = vset.pattern.permute.xlu0 2
        %1630 = vperm.xlu0 %1629, %v1361
        %v1631 = vpop.permute.xlu0 %1630
        %v1633 = vmul.f32 %v1628, %v1631
        %v1634 = vsel %vm1279, %v1633, 0.0
        %v1635 = vrot.slane %v1634, 4
        %v1636 = vadd.f32 %v1634, %v1635
        %v1637 = vrot.slane %v1636, 2
        %v1638 = vadd.f32 %v1636, %v1637
        %v1639 = vrot.slane %v1638, 1
        %v1640 = vadd.f32 %v1638, %v1639
        %vm1641 = vcmp.eq.s32.totalorder %v1124, 2
        %v1642 = vsel %vm1641, %v1640, 0.0
        %v1643 = vadd.f32 %v1626, %v1642
        %v1644 = vmul.f32 %v1483, %v1628
        %v1645 = vadd.f32 %v1644, %v1548
        %1646 = vset.pattern.permute.xlu0 3
        %1647 = vperm.xlu0 %1646, %v1361
        %v1648 = vpop.permute.xlu0 %1647
        %v1650 = vmul.f32 %v1645, %v1648
        %v1651 = vsel %vm1279, %v1650, 0.0
        %v1652 = vrot.slane %v1651, 4
        %v1653 = vadd.f32 %v1651, %v1652
        %v1654 = vrot.slane %v1653, 2
        %v1655 = vadd.f32 %v1653, %v1654
        %v1656 = vrot.slane %v1655, 1
        %v1657 = vadd.f32 %v1655, %v1656
        %vm1658 = vcmp.eq.s32.totalorder %v1124, 3
        %v1659 = vsel %vm1658, %v1657, 0.0
        %v1660 = vadd.f32 %v1643, %v1659
        %v1661 = vmul.f32 %v1490, %v1645
        %v1662 = vadd.f32 %v1661, %v1557
        %1663 = vset.pattern.permute.xlu0 4
        %1664 = vperm.xlu0 %1663, %v1361
        %v1665 = vpop.permute.xlu0 %1664
        %v1667 = vmul.f32 %v1662, %v1665
        %v1668 = vsel %vm1279, %v1667, 0.0
        %v1669 = vrot.slane %v1668, 4
        %v1670 = vadd.f32 %v1668, %v1669
        %v1671 = vrot.slane %v1670, 2
        %v1672 = vadd.f32 %v1670, %v1671
        %v1673 = vrot.slane %v1672, 1
        %v1674 = vadd.f32 %v1672, %v1673
        %vm1675 = vcmp.eq.s32.totalorder %v1124, 4
        %v1676 = vsel %vm1675, %v1674, 0.0
        %v1677 = vadd.f32 %v1660, %v1676
        %v1678 = vmul.f32 %v1497, %v1662
        %v1679 = vadd.f32 %v1678, %v1566
        %1680 = vset.pattern.permute.xlu0 5
        %1681 = vperm.xlu0 %1680, %v1361
        %v1682 = vpop.permute.xlu0 %1681
        %v1684 = vmul.f32 %v1679, %v1682
        %v1685 = vsel %vm1279, %v1684, 0.0
        %v1686 = vrot.slane %v1685, 4
        %v1687 = vadd.f32 %v1685, %v1686
        %v1688 = vrot.slane %v1687, 2
        %v1689 = vadd.f32 %v1687, %v1688
        %v1690 = vrot.slane %v1689, 1
        %v1691 = vadd.f32 %v1689, %v1690
        %vm1692 = vcmp.eq.s32.totalorder %v1124, 5
        %v1693 = vsel %vm1692, %v1691, 0.0
        %v1694 = vadd.f32 %v1677, %v1693
        %v1695 = vmul.f32 %v1504, %v1679
        %v1696 = vadd.f32 %v1695, %v1575
        %1697 = vset.pattern.permute.xlu0 6
        %1698 = vperm.xlu0 %1697, %v1361
        %v1699 = vpop.permute.xlu0 %1698
        %v1701 = vmul.f32 %v1696, %v1699
        %v1702 = vsel %vm1279, %v1701, 0.0
        %v1703 = vrot.slane %v1702, 4
        %v1704 = vadd.f32 %v1702, %v1703
        %v1705 = vrot.slane %v1704, 2
        %v1706 = vadd.f32 %v1704, %v1705
        %v1707 = vrot.slane %v1706, 1
        %v1708 = vadd.f32 %v1706, %v1707
        %vm1709 = vcmp.eq.s32.totalorder %v1124, 6
        %v1710 = vsel %vm1709, %v1708, 0.0
        %v1711 = vadd.f32 %v1694, %v1710
        %v1712 = vmul.f32 %v1511, %v1696
        %v1713 = vadd.f32 %v1712, %v1584
        %1714 = vset.pattern.permute.xlu0 7
        %1715 = vperm.xlu0 %1714, %v1361
        %v1716 = vpop.permute.xlu0 %1715
        %v1718 = vmul.f32 %v1713, %v1716
        %v1719 = vsel %vm1279, %v1718, 0.0
        %v1720 = vrot.slane %v1719, 4
        %v1721 = vadd.f32 %v1719, %v1720
        %v1722 = vrot.slane %v1721, 2
        %v1723 = vadd.f32 %v1721, %v1722
        %v1724 = vrot.slane %v1723, 1
        %v1725 = vadd.f32 %v1723, %v1724
        %vm1726 = vcmp.eq.s32.totalorder %v1124, 7
        %v1727 = vsel %vm1726, %v1725, 0.0
        %v1728 = vadd.f32 %v1711, %v1727
        %v1729 = vxor.u32 %v1226, 2147483648
        %v1730 = vmul.f32 %v1729, 1.442695
        %v1731 = vpow.pop %v1730
        %v1732 = vadd.f32 %v1731, 1.0
        %v1733 = vrcp.pop %v1732
        %v1734 = vmul.f32 1.0, %v1733
        %v1735 = vmul.f32 %v1226, %v1734
        %1737 = vrot.lane.b32.xlu0 %v1735, 64
        %v1738 = vpop.permute.xlu0 %1737
        %v1740 = vmul.f32 %v1728, %v1738
        %s1741 = scalar_lea.vmem %s9, 32
        %v1742 = vld [vmem:[%s1741] sm:$0xff]
        %v1743 = vld [vmem:[%s1741 + $0x8] sm:$0xff]
        %v1744 = vld [vmem:[%s1741 + $0x10] sm:$0xff]
        %v1745 = vld [vmem:[%s1741 + $0x18] sm:$0xff]
        %s1746 = scalar_lea.vmem [#allocation9], 4
        %v1747 = vld [vmem:[%s1746] sm:$0xf]
        %s1748 = scalar_lea.vmem [#allocation10], 1
        %v1749 = vld [vmem:[%s1748] sm:$0x1]
        %s1750 = scalar_lea.vmem %s12, 16
        %v1751 = vld [vmem:[%s1750] sm:$0xff]
        %v1752 = vld [vmem:[%s1750 + $0x8] sm:$0xff]
        %s1753 = scalar_lea.vmem %s13, 64
        %v1754 = vld [vmem:[%s1753] sm:$0xff]
        %v1755 = vld [vmem:[%s1753 + $0x8] sm:$0xff]
        %v1756 = vld [vmem:[%s1753 + $0x10] sm:$0xff]
        %v1757 = vld [vmem:[%s1753 + $0x18] sm:$0xff]
        %v1758 = vld [vmem:[%s1753 + $0x20] sm:$0xff]
        %v1759 = vld [vmem:[%s1753 + $0x28] sm:$0xff]
        %v1760 = vld [vmem:[%s1753 + $0x30] sm:$0xff]
        %v1761 = vld [vmem:[%s1753 + $0x38] sm:$0xff]
        %s1762 = scalar_lea.vmem [#allocation12], 1
        %v1763 = vld [vmem:[%s1762] sm:$0x1]
        %s1764 = scalar_lea.vmem [#allocation13], 8
        %v1765 = vld [vmem:[%s1764] sm:$0xff]
        %v1766 = vmul.f32 %v1765, 1.442695
        %v1767 = vpow.pop %v1766
        %v1768 = vsub.f32 0.0, %v1767
        %s1769 = scalar_lea.vmem [#allocation15], 1
        %v1770 = vld [vmem:[%s1769] sm:$0x1]
        %s1771 = scalar_lea.vmem %s17, 64
        %v1772 = vld [vmem:[%s1771] sm:$0xff]
        %v1773 = vld [vmem:[%s1771 + $0x8] sm:$0xff]
        %v1774 = vld [vmem:[%s1771 + $0x10] sm:$0xff]
        %v1775 = vld [vmem:[%s1771 + $0x18] sm:$0xff]
        %v1776 = vld [vmem:[%s1771 + $0x20] sm:$0xff]
        %v1777 = vld [vmem:[%s1771 + $0x28] sm:$0xff]
        %v1778 = vld [vmem:[%s1771 + $0x30] sm:$0xff]
        %v1779 = vld [vmem:[%s1771 + $0x38] sm:$0xff]
        %1780 = vmatprep.subr.mxu0 0.0
        %1781 = vmatpush1.msra.mxu0 0.0
        %1782 = vmatprep.subr.mxu0 0.0
        %1783 = vmatpush1.msra.mxu0 0.0
        %1784 = vmatprep.subr.mxu0 0.0
        %1785 = vmatpush1.msra.mxu0 0.0
        %1786 = vmatprep.subr.mxu0 0.0
        %1787 = vmatpush1.msra.mxu0 0.0
        %1788 = vmatprep.subr.mxu0 0.0
        %1789 = vmatpush1.msra.mxu0 0.0
        %1790 = vmatprep.subr.mxu0 0.0
        %1791 = vmatpush1.msra.mxu0 0.0
        %1792 = vmatprep.subr.mxu0 0.0
        %1793 = vmatpush1.msra.mxu0 0.0
        %1794 = vmatprep.subr.mxu0 0.0
        %1795 = vmatpush1.msra.mxu0 0.0
        %1796 = vmatprep.subr.mxu0 0.0
        %1797 = vmatpush1.msra.mxu0 0.0
        %1798 = vmatprep.subr.mxu0 0.0
        %1799 = vmatpush1.msra.mxu0 0.0
        %1800 = vmatprep.subr.mxu0 0.0
        %1801 = vmatpush1.msra.mxu0 0.0
        %1802 = vmatprep.subr.mxu0 0.0
        %1803 = vmatpush1.msra.mxu0 0.0
        %1804 = vmatprep.subr.mxu0 0.0
        %1805 = vmatpush1.msra.mxu0 %v1745
        %1806 = vmatprep.subr.mxu0 0.0
        %1807 = vmatpush1.msra.mxu0 %v1744
        %1808 = vmatprep.subr.mxu0 0.0
        %1809 = vmatpush1.msra.mxu0 %v1743
        %1810 = vmatprep.subr.mxu0 0.0
        %1811 = vmatpush1.msra.mxu0 %v1742
        %1812 = vmatprep.subr.mxu0 0.0
        %1813 = vmatpush2.msra.mxu0 0.0
        %1814 = vmatprep.subr.mxu0 0.0
        %1815 = vmatpush2.msra.mxu0 0.0
        %1816 = vmatprep.subr.mxu0 0.0
        %1817 = vmatpush2.msra.mxu0 0.0
        %1818 = vmatprep.subr.mxu0 0.0
        %1819 = vmatpush2.msra.mxu0 0.0
        %1820 = vmatprep.subr.mxu0 0.0
        %1821 = vmatpush2.msra.mxu0 0.0
        %1822 = vmatprep.subr.mxu0 0.0
        %1823 = vmatpush2.msra.mxu0 0.0
        %1824 = vmatprep.subr.mxu0 0.0
        %1825 = vmatpush2.msra.mxu0 0.0
        %1826 = vmatprep.subr.mxu0 0.0
        %1827 = vmatpush2.msra.mxu0 0.0
        %1828 = vmatprep.subr.mxu0 0.0
        %1829 = vmatpush2.msra.mxu0 0.0
        %1830 = vmatprep.subr.mxu0 0.0
        %1831 = vmatpush2.msra.mxu0 0.0
        %1832 = vmatprep.subr.mxu0 0.0
        %1833 = vmatpush2.msra.mxu0 0.0
        %1834 = vmatprep.subr.mxu0 0.0
        %1835 = vmatpush2.msra.mxu0 0.0
        %1836 = vmatprep.subr.mxu0 0.0
        %1837 = vmatpush2.msra.mxu0 0.0
        %1838 = vmatprep.subr.mxu0 0.0
        %1839 = vmatpush2.msra.mxu0 0.0
        %1840 = vmatprep.subr.mxu0 0.0
        %1841 = vmatpush2.msra.mxu0 0.0
        %1842 = vmatprep.subr.mxu0 0.0
        %1843 = vmatpush2.msra.mxu0 0.0
        %1844 = vmatprep.mubr.f32.mxu0 0.0
        %1845 = vmatmul.mubr.f32.gmra.mxu0 %v1157
        %v1846 = vpop.f32.mrf.mxu0
        %v1847 = vadd.f32 0.0, %v1846
        %v1848 = vpop.f32.mrf.mxu0
        %1849 = vdwg.mxu0
        %v1850 = vlaneseq
        %v1851 = vshrl.u32 %v1850, 7
        %v1852 = vsub.s32 3, %v1851
        %v1853 = vrot.slane %v1747, %v1852
        %v1854 = vmul.f32 %v1853, %v1847
        %v1856 = vrot.slane %v1847, 1
        %vm1858 = vcmask 1046528
        %v1859 = vsel %vm1858, %v1856, 0.0
        %v1860 = vlaneseq
        %v1861 = vshrl.u32 %v1860, 7
        %v1862 = vsub.s32 2, %v1861
        %v1863 = vrot.slane %v1747, %v1862
        %v1864 = vmul.f32 %v1863, %v1859
        %v1865 = vadd.f32 %v1854, %v1864
        %v1866 = vrot.slane %v1847, 2
        %vm1868 = vcmask 1045504
        %v1869 = vsel %vm1868, %v1866, 0.0
        %v1870 = vlaneseq
        %v1871 = vshrl.u32 %v1870, 7
        %v1872 = vsub.s32 1, %v1871
        %v1873 = vrot.slane %v1747, %v1872
        %v1874 = vmul.f32 %v1873, %v1869
        %v1875 = vadd.f32 %v1865, %v1874
        %v1876 = vrot.slane %v1847, 3
        %vm1878 = vcmask 1044480
        %v1879 = vsel %vm1878, %v1876, 0.0
        %v1880 = vlaneseq
        %v1881 = vshrl.u32 %v1880, 7
        %v1882 = vsub.s32 0, %v1881
        %v1883 = vrot.slane %v1747, %v1882
        %v1884 = vmul.f32 %v1883, %v1879
        %v1885 = vadd.f32 %v1875, %v1884
        %v1887 = vlaneseq
        %v1888 = vshrl.u32 %v1887, 7
        %v1889 = vsub.s32 0, %v1888
        %v1890 = vrot.slane %v1749, %v1889
        %v1892 = vadd.f32 %v1885, %v1890
        %v1893 = vxor.u32 %v1892, 2147483648
        %v1894 = vmul.f32 %v1893, 1.442695
        %v1895 = vpow.pop %v1894
        %v1896 = vadd.f32 %v1895, 1.0
        %v1897 = vrcp.pop %v1896
        %v1898 = vmul.f32 1.0, %v1897
        %v1899 = vmul.f32 %v1892, %v1898
        %v1901 = vsel %vm1279, %v1751, 0
        %v1904 = vsel %vm1279, %v1752, 0
        %v1907 = vsel %vm1279, %v1899, 0
        %1909 = vmatprep.subr.mxu0 0.0
        %1910 = vmatpush1.xpose.msra.mxu0 0.0
        %1911 = vmatprep.subr.mxu0 0.0
        %1912 = vmatpush1.xpose.msra.mxu0 0.0
        %1913 = vmatprep.subr.mxu0 0.0
        %1914 = vmatpush1.xpose.msra.mxu0 0.0
        %1915 = vmatprep.subr.mxu0 0.0
        %1916 = vmatpush1.xpose.msra.mxu0 0.0
        %1917 = vmatprep.subr.mxu0 0.0
        %1918 = vmatpush1.xpose.msra.mxu0 0.0
        %1919 = vmatprep.subr.mxu0 0.0
        %1920 = vmatpush1.xpose.msra.mxu0 0.0
        %1921 = vmatprep.subr.mxu0 0.0
        %1922 = vmatpush1.xpose.msra.mxu0 0.0
        %1923 = vmatprep.subr.mxu0 0.0
        %1924 = vmatpush1.xpose.msra.mxu0 0.0
        %1925 = vmatprep.subr.mxu0 0.0
        %1926 = vmatpush1.xpose.msra.mxu0 0.0
        %1927 = vmatprep.subr.mxu0 0.0
        %1928 = vmatpush1.xpose.msra.mxu0 0.0
        %1929 = vmatprep.subr.mxu0 0.0
        %1930 = vmatpush1.xpose.msra.mxu0 0.0
        %1931 = vmatprep.subr.mxu0 0.0
        %1932 = vmatpush1.xpose.msra.mxu0 0.0
        %1933 = vmatprep.subr.mxu0 0.0
        %1934 = vmatpush1.xpose.msra.mxu0 0.0
        %1935 = vmatprep.subr.mxu0 0.0
        %1936 = vmatpush1.xpose.msra.mxu0 0.0
        %1937 = vmatprep.subr.mxu0 0.0
        %1938 = vmatpush1.xpose.msra.mxu0 0.0
        %1939 = vmatprep.subr.mxu0 0.0
        %1940 = vmatpush1.xpose.msra.mxu0 %v1907
        %1941 = vmatprep.subr.mxu0 0.0
        %1942 = vmatpush2.xpose.msra.mxu0 0.0
        %1943 = vmatprep.subr.mxu0 0.0
        %1944 = vmatpush2.xpose.msra.mxu0 0.0
        %1945 = vmatprep.subr.mxu0 0.0
        %1946 = vmatpush2.xpose.msra.mxu0 0.0
        %1947 = vmatprep.subr.mxu0 0.0
        %1948 = vmatpush2.xpose.msra.mxu0 0.0
        %1949 = vmatprep.subr.mxu0 0.0
        %1950 = vmatpush2.xpose.msra.mxu0 0.0
        %1951 = vmatprep.subr.mxu0 0.0
        %1952 = vmatpush2.xpose.msra.mxu0 0.0
        %1953 = vmatprep.subr.mxu0 0.0
        %1954 = vmatpush2.xpose.msra.mxu0 0.0
        %1955 = vmatprep.subr.mxu0 0.0
        %1956 = vmatpush2.xpose.msra.mxu0 0.0
        %1957 = vmatprep.subr.mxu0 0.0
        %1958 = vmatpush2.xpose.msra.mxu0 0.0
        %1959 = vmatprep.subr.mxu0 0.0
        %1960 = vmatpush2.xpose.msra.mxu0 0.0
        %1961 = vmatprep.subr.mxu0 0.0
        %1962 = vmatpush2.xpose.msra.mxu0 0.0
        %1963 = vmatprep.subr.mxu0 0.0
        %1964 = vmatpush2.xpose.msra.mxu0 0.0
        %1965 = vmatprep.subr.mxu0 0.0
        %1966 = vmatpush2.xpose.msra.mxu0 0.0
        %1967 = vmatprep.subr.mxu0 0.0
        %1968 = vmatpush2.xpose.msra.mxu0 0.0
        %1969 = vmatprep.subr.mxu0 0.0
        %1970 = vmatpush2.xpose.msra.mxu0 0.0
        %1971 = vmatprep.subr.mxu0 0.0
        %1972 = vmatpush2.xpose.msra.mxu0 0.0
        %1973 = vmatprep.mubr.f32.mxu0 0.0
        %1974 = vmatmul.mubr.f32.gmra.mxu0 %v1901
        %v1975 = vpop.f32.mrf.mxu0
        %v1976 = vadd.f32 0.0, %v1975
        %v1977 = vpop.f32.mrf.mxu0
        %1978 = vmatprep.mubr.f32.mxu0 0.0
        %1979 = vmatmul.mubr.f32.gmra.mxu0 %v1904
        %v1980 = vpop.f32.mrf.mxu0
        %v1981 = vadd.f32 0.0, %v1980
        %v1982 = vpop.f32.mrf.mxu0
        %1983 = vdwg.mxu0
        %v1985 = vlaneseq
        %v1986 = vshrl.u32 %v1985, 7
        %v1987 = vsub.s32 0, %v1986
        %v1988 = vrot.slane %v1763, %v1987
        %1990 = vmatprep.subr.mxu0 0.0
        %1991 = vmatpush1.msra.mxu0 0.0
        %1992 = vmatprep.subr.mxu0 0.0
        %1993 = vmatpush1.msra.mxu0 0.0
        %1994 = vmatprep.subr.mxu0 0.0
        %1995 = vmatpush1.msra.mxu0 0.0
        %1996 = vmatprep.subr.mxu0 0.0
        %1997 = vmatpush1.msra.mxu0 0.0
        %1998 = vmatprep.subr.mxu0 0.0
        %1999 = vmatpush1.msra.mxu0 0.0
        %2000 = vmatprep.subr.mxu0 0.0
        %2001 = vmatpush1.msra.mxu0 0.0
        %2002 = vmatprep.subr.mxu0 0.0
        %2003 = vmatpush1.msra.mxu0 0.0
        %2004 = vmatprep.subr.mxu0 0.0
        %2005 = vmatpush1.msra.mxu0 0.0
        %2006 = vmatprep.subr.mxu0 0.0
        %2007 = vmatpush1.msra.mxu0 %v1761
        %2008 = vmatprep.subr.mxu0 0.0
        %2009 = vmatpush1.msra.mxu0 %v1760
        %2010 = vmatprep.subr.mxu0 0.0
        %2011 = vmatpush1.msra.mxu0 %v1759
        %2012 = vmatprep.subr.mxu0 0.0
        %2013 = vmatpush1.msra.mxu0 %v1758
        %2014 = vmatprep.subr.mxu0 0.0
        %2015 = vmatpush1.msra.mxu0 %v1757
        %2016 = vmatprep.subr.mxu0 0.0
        %2017 = vmatpush1.msra.mxu0 %v1756
        %2018 = vmatprep.subr.mxu0 0.0
        %2019 = vmatpush1.msra.mxu0 %v1755
        %2020 = vmatprep.subr.mxu0 0.0
        %2021 = vmatpush1.msra.mxu0 %v1754
        %2022 = vmatprep.subr.mxu0 0.0
        %2023 = vmatpush2.msra.mxu0 0.0
        %2024 = vmatprep.subr.mxu0 0.0
        %2025 = vmatpush2.msra.mxu0 0.0
        %2026 = vmatprep.subr.mxu0 0.0
        %2027 = vmatpush2.msra.mxu0 0.0
        %2028 = vmatprep.subr.mxu0 0.0
        %2029 = vmatpush2.msra.mxu0 0.0
        %2030 = vmatprep.subr.mxu0 0.0
        %2031 = vmatpush2.msra.mxu0 0.0
        %2032 = vmatprep.subr.mxu0 0.0
        %2033 = vmatpush2.msra.mxu0 0.0
        %2034 = vmatprep.subr.mxu0 0.0
        %2035 = vmatpush2.msra.mxu0 0.0
        %2036 = vmatprep.subr.mxu0 0.0
        %2037 = vmatpush2.msra.mxu0 0.0
        %2038 = vmatprep.subr.mxu0 0.0
        %2039 = vmatpush2.msra.mxu0 0.0
        %2040 = vmatprep.subr.mxu0 0.0
        %2041 = vmatpush2.msra.mxu0 0.0
        %2042 = vmatprep.subr.mxu0 0.0
        %2043 = vmatpush2.msra.mxu0 0.0
        %2044 = vmatprep.subr.mxu0 0.0
        %2045 = vmatpush2.msra.mxu0 0.0
        %2046 = vmatprep.subr.mxu0 0.0
        %2047 = vmatpush2.msra.mxu0 0.0
        %2048 = vmatprep.subr.mxu0 0.0
        %2049 = vmatpush2.msra.mxu0 0.0
        %2050 = vmatprep.subr.mxu0 0.0
        %2051 = vmatpush2.msra.mxu0 0.0
        %2052 = vmatprep.subr.mxu0 0.0
        %2053 = vmatpush2.msra.mxu0 0.0
        %2054 = vmatprep.mubr.f32.mxu0 0.0
        %2055 = vmatmul.mubr.f32.gmra.mxu0 %v1907
        %v2056 = vpop.f32.mrf.mxu0
        %v2057 = vadd.f32 %v1988, %v2056
        %v2058 = vpop.f32.mrf.mxu0
        %2059 = vdwg.mxu0
        %v2060 = vmax.f32 %v2057, 0.0
        %v2061 = vand.u32 2147483647, %v2057
        %v2062 = vsub.f32 0.0, %v2061
        %v2063 = vmul.f32 %v2062, 1.442695
        %v2064 = vpow.pop %v2063
        %v2065 = vadd.f32 %v2064, 1.0
        %v2066 = vlog2.pop %v2065
        %v2067 = vmul.f32 %v2066, 0.6931472
        %v2068 = vmul.f32 -0.5, %v2064
        %v2069 = vadd.f32 %v2068, 1.0
        %v2070 = vmul.f32 %v2069, %v2064
        %v2071 = vand.u32 2147483647, %v2064
        %vm2072 = vcmp.lt.f32.partialorder %v2071, 0.0004427343
        %v2073 = vsel %vm2072, %v2070, %v2067
        %v2074 = vadd.f32 %v2060, %v2073
        %v2075 = vmul.f32 %v2074, %v1899
        %v2076 = vlaneseq
        %v2077 = vshrl.u32 %v2076, 7
        %v2078 = vsub.s32 0, %v2077
        %v2079 = vrot.slane %v2074, %v2078
        %v2080 = vmul.f32 %v2079, %v1768
        %v2081 = vmul.f32 %v2080, 1.442695
        %v2082 = vpow.pop %v2081
        %v2083 = vlaneseq
        %v2084 = vshrl.u32 %v2083, 7
        %v2085 = vsub.s32 1, %v2084
        %v2086 = vrot.slane %v2074, %v2085
        %v2087 = vmul.f32 %v2086, %v1768
        %v2088 = vmul.f32 %v2087, 1.442695
        %v2089 = vpow.pop %v2088
        %v2090 = vlaneseq
        %v2091 = vshrl.u32 %v2090, 7
        %v2092 = vsub.s32 2, %v2091
        %v2093 = vrot.slane %v2074, %v2092
        %v2094 = vmul.f32 %v2093, %v1768
        %v2095 = vmul.f32 %v2094, 1.442695
        %v2096 = vpow.pop %v2095
        %v2097 = vlaneseq
        %v2098 = vshrl.u32 %v2097, 7
        %v2099 = vsub.s32 3, %v2098
        %v2100 = vrot.slane %v2074, %v2099
        %v2101 = vmul.f32 %v2100, %v1768
        %v2102 = vmul.f32 %v2101, 1.442695
        %v2103 = vpow.pop %v2102
        %v2104 = vlaneseq
        %v2105 = vshrl.u32 %v2104, 7
        %v2106 = vsub.s32 4, %v2105
        %v2107 = vrot.slane %v2074, %v2106
        %v2108 = vmul.f32 %v2107, %v1768
        %v2109 = vmul.f32 %v2108, 1.442695
        %v2110 = vpow.pop %v2109
        %v2111 = vlaneseq
        %v2112 = vshrl.u32 %v2111, 7
        %v2113 = vsub.s32 5, %v2112
        %v2114 = vrot.slane %v2074, %v2113
        %v2115 = vmul.f32 %v2114, %v1768
        %v2116 = vmul.f32 %v2115, 1.442695
        %v2117 = vpow.pop %v2116
        %v2118 = vlaneseq
        %v2119 = vshrl.u32 %v2118, 7
        %v2120 = vsub.s32 6, %v2119
        %v2121 = vrot.slane %v2074, %v2120
        %v2122 = vmul.f32 %v2121, %v1768
        %v2123 = vmul.f32 %v2122, 1.442695
        %v2124 = vpow.pop %v2123
        %v2125 = vlaneseq
        %v2126 = vshrl.u32 %v2125, 7
        %v2127 = vsub.s32 7, %v2126
        %v2128 = vrot.slane %v2074, %v2127
        %v2129 = vmul.f32 %v2128, %v1768
        %v2130 = vmul.f32 %v2129, 1.442695
        %v2131 = vpow.pop %v2130
        %v2132 = vlaneseq
        %v2133 = vshrl.u32 %v2132, 7
        %v2134 = vsub.s32 0, %v2133
        %v2135 = vrot.slane %v2075, %v2134
        %2137 = vset.pattern.permute.xlu0 0
        %2138 = vperm.xlu0 %2137, %v1976
        %v2139 = vpop.permute.xlu0 %2138
        %v2141 = vmul.f32 %v2135, %v2139
        %v2142 = vlaneseq
        %v2143 = vshrl.u32 %v2142, 7
        %v2144 = vsub.s32 1, %v2143
        %v2145 = vrot.slane %v2075, %v2144
        %2146 = vset.pattern.permute.xlu0 1
        %2147 = vperm.xlu0 %2146, %v1976
        %v2148 = vpop.permute.xlu0 %2147
        %v2150 = vmul.f32 %v2145, %v2148
        %v2151 = vlaneseq
        %v2152 = vshrl.u32 %v2151, 7
        %v2153 = vsub.s32 2, %v2152
        %v2154 = vrot.slane %v2075, %v2153
        %2155 = vset.pattern.permute.xlu0 2
        %2156 = vperm.xlu0 %2155, %v1976
        %v2157 = vpop.permute.xlu0 %2156
        %v2159 = vmul.f32 %v2154, %v2157
        %v2160 = vlaneseq
        %v2161 = vshrl.u32 %v2160, 7
        %v2162 = vsub.s32 3, %v2161
        %v2163 = vrot.slane %v2075, %v2162
        %2164 = vset.pattern.permute.xlu0 3
        %2165 = vperm.xlu0 %2164, %v1976
        %v2166 = vpop.permute.xlu0 %2165
        %v2168 = vmul.f32 %v2163, %v2166
        %v2169 = vlaneseq
        %v2170 = vshrl.u32 %v2169, 7
        %v2171 = vsub.s32 4, %v2170
        %v2172 = vrot.slane %v2075, %v2171
        %2173 = vset.pattern.permute.xlu0 4
        %2174 = vperm.xlu0 %2173, %v1976
        %v2175 = vpop.permute.xlu0 %2174
        %v2177 = vmul.f32 %v2172, %v2175
        %v2178 = vlaneseq
        %v2179 = vshrl.u32 %v2178, 7
        %v2180 = vsub.s32 5, %v2179
        %v2181 = vrot.slane %v2075, %v2180
        %2182 = vset.pattern.permute.xlu0 5
        %2183 = vperm.xlu0 %2182, %v1976
        %v2184 = vpop.permute.xlu0 %2183
        %v2186 = vmul.f32 %v2181, %v2184
        %v2187 = vlaneseq
        %v2188 = vshrl.u32 %v2187, 7
        %v2189 = vsub.s32 6, %v2188
        %v2190 = vrot.slane %v2075, %v2189
        %2191 = vset.pattern.permute.xlu0 6
        %2192 = vperm.xlu0 %2191, %v1976
        %v2193 = vpop.permute.xlu0 %2192
        %v2195 = vmul.f32 %v2190, %v2193
        %v2196 = vlaneseq
        %v2197 = vshrl.u32 %v2196, 7
        %v2198 = vsub.s32 7, %v2197
        %v2199 = vrot.slane %v2075, %v2198
        %2200 = vset.pattern.permute.xlu0 7
        %2201 = vperm.xlu0 %2200, %v1976
        %v2202 = vpop.permute.xlu0 %2201
        %v2204 = vmul.f32 %v2199, %v2202
        %v2206 = vlaneseq
        %v2207 = vshrl.u32 %v2206, 7
        %v2208 = vsub.s32 0, %v2207
        %v2209 = vrot.slane %v1770, %v2208
        %v2211 = vmul.f32 %v2209, %v1899
        %v2212 = vmul.f32 %v2131, 0.0
        %v2213 = vadd.f32 %v2212, %v2204
        %2215 = vset.pattern.permute.xlu0 7
        %2216 = vperm.xlu0 %2215, %v1981
        %v2217 = vpop.permute.xlu0 %2216
        %v2219 = vmul.f32 %v2213, %v2217
        %v2220 = vsel %vm1279, %v2219, 0.0
        %v2221 = vrot.slane %v2220, 4
        %v2222 = vadd.f32 %v2220, %v2221
        %v2223 = vrot.slane %v2222, 2
        %v2224 = vadd.f32 %v2222, %v2223
        %v2225 = vrot.slane %v2224, 1
        %v2226 = vadd.f32 %v2224, %v2225
        %v2227 = vsel %vm1726, %v2226, 0.0
        %v2228 = vadd.f32 %v2211, %v2227
        %v2229 = vmul.f32 %v2124, %v2213
        %v2230 = vadd.f32 %v2229, %v2195
        %2231 = vset.pattern.permute.xlu0 6
        %2232 = vperm.xlu0 %2231, %v1981
        %v2233 = vpop.permute.xlu0 %2232
        %v2235 = vmul.f32 %v2230, %v2233
        %v2236 = vsel %vm1279, %v2235, 0.0
        %v2237 = vrot.slane %v2236, 4
        %v2238 = vadd.f32 %v2236, %v2237
        %v2239 = vrot.slane %v2238, 2
        %v2240 = vadd.f32 %v2238, %v2239
        %v2241 = vrot.slane %v2240, 1
        %v2242 = vadd.f32 %v2240, %v2241
        %v2243 = vsel %vm1709, %v2242, 0.0
        %v2244 = vadd.f32 %v2228, %v2243
        %v2245 = vmul.f32 %v2117, %v2230
        %v2246 = vadd.f32 %v2245, %v2186
        %2247 = vset.pattern.permute.xlu0 5
        %2248 = vperm.xlu0 %2247, %v1981
        %v2249 = vpop.permute.xlu0 %2248
        %v2251 = vmul.f32 %v2246, %v2249
        %v2252 = vsel %vm1279, %v2251, 0.0
        %v2253 = vrot.slane %v2252, 4
        %v2254 = vadd.f32 %v2252, %v2253
        %v2255 = vrot.slane %v2254, 2
        %v2256 = vadd.f32 %v2254, %v2255
        %v2257 = vrot.slane %v2256, 1
        %v2258 = vadd.f32 %v2256, %v2257
        %v2259 = vsel %vm1692, %v2258, 0.0
        %v2260 = vadd.f32 %v2244, %v2259
        %v2261 = vmul.f32 %v2110, %v2246
        %v2262 = vadd.f32 %v2261, %v2177
        %2263 = vset.pattern.permute.xlu0 4
        %2264 = vperm.xlu0 %2263, %v1981
        %v2265 = vpop.permute.xlu0 %2264
        %v2267 = vmul.f32 %v2262, %v2265
        %v2268 = vsel %vm1279, %v2267, 0.0
        %v2269 = vrot.slane %v2268, 4
        %v2270 = vadd.f32 %v2268, %v2269
        %v2271 = vrot.slane %v2270, 2
        %v2272 = vadd.f32 %v2270, %v2271
        %v2273 = vrot.slane %v2272, 1
        %v2274 = vadd.f32 %v2272, %v2273
        %v2275 = vsel %vm1675, %v2274, 0.0
        %v2276 = vadd.f32 %v2260, %v2275
        %v2277 = vmul.f32 %v2103, %v2262
        %v2278 = vadd.f32 %v2277, %v2168
        %2279 = vset.pattern.permute.xlu0 3
        %2280 = vperm.xlu0 %2279, %v1981
        %v2281 = vpop.permute.xlu0 %2280
        %v2283 = vmul.f32 %v2278, %v2281
        %v2284 = vsel %vm1279, %v2283, 0.0
        %v2285 = vrot.slane %v2284, 4
        %v2286 = vadd.f32 %v2284, %v2285
        %v2287 = vrot.slane %v2286, 2
        %v2288 = vadd.f32 %v2286, %v2287
        %v2289 = vrot.slane %v2288, 1
        %v2290 = vadd.f32 %v2288, %v2289
        %v2291 = vsel %vm1658, %v2290, 0.0
        %v2292 = vadd.f32 %v2276, %v2291
        %v2293 = vmul.f32 %v2096, %v2278
        %v2294 = vadd.f32 %v2293, %v2159
        %2295 = vset.pattern.permute.xlu0 2
        %2296 = vperm.xlu0 %2295, %v1981
        %v2297 = vpop.permute.xlu0 %2296
        %v2299 = vmul.f32 %v2294, %v2297
        %v2300 = vsel %vm1279, %v2299, 0.0
        %v2301 = vrot.slane %v2300, 4
        %v2302 = vadd.f32 %v2300, %v2301
        %v2303 = vrot.slane %v2302, 2
        %v2304 = vadd.f32 %v2302, %v2303
        %v2305 = vrot.slane %v2304, 1
        %v2306 = vadd.f32 %v2304, %v2305
        %v2307 = vsel %vm1641, %v2306, 0.0
        %v2308 = vadd.f32 %v2292, %v2307
        %v2309 = vmul.f32 %v2089, %v2294
        %v2310 = vadd.f32 %v2309, %v2150
        %2311 = vset.pattern.permute.xlu0 1
        %2312 = vperm.xlu0 %2311, %v1981
        %v2313 = vpop.permute.xlu0 %2312
        %v2315 = vmul.f32 %v2310, %v2313
        %v2316 = vsel %vm1279, %v2315, 0.0
        %v2317 = vrot.slane %v2316, 4
        %v2318 = vadd.f32 %v2316, %v2317
        %v2319 = vrot.slane %v2318, 2
        %v2320 = vadd.f32 %v2318, %v2319
        %v2321 = vrot.slane %v2320, 1
        %v2322 = vadd.f32 %v2320, %v2321
        %v2323 = vsel %vm1624, %v2322, 0.0
        %v2324 = vadd.f32 %v2308, %v2323
        %v2325 = vmul.f32 %v2082, %v2310
        %v2326 = vadd.f32 %v2325, %v2141
        %2327 = vset.pattern.permute.xlu0 0
        %2328 = vperm.xlu0 %2327, %v1981
        %v2329 = vpop.permute.xlu0 %2328
        %v2331 = vmul.f32 %v2326, %v2329
        %v2332 = vsel %vm1279, %v2331, 0.0
        %v2333 = vrot.slane %v2332, 4
        %v2334 = vadd.f32 %v2332, %v2333
        %v2335 = vrot.slane %v2334, 2
        %v2336 = vadd.f32 %v2334, %v2335
        %v2337 = vrot.slane %v2336, 1
        %v2338 = vadd.f32 %v2336, %v2337
        %v2339 = vsel %vm1607, %v2338, 0.0
        %v2340 = vadd.f32 %v2324, %v2339
        %v2341 = vxor.u32 %v1847, 2147483648
        %v2342 = vmul.f32 %v2341, 1.442695
        %v2343 = vpow.pop %v2342
        %v2344 = vadd.f32 %v2343, 1.0
        %v2345 = vrcp.pop %v2344
        %v2346 = vmul.f32 1.0, %v2345
        %v2347 = vmul.f32 %v1847, %v2346
        %2349 = vrot.lane.b32.xlu0 %v2347, 64
        %v2350 = vpop.permute.xlu0 %2349
        %v2352 = vmul.f32 %v2340, %v2350
        %v2354 = vsel %vm1279, %v2352, 0
        %2356 = vmatprep.subr.mxu0 0.0
        %2357 = vmatpush1.msra.mxu0 0.0
        %2358 = vmatprep.subr.mxu0 0.0
        %2359 = vmatpush1.msra.mxu0 0.0
        %2360 = vmatprep.subr.mxu0 0.0
        %2361 = vmatpush1.msra.mxu0 0.0
        %2362 = vmatprep.subr.mxu0 0.0
        %2363 = vmatpush1.msra.mxu0 0.0
        %2364 = vmatprep.subr.mxu0 0.0
        %2365 = vmatpush1.msra.mxu0 0.0
        %2366 = vmatprep.subr.mxu0 0.0
        %2367 = vmatpush1.msra.mxu0 0.0
        %2368 = vmatprep.subr.mxu0 0.0
        %2369 = vmatpush1.msra.mxu0 0.0
        %2370 = vmatprep.subr.mxu0 0.0
        %2371 = vmatpush1.msra.mxu0 0.0
        %2372 = vmatprep.subr.mxu0 0.0
        %2373 = vmatpush1.msra.mxu0 %v1779
        %2374 = vmatprep.subr.mxu0 0.0
        %2375 = vmatpush1.msra.mxu0 %v1778
        %2376 = vmatprep.subr.mxu0 0.0
        %2377 = vmatpush1.msra.mxu0 %v1777
        %2378 = vmatprep.subr.mxu0 0.0
        %2379 = vmatpush1.msra.mxu0 %v1776
        %2380 = vmatprep.subr.mxu0 0.0
        %2381 = vmatpush1.msra.mxu0 %v1775
        %2382 = vmatprep.subr.mxu0 0.0
        %2383 = vmatpush1.msra.mxu0 %v1774
        %2384 = vmatprep.subr.mxu0 0.0
        %2385 = vmatpush1.msra.mxu0 %v1773
        %2386 = vmatprep.subr.mxu0 0.0
        %2387 = vmatpush1.msra.mxu0 %v1772
        %2388 = vmatprep.subr.mxu0 0.0
        %2389 = vmatpush2.msra.mxu0 0.0
        %2390 = vmatprep.subr.mxu0 0.0
        %2391 = vmatpush2.msra.mxu0 0.0
        %2392 = vmatprep.subr.mxu0 0.0
        %2393 = vmatpush2.msra.mxu0 0.0
        %2394 = vmatprep.subr.mxu0 0.0
        %2395 = vmatpush2.msra.mxu0 0.0
        %2396 = vmatprep.subr.mxu0 0.0
        %2397 = vmatpush2.msra.mxu0 0.0
        %2398 = vmatprep.subr.mxu0 0.0
        %2399 = vmatpush2.msra.mxu0 0.0
        %2400 = vmatprep.subr.mxu0 0.0
        %2401 = vmatpush2.msra.mxu0 0.0
        %2402 = vmatprep.subr.mxu0 0.0
        %2403 = vmatpush2.msra.mxu0 0.0
        %2404 = vmatprep.subr.mxu0 0.0
        %2405 = vmatpush2.msra.mxu0 0.0
        %2406 = vmatprep.subr.mxu0 0.0
        %2407 = vmatpush2.msra.mxu0 0.0
        %2408 = vmatprep.subr.mxu0 0.0
        %2409 = vmatpush2.msra.mxu0 0.0
        %2410 = vmatprep.subr.mxu0 0.0
        %2411 = vmatpush2.msra.mxu0 0.0
        %2412 = vmatprep.subr.mxu0 0.0
        %2413 = vmatpush2.msra.mxu0 0.0
        %2414 = vmatprep.subr.mxu0 0.0
        %2415 = vmatpush2.msra.mxu0 0.0
        %2416 = vmatprep.subr.mxu0 0.0
        %2417 = vmatpush2.msra.mxu0 0.0
        %2418 = vmatprep.subr.mxu0 0.0
        %2419 = vmatpush2.msra.mxu0 0.0
        %2420 = vmatprep.mubr.f32.mxu0 0.0
        %2421 = vmatmul.mubr.f32.gmra.mxu0 %v2354
        %v2422 = vpop.f32.mrf.mxu0
        %v2423 = vadd.f32 0.0, %v2422
        %v2424 = vpop.f32.mrf.mxu0
        %2425 = vdwg.mxu0
        %v2427 = vsel %vm1279, %v1740, 0
        %2429 = vmatprep.subr.mxu0 0.0
        %2430 = vmatpush1.msra.mxu0 0.0
        %2431 = vmatprep.subr.mxu0 0.0
        %2432 = vmatpush1.msra.mxu0 0.0
        %2433 = vmatprep.subr.mxu0 0.0
        %2434 = vmatpush1.msra.mxu0 0.0
        %2435 = vmatprep.subr.mxu0 0.0
        %2436 = vmatpush1.msra.mxu0 0.0
        %2437 = vmatprep.subr.mxu0 0.0
        %2438 = vmatpush1.msra.mxu0 0.0
        %2439 = vmatprep.subr.mxu0 0.0
        %2440 = vmatpush1.msra.mxu0 0.0
        %2441 = vmatprep.subr.mxu0 0.0
        %2442 = vmatpush1.msra.mxu0 0.0
        %2443 = vmatprep.subr.mxu0 0.0
        %2444 = vmatpush1.msra.mxu0 0.0
        %2445 = vmatprep.subr.mxu0 0.0
        %2446 = vmatpush1.msra.mxu0 %v1154
        %2447 = vmatprep.subr.mxu0 0.0
        %2448 = vmatpush1.msra.mxu0 %v1153
        %2449 = vmatprep.subr.mxu0 0.0
        %2450 = vmatpush1.msra.mxu0 %v1152
        %2451 = vmatprep.subr.mxu0 0.0
        %2452 = vmatpush1.msra.mxu0 %v1151
        %2453 = vmatprep.subr.mxu0 0.0
        %2454 = vmatpush1.msra.mxu0 %v1150
        %2455 = vmatprep.subr.mxu0 0.0
        %2456 = vmatpush1.msra.mxu0 %v1149
        %2457 = vmatprep.subr.mxu0 0.0
        %2458 = vmatpush1.msra.mxu0 %v1148
        %2459 = vmatprep.subr.mxu0 0.0
        %2460 = vmatpush1.msra.mxu0 %v1147
        %2461 = vmatprep.subr.mxu0 0.0
        %2462 = vmatpush2.msra.mxu0 0.0
        %2463 = vmatprep.subr.mxu0 0.0
        %2464 = vmatpush2.msra.mxu0 0.0
        %2465 = vmatprep.subr.mxu0 0.0
        %2466 = vmatpush2.msra.mxu0 0.0
        %2467 = vmatprep.subr.mxu0 0.0
        %2468 = vmatpush2.msra.mxu0 0.0
        %2469 = vmatprep.subr.mxu0 0.0
        %2470 = vmatpush2.msra.mxu0 0.0
        %2471 = vmatprep.subr.mxu0 0.0
        %2472 = vmatpush2.msra.mxu0 0.0
        %2473 = vmatprep.subr.mxu0 0.0
        %2474 = vmatpush2.msra.mxu0 0.0
        %2475 = vmatprep.subr.mxu0 0.0
        %2476 = vmatpush2.msra.mxu0 0.0
        %2477 = vmatprep.subr.mxu0 0.0
        %2478 = vmatpush2.msra.mxu0 0.0
        %2479 = vmatprep.subr.mxu0 0.0
        %2480 = vmatpush2.msra.mxu0 0.0
        %2481 = vmatprep.subr.mxu0 0.0
        %2482 = vmatpush2.msra.mxu0 0.0
        %2483 = vmatprep.subr.mxu0 0.0
        %2484 = vmatpush2.msra.mxu0 0.0
        %2485 = vmatprep.subr.mxu0 0.0
        %2486 = vmatpush2.msra.mxu0 0.0
        %2487 = vmatprep.subr.mxu0 0.0
        %2488 = vmatpush2.msra.mxu0 0.0
        %2489 = vmatprep.subr.mxu0 0.0
        %2490 = vmatpush2.msra.mxu0 0.0
        %2491 = vmatprep.subr.mxu0 0.0
        %2492 = vmatpush2.msra.mxu0 0.0
        %2493 = vmatprep.mubr.f32.mxu0 0.0
        %2494 = vmatmul.mubr.f32.gmra.mxu0 %v2427
        %v2495 = vpop.f32.mrf.mxu0
        %v2496 = vadd.f32 %v2423, %v2495
        %v2497 = vpop.f32.mrf.mxu0
        %2498 = vdwg.mxu0
        %v2499 = vadd.f32 %v1120, %v2496
        %v2500 = vld [vmem:[#allocation16] sm:$0x1]
        %v2501 = vld [vmem:[#allocation18] sm:$0x1]
        %v2502 = vsel %vm1155, %v2499, 0.0
        %2503 = vadd.xlane.f32.xlu0 %v2502
        %v2504 = vpop.xlane.xlu0 %2503
        %v2505 = vrcp.pop 32.0
        %v2506 = vmul.f32 %v2504, %v2505
        %v2507 = vsub.f32 %v2499, %v2506
        %v2508 = vmul.f32 %v2507, %v2507
        %v2509 = vsel %vm1155, %v2508, 0.0
        %2510 = vadd.xlane.f32.xlu0 %v2509
        %v2511 = vpop.xlane.xlu0 %2510
        %v2512 = vmul.f32 %v2511, %v2505
        %v2513 = vadd.f32 %v2512, 1e-05
        %v2514 = vrsqrt.pop %v2513
        %v2515 = vmul.f32 %v2507, %v2514
        %v2517 = vlaneseq
        %v2518 = vshrl.u32 %v2517, 7
        %v2519 = vsub.s32 0, %v2518
        %v2520 = vrot.slane %v2500, %v2519
        %v2522 = vmul.f32 %v2515, %v2520
        %v2524 = vlaneseq
        %v2525 = vshrl.u32 %v2524, 7
        %v2526 = vsub.s32 0, %v2525
        %v2527 = vrot.slane %v2501, %v2526
        %v2529 = vadd.f32 %v2522, %v2527
        %v2530 = vld [vmem:[%s20] sm:$0xff]
        %v2531 = vld [vmem:[%s20 + $0x8] sm:$0xff]
        %v2532 = vld [vmem:[%s20 + $0x10] sm:$0xff]
        %v2533 = vld [vmem:[%s20 + $0x18] sm:$0xff]
        %v2534 = vld [vmem:[#allocation19] sm:$0x1]
        %v2536 = vlaneseq
        %v2537 = vshrl.u32 %v2536, 7
        %v2538 = vsub.s32 0, %v2537
        %v2539 = vrot.slane %v2534, %v2538
        %v2542 = vsel %vm1155, %v2529, 0
        %2544 = vmatprep.subr.mxu0 0.0
        %2545 = vmatpush1.msra.mxu0 0.0
        %2546 = vmatprep.subr.mxu0 0.0
        %2547 = vmatpush1.msra.mxu0 0.0
        %2548 = vmatprep.subr.mxu0 0.0
        %2549 = vmatpush1.msra.mxu0 0.0
        %2550 = vmatprep.subr.mxu0 0.0
        %2551 = vmatpush1.msra.mxu0 0.0
        %2552 = vmatprep.subr.mxu0 0.0
        %2553 = vmatpush1.msra.mxu0 0.0
        %2554 = vmatprep.subr.mxu0 0.0
        %2555 = vmatpush1.msra.mxu0 0.0
        %2556 = vmatprep.subr.mxu0 0.0
        %2557 = vmatpush1.msra.mxu0 0.0
        %2558 = vmatprep.subr.mxu0 0.0
        %2559 = vmatpush1.msra.mxu0 0.0
        %2560 = vmatprep.subr.mxu0 0.0
        %2561 = vmatpush1.msra.mxu0 0.0
        %2562 = vmatprep.subr.mxu0 0.0
        %2563 = vmatpush1.msra.mxu0 0.0
        %2564 = vmatprep.subr.mxu0 0.0
        %2565 = vmatpush1.msra.mxu0 0.0
        %2566 = vmatprep.subr.mxu0 0.0
        %2567 = vmatpush1.msra.mxu0 0.0
        %2568 = vmatprep.subr.mxu0 0.0
        %2569 = vmatpush1.msra.mxu0 %v2533
        %2570 = vmatprep.subr.mxu0 0.0
        %2571 = vmatpush1.msra.mxu0 %v2532
        %2572 = vmatprep.subr.mxu0 0.0
        %2573 = vmatpush1.msra.mxu0 %v2531
        %2574 = vmatprep.subr.mxu0 0.0
        %2575 = vmatpush1.msra.mxu0 %v2530
        %2576 = vmatprep.subr.mxu0 0.0
        %2577 = vmatpush2.msra.mxu0 0.0
        %2578 = vmatprep.subr.mxu0 0.0
        %2579 = vmatpush2.msra.mxu0 0.0
        %2580 = vmatprep.subr.mxu0 0.0
        %2581 = vmatpush2.msra.mxu0 0.0
        %2582 = vmatprep.subr.mxu0 0.0
        %2583 = vmatpush2.msra.mxu0 0.0
        %2584 = vmatprep.subr.mxu0 0.0
        %2585 = vmatpush2.msra.mxu0 0.0
        %2586 = vmatprep.subr.mxu0 0.0
        %2587 = vmatpush2.msra.mxu0 0.0
        %2588 = vmatprep.subr.mxu0 0.0
        %2589 = vmatpush2.msra.mxu0 0.0
        %2590 = vmatprep.subr.mxu0 0.0
        %2591 = vmatpush2.msra.mxu0 0.0
        %2592 = vmatprep.subr.mxu0 0.0
        %2593 = vmatpush2.msra.mxu0 0.0
        %2594 = vmatprep.subr.mxu0 0.0
        %2595 = vmatpush2.msra.mxu0 0.0
        %2596 = vmatprep.subr.mxu0 0.0
        %2597 = vmatpush2.msra.mxu0 0.0
        %2598 = vmatprep.subr.mxu0 0.0
        %2599 = vmatpush2.msra.mxu0 0.0
        %2600 = vmatprep.subr.mxu0 0.0
        %2601 = vmatpush2.msra.mxu0 0.0
        %2602 = vmatprep.subr.mxu0 0.0
        %2603 = vmatpush2.msra.mxu0 0.0
        %2604 = vmatprep.subr.mxu0 0.0
        %2605 = vmatpush2.msra.mxu0 0.0
        %2606 = vmatprep.subr.mxu0 0.0
        %2607 = vmatpush2.msra.mxu0 0.0
        %2608 = vmatprep.mubr.f32.mxu0 0.0
        %2609 = vmatmul.mubr.f32.gmra.mxu0 %v2542
        %v2610 = vpop.f32.mrf.mxu0
        %v2611 = vadd.f32 %v2539, %v2610
        %v2612 = vpop.f32.mrf.mxu0
        %2613 = vdwg.mxu0
        %v2614 = vmax.f32 %v2611, 0.0
        %v2615 = vld [vmem:[%s22] sm:$0xff]
        %v2616 = vld [vmem:[%s22 + $0x8] sm:$0xff]
        %v2617 = vld [vmem:[%s22 + $0x10] sm:$0xff]
        %v2618 = vld [vmem:[%s22 + $0x18] sm:$0xff]
        %v2619 = vld [vmem:[%s22 + $0x20] sm:$0xff]
        %v2620 = vld [vmem:[%s22 + $0x28] sm:$0xff]
        %v2621 = vld [vmem:[%s22 + $0x30] sm:$0xff]
        %v2622 = vld [vmem:[%s22 + $0x38] sm:$0xff]
        %v2623 = vld [vmem:[#allocation21] sm:$0x1]
        %v2625 = vlaneseq
        %v2626 = vshrl.u32 %v2625, 7
        %v2627 = vsub.s32 0, %v2626
        %v2628 = vrot.slane %v2623, %v2627
        %v2631 = vsel %vm1279, %v2614, 0
        %2633 = vmatprep.subr.mxu0 0.0
        %2634 = vmatpush1.msra.mxu0 0.0
        %2635 = vmatprep.subr.mxu0 0.0
        %2636 = vmatpush1.msra.mxu0 0.0
        %2637 = vmatprep.subr.mxu0 0.0
        %2638 = vmatpush1.msra.mxu0 0.0
        %2639 = vmatprep.subr.mxu0 0.0
        %2640 = vmatpush1.msra.mxu0 0.0
        %2641 = vmatprep.subr.mxu0 0.0
        %2642 = vmatpush1.msra.mxu0 0.0
        %2643 = vmatprep.subr.mxu0 0.0
        %2644 = vmatpush1.msra.mxu0 0.0
        %2645 = vmatprep.subr.mxu0 0.0
        %2646 = vmatpush1.msra.mxu0 0.0
        %2647 = vmatprep.subr.mxu0 0.0
        %2648 = vmatpush1.msra.mxu0 0.0
        %2649 = vmatprep.subr.mxu0 0.0
        %2650 = vmatpush1.msra.mxu0 %v2622
        %2651 = vmatprep.subr.mxu0 0.0
        %2652 = vmatpush1.msra.mxu0 %v2621
        %2653 = vmatprep.subr.mxu0 0.0
        %2654 = vmatpush1.msra.mxu0 %v2620
        %2655 = vmatprep.subr.mxu0 0.0
        %2656 = vmatpush1.msra.mxu0 %v2619
        %2657 = vmatprep.subr.mxu0 0.0
        %2658 = vmatpush1.msra.mxu0 %v2618
        %2659 = vmatprep.subr.mxu0 0.0
        %2660 = vmatpush1.msra.mxu0 %v2617
        %2661 = vmatprep.subr.mxu0 0.0
        %2662 = vmatpush1.msra.mxu0 %v2616
        %2663 = vmatprep.subr.mxu0 0.0
        %2664 = vmatpush1.msra.mxu0 %v2615
        %2665 = vmatprep.subr.mxu0 0.0
        %2666 = vmatpush2.msra.mxu0 0.0
        %2667 = vmatprep.subr.mxu0 0.0
        %2668 = vmatpush2.msra.mxu0 0.0
        %2669 = vmatprep.subr.mxu0 0.0
        %2670 = vmatpush2.msra.mxu0 0.0
        %2671 = vmatprep.subr.mxu0 0.0
        %2672 = vmatpush2.msra.mxu0 0.0
        %2673 = vmatprep.subr.mxu0 0.0
        %2674 = vmatpush2.msra.mxu0 0.0
        %2675 = vmatprep.subr.mxu0 0.0
        %2676 = vmatpush2.msra.mxu0 0.0
        %2677 = vmatprep.subr.mxu0 0.0
        %2678 = vmatpush2.msra.mxu0 0.0
        %2679 = vmatprep.subr.mxu0 0.0
        %2680 = vmatpush2.msra.mxu0 0.0
        %2681 = vmatprep.subr.mxu0 0.0
        %2682 = vmatpush2.msra.mxu0 0.0
        %2683 = vmatprep.subr.mxu0 0.0
        %2684 = vmatpush2.msra.mxu0 0.0
        %2685 = vmatprep.subr.mxu0 0.0
        %2686 = vmatpush2.msra.mxu0 0.0
        %2687 = vmatprep.subr.mxu0 0.0
        %2688 = vmatpush2.msra.mxu0 0.0
        %2689 = vmatprep.subr.mxu0 0.0
        %2690 = vmatpush2.msra.mxu0 0.0
        %2691 = vmatprep.subr.mxu0 0.0
        %2692 = vmatpush2.msra.mxu0 0.0
        %2693 = vmatprep.subr.mxu0 0.0
        %2694 = vmatpush2.msra.mxu0 0.0
        %2695 = vmatprep.subr.mxu0 0.0
        %2696 = vmatpush2.msra.mxu0 0.0
        %2697 = vmatprep.mubr.f32.mxu0 0.0
        %2698 = vmatmul.mubr.f32.gmra.mxu0 %v2631
        %v2699 = vpop.f32.mrf.mxu0
        %v2700 = vadd.f32 %v2628, %v2699
        %v2701 = vpop.f32.mrf.mxu0
        %2702 = vdwg.mxu0
        %v2703 = vadd.f32 %v2529, %v2700
        %v2704 = vld [vmem:[#allocation22] sm:$0x1]
        %v2705 = vld [vmem:[#allocation24] sm:$0x1]
        %v2706 = vsel %vm1155, %v2703, 0.0
        %2707 = vadd.xlane.f32.xlu0 %v2706
        %v2708 = vpop.xlane.xlu0 %2707
        %v2709 = vmul.f32 %v2708, %v2505
        %v2710 = vsub.f32 %v2703, %v2709
        %v2711 = vmul.f32 %v2710, %v2710
        %v2712 = vsel %vm1155, %v2711, 0.0
        %2713 = vadd.xlane.f32.xlu0 %v2712
        %v2714 = vpop.xlane.xlu0 %2713
        %v2715 = vmul.f32 %v2714, %v2505
        %v2716 = vadd.f32 %v2715, 1e-05
        %v2717 = vrsqrt.pop %v2716
        %v2718 = vmul.f32 %v2710, %v2717
        %v2720 = vlaneseq
        %v2721 = vshrl.u32 %v2720, 7
        %v2722 = vsub.s32 0, %v2721
        %v2723 = vrot.slane %v2704, %v2722
        %v2725 = vmul.f32 %v2718, %v2723
        %v2727 = vlaneseq
        %v2728 = vshrl.u32 %v2727, 7
        %v2729 = vsub.s32 0, %v2728
        %v2730 = vrot.slane %v2705, %v2729
        %v2732 = vadd.f32 %v2725, %v2730
        %s2733 = scalar_lea.vmem %s9, 64
        %v2734 = vld [vmem:[%s2733] sm:$0xff]
        %v2735 = vld [vmem:[%s2733 + $0x8] sm:$0xff]
        %v2736 = vld [vmem:[%s2733 + $0x10] sm:$0xff]
        %v2737 = vld [vmem:[%s2733 + $0x18] sm:$0xff]
        %s2738 = scalar_lea.vmem [#allocation9], 8
        %v2739 = vld [vmem:[%s2738] sm:$0xf]
        %s2740 = scalar_lea.vmem [#allocation10], 2
        %v2741 = vld [vmem:[%s2740] sm:$0x1]
        %s2742 = scalar_lea.vmem %s12, 32
        %v2743 = vld [vmem:[%s2742] sm:$0xff]
        %v2744 = vld [vmem:[%s2742 + $0x8] sm:$0xff]
        %s2745 = scalar_lea.vmem %s13, 128
        %v2746 = vld [vmem:[%s2745] sm:$0xff]
        %v2747 = vld [vmem:[%s2745 + $0x8] sm:$0xff]
        %v2748 = vld [vmem:[%s2745 + $0x10] sm:$0xff]
        %v2749 = vld [vmem:[%s2745 + $0x18] sm:$0xff]
        %v2750 = vld [vmem:[%s2745 + $0x20] sm:$0xff]
        %v2751 = vld [vmem:[%s2745 + $0x28] sm:$0xff]
        %v2752 = vld [vmem:[%s2745 + $0x30] sm:$0xff]
        %v2753 = vld [vmem:[%s2745 + $0x38] sm:$0xff]
        %s2754 = scalar_lea.vmem [#allocation12], 2
        %v2755 = vld [vmem:[%s2754] sm:$0x1]
        %s2756 = scalar_lea.vmem [#allocation13], 16
        %v2757 = vld [vmem:[%s2756] sm:$0xff]
        %v2758 = vmul.f32 %v2757, 1.442695
        %v2759 = vpow.pop %v2758
        %v2760 = vsub.f32 0.0, %v2759
        %s2761 = scalar_lea.vmem [#allocation15], 2
        %v2762 = vld [vmem:[%s2761] sm:$0x1]
        %s2763 = scalar_lea.vmem %s17, 128
        %v2764 = vld [vmem:[%s2763] sm:$0xff]
        %v2765 = vld [vmem:[%s2763 + $0x8] sm:$0xff]
        %v2766 = vld [vmem:[%s2763 + $0x10] sm:$0xff]
        %v2767 = vld [vmem:[%s2763 + $0x18] sm:$0xff]
        %v2768 = vld [vmem:[%s2763 + $0x20] sm:$0xff]
        %v2769 = vld [vmem:[%s2763 + $0x28] sm:$0xff]
        %v2770 = vld [vmem:[%s2763 + $0x30] sm:$0xff]
        %v2771 = vld [vmem:[%s2763 + $0x38] sm:$0xff]
        %v2773 = vsel %vm1155, %v2732, 0
        %2775 = vmatprep.subr.mxu0 0.0
        %2776 = vmatpush1.msra.mxu0 0.0
        %2777 = vmatprep.subr.mxu0 0.0
        %2778 = vmatpush1.msra.mxu0 0.0
        %2779 = vmatprep.subr.mxu0 0.0
        %2780 = vmatpush1.msra.mxu0 0.0
        %2781 = vmatprep.subr.mxu0 0.0
        %2782 = vmatpush1.msra.mxu0 0.0
        %2783 = vmatprep.subr.mxu0 0.0
        %2784 = vmatpush1.msra.mxu0 0.0
        %2785 = vmatprep.subr.mxu0 0.0
        %2786 = vmatpush1.msra.mxu0 0.0
        %2787 = vmatprep.subr.mxu0 0.0
        %2788 = vmatpush1.msra.mxu0 0.0
        %2789 = vmatprep.subr.mxu0 0.0
        %2790 = vmatpush1.msra.mxu0 0.0
        %2791 = vmatprep.subr.mxu0 0.0
        %2792 = vmatpush1.msra.mxu0 0.0
        %2793 = vmatprep.subr.mxu0 0.0
        %2794 = vmatpush1.msra.mxu0 0.0
        %2795 = vmatprep.subr.mxu0 0.0
        %2796 = vmatpush1.msra.mxu0 0.0
        %2797 = vmatprep.subr.mxu0 0.0
        %2798 = vmatpush1.msra.mxu0 0.0
        %2799 = vmatprep.subr.mxu0 0.0
        %2800 = vmatpush1.msra.mxu0 %v2737
        %2801 = vmatprep.subr.mxu0 0.0
        %2802 = vmatpush1.msra.mxu0 %v2736
        %2803 = vmatprep.subr.mxu0 0.0
        %2804 = vmatpush1.msra.mxu0 %v2735
        %2805 = vmatprep.subr.mxu0 0.0
        %2806 = vmatpush1.msra.mxu0 %v2734
        %2807 = vmatprep.subr.mxu0 0.0
        %2808 = vmatpush2.msra.mxu0 0.0
        %2809 = vmatprep.subr.mxu0 0.0
        %2810 = vmatpush2.msra.mxu0 0.0
        %2811 = vmatprep.subr.mxu0 0.0
        %2812 = vmatpush2.msra.mxu0 0.0
        %2813 = vmatprep.subr.mxu0 0.0
        %2814 = vmatpush2.msra.mxu0 0.0
        %2815 = vmatprep.subr.mxu0 0.0
        %2816 = vmatpush2.msra.mxu0 0.0
        %2817 = vmatprep.subr.mxu0 0.0
        %2818 = vmatpush2.msra.mxu0 0.0
        %2819 = vmatprep.subr.mxu0 0.0
        %2820 = vmatpush2.msra.mxu0 0.0
        %2821 = vmatprep.subr.mxu0 0.0
        %2822 = vmatpush2.msra.mxu0 0.0
        %2823 = vmatprep.subr.mxu0 0.0
        %2824 = vmatpush2.msra.mxu0 0.0
        %2825 = vmatprep.subr.mxu0 0.0
        %2826 = vmatpush2.msra.mxu0 0.0
        %2827 = vmatprep.subr.mxu0 0.0
        %2828 = vmatpush2.msra.mxu0 0.0
        %2829 = vmatprep.subr.mxu0 0.0
        %2830 = vmatpush2.msra.mxu0 0.0
        %2831 = vmatprep.subr.mxu0 0.0
        %2832 = vmatpush2.msra.mxu0 0.0
        %2833 = vmatprep.subr.mxu0 0.0
        %2834 = vmatpush2.msra.mxu0 0.0
        %2835 = vmatprep.subr.mxu0 0.0
        %2836 = vmatpush2.msra.mxu0 0.0
        %2837 = vmatprep.subr.mxu0 0.0
        %2838 = vmatpush2.msra.mxu0 0.0
        %2839 = vmatprep.mubr.f32.mxu0 0.0
        %2840 = vmatmul.mubr.f32.gmra.mxu0 %v2773
        %v2841 = vpop.f32.mrf.mxu0
        %v2842 = vadd.f32 0.0, %v2841
        %v2843 = vpop.f32.mrf.mxu0
        %2844 = vdwg.mxu0
        %v2845 = vlaneseq
        %v2846 = vshrl.u32 %v2845, 7
        %v2847 = vsub.s32 3, %v2846
        %v2848 = vrot.slane %v2739, %v2847
        %v2849 = vmul.f32 %v2848, %v2842
        %v2851 = vrot.slane %v2842, 7
        %v2853 = vsel %vm1237, 0.0, %v2851
        %v2854 = vlaneseq
        %v2855 = vshrl.u32 %v2854, 7
        %v2856 = vsub.s32 2, %v2855
        %v2857 = vrot.slane %v2739, %v2856
        %v2858 = vmul.f32 %v2857, %v2853
        %v2859 = vadd.f32 %v2849, %v2858
        %v2860 = vrot.slane %v2842, 6
        %v2862 = vsel %vm1247, 0.0, %v2860
        %v2863 = vlaneseq
        %v2864 = vshrl.u32 %v2863, 7
        %v2865 = vsub.s32 1, %v2864
        %v2866 = vrot.slane %v2739, %v2865
        %v2867 = vmul.f32 %v2866, %v2862
        %v2868 = vadd.f32 %v2859, %v2867
        %v2869 = vrot.slane %v2842, 5
        %v2871 = vsel %vm1257, 0.0, %v2869
        %v2872 = vlaneseq
        %v2873 = vshrl.u32 %v2872, 7
        %v2874 = vsub.s32 0, %v2873
        %v2875 = vrot.slane %v2739, %v2874
        %v2876 = vmul.f32 %v2875, %v2871
        %v2877 = vadd.f32 %v2868, %v2876
        %v2879 = vlaneseq
        %v2880 = vshrl.u32 %v2879, 7
        %v2881 = vsub.s32 0, %v2880
        %v2882 = vrot.slane %v2741, %v2881
        %v2884 = vadd.f32 %v2877, %v2882
        %v2885 = vxor.u32 %v2884, 2147483648
        %v2886 = vmul.f32 %v2885, 1.442695
        %v2887 = vpow.pop %v2886
        %v2888 = vadd.f32 %v2887, 1.0
        %v2889 = vrcp.pop %v2888
        %v2890 = vmul.f32 1.0, %v2889
        %v2891 = vmul.f32 %v2884, %v2890
        %v2893 = vsel %vm1279, %v2743, 0
        %v2896 = vsel %vm1279, %v2744, 0
        %v2899 = vsel %vm1279, %v2891, 0
        %2901 = vmatprep.subr.mxu0 0.0
        %2902 = vmatpush1.xpose.msra.mxu0 0.0
        %2903 = vmatprep.subr.mxu0 0.0
        %2904 = vmatpush1.xpose.msra.mxu0 0.0
        %2905 = vmatprep.subr.mxu0 0.0
        %2906 = vmatpush1.xpose.msra.mxu0 0.0
        %2907 = vmatprep.subr.mxu0 0.0
        %2908 = vmatpush1.xpose.msra.mxu0 0.0
        %2909 = vmatprep.subr.mxu0 0.0
        %2910 = vmatpush1.xpose.msra.mxu0 0.0
        %2911 = vmatprep.subr.mxu0 0.0
        %2912 = vmatpush1.xpose.msra.mxu0 0.0
        %2913 = vmatprep.subr.mxu0 0.0
        %2914 = vmatpush1.xpose.msra.mxu0 0.0
        %2915 = vmatprep.subr.mxu0 0.0
        %2916 = vmatpush1.xpose.msra.mxu0 0.0
        %2917 = vmatprep.subr.mxu0 0.0
        %2918 = vmatpush1.xpose.msra.mxu0 0.0
        %2919 = vmatprep.subr.mxu0 0.0
        %2920 = vmatpush1.xpose.msra.mxu0 0.0
        %2921 = vmatprep.subr.mxu0 0.0
        %2922 = vmatpush1.xpose.msra.mxu0 0.0
        %2923 = vmatprep.subr.mxu0 0.0
        %2924 = vmatpush1.xpose.msra.mxu0 0.0
        %2925 = vmatprep.subr.mxu0 0.0
        %2926 = vmatpush1.xpose.msra.mxu0 0.0
        %2927 = vmatprep.subr.mxu0 0.0
        %2928 = vmatpush1.xpose.msra.mxu0 0.0
        %2929 = vmatprep.subr.mxu0 0.0
        %2930 = vmatpush1.xpose.msra.mxu0 0.0
        %2931 = vmatprep.subr.mxu0 0.0
        %2932 = vmatpush1.xpose.msra.mxu0 %v2899
        %2933 = vmatprep.subr.mxu0 0.0
        %2934 = vmatpush2.xpose.msra.mxu0 0.0
        %2935 = vmatprep.subr.mxu0 0.0
        %2936 = vmatpush2.xpose.msra.mxu0 0.0
        %2937 = vmatprep.subr.mxu0 0.0
        %2938 = vmatpush2.xpose.msra.mxu0 0.0
        %2939 = vmatprep.subr.mxu0 0.0
        %2940 = vmatpush2.xpose.msra.mxu0 0.0
        %2941 = vmatprep.subr.mxu0 0.0
        %2942 = vmatpush2.xpose.msra.mxu0 0.0
        %2943 = vmatprep.subr.mxu0 0.0
        %2944 = vmatpush2.xpose.msra.mxu0 0.0
        %2945 = vmatprep.subr.mxu0 0.0
        %2946 = vmatpush2.xpose.msra.mxu0 0.0
        %2947 = vmatprep.subr.mxu0 0.0
        %2948 = vmatpush2.xpose.msra.mxu0 0.0
        %2949 = vmatprep.subr.mxu0 0.0
        %2950 = vmatpush2.xpose.msra.mxu0 0.0
        %2951 = vmatprep.subr.mxu0 0.0
        %2952 = vmatpush2.xpose.msra.mxu0 0.0
        %2953 = vmatprep.subr.mxu0 0.0
        %2954 = vmatpush2.xpose.msra.mxu0 0.0
        %2955 = vmatprep.subr.mxu0 0.0
        %2956 = vmatpush2.xpose.msra.mxu0 0.0
        %2957 = vmatprep.subr.mxu0 0.0
        %2958 = vmatpush2.xpose.msra.mxu0 0.0
        %2959 = vmatprep.subr.mxu0 0.0
        %2960 = vmatpush2.xpose.msra.mxu0 0.0
        %2961 = vmatprep.subr.mxu0 0.0
        %2962 = vmatpush2.xpose.msra.mxu0 0.0
        %2963 = vmatprep.subr.mxu0 0.0
        %2964 = vmatpush2.xpose.msra.mxu0 0.0
        %2965 = vmatprep.mubr.f32.mxu0 0.0
        %2966 = vmatmul.mubr.f32.gmra.mxu0 %v2893
        %v2967 = vpop.f32.mrf.mxu0
        %v2968 = vadd.f32 0.0, %v2967
        %v2969 = vpop.f32.mrf.mxu0
        %2970 = vmatprep.mubr.f32.mxu0 0.0
        %2971 = vmatmul.mubr.f32.gmra.mxu0 %v2896
        %v2972 = vpop.f32.mrf.mxu0
        %v2973 = vadd.f32 0.0, %v2972
        %v2974 = vpop.f32.mrf.mxu0
        %2975 = vdwg.mxu0
        %v2977 = vlaneseq
        %v2978 = vshrl.u32 %v2977, 7
        %v2979 = vsub.s32 0, %v2978
        %v2980 = vrot.slane %v2755, %v2979
        %2982 = vmatprep.subr.mxu0 0.0
        %2983 = vmatpush1.msra.mxu0 0.0
        %2984 = vmatprep.subr.mxu0 0.0
        %2985 = vmatpush1.msra.mxu0 0.0
        %2986 = vmatprep.subr.mxu0 0.0
        %2987 = vmatpush1.msra.mxu0 0.0
        %2988 = vmatprep.subr.mxu0 0.0
        %2989 = vmatpush1.msra.mxu0 0.0
        %2990 = vmatprep.subr.mxu0 0.0
        %2991 = vmatpush1.msra.mxu0 0.0
        %2992 = vmatprep.subr.mxu0 0.0
        %2993 = vmatpush1.msra.mxu0 0.0
        %2994 = vmatprep.subr.mxu0 0.0
        %2995 = vmatpush1.msra.mxu0 0.0
        %2996 = vmatprep.subr.mxu0 0.0
        %2997 = vmatpush1.msra.mxu0 0.0
        %2998 = vmatprep.subr.mxu0 0.0
        %2999 = vmatpush1.msra.mxu0 %v2753
        %3000 = vmatprep.subr.mxu0 0.0
        %3001 = vmatpush1.msra.mxu0 %v2752
        %3002 = vmatprep.subr.mxu0 0.0
        %3003 = vmatpush1.msra.mxu0 %v2751
        %3004 = vmatprep.subr.mxu0 0.0
        %3005 = vmatpush1.msra.mxu0 %v2750
        %3006 = vmatprep.subr.mxu0 0.0
        %3007 = vmatpush1.msra.mxu0 %v2749
        %3008 = vmatprep.subr.mxu0 0.0
        %3009 = vmatpush1.msra.mxu0 %v2748
        %3010 = vmatprep.subr.mxu0 0.0
        %3011 = vmatpush1.msra.mxu0 %v2747
        %3012 = vmatprep.subr.mxu0 0.0
        %3013 = vmatpush1.msra.mxu0 %v2746
        %3014 = vmatprep.subr.mxu0 0.0
        %3015 = vmatpush2.msra.mxu0 0.0
        %3016 = vmatprep.subr.mxu0 0.0
        %3017 = vmatpush2.msra.mxu0 0.0
        %3018 = vmatprep.subr.mxu0 0.0
        %3019 = vmatpush2.msra.mxu0 0.0
        %3020 = vmatprep.subr.mxu0 0.0
        %3021 = vmatpush2.msra.mxu0 0.0
        %3022 = vmatprep.subr.mxu0 0.0
        %3023 = vmatpush2.msra.mxu0 0.0
        %3024 = vmatprep.subr.mxu0 0.0
        %3025 = vmatpush2.msra.mxu0 0.0
        %3026 = vmatprep.subr.mxu0 0.0
        %3027 = vmatpush2.msra.mxu0 0.0
        %3028 = vmatprep.subr.mxu0 0.0
        %3029 = vmatpush2.msra.mxu0 0.0
        %3030 = vmatprep.subr.mxu0 0.0
        %3031 = vmatpush2.msra.mxu0 0.0
        %3032 = vmatprep.subr.mxu0 0.0
        %3033 = vmatpush2.msra.mxu0 0.0
        %3034 = vmatprep.subr.mxu0 0.0
        %3035 = vmatpush2.msra.mxu0 0.0
        %3036 = vmatprep.subr.mxu0 0.0
        %3037 = vmatpush2.msra.mxu0 0.0
        %3038 = vmatprep.subr.mxu0 0.0
        %3039 = vmatpush2.msra.mxu0 0.0
        %3040 = vmatprep.subr.mxu0 0.0
        %3041 = vmatpush2.msra.mxu0 0.0
        %3042 = vmatprep.subr.mxu0 0.0
        %3043 = vmatpush2.msra.mxu0 0.0
        %3044 = vmatprep.subr.mxu0 0.0
        %3045 = vmatpush2.msra.mxu0 0.0
        %3046 = vmatprep.mubr.f32.mxu0 0.0
        %3047 = vmatmul.mubr.f32.gmra.mxu0 %v2899
        %v3048 = vpop.f32.mrf.mxu0
        %v3049 = vadd.f32 %v2980, %v3048
        %v3050 = vpop.f32.mrf.mxu0
        %3051 = vdwg.mxu0
        %v3052 = vmax.f32 %v3049, 0.0
        %v3053 = vand.u32 2147483647, %v3049
        %v3054 = vsub.f32 0.0, %v3053
        %v3055 = vmul.f32 %v3054, 1.442695
        %v3056 = vpow.pop %v3055
        %v3057 = vadd.f32 %v3056, 1.0
        %v3058 = vlog2.pop %v3057
        %v3059 = vmul.f32 %v3058, 0.6931472
        %v3060 = vmul.f32 -0.5, %v3056
        %v3061 = vadd.f32 %v3060, 1.0
        %v3062 = vmul.f32 %v3061, %v3056
        %v3063 = vand.u32 2147483647, %v3056
        %vm3064 = vcmp.lt.f32.partialorder %v3063, 0.0004427343
        %v3065 = vsel %vm3064, %v3062, %v3059
        %v3066 = vadd.f32 %v3052, %v3065
        %v3067 = vmul.f32 %v3066, %v2891
        %v3068 = vlaneseq
        %v3069 = vshrl.u32 %v3068, 7
        %v3070 = vsub.s32 0, %v3069
        %v3071 = vrot.slane %v3066, %v3070
        %v3072 = vmul.f32 %v3071, %v2760
        %v3073 = vmul.f32 %v3072, 1.442695
        %v3074 = vpow.pop %v3073
        %v3075 = vlaneseq
        %v3076 = vshrl.u32 %v3075, 7
        %v3077 = vsub.s32 1, %v3076
        %v3078 = vrot.slane %v3066, %v3077
        %v3079 = vmul.f32 %v3078, %v2760
        %v3080 = vmul.f32 %v3079, 1.442695
        %v3081 = vpow.pop %v3080
        %v3082 = vlaneseq
        %v3083 = vshrl.u32 %v3082, 7
        %v3084 = vsub.s32 2, %v3083
        %v3085 = vrot.slane %v3066, %v3084
        %v3086 = vmul.f32 %v3085, %v2760
        %v3087 = vmul.f32 %v3086, 1.442695
        %v3088 = vpow.pop %v3087
        %v3089 = vlaneseq
        %v3090 = vshrl.u32 %v3089, 7
        %v3091 = vsub.s32 3, %v3090
        %v3092 = vrot.slane %v3066, %v3091
        %v3093 = vmul.f32 %v3092, %v2760
        %v3094 = vmul.f32 %v3093, 1.442695
        %v3095 = vpow.pop %v3094
        %v3096 = vlaneseq
        %v3097 = vshrl.u32 %v3096, 7
        %v3098 = vsub.s32 4, %v3097
        %v3099 = vrot.slane %v3066, %v3098
        %v3100 = vmul.f32 %v3099, %v2760
        %v3101 = vmul.f32 %v3100, 1.442695
        %v3102 = vpow.pop %v3101
        %v3103 = vlaneseq
        %v3104 = vshrl.u32 %v3103, 7
        %v3105 = vsub.s32 5, %v3104
        %v3106 = vrot.slane %v3066, %v3105
        %v3107 = vmul.f32 %v3106, %v2760
        %v3108 = vmul.f32 %v3107, 1.442695
        %v3109 = vpow.pop %v3108
        %v3110 = vlaneseq
        %v3111 = vshrl.u32 %v3110, 7
        %v3112 = vsub.s32 6, %v3111
        %v3113 = vrot.slane %v3066, %v3112
        %v3114 = vmul.f32 %v3113, %v2760
        %v3115 = vmul.f32 %v3114, 1.442695
        %v3116 = vpow.pop %v3115
        %v3117 = vlaneseq
        %v3118 = vshrl.u32 %v3117, 7
        %v3119 = vsub.s32 7, %v3118
        %v3120 = vrot.slane %v3066, %v3119
        %v3121 = vmul.f32 %v3120, %v2760
        %v3122 = vmul.f32 %v3121, 1.442695
        %v3123 = vpow.pop %v3122
        %v3124 = vlaneseq
        %v3125 = vshrl.u32 %v3124, 7
        %v3126 = vsub.s32 0, %v3125
        %v3127 = vrot.slane %v3067, %v3126
        %3129 = vset.pattern.permute.xlu0 0
        %3130 = vperm.xlu0 %3129, %v2968
        %v3131 = vpop.permute.xlu0 %3130
        %v3133 = vmul.f32 %v3127, %v3131
        %v3134 = vlaneseq
        %v3135 = vshrl.u32 %v3134, 7
        %v3136 = vsub.s32 1, %v3135
        %v3137 = vrot.slane %v3067, %v3136
        %3138 = vset.pattern.permute.xlu0 1
        %3139 = vperm.xlu0 %3138, %v2968
        %v3140 = vpop.permute.xlu0 %3139
        %v3142 = vmul.f32 %v3137, %v3140
        %v3143 = vlaneseq
        %v3144 = vshrl.u32 %v3143, 7
        %v3145 = vsub.s32 2, %v3144
        %v3146 = vrot.slane %v3067, %v3145
        %3147 = vset.pattern.permute.xlu0 2
        %3148 = vperm.xlu0 %3147, %v2968
        %v3149 = vpop.permute.xlu0 %3148
        %v3151 = vmul.f32 %v3146, %v3149
        %v3152 = vlaneseq
        %v3153 = vshrl.u32 %v3152, 7
        %v3154 = vsub.s32 3, %v3153
        %v3155 = vrot.slane %v3067, %v3154
        %3156 = vset.pattern.permute.xlu0 3
        %3157 = vperm.xlu0 %3156, %v2968
        %v3158 = vpop.permute.xlu0 %3157
        %v3160 = vmul.f32 %v3155, %v3158
        %v3161 = vlaneseq
        %v3162 = vshrl.u32 %v3161, 7
        %v3163 = vsub.s32 4, %v3162
        %v3164 = vrot.slane %v3067, %v3163
        %3165 = vset.pattern.permute.xlu0 4
        %3166 = vperm.xlu0 %3165, %v2968
        %v3167 = vpop.permute.xlu0 %3166
        %v3169 = vmul.f32 %v3164, %v3167
        %v3170 = vlaneseq
        %v3171 = vshrl.u32 %v3170, 7
        %v3172 = vsub.s32 5, %v3171
        %v3173 = vrot.slane %v3067, %v3172
        %3174 = vset.pattern.permute.xlu0 5
        %3175 = vperm.xlu0 %3174, %v2968
        %v3176 = vpop.permute.xlu0 %3175
        %v3178 = vmul.f32 %v3173, %v3176
        %v3179 = vlaneseq
        %v3180 = vshrl.u32 %v3179, 7
        %v3181 = vsub.s32 6, %v3180
        %v3182 = vrot.slane %v3067, %v3181
        %3183 = vset.pattern.permute.xlu0 6
        %3184 = vperm.xlu0 %3183, %v2968
        %v3185 = vpop.permute.xlu0 %3184
        %v3187 = vmul.f32 %v3182, %v3185
        %v3188 = vlaneseq
        %v3189 = vshrl.u32 %v3188, 7
        %v3190 = vsub.s32 7, %v3189
        %v3191 = vrot.slane %v3067, %v3190
        %3192 = vset.pattern.permute.xlu0 7
        %3193 = vperm.xlu0 %3192, %v2968
        %v3194 = vpop.permute.xlu0 %3193
        %v3196 = vmul.f32 %v3191, %v3194
        %v3198 = vlaneseq
        %v3199 = vshrl.u32 %v3198, 7
        %v3200 = vsub.s32 0, %v3199
        %v3201 = vrot.slane %v2762, %v3200
        %v3203 = vmul.f32 %v3201, %v2891
        %v3204 = vmul.f32 %v3074, 0.0
        %v3205 = vadd.f32 %v3204, %v3133
        %3207 = vset.pattern.permute.xlu0 0
        %3208 = vperm.xlu0 %3207, %v2973
        %v3209 = vpop.permute.xlu0 %3208
        %v3211 = vmul.f32 %v3205, %v3209
        %v3212 = vsel %vm1279, %v3211, 0.0
        %v3213 = vrot.slane %v3212, 4
        %v3214 = vadd.f32 %v3212, %v3213
        %v3215 = vrot.slane %v3214, 2
        %v3216 = vadd.f32 %v3214, %v3215
        %v3217 = vrot.slane %v3216, 1
        %v3218 = vadd.f32 %v3216, %v3217
        %v3219 = vsel %vm1607, %v3218, 0.0
        %v3220 = vadd.f32 %v3203, %v3219
        %v3221 = vmul.f32 %v3081, %v3205
        %v3222 = vadd.f32 %v3221, %v3142
        %3223 = vset.pattern.permute.xlu0 1
        %3224 = vperm.xlu0 %3223, %v2973
        %v3225 = vpop.permute.xlu0 %3224
        %v3227 = vmul.f32 %v3222, %v3225
        %v3228 = vsel %vm1279, %v3227, 0.0
        %v3229 = vrot.slane %v3228, 4
        %v3230 = vadd.f32 %v3228, %v3229
        %v3231 = vrot.slane %v3230, 2
        %v3232 = vadd.f32 %v3230, %v3231
        %v3233 = vrot.slane %v3232, 1
        %v3234 = vadd.f32 %v3232, %v3233
        %v3235 = vsel %vm1624, %v3234, 0.0
        %v3236 = vadd.f32 %v3220, %v3235
        %v3237 = vmul.f32 %v3088, %v3222
        %v3238 = vadd.f32 %v3237, %v3151
        %3239 = vset.pattern.permute.xlu0 2
        %3240 = vperm.xlu0 %3239, %v2973
        %v3241 = vpop.permute.xlu0 %3240
        %v3243 = vmul.f32 %v3238, %v3241
        %v3244 = vsel %vm1279, %v3243, 0.0
        %v3245 = vrot.slane %v3244, 4
        %v3246 = vadd.f32 %v3244, %v3245
        %v3247 = vrot.slane %v3246, 2
        %v3248 = vadd.f32 %v3246, %v3247
        %v3249 = vrot.slane %v3248, 1
        %v3250 = vadd.f32 %v3248, %v3249
        %v3251 = vsel %vm1641, %v3250, 0.0
        %v3252 = vadd.f32 %v3236, %v3251
        %v3253 = vmul.f32 %v3095, %v3238
        %v3254 = vadd.f32 %v3253, %v3160
        %3255 = vset.pattern.permute.xlu0 3
        %3256 = vperm.xlu0 %3255, %v2973
        %v3257 = vpop.permute.xlu0 %3256
        %v3259 = vmul.f32 %v3254, %v3257
        %v3260 = vsel %vm1279, %v3259, 0.0
        %v3261 = vrot.slane %v3260, 4
        %v3262 = vadd.f32 %v3260, %v3261
        %v3263 = vrot.slane %v3262, 2
        %v3264 = vadd.f32 %v3262, %v3263
        %v3265 = vrot.slane %v3264, 1
        %v3266 = vadd.f32 %v3264, %v3265
        %v3267 = vsel %vm1658, %v3266, 0.0
        %v3268 = vadd.f32 %v3252, %v3267
        %v3269 = vmul.f32 %v3102, %v3254
        %v3270 = vadd.f32 %v3269, %v3169
        %3271 = vset.pattern.permute.xlu0 4
        %3272 = vperm.xlu0 %3271, %v2973
        %v3273 = vpop.permute.xlu0 %3272
        %v3275 = vmul.f32 %v3270, %v3273
        %v3276 = vsel %vm1279, %v3275, 0.0
        %v3277 = vrot.slane %v3276, 4
        %v3278 = vadd.f32 %v3276, %v3277
        %v3279 = vrot.slane %v3278, 2
        %v3280 = vadd.f32 %v3278, %v3279
        %v3281 = vrot.slane %v3280, 1
        %v3282 = vadd.f32 %v3280, %v3281
        %v3283 = vsel %vm1675, %v3282, 0.0
        %v3284 = vadd.f32 %v3268, %v3283
        %v3285 = vmul.f32 %v3109, %v3270
        %v3286 = vadd.f32 %v3285, %v3178
        %3287 = vset.pattern.permute.xlu0 5
        %3288 = vperm.xlu0 %3287, %v2973
        %v3289 = vpop.permute.xlu0 %3288
        %v3291 = vmul.f32 %v3286, %v3289
        %v3292 = vsel %vm1279, %v3291, 0.0
        %v3293 = vrot.slane %v3292, 4
        %v3294 = vadd.f32 %v3292, %v3293
        %v3295 = vrot.slane %v3294, 2
        %v3296 = vadd.f32 %v3294, %v3295
        %v3297 = vrot.slane %v3296, 1
        %v3298 = vadd.f32 %v3296, %v3297
        %v3299 = vsel %vm1692, %v3298, 0.0
        %v3300 = vadd.f32 %v3284, %v3299
        %v3301 = vmul.f32 %v3116, %v3286
        %v3302 = vadd.f32 %v3301, %v3187
        %3303 = vset.pattern.permute.xlu0 6
        %3304 = vperm.xlu0 %3303, %v2973
        %v3305 = vpop.permute.xlu0 %3304
        %v3307 = vmul.f32 %v3302, %v3305
        %v3308 = vsel %vm1279, %v3307, 0.0
        %v3309 = vrot.slane %v3308, 4
        %v3310 = vadd.f32 %v3308, %v3309
        %v3311 = vrot.slane %v3310, 2
        %v3312 = vadd.f32 %v3310, %v3311
        %v3313 = vrot.slane %v3312, 1
        %v3314 = vadd.f32 %v3312, %v3313
        %v3315 = vsel %vm1709, %v3314, 0.0
        %v3316 = vadd.f32 %v3300, %v3315
        %v3317 = vmul.f32 %v3123, %v3302
        %v3318 = vadd.f32 %v3317, %v3196
        %3319 = vset.pattern.permute.xlu0 7
        %3320 = vperm.xlu0 %3319, %v2973
        %v3321 = vpop.permute.xlu0 %3320
        %v3323 = vmul.f32 %v3318, %v3321
        %v3324 = vsel %vm1279, %v3323, 0.0
        %v3325 = vrot.slane %v3324, 4
        %v3326 = vadd.f32 %v3324, %v3325
        %v3327 = vrot.slane %v3326, 2
        %v3328 = vadd.f32 %v3326, %v3327
        %v3329 = vrot.slane %v3328, 1
        %v3330 = vadd.f32 %v3328, %v3329
        %v3331 = vsel %vm1726, %v3330, 0.0
        %v3332 = vadd.f32 %v3316, %v3331
        %v3333 = vxor.u32 %v2842, 2147483648
        %v3334 = vmul.f32 %v3333, 1.442695
        %v3335 = vpow.pop %v3334
        %v3336 = vadd.f32 %v3335, 1.0
        %v3337 = vrcp.pop %v3336
        %v3338 = vmul.f32 1.0, %v3337
        %v3339 = vmul.f32 %v2842, %v3338
        %3341 = vrot.lane.b32.xlu0 %v3339, 64
        %v3342 = vpop.permute.xlu0 %3341
        %v3344 = vmul.f32 %v3332, %v3342
        %s3345 = scalar_lea.vmem %s9, 96
        %v3346 = vld [vmem:[%s3345] sm:$0xff]
        %v3347 = vld [vmem:[%s3345 + $0x8] sm:$0xff]
        %v3348 = vld [vmem:[%s3345 + $0x10] sm:$0xff]
        %v3349 = vld [vmem:[%s3345 + $0x18] sm:$0xff]
        %s3350 = scalar_lea.vmem [#allocation9], 12
        %v3351 = vld [vmem:[%s3350] sm:$0xf]
        %s3352 = scalar_lea.vmem [#allocation10], 3
        %v3353 = vld [vmem:[%s3352] sm:$0x1]
        %s3354 = scalar_lea.vmem %s12, 48
        %v3355 = vld [vmem:[%s3354] sm:$0xff]
        %v3356 = vld [vmem:[%s3354 + $0x8] sm:$0xff]
        %s3357 = scalar_lea.vmem %s13, 192
        %v3358 = vld [vmem:[%s3357] sm:$0xff]
        %v3359 = vld [vmem:[%s3357 + $0x8] sm:$0xff]
        %v3360 = vld [vmem:[%s3357 + $0x10] sm:$0xff]
        %v3361 = vld [vmem:[%s3357 + $0x18] sm:$0xff]
        %v3362 = vld [vmem:[%s3357 + $0x20] sm:$0xff]
        %v3363 = vld [vmem:[%s3357 + $0x28] sm:$0xff]
        %v3364 = vld [vmem:[%s3357 + $0x30] sm:$0xff]
        %v3365 = vld [vmem:[%s3357 + $0x38] sm:$0xff]
        %s3366 = scalar_lea.vmem [#allocation12], 3
        %v3367 = vld [vmem:[%s3366] sm:$0x1]
        %s3368 = scalar_lea.vmem [#allocation13], 24
        %v3369 = vld [vmem:[%s3368] sm:$0xff]
        %v3370 = vmul.f32 %v3369, 1.442695
        %v3371 = vpow.pop %v3370
        %v3372 = vsub.f32 0.0, %v3371
        %s3373 = scalar_lea.vmem [#allocation15], 3
        %v3374 = vld [vmem:[%s3373] sm:$0x1]
        %s3375 = scalar_lea.vmem %s17, 192
        %v3376 = vld [vmem:[%s3375] sm:$0xff]
        %v3377 = vld [vmem:[%s3375 + $0x8] sm:$0xff]
        %v3378 = vld [vmem:[%s3375 + $0x10] sm:$0xff]
        %v3379 = vld [vmem:[%s3375 + $0x18] sm:$0xff]
        %v3380 = vld [vmem:[%s3375 + $0x20] sm:$0xff]
        %v3381 = vld [vmem:[%s3375 + $0x28] sm:$0xff]
        %v3382 = vld [vmem:[%s3375 + $0x30] sm:$0xff]
        %v3383 = vld [vmem:[%s3375 + $0x38] sm:$0xff]
        %3384 = vmatprep.subr.mxu0 0.0
        %3385 = vmatpush1.msra.mxu0 0.0
        %3386 = vmatprep.subr.mxu0 0.0
        %3387 = vmatpush1.msra.mxu0 0.0
        %3388 = vmatprep.subr.mxu0 0.0
        %3389 = vmatpush1.msra.mxu0 0.0
        %3390 = vmatprep.subr.mxu0 0.0
        %3391 = vmatpush1.msra.mxu0 0.0
        %3392 = vmatprep.subr.mxu0 0.0
        %3393 = vmatpush1.msra.mxu0 0.0
        %3394 = vmatprep.subr.mxu0 0.0
        %3395 = vmatpush1.msra.mxu0 0.0
        %3396 = vmatprep.subr.mxu0 0.0
        %3397 = vmatpush1.msra.mxu0 0.0
        %3398 = vmatprep.subr.mxu0 0.0
        %3399 = vmatpush1.msra.mxu0 0.0
        %3400 = vmatprep.subr.mxu0 0.0
        %3401 = vmatpush1.msra.mxu0 0.0
        %3402 = vmatprep.subr.mxu0 0.0
        %3403 = vmatpush1.msra.mxu0 0.0
        %3404 = vmatprep.subr.mxu0 0.0
        %3405 = vmatpush1.msra.mxu0 0.0
        %3406 = vmatprep.subr.mxu0 0.0
        %3407 = vmatpush1.msra.mxu0 0.0
        %3408 = vmatprep.subr.mxu0 0.0
        %3409 = vmatpush1.msra.mxu0 %v3349
        %3410 = vmatprep.subr.mxu0 0.0
        %3411 = vmatpush1.msra.mxu0 %v3348
        %3412 = vmatprep.subr.mxu0 0.0
        %3413 = vmatpush1.msra.mxu0 %v3347
        %3414 = vmatprep.subr.mxu0 0.0
        %3415 = vmatpush1.msra.mxu0 %v3346
        %3416 = vmatprep.subr.mxu0 0.0
        %3417 = vmatpush2.msra.mxu0 0.0
        %3418 = vmatprep.subr.mxu0 0.0
        %3419 = vmatpush2.msra.mxu0 0.0
        %3420 = vmatprep.subr.mxu0 0.0
        %3421 = vmatpush2.msra.mxu0 0.0
        %3422 = vmatprep.subr.mxu0 0.0
        %3423 = vmatpush2.msra.mxu0 0.0
        %3424 = vmatprep.subr.mxu0 0.0
        %3425 = vmatpush2.msra.mxu0 0.0
        %3426 = vmatprep.subr.mxu0 0.0
        %3427 = vmatpush2.msra.mxu0 0.0
        %3428 = vmatprep.subr.mxu0 0.0
        %3429 = vmatpush2.msra.mxu0 0.0
        %3430 = vmatprep.subr.mxu0 0.0
        %3431 = vmatpush2.msra.mxu0 0.0
        %3432 = vmatprep.subr.mxu0 0.0
        %3433 = vmatpush2.msra.mxu0 0.0
        %3434 = vmatprep.subr.mxu0 0.0
        %3435 = vmatpush2.msra.mxu0 0.0
        %3436 = vmatprep.subr.mxu0 0.0
        %3437 = vmatpush2.msra.mxu0 0.0
        %3438 = vmatprep.subr.mxu0 0.0
        %3439 = vmatpush2.msra.mxu0 0.0
        %3440 = vmatprep.subr.mxu0 0.0
        %3441 = vmatpush2.msra.mxu0 0.0
        %3442 = vmatprep.subr.mxu0 0.0
        %3443 = vmatpush2.msra.mxu0 0.0
        %3444 = vmatprep.subr.mxu0 0.0
        %3445 = vmatpush2.msra.mxu0 0.0
        %3446 = vmatprep.subr.mxu0 0.0
        %3447 = vmatpush2.msra.mxu0 0.0
        %3448 = vmatprep.mubr.f32.mxu0 0.0
        %3449 = vmatmul.mubr.f32.gmra.mxu0 %v2773
        %v3450 = vpop.f32.mrf.mxu0
        %v3451 = vadd.f32 0.0, %v3450
        %v3452 = vpop.f32.mrf.mxu0
        %3453 = vdwg.mxu0
        %v3454 = vlaneseq
        %v3455 = vshrl.u32 %v3454, 7
        %v3456 = vsub.s32 3, %v3455
        %v3457 = vrot.slane %v3351, %v3456
        %v3458 = vmul.f32 %v3457, %v3451
        %v3460 = vrot.slane %v3451, 1
        %v3462 = vsel %vm1858, %v3460, 0.0
        %v3463 = vlaneseq
        %v3464 = vshrl.u32 %v3463, 7
        %v3465 = vsub.s32 2, %v3464
        %v3466 = vrot.slane %v3351, %v3465
        %v3467 = vmul.f32 %v3466, %v3462
        %v3468 = vadd.f32 %v3458, %v3467
        %v3469 = vrot.slane %v3451, 2
        %v3471 = vsel %vm1868, %v3469, 0.0
        %v3472 = vlaneseq
        %v3473 = vshrl.u32 %v3472, 7
        %v3474 = vsub.s32 1, %v3473
        %v3475 = vrot.slane %v3351, %v3474
        %v3476 = vmul.f32 %v3475, %v3471
        %v3477 = vadd.f32 %v3468, %v3476
        %v3478 = vrot.slane %v3451, 3
        %v3480 = vsel %vm1878, %v3478, 0.0
        %v3481 = vlaneseq
        %v3482 = vshrl.u32 %v3481, 7
        %v3483 = vsub.s32 0, %v3482
        %v3484 = vrot.slane %v3351, %v3483
        %v3485 = vmul.f32 %v3484, %v3480
        %v3486 = vadd.f32 %v3477, %v3485
        %v3488 = vlaneseq
        %v3489 = vshrl.u32 %v3488, 7
        %v3490 = vsub.s32 0, %v3489
        %v3491 = vrot.slane %v3353, %v3490
        %v3493 = vadd.f32 %v3486, %v3491
        %v3494 = vxor.u32 %v3493, 2147483648
        %v3495 = vmul.f32 %v3494, 1.442695
        %v3496 = vpow.pop %v3495
        %v3497 = vadd.f32 %v3496, 1.0
        %v3498 = vrcp.pop %v3497
        %v3499 = vmul.f32 1.0, %v3498
        %v3500 = vmul.f32 %v3493, %v3499
        %v3502 = vsel %vm1279, %v3355, 0
        %v3505 = vsel %vm1279, %v3356, 0
        %v3508 = vsel %vm1279, %v3500, 0
        %3510 = vmatprep.subr.mxu0 0.0
        %3511 = vmatpush1.xpose.msra.mxu0 0.0
        %3512 = vmatprep.subr.mxu0 0.0
        %3513 = vmatpush1.xpose.msra.mxu0 0.0
        %3514 = vmatprep.subr.mxu0 0.0
        %3515 = vmatpush1.xpose.msra.mxu0 0.0
        %3516 = vmatprep.subr.mxu0 0.0
        %3517 = vmatpush1.xpose.msra.mxu0 0.0
        %3518 = vmatprep.subr.mxu0 0.0
        %3519 = vmatpush1.xpose.msra.mxu0 0.0
        %3520 = vmatprep.subr.mxu0 0.0
        %3521 = vmatpush1.xpose.msra.mxu0 0.0
        %3522 = vmatprep.subr.mxu0 0.0
        %3523 = vmatpush1.xpose.msra.mxu0 0.0
        %3524 = vmatprep.subr.mxu0 0.0
        %3525 = vmatpush1.xpose.msra.mxu0 0.0
        %3526 = vmatprep.subr.mxu0 0.0
        %3527 = vmatpush1.xpose.msra.mxu0 0.0
        %3528 = vmatprep.subr.mxu0 0.0
        %3529 = vmatpush1.xpose.msra.mxu0 0.0
        %3530 = vmatprep.subr.mxu0 0.0
        %3531 = vmatpush1.xpose.msra.mxu0 0.0
        %3532 = vmatprep.subr.mxu0 0.0
        %3533 = vmatpush1.xpose.msra.mxu0 0.0
        %3534 = vmatprep.subr.mxu0 0.0
        %3535 = vmatpush1.xpose.msra.mxu0 0.0
        %3536 = vmatprep.subr.mxu0 0.0
        %3537 = vmatpush1.xpose.msra.mxu0 0.0
        %3538 = vmatprep.subr.mxu0 0.0
        %3539 = vmatpush1.xpose.msra.mxu0 0.0
        %3540 = vmatprep.subr.mxu0 0.0
        %3541 = vmatpush1.xpose.msra.mxu0 %v3508
        %3542 = vmatprep.subr.mxu0 0.0
        %3543 = vmatpush2.xpose.msra.mxu0 0.0
        %3544 = vmatprep.subr.mxu0 0.0
        %3545 = vmatpush2.xpose.msra.mxu0 0.0
        %3546 = vmatprep.subr.mxu0 0.0
        %3547 = vmatpush2.xpose.msra.mxu0 0.0
        %3548 = vmatprep.subr.mxu0 0.0
        %3549 = vmatpush2.xpose.msra.mxu0 0.0
        %3550 = vmatprep.subr.mxu0 0.0
        %3551 = vmatpush2.xpose.msra.mxu0 0.0
        %3552 = vmatprep.subr.mxu0 0.0
        %3553 = vmatpush2.xpose.msra.mxu0 0.0
        %3554 = vmatprep.subr.mxu0 0.0
        %3555 = vmatpush2.xpose.msra.mxu0 0.0
        %3556 = vmatprep.subr.mxu0 0.0
        %3557 = vmatpush2.xpose.msra.mxu0 0.0
        %3558 = vmatprep.subr.mxu0 0.0
        %3559 = vmatpush2.xpose.msra.mxu0 0.0
        %3560 = vmatprep.subr.mxu0 0.0
        %3561 = vmatpush2.xpose.msra.mxu0 0.0
        %3562 = vmatprep.subr.mxu0 0.0
        %3563 = vmatpush2.xpose.msra.mxu0 0.0
        %3564 = vmatprep.subr.mxu0 0.0
        %3565 = vmatpush2.xpose.msra.mxu0 0.0
        %3566 = vmatprep.subr.mxu0 0.0
        %3567 = vmatpush2.xpose.msra.mxu0 0.0
        %3568 = vmatprep.subr.mxu0 0.0
        %3569 = vmatpush2.xpose.msra.mxu0 0.0
        %3570 = vmatprep.subr.mxu0 0.0
        %3571 = vmatpush2.xpose.msra.mxu0 0.0
        %3572 = vmatprep.subr.mxu0 0.0
        %3573 = vmatpush2.xpose.msra.mxu0 0.0
        %3574 = vmatprep.mubr.f32.mxu0 0.0
        %3575 = vmatmul.mubr.f32.gmra.mxu0 %v3502
        %v3576 = vpop.f32.mrf.mxu0
        %v3577 = vadd.f32 0.0, %v3576
        %v3578 = vpop.f32.mrf.mxu0
        %3579 = vmatprep.mubr.f32.mxu0 0.0
        %3580 = vmatmul.mubr.f32.gmra.mxu0 %v3505
        %v3581 = vpop.f32.mrf.mxu0
        %v3582 = vadd.f32 0.0, %v3581
        %v3583 = vpop.f32.mrf.mxu0
        %3584 = vdwg.mxu0
        %v3586 = vlaneseq
        %v3587 = vshrl.u32 %v3586, 7
        %v3588 = vsub.s32 0, %v3587
        %v3589 = vrot.slane %v3367, %v3588
        %3591 = vmatprep.subr.mxu0 0.0
        %3592 = vmatpush1.msra.mxu0 0.0
        %3593 = vmatprep.subr.mxu0 0.0
        %3594 = vmatpush1.msra.mxu0 0.0
        %3595 = vmatprep.subr.mxu0 0.0
        %3596 = vmatpush1.msra.mxu0 0.0
        %3597 = vmatprep.subr.mxu0 0.0
        %3598 = vmatpush1.msra.mxu0 0.0
        %3599 = vmatprep.subr.mxu0 0.0
        %3600 = vmatpush1.msra.mxu0 0.0
        %3601 = vmatprep.subr.mxu0 0.0
        %3602 = vmatpush1.msra.mxu0 0.0
        %3603 = vmatprep.subr.mxu0 0.0
        %3604 = vmatpush1.msra.mxu0 0.0
        %3605 = vmatprep.subr.mxu0 0.0
        %3606 = vmatpush1.msra.mxu0 0.0
        %3607 = vmatprep.subr.mxu0 0.0
        %3608 = vmatpush1.msra.mxu0 %v3365
        %3609 = vmatprep.subr.mxu0 0.0
        %3610 = vmatpush1.msra.mxu0 %v3364
        %3611 = vmatprep.subr.mxu0 0.0
        %3612 = vmatpush1.msra.mxu0 %v3363
        %3613 = vmatprep.subr.mxu0 0.0
        %3614 = vmatpush1.msra.mxu0 %v3362
        %3615 = vmatprep.subr.mxu0 0.0
        %3616 = vmatpush1.msra.mxu0 %v3361
        %3617 = vmatprep.subr.mxu0 0.0
        %3618 = vmatpush1.msra.mxu0 %v3360
        %3619 = vmatprep.subr.mxu0 0.0
        %3620 = vmatpush1.msra.mxu0 %v3359
        %3621 = vmatprep.subr.mxu0 0.0
        %3622 = vmatpush1.msra.mxu0 %v3358
        %3623 = vmatprep.subr.mxu0 0.0
        %3624 = vmatpush2.msra.mxu0 0.0
        %3625 = vmatprep.subr.mxu0 0.0
        %3626 = vmatpush2.msra.mxu0 0.0
        %3627 = vmatprep.subr.mxu0 0.0
        %3628 = vmatpush2.msra.mxu0 0.0
        %3629 = vmatprep.subr.mxu0 0.0
        %3630 = vmatpush2.msra.mxu0 0.0
        %3631 = vmatprep.subr.mxu0 0.0
        %3632 = vmatpush2.msra.mxu0 0.0
        %3633 = vmatprep.subr.mxu0 0.0
        %3634 = vmatpush2.msra.mxu0 0.0
        %3635 = vmatprep.subr.mxu0 0.0
        %3636 = vmatpush2.msra.mxu0 0.0
        %3637 = vmatprep.subr.mxu0 0.0
        %3638 = vmatpush2.msra.mxu0 0.0
        %3639 = vmatprep.subr.mxu0 0.0
        %3640 = vmatpush2.msra.mxu0 0.0
        %3641 = vmatprep.subr.mxu0 0.0
        %3642 = vmatpush2.msra.mxu0 0.0
        %3643 = vmatprep.subr.mxu0 0.0
        %3644 = vmatpush2.msra.mxu0 0.0
        %3645 = vmatprep.subr.mxu0 0.0
        %3646 = vmatpush2.msra.mxu0 0.0
        %3647 = vmatprep.subr.mxu0 0.0
        %3648 = vmatpush2.msra.mxu0 0.0
        %3649 = vmatprep.subr.mxu0 0.0
        %3650 = vmatpush2.msra.mxu0 0.0
        %3651 = vmatprep.subr.mxu0 0.0
        %3652 = vmatpush2.msra.mxu0 0.0
        %3653 = vmatprep.subr.mxu0 0.0
        %3654 = vmatpush2.msra.mxu0 0.0
        %3655 = vmatprep.mubr.f32.mxu0 0.0
        %3656 = vmatmul.mubr.f32.gmra.mxu0 %v3508
        %v3657 = vpop.f32.mrf.mxu0
        %v3658 = vadd.f32 %v3589, %v3657
        %v3659 = vpop.f32.mrf.mxu0
        %3660 = vdwg.mxu0
        %v3661 = vmax.f32 %v3658, 0.0
        %v3662 = vand.u32 2147483647, %v3658
        %v3663 = vsub.f32 0.0, %v3662
        %v3664 = vmul.f32 %v3663, 1.442695
        %v3665 = vpow.pop %v3664
        %v3666 = vadd.f32 %v3665, 1.0
        %v3667 = vlog2.pop %v3666
        %v3668 = vmul.f32 %v3667, 0.6931472
        %v3669 = vmul.f32 -0.5, %v3665
        %v3670 = vadd.f32 %v3669, 1.0
        %v3671 = vmul.f32 %v3670, %v3665
        %v3672 = vand.u32 2147483647, %v3665
        %vm3673 = vcmp.lt.f32.partialorder %v3672, 0.0004427343
        %v3674 = vsel %vm3673, %v3671, %v3668
        %v3675 = vadd.f32 %v3661, %v3674
        %v3676 = vmul.f32 %v3675, %v3500
        %v3677 = vlaneseq
        %v3678 = vshrl.u32 %v3677, 7
        %v3679 = vsub.s32 0, %v3678
        %v3680 = vrot.slane %v3675, %v3679
        %v3681 = vmul.f32 %v3680, %v3372
        %v3682 = vmul.f32 %v3681, 1.442695
        %v3683 = vpow.pop %v3682
        %v3684 = vlaneseq
        %v3685 = vshrl.u32 %v3684, 7
        %v3686 = vsub.s32 1, %v3685
        %v3687 = vrot.slane %v3675, %v3686
        %v3688 = vmul.f32 %v3687, %v3372
        %v3689 = vmul.f32 %v3688, 1.442695
        %v3690 = vpow.pop %v3689
        %v3691 = vlaneseq
        %v3692 = vshrl.u32 %v3691, 7
        %v3693 = vsub.s32 2, %v3692
        %v3694 = vrot.slane %v3675, %v3693
        %v3695 = vmul.f32 %v3694, %v3372
        %v3696 = vmul.f32 %v3695, 1.442695
        %v3697 = vpow.pop %v3696
        %v3698 = vlaneseq
        %v3699 = vshrl.u32 %v3698, 7
        %v3700 = vsub.s32 3, %v3699
        %v3701 = vrot.slane %v3675, %v3700
        %v3702 = vmul.f32 %v3701, %v3372
        %v3703 = vmul.f32 %v3702, 1.442695
        %v3704 = vpow.pop %v3703
        %v3705 = vlaneseq
        %v3706 = vshrl.u32 %v3705, 7
        %v3707 = vsub.s32 4, %v3706
        %v3708 = vrot.slane %v3675, %v3707
        %v3709 = vmul.f32 %v3708, %v3372
        %v3710 = vmul.f32 %v3709, 1.442695
        %v3711 = vpow.pop %v3710
        %v3712 = vlaneseq
        %v3713 = vshrl.u32 %v3712, 7
        %v3714 = vsub.s32 5, %v3713
        %v3715 = vrot.slane %v3675, %v3714
        %v3716 = vmul.f32 %v3715, %v3372
        %v3717 = vmul.f32 %v3716, 1.442695
        %v3718 = vpow.pop %v3717
        %v3719 = vlaneseq
        %v3720 = vshrl.u32 %v3719, 7
        %v3721 = vsub.s32 6, %v3720
        %v3722 = vrot.slane %v3675, %v3721
        %v3723 = vmul.f32 %v3722, %v3372
        %v3724 = vmul.f32 %v3723, 1.442695
        %v3725 = vpow.pop %v3724
        %v3726 = vlaneseq
        %v3727 = vshrl.u32 %v3726, 7
        %v3728 = vsub.s32 7, %v3727
        %v3729 = vrot.slane %v3675, %v3728
        %v3730 = vmul.f32 %v3729, %v3372
        %v3731 = vmul.f32 %v3730, 1.442695
        %v3732 = vpow.pop %v3731
        %v3733 = vlaneseq
        %v3734 = vshrl.u32 %v3733, 7
        %v3735 = vsub.s32 0, %v3734
        %v3736 = vrot.slane %v3676, %v3735
        %3738 = vset.pattern.permute.xlu0 0
        %3739 = vperm.xlu0 %3738, %v3577
        %v3740 = vpop.permute.xlu0 %3739
        %v3742 = vmul.f32 %v3736, %v3740
        %v3743 = vlaneseq
        %v3744 = vshrl.u32 %v3743, 7
        %v3745 = vsub.s32 1, %v3744
        %v3746 = vrot.slane %v3676, %v3745
        %3747 = vset.pattern.permute.xlu0 1
        %3748 = vperm.xlu0 %3747, %v3577
        %v3749 = vpop.permute.xlu0 %3748
        %v3751 = vmul.f32 %v3746, %v3749
        %v3752 = vlaneseq
        %v3753 = vshrl.u32 %v3752, 7
        %v3754 = vsub.s32 2, %v3753
        %v3755 = vrot.slane %v3676, %v3754
        %3756 = vset.pattern.permute.xlu0 2
        %3757 = vperm.xlu0 %3756, %v3577
        %v3758 = vpop.permute.xlu0 %3757
        %v3760 = vmul.f32 %v3755, %v3758
        %v3761 = vlaneseq
        %v3762 = vshrl.u32 %v3761, 7
        %v3763 = vsub.s32 3, %v3762
        %v3764 = vrot.slane %v3676, %v3763
        %3765 = vset.pattern.permute.xlu0 3
        %3766 = vperm.xlu0 %3765, %v3577
        %v3767 = vpop.permute.xlu0 %3766
        %v3769 = vmul.f32 %v3764, %v3767
        %v3770 = vlaneseq
        %v3771 = vshrl.u32 %v3770, 7
        %v3772 = vsub.s32 4, %v3771
        %v3773 = vrot.slane %v3676, %v3772
        %3774 = vset.pattern.permute.xlu0 4
        %3775 = vperm.xlu0 %3774, %v3577
        %v3776 = vpop.permute.xlu0 %3775
        %v3778 = vmul.f32 %v3773, %v3776
        %v3779 = vlaneseq
        %v3780 = vshrl.u32 %v3779, 7
        %v3781 = vsub.s32 5, %v3780
        %v3782 = vrot.slane %v3676, %v3781
        %3783 = vset.pattern.permute.xlu0 5
        %3784 = vperm.xlu0 %3783, %v3577
        %v3785 = vpop.permute.xlu0 %3784
        %v3787 = vmul.f32 %v3782, %v3785
        %v3788 = vlaneseq
        %v3789 = vshrl.u32 %v3788, 7
        %v3790 = vsub.s32 6, %v3789
        %v3791 = vrot.slane %v3676, %v3790
        %3792 = vset.pattern.permute.xlu0 6
        %3793 = vperm.xlu0 %3792, %v3577
        %v3794 = vpop.permute.xlu0 %3793
        %v3796 = vmul.f32 %v3791, %v3794
        %v3797 = vlaneseq
        %v3798 = vshrl.u32 %v3797, 7
        %v3799 = vsub.s32 7, %v3798
        %v3800 = vrot.slane %v3676, %v3799
        %3801 = vset.pattern.permute.xlu0 7
        %3802 = vperm.xlu0 %3801, %v3577
        %v3803 = vpop.permute.xlu0 %3802
        %v3805 = vmul.f32 %v3800, %v3803
        %v3807 = vlaneseq
        %v3808 = vshrl.u32 %v3807, 7
        %v3809 = vsub.s32 0, %v3808
        %v3810 = vrot.slane %v3374, %v3809
        %v3812 = vmul.f32 %v3810, %v3500
        %v3813 = vmul.f32 %v3732, 0.0
        %v3814 = vadd.f32 %v3813, %v3805
        %3816 = vset.pattern.permute.xlu0 7
        %3817 = vperm.xlu0 %3816, %v3582
        %v3818 = vpop.permute.xlu0 %3817
        %v3820 = vmul.f32 %v3814, %v3818
        %v3821 = vsel %vm1279, %v3820, 0.0
        %v3822 = vrot.slane %v3821, 4
        %v3823 = vadd.f32 %v3821, %v3822
        %v3824 = vrot.slane %v3823, 2
        %v3825 = vadd.f32 %v3823, %v3824
        %v3826 = vrot.slane %v3825, 1
        %v3827 = vadd.f32 %v3825, %v3826
        %v3828 = vsel %vm1726, %v3827, 0.0
        %v3829 = vadd.f32 %v3812, %v3828
        %v3830 = vmul.f32 %v3725, %v3814
        %v3831 = vadd.f32 %v3830, %v3796
        %3832 = vset.pattern.permute.xlu0 6
        %3833 = vperm.xlu0 %3832, %v3582
        %v3834 = vpop.permute.xlu0 %3833
        %v3836 = vmul.f32 %v3831, %v3834
        %v3837 = vsel %vm1279, %v3836, 0.0
        %v3838 = vrot.slane %v3837, 4
        %v3839 = vadd.f32 %v3837, %v3838
        %v3840 = vrot.slane %v3839, 2
        %v3841 = vadd.f32 %v3839, %v3840
        %v3842 = vrot.slane %v3841, 1
        %v3843 = vadd.f32 %v3841, %v3842
        %v3844 = vsel %vm1709, %v3843, 0.0
        %v3845 = vadd.f32 %v3829, %v3844
        %v3846 = vmul.f32 %v3718, %v3831
        %v3847 = vadd.f32 %v3846, %v3787
        %3848 = vset.pattern.permute.xlu0 5
        %3849 = vperm.xlu0 %3848, %v3582
        %v3850 = vpop.permute.xlu0 %3849
        %v3852 = vmul.f32 %v3847, %v3850
        %v3853 = vsel %vm1279, %v3852, 0.0
        %v3854 = vrot.slane %v3853, 4
        %v3855 = vadd.f32 %v3853, %v3854
        %v3856 = vrot.slane %v3855, 2
        %v3857 = vadd.f32 %v3855, %v3856
        %v3858 = vrot.slane %v3857, 1
        %v3859 = vadd.f32 %v3857, %v3858
        %v3860 = vsel %vm1692, %v3859, 0.0
        %v3861 = vadd.f32 %v3845, %v3860
        %v3862 = vmul.f32 %v3711, %v3847
        %v3863 = vadd.f32 %v3862, %v3778
        %3864 = vset.pattern.permute.xlu0 4
        %3865 = vperm.xlu0 %3864, %v3582
        %v3866 = vpop.permute.xlu0 %3865
        %v3868 = vmul.f32 %v3863, %v3866
        %v3869 = vsel %vm1279, %v3868, 0.0
        %v3870 = vrot.slane %v3869, 4
        %v3871 = vadd.f32 %v3869, %v3870
        %v3872 = vrot.slane %v3871, 2
        %v3873 = vadd.f32 %v3871, %v3872
        %v3874 = vrot.slane %v3873, 1
        %v3875 = vadd.f32 %v3873, %v3874
        %v3876 = vsel %vm1675, %v3875, 0.0
        %v3877 = vadd.f32 %v3861, %v3876
        %v3878 = vmul.f32 %v3704, %v3863
        %v3879 = vadd.f32 %v3878, %v3769
        %3880 = vset.pattern.permute.xlu0 3
        %3881 = vperm.xlu0 %3880, %v3582
        %v3882 = vpop.permute.xlu0 %3881
        %v3884 = vmul.f32 %v3879, %v3882
        %v3885 = vsel %vm1279, %v3884, 0.0
        %v3886 = vrot.slane %v3885, 4
        %v3887 = vadd.f32 %v3885, %v3886
        %v3888 = vrot.slane %v3887, 2
        %v3889 = vadd.f32 %v3887, %v3888
        %v3890 = vrot.slane %v3889, 1
        %v3891 = vadd.f32 %v3889, %v3890
        %v3892 = vsel %vm1658, %v3891, 0.0
        %v3893 = vadd.f32 %v3877, %v3892
        %v3894 = vmul.f32 %v3697, %v3879
        %v3895 = vadd.f32 %v3894, %v3760
        %3896 = vset.pattern.permute.xlu0 2
        %3897 = vperm.xlu0 %3896, %v3582
        %v3898 = vpop.permute.xlu0 %3897
        %v3900 = vmul.f32 %v3895, %v3898
        %v3901 = vsel %vm1279, %v3900, 0.0
        %v3902 = vrot.slane %v3901, 4
        %v3903 = vadd.f32 %v3901, %v3902
        %v3904 = vrot.slane %v3903, 2
        %v3905 = vadd.f32 %v3903, %v3904
        %v3906 = vrot.slane %v3905, 1
        %v3907 = vadd.f32 %v3905, %v3906
        %v3908 = vsel %vm1641, %v3907, 0.0
        %v3909 = vadd.f32 %v3893, %v3908
        %v3910 = vmul.f32 %v3690, %v3895
        %v3911 = vadd.f32 %v3910, %v3751
        %3912 = vset.pattern.permute.xlu0 1
        %3913 = vperm.xlu0 %3912, %v3582
        %v3914 = vpop.permute.xlu0 %3913
        %v3916 = vmul.f32 %v3911, %v3914
        %v3917 = vsel %vm1279, %v3916, 0.0
        %v3918 = vrot.slane %v3917, 4
        %v3919 = vadd.f32 %v3917, %v3918
        %v3920 = vrot.slane %v3919, 2
        %v3921 = vadd.f32 %v3919, %v3920
        %v3922 = vrot.slane %v3921, 1
        %v3923 = vadd.f32 %v3921, %v3922
        %v3924 = vsel %vm1624, %v3923, 0.0
        %v3925 = vadd.f32 %v3909, %v3924
        %v3926 = vmul.f32 %v3683, %v3911
        %v3927 = vadd.f32 %v3926, %v3742
        %3928 = vset.pattern.permute.xlu0 0
        %3929 = vperm.xlu0 %3928, %v3582
        %v3930 = vpop.permute.xlu0 %3929
        %v3932 = vmul.f32 %v3927, %v3930
        %v3933 = vsel %vm1279, %v3932, 0.0
        %v3934 = vrot.slane %v3933, 4
        %v3935 = vadd.f32 %v3933, %v3934
        %v3936 = vrot.slane %v3935, 2
        %v3937 = vadd.f32 %v3935, %v3936
        %v3938 = vrot.slane %v3937, 1
        %v3939 = vadd.f32 %v3937, %v3938
        %v3940 = vsel %vm1607, %v3939, 0.0
        %v3941 = vadd.f32 %v3925, %v3940
        %v3942 = vxor.u32 %v3451, 2147483648
        %v3943 = vmul.f32 %v3942, 1.442695
        %v3944 = vpow.pop %v3943
        %v3945 = vadd.f32 %v3944, 1.0
        %v3946 = vrcp.pop %v3945
        %v3947 = vmul.f32 1.0, %v3946
        %v3948 = vmul.f32 %v3451, %v3947
        %3950 = vrot.lane.b32.xlu0 %v3948, 64
        %v3951 = vpop.permute.xlu0 %3950
        %v3953 = vmul.f32 %v3941, %v3951
        %v3955 = vsel %vm1279, %v3953, 0
        %3957 = vmatprep.subr.mxu0 0.0
        %3958 = vmatpush1.msra.mxu0 0.0
        %3959 = vmatprep.subr.mxu0 0.0
        %3960 = vmatpush1.msra.mxu0 0.0
        %3961 = vmatprep.subr.mxu0 0.0
        %3962 = vmatpush1.msra.mxu0 0.0
        %3963 = vmatprep.subr.mxu0 0.0
        %3964 = vmatpush1.msra.mxu0 0.0
        %3965 = vmatprep.subr.mxu0 0.0
        %3966 = vmatpush1.msra.mxu0 0.0
        %3967 = vmatprep.subr.mxu0 0.0
        %3968 = vmatpush1.msra.mxu0 0.0
        %3969 = vmatprep.subr.mxu0 0.0
        %3970 = vmatpush1.msra.mxu0 0.0
        %3971 = vmatprep.subr.mxu0 0.0
        %3972 = vmatpush1.msra.mxu0 0.0
        %3973 = vmatprep.subr.mxu0 0.0
        %3974 = vmatpush1.msra.mxu0 %v3383
        %3975 = vmatprep.subr.mxu0 0.0
        %3976 = vmatpush1.msra.mxu0 %v3382
        %3977 = vmatprep.subr.mxu0 0.0
        %3978 = vmatpush1.msra.mxu0 %v3381
        %3979 = vmatprep.subr.mxu0 0.0
        %3980 = vmatpush1.msra.mxu0 %v3380
        %3981 = vmatprep.subr.mxu0 0.0
        %3982 = vmatpush1.msra.mxu0 %v3379
        %3983 = vmatprep.subr.mxu0 0.0
        %3984 = vmatpush1.msra.mxu0 %v3378
        %3985 = vmatprep.subr.mxu0 0.0
        %3986 = vmatpush1.msra.mxu0 %v3377
        %3987 = vmatprep.subr.mxu0 0.0
        %3988 = vmatpush1.msra.mxu0 %v3376
        %3989 = vmatprep.subr.mxu0 0.0
        %3990 = vmatpush2.msra.mxu0 0.0
        %3991 = vmatprep.subr.mxu0 0.0
        %3992 = vmatpush2.msra.mxu0 0.0
        %3993 = vmatprep.subr.mxu0 0.0
        %3994 = vmatpush2.msra.mxu0 0.0
        %3995 = vmatprep.subr.mxu0 0.0
        %3996 = vmatpush2.msra.mxu0 0.0
        %3997 = vmatprep.subr.mxu0 0.0
        %3998 = vmatpush2.msra.mxu0 0.0
        %3999 = vmatprep.subr.mxu0 0.0
        %4000 = vmatpush2.msra.mxu0 0.0
        %4001 = vmatprep.subr.mxu0 0.0
        %4002 = vmatpush2.msra.mxu0 0.0
        %4003 = vmatprep.subr.mxu0 0.0
        %4004 = vmatpush2.msra.mxu0 0.0
        %4005 = vmatprep.subr.mxu0 0.0
        %4006 = vmatpush2.msra.mxu0 0.0
        %4007 = vmatprep.subr.mxu0 0.0
        %4008 = vmatpush2.msra.mxu0 0.0
        %4009 = vmatprep.subr.mxu0 0.0
        %4010 = vmatpush2.msra.mxu0 0.0
        %4011 = vmatprep.subr.mxu0 0.0
        %4012 = vmatpush2.msra.mxu0 0.0
        %4013 = vmatprep.subr.mxu0 0.0
        %4014 = vmatpush2.msra.mxu0 0.0
        %4015 = vmatprep.subr.mxu0 0.0
        %4016 = vmatpush2.msra.mxu0 0.0
        %4017 = vmatprep.subr.mxu0 0.0
        %4018 = vmatpush2.msra.mxu0 0.0
        %4019 = vmatprep.subr.mxu0 0.0
        %4020 = vmatpush2.msra.mxu0 0.0
        %4021 = vmatprep.mubr.f32.mxu0 0.0
        %4022 = vmatmul.mubr.f32.gmra.mxu0 %v3955
        %v4023 = vpop.f32.mrf.mxu0
        %v4024 = vadd.f32 0.0, %v4023
        %v4025 = vpop.f32.mrf.mxu0
        %4026 = vdwg.mxu0
        %v4028 = vsel %vm1279, %v3344, 0
        %4030 = vmatprep.subr.mxu0 0.0
        %4031 = vmatpush1.msra.mxu0 0.0
        %4032 = vmatprep.subr.mxu0 0.0
        %4033 = vmatpush1.msra.mxu0 0.0
        %4034 = vmatprep.subr.mxu0 0.0
        %4035 = vmatpush1.msra.mxu0 0.0
        %4036 = vmatprep.subr.mxu0 0.0
        %4037 = vmatpush1.msra.mxu0 0.0
        %4038 = vmatprep.subr.mxu0 0.0
        %4039 = vmatpush1.msra.mxu0 0.0
        %4040 = vmatprep.subr.mxu0 0.0
        %4041 = vmatpush1.msra.mxu0 0.0
        %4042 = vmatprep.subr.mxu0 0.0
        %4043 = vmatpush1.msra.mxu0 0.0
        %4044 = vmatprep.subr.mxu0 0.0
        %4045 = vmatpush1.msra.mxu0 0.0
        %4046 = vmatprep.subr.mxu0 0.0
        %4047 = vmatpush1.msra.mxu0 %v2771
        %4048 = vmatprep.subr.mxu0 0.0
        %4049 = vmatpush1.msra.mxu0 %v2770
        %4050 = vmatprep.subr.mxu0 0.0
        %4051 = vmatpush1.msra.mxu0 %v2769
        %4052 = vmatprep.subr.mxu0 0.0
        %4053 = vmatpush1.msra.mxu0 %v2768
        %4054 = vmatprep.subr.mxu0 0.0
        %4055 = vmatpush1.msra.mxu0 %v2767
        %4056 = vmatprep.subr.mxu0 0.0
        %4057 = vmatpush1.msra.mxu0 %v2766
        %4058 = vmatprep.subr.mxu0 0.0
        %4059 = vmatpush1.msra.mxu0 %v2765
        %4060 = vmatprep.subr.mxu0 0.0
        %4061 = vmatpush1.msra.mxu0 %v2764
        %4062 = vmatprep.subr.mxu0 0.0
        %4063 = vmatpush2.msra.mxu0 0.0
        %4064 = vmatprep.subr.mxu0 0.0
        %4065 = vmatpush2.msra.mxu0 0.0
        %4066 = vmatprep.subr.mxu0 0.0
        %4067 = vmatpush2.msra.mxu0 0.0
        %4068 = vmatprep.subr.mxu0 0.0
        %4069 = vmatpush2.msra.mxu0 0.0
        %4070 = vmatprep.subr.mxu0 0.0
        %4071 = vmatpush2.msra.mxu0 0.0
        %4072 = vmatprep.subr.mxu0 0.0
        %4073 = vmatpush2.msra.mxu0 0.0
        %4074 = vmatprep.subr.mxu0 0.0
        %4075 = vmatpush2.msra.mxu0 0.0
        %4076 = vmatprep.subr.mxu0 0.0
        %4077 = vmatpush2.msra.mxu0 0.0
        %4078 = vmatprep.subr.mxu0 0.0
        %4079 = vmatpush2.msra.mxu0 0.0
        %4080 = vmatprep.subr.mxu0 0.0
        %4081 = vmatpush2.msra.mxu0 0.0
        %4082 = vmatprep.subr.mxu0 0.0
        %4083 = vmatpush2.msra.mxu0 0.0
        %4084 = vmatprep.subr.mxu0 0.0
        %4085 = vmatpush2.msra.mxu0 0.0
        %4086 = vmatprep.subr.mxu0 0.0
        %4087 = vmatpush2.msra.mxu0 0.0
        %4088 = vmatprep.subr.mxu0 0.0
        %4089 = vmatpush2.msra.mxu0 0.0
        %4090 = vmatprep.subr.mxu0 0.0
        %4091 = vmatpush2.msra.mxu0 0.0
        %4092 = vmatprep.subr.mxu0 0.0
        %4093 = vmatpush2.msra.mxu0 0.0
        %4094 = vmatprep.mubr.f32.mxu0 0.0
        %4095 = vmatmul.mubr.f32.gmra.mxu0 %v4028
        %v4096 = vpop.f32.mrf.mxu0
        %v4097 = vadd.f32 %v4024, %v4096
        %v4098 = vpop.f32.mrf.mxu0
        %4099 = vdwg.mxu0
        %v4100 = vadd.f32 %v2732, %v4097
        %s4101 = scalar_lea.vmem [#allocation16], 1
        %v4102 = vld [vmem:[%s4101] sm:$0x1]
        %s4103 = scalar_lea.vmem [#allocation18], 1
        %v4104 = vld [vmem:[%s4103] sm:$0x1]
        %v4105 = vsel %vm1155, %v4100, 0.0
        %4106 = vadd.xlane.f32.xlu0 %v4105
        %v4107 = vpop.xlane.xlu0 %4106
        %v4108 = vmul.f32 %v4107, %v2505
        %v4109 = vsub.f32 %v4100, %v4108
        %v4110 = vmul.f32 %v4109, %v4109
        %v4111 = vsel %vm1155, %v4110, 0.0
        %4112 = vadd.xlane.f32.xlu0 %v4111
        %v4113 = vpop.xlane.xlu0 %4112
        %v4114 = vmul.f32 %v4113, %v2505
        %v4115 = vadd.f32 %v4114, 1e-05
        %v4116 = vrsqrt.pop %v4115
        %v4117 = vmul.f32 %v4109, %v4116
        %v4119 = vlaneseq
        %v4120 = vshrl.u32 %v4119, 7
        %v4121 = vsub.s32 0, %v4120
        %v4122 = vrot.slane %v4102, %v4121
        %v4124 = vmul.f32 %v4117, %v4122
        %v4126 = vlaneseq
        %v4127 = vshrl.u32 %v4126, 7
        %v4128 = vsub.s32 0, %v4127
        %v4129 = vrot.slane %v4104, %v4128
        %v4131 = vadd.f32 %v4124, %v4129
        %s4132 = scalar_lea.vmem %s20, 32
        %v4133 = vld [vmem:[%s4132] sm:$0xff]
        %v4134 = vld [vmem:[%s4132 + $0x8] sm:$0xff]
        %v4135 = vld [vmem:[%s4132 + $0x10] sm:$0xff]
        %v4136 = vld [vmem:[%s4132 + $0x18] sm:$0xff]
        %s4137 = scalar_lea.vmem [#allocation19], 1
        %v4138 = vld [vmem:[%s4137] sm:$0x1]
        %v4140 = vlaneseq
        %v4141 = vshrl.u32 %v4140, 7
        %v4142 = vsub.s32 0, %v4141
        %v4143 = vrot.slane %v4138, %v4142
        %v4146 = vsel %vm1155, %v4131, 0
        %4148 = vmatprep.subr.mxu0 0.0
        %4149 = vmatpush1.msra.mxu0 0.0
        %4150 = vmatprep.subr.mxu0 0.0
        %4151 = vmatpush1.msra.mxu0 0.0
        %4152 = vmatprep.subr.mxu0 0.0
        %4153 = vmatpush1.msra.mxu0 0.0
        %4154 = vmatprep.subr.mxu0 0.0
        %4155 = vmatpush1.msra.mxu0 0.0
        %4156 = vmatprep.subr.mxu0 0.0
        %4157 = vmatpush1.msra.mxu0 0.0
        %4158 = vmatprep.subr.mxu0 0.0
        %4159 = vmatpush1.msra.mxu0 0.0
        %4160 = vmatprep.subr.mxu0 0.0
        %4161 = vmatpush1.msra.mxu0 0.0
        %4162 = vmatprep.subr.mxu0 0.0
        %4163 = vmatpush1.msra.mxu0 0.0
        %4164 = vmatprep.subr.mxu0 0.0
        %4165 = vmatpush1.msra.mxu0 0.0
        %4166 = vmatprep.subr.mxu0 0.0
        %4167 = vmatpush1.msra.mxu0 0.0
        %4168 = vmatprep.subr.mxu0 0.0
        %4169 = vmatpush1.msra.mxu0 0.0
        %4170 = vmatprep.subr.mxu0 0.0
        %4171 = vmatpush1.msra.mxu0 0.0
        %4172 = vmatprep.subr.mxu0 0.0
        %4173 = vmatpush1.msra.mxu0 %v4136
        %4174 = vmatprep.subr.mxu0 0.0
        %4175 = vmatpush1.msra.mxu0 %v4135
        %4176 = vmatprep.subr.mxu0 0.0
        %4177 = vmatpush1.msra.mxu0 %v4134
        %4178 = vmatprep.subr.mxu0 0.0
        %4179 = vmatpush1.msra.mxu0 %v4133
        %4180 = vmatprep.subr.mxu0 0.0
        %4181 = vmatpush2.msra.mxu0 0.0
        %4182 = vmatprep.subr.mxu0 0.0
        %4183 = vmatpush2.msra.mxu0 0.0
        %4184 = vmatprep.subr.mxu0 0.0
        %4185 = vmatpush2.msra.mxu0 0.0
        %4186 = vmatprep.subr.mxu0 0.0
        %4187 = vmatpush2.msra.mxu0 0.0
        %4188 = vmatprep.subr.mxu0 0.0
        %4189 = vmatpush2.msra.mxu0 0.0
        %4190 = vmatprep.subr.mxu0 0.0
        %4191 = vmatpush2.msra.mxu0 0.0
        %4192 = vmatprep.subr.mxu0 0.0
        %4193 = vmatpush2.msra.mxu0 0.0
        %4194 = vmatprep.subr.mxu0 0.0
        %4195 = vmatpush2.msra.mxu0 0.0
        %4196 = vmatprep.subr.mxu0 0.0
        %4197 = vmatpush2.msra.mxu0 0.0
        %4198 = vmatprep.subr.mxu0 0.0
        %4199 = vmatpush2.msra.mxu0 0.0
        %4200 = vmatprep.subr.mxu0 0.0
        %4201 = vmatpush2.msra.mxu0 0.0
        %4202 = vmatprep.subr.mxu0 0.0
        %4203 = vmatpush2.msra.mxu0 0.0
        %4204 = vmatprep.subr.mxu0 0.0
        %4205 = vmatpush2.msra.mxu0 0.0
        %4206 = vmatprep.subr.mxu0 0.0
        %4207 = vmatpush2.msra.mxu0 0.0
        %4208 = vmatprep.subr.mxu0 0.0
        %4209 = vmatpush2.msra.mxu0 0.0
        %4210 = vmatprep.subr.mxu0 0.0
        %4211 = vmatpush2.msra.mxu0 0.0
        %4212 = vmatprep.mubr.f32.mxu0 0.0
        %4213 = vmatmul.mubr.f32.gmra.mxu0 %v4146
        %v4214 = vpop.f32.mrf.mxu0
        %v4215 = vadd.f32 %v4143, %v4214
        %v4216 = vpop.f32.mrf.mxu0
        %4217 = vdwg.mxu0
        %v4218 = vmax.f32 %v4215, 0.0
        %s4219 = scalar_lea.vmem %s22, 64
        %v4220 = vld [vmem:[%s4219] sm:$0xff]
        %v4221 = vld [vmem:[%s4219 + $0x8] sm:$0xff]
        %v4222 = vld [vmem:[%s4219 + $0x10] sm:$0xff]
        %v4223 = vld [vmem:[%s4219 + $0x18] sm:$0xff]
        %v4224 = vld [vmem:[%s4219 + $0x20] sm:$0xff]
        %v4225 = vld [vmem:[%s4219 + $0x28] sm:$0xff]
        %v4226 = vld [vmem:[%s4219 + $0x30] sm:$0xff]
        %v4227 = vld [vmem:[%s4219 + $0x38] sm:$0xff]
        %s4228 = scalar_lea.vmem [#allocation21], 1
        %v4229 = vld [vmem:[%s4228] sm:$0x1]
        %v4231 = vlaneseq
        %v4232 = vshrl.u32 %v4231, 7
        %v4233 = vsub.s32 0, %v4232
        %v4234 = vrot.slane %v4229, %v4233
        %v4237 = vsel %vm1279, %v4218, 0
        %4239 = vmatprep.subr.mxu0 0.0
        %4240 = vmatpush1.msra.mxu0 0.0
        %4241 = vmatprep.subr.mxu0 0.0
        %4242 = vmatpush1.msra.mxu0 0.0
        %4243 = vmatprep.subr.mxu0 0.0
        %4244 = vmatpush1.msra.mxu0 0.0
        %4245 = vmatprep.subr.mxu0 0.0
        %4246 = vmatpush1.msra.mxu0 0.0
        %4247 = vmatprep.subr.mxu0 0.0
        %4248 = vmatpush1.msra.mxu0 0.0
        %4249 = vmatprep.subr.mxu0 0.0
        %4250 = vmatpush1.msra.mxu0 0.0
        %4251 = vmatprep.subr.mxu0 0.0
        %4252 = vmatpush1.msra.mxu0 0.0
        %4253 = vmatprep.subr.mxu0 0.0
        %4254 = vmatpush1.msra.mxu0 0.0
        %4255 = vmatprep.subr.mxu0 0.0
        %4256 = vmatpush1.msra.mxu0 %v4227
        %4257 = vmatprep.subr.mxu0 0.0
        %4258 = vmatpush1.msra.mxu0 %v4226
        %4259 = vmatprep.subr.mxu0 0.0
        %4260 = vmatpush1.msra.mxu0 %v4225
        %4261 = vmatprep.subr.mxu0 0.0
        %4262 = vmatpush1.msra.mxu0 %v4224
        %4263 = vmatprep.subr.mxu0 0.0
        %4264 = vmatpush1.msra.mxu0 %v4223
        %4265 = vmatprep.subr.mxu0 0.0
        %4266 = vmatpush1.msra.mxu0 %v4222
        %4267 = vmatprep.subr.mxu0 0.0
        %4268 = vmatpush1.msra.mxu0 %v4221
        %4269 = vmatprep.subr.mxu0 0.0
        %4270 = vmatpush1.msra.mxu0 %v4220
        %4271 = vmatprep.subr.mxu0 0.0
        %4272 = vmatpush2.msra.mxu0 0.0
        %4273 = vmatprep.subr.mxu0 0.0
        %4274 = vmatpush2.msra.mxu0 0.0
        %4275 = vmatprep.subr.mxu0 0.0
        %4276 = vmatpush2.msra.mxu0 0.0
        %4277 = vmatprep.subr.mxu0 0.0
        %4278 = vmatpush2.msra.mxu0 0.0
        %4279 = vmatprep.subr.mxu0 0.0
        %4280 = vmatpush2.msra.mxu0 0.0
        %4281 = vmatprep.subr.mxu0 0.0
        %4282 = vmatpush2.msra.mxu0 0.0
        %4283 = vmatprep.subr.mxu0 0.0
        %4284 = vmatpush2.msra.mxu0 0.0
        %4285 = vmatprep.subr.mxu0 0.0
        %4286 = vmatpush2.msra.mxu0 0.0
        %4287 = vmatprep.subr.mxu0 0.0
        %4288 = vmatpush2.msra.mxu0 0.0
        %4289 = vmatprep.subr.mxu0 0.0
        %4290 = vmatpush2.msra.mxu0 0.0
        %4291 = vmatprep.subr.mxu0 0.0
        %4292 = vmatpush2.msra.mxu0 0.0
        %4293 = vmatprep.subr.mxu0 0.0
        %4294 = vmatpush2.msra.mxu0 0.0
        %4295 = vmatprep.subr.mxu0 0.0
        %4296 = vmatpush2.msra.mxu0 0.0
        %4297 = vmatprep.subr.mxu0 0.0
        %4298 = vmatpush2.msra.mxu0 0.0
        %4299 = vmatprep.subr.mxu0 0.0
        %4300 = vmatpush2.msra.mxu0 0.0
        %4301 = vmatprep.subr.mxu0 0.0
        %4302 = vmatpush2.msra.mxu0 0.0
        %4303 = vmatprep.mubr.f32.mxu0 0.0
        %4304 = vmatmul.mubr.f32.gmra.mxu0 %v4237
        %v4305 = vpop.f32.mrf.mxu0
        %v4306 = vadd.f32 %v4234, %v4305
        %v4307 = vpop.f32.mrf.mxu0
        %4308 = vdwg.mxu0
        %v4309 = vadd.f32 %v4131, %v4306
        %s4310 = scalar_lea.vmem [#allocation22], 1
        %v4311 = vld [vmem:[%s4310] sm:$0x1]
        %s4312 = scalar_lea.vmem [#allocation24], 1
        %v4313 = vld [vmem:[%s4312] sm:$0x1]
        %v4314 = vsel %vm1155, %v4309, 0.0
        %4315 = vadd.xlane.f32.xlu0 %v4314
        %v4316 = vpop.xlane.xlu0 %4315
        %v4317 = vmul.f32 %v4316, %v2505
        %v4318 = vsub.f32 %v4309, %v4317
        %v4319 = vmul.f32 %v4318, %v4318
        %v4320 = vsel %vm1155, %v4319, 0.0
        %4321 = vadd.xlane.f32.xlu0 %v4320
        %v4322 = vpop.xlane.xlu0 %4321
        %v4323 = vmul.f32 %v4322, %v2505
        %v4324 = vadd.f32 %v4323, 1e-05
        %v4325 = vrsqrt.pop %v4324
        %v4326 = vmul.f32 %v4318, %v4325
        %v4328 = vlaneseq
        %v4329 = vshrl.u32 %v4328, 7
        %v4330 = vsub.s32 0, %v4329
        %v4331 = vrot.slane %v4311, %v4330
        %v4333 = vmul.f32 %v4326, %v4331
        %v4335 = vlaneseq
        %v4336 = vshrl.u32 %v4335, 7
        %v4337 = vsub.s32 0, %v4336
        %v4338 = vrot.slane %v4313, %v4337
        %v4340 = vadd.f32 %v4333, %v4338
        %v4341 = vld [vmem:[#allocation4] sm:$0x1]
        %v4342 = vld [vmem:[#allocation6] sm:$0x1]
        %v4343 = vsel %vm1155, %v4340, 0.0
        %4344 = vadd.xlane.f32.xlu0 %v4343
        %v4345 = vpop.xlane.xlu0 %4344
        %v4346 = vmul.f32 %v4345, %v2505
        %v4347 = vsub.f32 %v4340, %v4346
        %v4348 = vmul.f32 %v4347, %v4347
        %v4349 = vsel %vm1155, %v4348, 0.0
        %4350 = vadd.xlane.f32.xlu0 %v4349
        %v4351 = vpop.xlane.xlu0 %4350
        %v4352 = vmul.f32 %v4351, %v2505
        %v4353 = vadd.f32 %v4352, 1e-05
        %v4354 = vrsqrt.pop %v4353
        %v4355 = vmul.f32 %v4347, %v4354
        %v4357 = vlaneseq
        %v4358 = vshrl.u32 %v4357, 7
        %v4359 = vsub.s32 0, %v4358
        %v4360 = vrot.slane %v4341, %v4359
        %v4362 = vmul.f32 %v4355, %v4360
        %v4364 = vlaneseq
        %v4365 = vshrl.u32 %v4364, 7
        %v4366 = vsub.s32 0, %v4365
        %v4367 = vrot.slane %v4342, %v4366
        %v4369 = vadd.f32 %v4362, %v4367
        %v4370 = vld [vmem:[%s7] sm:$0xff]
        %v4371 = vld [vmem:[%s7 + $0x8] sm:$0xff]
        %v4372 = vld [vmem:[%s7 + $0x10] sm:$0xff]
        %v4373 = vld [vmem:[%s7 + $0x18] sm:$0xff]
        %v4374 = vld [vmem:[#allocation7] sm:$0x1]
        %v4376 = vlaneseq
        %v4377 = vshrl.u32 %v4376, 7
        %v4378 = vsub.s32 0, %v4377
        %v4379 = vrot.slane %v4374, %v4378
        %v4382 = vsel %vm1155, %v4369, 0
        %4384 = vmatprep.subr.mxu0 0.0
        %4385 = vmatpush1.msra.mxu0 0.0
        %4386 = vmatprep.subr.mxu0 0.0
        %4387 = vmatpush1.msra.mxu0 0.0
        %4388 = vmatprep.subr.mxu0 0.0
        %4389 = vmatpush1.msra.mxu0 0.0
        %4390 = vmatprep.subr.mxu0 0.0
        %4391 = vmatpush1.msra.mxu0 0.0
        %4392 = vmatprep.subr.mxu0 0.0
        %4393 = vmatpush1.msra.mxu0 0.0
        %4394 = vmatprep.subr.mxu0 0.0
        %4395 = vmatpush1.msra.mxu0 0.0
        %4396 = vmatprep.subr.mxu0 0.0
        %4397 = vmatpush1.msra.mxu0 0.0
        %4398 = vmatprep.subr.mxu0 0.0
        %4399 = vmatpush1.msra.mxu0 0.0
        %4400 = vmatprep.subr.mxu0 0.0
        %4401 = vmatpush1.msra.mxu0 0.0
        %4402 = vmatprep.subr.mxu0 0.0
        %4403 = vmatpush1.msra.mxu0 0.0
        %4404 = vmatprep.subr.mxu0 0.0
        %4405 = vmatpush1.msra.mxu0 0.0
        %4406 = vmatprep.subr.mxu0 0.0
        %4407 = vmatpush1.msra.mxu0 0.0
        %4408 = vmatprep.subr.mxu0 0.0
        %4409 = vmatpush1.msra.mxu0 %v4373
        %4410 = vmatprep.subr.mxu0 0.0
        %4411 = vmatpush1.msra.mxu0 %v4372
        %4412 = vmatprep.subr.mxu0 0.0
        %4413 = vmatpush1.msra.mxu0 %v4371
        %4414 = vmatprep.subr.mxu0 0.0
        %4415 = vmatpush1.msra.mxu0 %v4370
        %4416 = vmatprep.subr.mxu0 0.0
        %4417 = vmatpush2.msra.mxu0 0.0
        %4418 = vmatprep.subr.mxu0 0.0
        %4419 = vmatpush2.msra.mxu0 0.0
        %4420 = vmatprep.subr.mxu0 0.0
        %4421 = vmatpush2.msra.mxu0 0.0
        %4422 = vmatprep.subr.mxu0 0.0
        %4423 = vmatpush2.msra.mxu0 0.0
        %4424 = vmatprep.subr.mxu0 0.0
        %4425 = vmatpush2.msra.mxu0 0.0
        %4426 = vmatprep.subr.mxu0 0.0
        %4427 = vmatpush2.msra.mxu0 0.0
        %4428 = vmatprep.subr.mxu0 0.0
        %4429 = vmatpush2.msra.mxu0 0.0
        %4430 = vmatprep.subr.mxu0 0.0
        %4431 = vmatpush2.msra.mxu0 0.0
        %4432 = vmatprep.subr.mxu0 0.0
        %4433 = vmatpush2.msra.mxu0 0.0
        %4434 = vmatprep.subr.mxu0 0.0
        %4435 = vmatpush2.msra.mxu0 0.0
        %4436 = vmatprep.subr.mxu0 0.0
        %4437 = vmatpush2.msra.mxu0 0.0
        %4438 = vmatprep.subr.mxu0 0.0
        %4439 = vmatpush2.msra.mxu0 0.0
        %4440 = vmatprep.subr.mxu0 0.0
        %4441 = vmatpush2.msra.mxu0 0.0
        %4442 = vmatprep.subr.mxu0 0.0
        %4443 = vmatpush2.msra.mxu0 0.0
        %4444 = vmatprep.subr.mxu0 0.0
        %4445 = vmatpush2.msra.mxu0 0.0
        %4446 = vmatprep.subr.mxu0 0.0
        %4447 = vmatpush2.msra.mxu0 0.0
        %4448 = vmatprep.mubr.f32.mxu0 0.0
        %4449 = vmatmul.mubr.f32.gmra.mxu0 %v4382
        %v4450 = vpop.f32.mrf.mxu0
        %v4451 = vadd.f32 %v4379, %v4450
        %v4452 = vpop.f32.mrf.mxu0
        %4453 = vdwg.mxu0
        %v4454 = vsub.f32 %v4451, %v1038
        %v4455 = vadd.f32 %v1027, 1e-10
        %4457 = vset.pattern.permute.xlu0 0
        %4458 = vperm.xlu0 %4457, %v4455
        %v4459 = vpop.permute.xlu0 %4458
        %v4461 = vrcp.pop %v4459
        %v4462 = vmul.f32 %v4454, %v4461
        %v4463 = vmul.f32 %v4462, %v1024
        %v4464 = vadd.f32 %v4463, %v1010
        %vm4465 = vcmask 64512
        %4466 = vst.msk [vmem:[%s1003] sm:$0xff] %vm4465, %v4464
        %p4467 = scmp.lt.s32.totalorder %s47, 1
        %s4468 = scalar_select %p4467, %s47, 1
        %s4469 = smul.addr %s4468, 8
        %s4470 = scalar_lea.vmem %s26, %s4469
        // Predicated region
        $region185: #{sdmamba_forward.1} parent=123 // pred_check
          %p4471 = pneg %p616
        $region186: #{sdmamba_forward.1} parent=123 // pred_check_branch
          %4473 = sbr.rel (%p4471) target = $region188
        $region187: #{sdmamba_forward.1} parent=123 // pred_region
          _
        $region188: #{sdmamba_forward.1} parent=123 // pred_fallthru
          _
      $region124: #{sdmamba_forward.1} parent=5 // pred_fallthru
        _
      %p4474 = scmp.le.s32.totalorder 2, %s42
      // Predicated region
      $region189: #{sdmamba_forward.1} parent=5 // pred_check
        %p4475 = pneg %p4474
      $region190: #{sdmamba_forward.1} parent=5 // pred_check_branch
        %4477 = sbr.rel (%p4475) target = $region192
      $region191: #{sdmamba_forward.1} parent=5 // pred_region
        %s4478 = ssub.s32 %s42, 2
        // Predicated region
        $region193: #{sdmamba_forward.1} parent=191 // pred_check
          %p4479 = pneg %p622
        $region194: #{sdmamba_forward.1} parent=191 // pred_check_branch
          %4481 = sbr.rel (%p4479) target = $region196
        $region195: #{sdmamba_forward.1} parent=191 // pred_region
          %p4482 = scmp.lt.s32.totalorder %s48, 1
          %s4483 = scalar_select %p4482, %s48, 1
          %s4484 = smul.addr %s4483, 8
          %s4485 = scalar_lea.vmem %s26, %s4484
        $region196: #{sdmamba_forward.1} parent=191 // pred_fallthru
          _
      $region192: #{sdmamba_forward.1} parent=5 // pred_fallthru
        _
    $region6: #{sdmamba_forward.1} parent=1 // loop_footer
      %s46 = sadd.s32 1, %s42
    $region7: #{sdmamba_forward.1} parent=1 // loop_footer_branch
      %41 = sbr.rel target = $region3
    $region8: #{sdmamba_forward.1} parent=1 // loop_exit
      _
    %4486 = vsyncpa [#allocation3], 1
    %s4487 = scalar_lea.sflag [#allocation3], 1
    %4488 = vsyncpa %s4487, 1
    %4489 = vsyncpa [#allocation5], 1
    %4490 = vsyncpa [#allocation8], 1
    %4491 = vsyncpa [#allocation11], 1
    %4492 = vsyncpa [#allocation14], 1
    %4493 = vsyncpa [#allocation17], 1
    %4494 = vsyncpa [#allocation20], 1
    %4495 = vsyncpa [#allocation23], 1

</llo_original>
